<compile_context>
chip_gen: v5e
topology: v5e:2x2
jax: 0.10.0
libtpu: 0.0.40
codegen_flags: <defaults>
</compile_context>

<pallas_src>
import functools

import jax
import jax.numpy as jnp
from jax.experimental import pallas as pl
from jax.experimental.pallas import tpu as pltpu


_VMEM_LIMIT = 64 * 1024 * 1024  # sized against v7x's 64 MiB VMEM (plenty of headroom here)


def _row_tiles(M, target=256):
    """Pick a row tile (multiple of 8, or the full extent) and grid size."""
    if M <= target:
        return M, 1
    return target, pl.cdiv(M, target)


# ----------------------------------------------------------------------------
# Pallas kernels
# ----------------------------------------------------------------------------

def _gn_projin_kernel(x_ref, g_ref, b_ref, sel_ref, selT_ref, w_ref, wb_ref,
                      o_ref, *, n_per_group, eps):
    # GroupNorm (per-sample, per-group over HW x group-channels) fused with the
    # 1x1-conv proj_in (a per-pixel linear).  Group reductions / broadcasts are
    # expressed as tiny matmuls against a one-hot selector to avoid awkward
    # in-kernel reshapes.
    x = x_ref[0].astype(jnp.float32)                              # (HW, C)
    sel = sel_ref[...].astype(jnp.float32)                        # (C, G)
    selT = selT_ref[...].astype(jnp.float32)                      # (G, C)

    ch_sum = jnp.sum(x, axis=0, keepdims=True)                    # (1, C)
    g_mean = jnp.dot(ch_sum, sel,
                     preferred_element_type=jnp.float32) / n_per_group   # (1, G)
    mean_c = jnp.dot(g_mean, selT, preferred_element_type=jnp.float32)   # (1, C)

    d = x - mean_c
    ch_sq = jnp.sum(d * d, axis=0, keepdims=True)                 # (1, C)
    g_var = jnp.dot(ch_sq, sel,
                    preferred_element_type=jnp.float32) / n_per_group    # (1, G)
    rstd_c = jnp.dot(jax.lax.rsqrt(g_var + eps), selT,
                     preferred_element_type=jnp.float32)                  # (1, C)

    xn = d * rstd_c * g_ref[...] + b_ref[...]
    y = jnp.dot(xn.astype(jnp.bfloat16), w_ref[...].astype(jnp.bfloat16),
                preferred_element_type=jnp.float32) + wb_ref[...]
    o_ref[0] = y.astype(o_ref.dtype)


def _ln_linear_kernel(x_ref, g_ref, b_ref, w_ref, wb_ref, o_ref, *, eps):
    # LayerNorm (eps=1e-5, biased var) fused into the following GEMM.
    x = x_ref[...].astype(jnp.float32)                            # (TM, Din)
    mean = jnp.mean(x, axis=-1, keepdims=True)
    xc = x - mean
    var = jnp.mean(xc * xc, axis=-1, keepdims=True)
    xn = xc * jax.lax.rsqrt(var + eps) * g_ref[...] + b_ref[...]
    y = jnp.dot(xn.astype(jnp.bfloat16), w_ref[...].astype(jnp.bfloat16),
                preferred_element_type=jnp.float32) + wb_ref[...]
    o_ref[...] = y.astype(o_ref.dtype)


def _linear_res_kernel(x_ref, w_ref, b_ref, r_ref, o_ref):
    # y = x @ w + b + residual   (residual add fused into the GEMM epilogue)
    y = jnp.dot(x_ref[...].astype(jnp.bfloat16), w_ref[...].astype(jnp.bfloat16),
                preferred_element_type=jnp.float32) + b_ref[...]
    o_ref[...] = (y + r_ref[...].astype(jnp.float32)).astype(o_ref.dtype)


def _ln_ffn_kernel(h_ref, g_ref, b_ref, wx_ref, bx_ref, wg_ref, bg_ref,
                   wo_ref, bo_ref, o_ref, *, eps):
    # LayerNorm -> Linear(dim, 2*ffi) (split into x/gate slabs) -> GEGLU ->
    # Linear(ffi, dim) -> +residual, all in one pass so the wide (TM, 2*ffi)
    # intermediate never touches HBM.
    h = h_ref[...].astype(jnp.float32)                            # (TM, D)
    mean = jnp.mean(h, axis=-1, keepdims=True)
    hc = h - mean
    var = jnp.mean(hc * hc, axis=-1, keepdims=True)
    xn = hc * jax.lax.rsqrt(var + eps) * g_ref[...] + b_ref[...]
    xb = xn.astype(jnp.bfloat16)

    hx = jnp.dot(xb, wx_ref[...].astype(jnp.bfloat16),
                 preferred_element_type=jnp.float32) + bx_ref[...]
    hg = jnp.dot(xb, wg_ref[...].astype(jnp.bfloat16),
                 preferred_element_type=jnp.float32) + bg_ref[...]
    # TODO(synk): PyTorch F.gelu is erf-based; tanh-approx GELU used for robust Mosaic lowering.
    gated = hx * jax.nn.gelu(hg, approximate=True)

    y = jnp.dot(gated.astype(jnp.bfloat16), wo_ref[...].astype(jnp.bfloat16),
                preferred_element_type=jnp.float32) + bo_ref[...]
    o_ref[...] = (y + h).astype(o_ref.dtype)


def _attention_kernel(q_ref, k_ref, v_ref, o_ref, *, scale):
    # One batch item, all heads at once (head-batched blocks amortize the
    # per-grid-step overhead and keep the MXU busier than 1-head tiles).
    # TODO(synk): switch to flash-style K/V tiling (online softmax) for long T.
    q = (q_ref[0].astype(jnp.float32) * scale).astype(jnp.bfloat16)   # (H, T, Dh)
    k = k_ref[0].astype(jnp.bfloat16)
    v = v_ref[0].astype(jnp.bfloat16)

    sim = jnp.einsum('hqd,hkd->hqk', q, k,
                     preferred_element_type=jnp.float32)               # (H, T, T)
    sim = sim - jnp.max(sim, axis=-1, keepdims=True)
    p = jnp.exp(sim)
    denom = jnp.sum(p, axis=-1, keepdims=True)
    p = p * pl.reciprocal(denom, approx=True)

    o = jnp.einsum('hqk,hkd->hqd', p.astype(jnp.bfloat16), v,
                   preferred_element_type=jnp.float32)
    o_ref[0] = o.astype(o_ref.dtype)


# ----------------------------------------------------------------------------
# pallas_call wrappers
# ----------------------------------------------------------------------------

def _cparams():
    return pltpu.CompilerParams(dimension_semantics=("parallel",),
                                vmem_limit_bytes=_VMEM_LIMIT)


def groupnorm_proj_in(x_bhwc, gamma, beta, w, b, *, num_groups, eps=1e-6):
    B, HW, C = x_bhwc.shape
    assert C % num_groups == 0
    G = num_groups
    gs = C // G
    inner = w.shape[1]
    sel = (jnp.arange(C)[:, None] // gs == jnp.arange(G)[None, :]).astype(jnp.float32)
    selT = sel.T
    kern = functools.partial(_gn_projin_kernel, n_per_group=float(HW * gs), eps=eps)
    # TODO(synk): for very large H*W, split the spatial axis with a two-pass group-stat kernel.
    return pl.pallas_call(
        kern,
        out_shape=jax.ShapeDtypeStruct((B, HW, inner), x_bhwc.dtype),
        grid=(B,),
        in_specs=[
            pl.BlockSpec((1, HW, C), lambda i: (i, 0, 0)),
            pl.BlockSpec((1, C), lambda i: (0, 0)),
            pl.BlockSpec((1, C), lambda i: (0, 0)),
            pl.BlockSpec((C, G), lambda i: (0, 0)),
            pl.BlockSpec((G, C), lambda i: (0, 0)),
            pl.BlockSpec((C, inner), lambda i: (0, 0)),
            pl.BlockSpec((1, inner), lambda i: (0, 0)),
        ],
        out_specs=pl.BlockSpec((1, HW, inner), lambda i: (i, 0, 0)),
        compiler_params=_cparams(),
    )(x_bhwc, gamma.reshape(1, C), beta.reshape(1, C), sel, selT,
      w, b.reshape(1, inner))


def ln_linear(x2d, gamma, beta, w, b, *, eps=1e-5):
    M, Din = x2d.shape
    Dout = w.shape[1]
    tm, nt = _row_tiles(M)
    kern = functools.partial(_ln_linear_kernel, eps=eps)
    return pl.pallas_call(
        kern,
        out_shape=jax.ShapeDtypeStruct((M, Dout), x2d.dtype),
        grid=(nt,),
        in_specs=[
            pl.BlockSpec((tm, Din), lambda i: (i, 0)),
            pl.BlockSpec((1, Din), lambda i: (0, 0)),
            pl.BlockSpec((1, Din), lambda i: (0, 0)),
            pl.BlockSpec((Din, Dout), lambda i: (0, 0)),
            pl.BlockSpec((1, Dout), lambda i: (0, 0)),
        ],
        out_specs=pl.BlockSpec((tm, Dout), lambda i: (i, 0)),
        compiler_params=_cparams(),
    )(x2d, gamma.reshape(1, Din), beta.reshape(1, Din), w, b.reshape(1, Dout))


def linear_residual(x2d, w, b, res2d):
    M, Din = x2d.shape
    Dout = w.shape[1]
    tm, nt = _row_tiles(M)
    return pl.pallas_call(
        _linear_res_kernel,
        out_shape=jax.ShapeDtypeStruct((M, Dout), res2d.dtype),
        grid=(nt,),
        in_specs=[
            pl.BlockSpec((tm, Din), lambda i: (i, 0)),
            pl.BlockSpec((Din, Dout), lambda i: (0, 0)),
            pl.BlockSpec((1, Dout), lambda i: (0, 0)),
            pl.BlockSpec((tm, Dout), lambda i: (i, 0)),
        ],
        out_specs=pl.BlockSpec((tm, Dout), lambda i: (i, 0)),
        compiler_params=_cparams(),
    )(x2d, w, b.reshape(1, Dout), res2d)


def ln_ffn(h2d, gamma, beta, wx, bx, wg, bg, wo, bo, *, eps=1e-5):
    M, D = h2d.shape
    F = wx.shape[1]
    tm, nt = _row_tiles(M)
    kern = functools.partial(_ln_ffn_kernel, eps=eps)
    return pl.pallas_call(
        kern,
        out_shape=jax.ShapeDtypeStruct((M, D), h2d.dtype),
        grid=(nt,),
        in_specs=[
            pl.BlockSpec((tm, D), lambda i: (i, 0)),
            pl.BlockSpec((1, D), lambda i: (0, 0)),
            pl.BlockSpec((1, D), lambda i: (0, 0)),
            pl.BlockSpec((D, F), lambda i: (0, 0)),
            pl.BlockSpec((1, F), lambda i: (0, 0)),
            pl.BlockSpec((D, F), lambda i: (0, 0)),
            pl.BlockSpec((1, F), lambda i: (0, 0)),
            pl.BlockSpec((F, D), lambda i: (0, 0)),
            pl.BlockSpec((1, D), lambda i: (0, 0)),
        ],
        out_specs=pl.BlockSpec((tm, D), lambda i: (i, 0)),
        compiler_params=_cparams(),
    )(h2d, gamma.reshape(1, D), beta.reshape(1, D),
      wx, bx.reshape(1, F), wg, bg.reshape(1, F), wo, bo.reshape(1, D))


def attention(q, k, v, scale):
    B, H, T, D = q.shape
    kern = functools.partial(_attention_kernel, scale=scale)
    spec = pl.BlockSpec((1, H, T, D), lambda b: (b, 0, 0, 0))
    return pl.pallas_call(
        kern,
        out_shape=jax.ShapeDtypeStruct((B, H, T, D), q.dtype),
        grid=(B,),
        in_specs=[spec, spec, spec],
        out_specs=spec,
        compiler_params=_cparams(),
    )(q, k, v)


# ----------------------------------------------------------------------------
# Parameter init (deterministic, synthetic) and forward pass
# ----------------------------------------------------------------------------

def init_params(key, in_channels, n_heads, d_head, depth, ff_mult=4):
    inner = n_heads * d_head
    ffi = inner * ff_mult
    keys = iter(jax.random.split(key, 8 + 16 * depth))

    def nrm(shape, s=0.05):
        return jax.random.normal(next(keys), shape, jnp.float32) * s

    params = {
        # SpatialTransformer.norm  (GroupNorm over in_channels, eps=1e-6, affine)
        "gn_g": jnp.ones((in_channels,), jnp.float32),
        "gn_b": jnp.zeros((in_channels,), jnp.float32),
        # proj_in : Conv2d(in_channels, inner, 1)  -> stored as (Cin, Cout)
        "proj_in_w": nrm((in_channels, inner)),
        "proj_in_b": nrm((inner,)),
        # proj_out: Conv2d(inner, in_channels, 1).
        # NOTE: the reference zero-initializes this (zero_module); small random
        # weights are used here so the transformer path contributes numerically.
        "proj_out_w": nrm((inner, in_channels), s=0.02),
        "proj_out_b": jnp.zeros((in_channels,), jnp.float32),
        "blocks": [],
    }
    for _ in range(depth):
        params["blocks"].append({
            "norm1_g": jnp.ones((inner,), jnp.float32),
            "norm1_b": jnp.zeros((inner,), jnp.float32),
            "norm2_g": jnp.ones((inner,), jnp.float32),
            "norm2_b": jnp.zeros((inner,), jnp.float32),
            "norm3_g": jnp.ones((inner,), jnp.float32),
            "norm3_b": jnp.zeros((inner,), jnp.float32),
            # attn1 (self-attn): to_q|to_k|to_v fused as one (inner, 3*inner) GEMM (bias-free)
            "attn1_wqkv": nrm((inner, 3 * inner)),
            "attn1_bqkv": jnp.zeros((3 * inner,), jnp.float32),
            "attn1_out_w": nrm((inner, inner)),
            "attn1_out_b": nrm((inner,)),
            # attn2 (context=None -> self-attn on norm2(x))
            "attn2_wqkv": nrm((inner, 3 * inner)),
            "attn2_bqkv": jnp.zeros((3 * inner,), jnp.float32),
            "attn2_out_w": nrm((inner, inner)),
            "attn2_out_b": nrm((inner,)),
            # FeedForward GEGLU: Linear(inner, 2*ffi) split into x/gate slabs, Linear(ffi, inner)
            "ff_in_wx": nrm((inner, ffi)),
            "ff_in_bx": nrm((ffi,)),
            "ff_in_wg": nrm((inner, ffi)),
            "ff_in_bg": nrm((ffi,)),
            "ff_out_w": nrm((ffi, inner)),
            "ff_out_b": nrm((inner,)),
        })
    return params


def spatial_transformer_forward(x, params, *, n_heads, d_head, num_groups):
    """x: (B, C, H, W) float32. Mirrors SpatialTransformer.forward (dims=2,
    context=None, dropout=0.0, causal=False, vanilla attention)."""
    B, C, H, W = x.shape
    inner = n_heads * d_head
    T = H * W
    scale = d_head ** (-0.5)

    # 'b c h w -> b (h w) c' (channels-last rows)
    x_cl = jnp.transpose(x, (0, 2, 3, 1)).reshape(B, T, C)

    # GroupNorm + proj_in (1x1 conv == per-pixel linear), fused
    h = groupnorm_proj_in(x_cl, params["gn_g"], params["gn_b"],
                          params["proj_in_w"], params["proj_in_b"],
                          num_groups=num_groups)                    # (B, T, inner)
    h = h.reshape(B * T, inner)

    def split_heads(t2d):
        # 'b n (h d) -> b h n d'
        return t2d.reshape(B, T, n_heads, d_head).transpose(0, 2, 1, 3)

    def merge_heads(t4d):
        # 'b h n d -> (b n) (h d)'
        return t4d.transpose(0, 2, 1, 3).reshape(B * T, inner)

    for blk in params["blocks"]:
        # ---- x = attn1(norm1(x)) + x  (LN + fused QKV; residual fused into to_out) ----
        qkv = ln_linear(h, blk["norm1_g"], blk["norm1_b"],
                        blk["attn1_wqkv"], blk["attn1_bqkv"])
        q, k, v = jnp.split(qkv, 3, axis=-1)
        o = attention(split_heads(q), split_heads(k), split_heads(v), scale)
        h = linear_residual(merge_heads(o), blk["attn1_out_w"], blk["attn1_out_b"], h)

        # ---- x = attn2(norm2(x), context=None) + x ----
        qkv = ln_linear(h, blk["norm2_g"], blk["norm2_b"],
                        blk["attn2_wqkv"], blk["attn2_bqkv"])
        q, k, v = jnp.split(qkv, 3, axis=-1)
        o = attention(split_heads(q), split_heads(k), split_heads(v), scale)
        h = linear_residual(merge_heads(o), blk["attn2_out_w"], blk["attn2_out_b"], h)

        # ---- x = ff(norm3(x)) + x  (LN + GEGLU FF + residual, single kernel) ----
        h = ln_ffn(h, blk["norm3_g"], blk["norm3_b"],
                   blk["ff_in_wx"], blk["ff_in_bx"],
                   blk["ff_in_wg"], blk["ff_in_bg"],
                   blk["ff_out_w"], blk["ff_out_b"])

    # proj_out (1x1 conv) + final image residual (x + x_in), fused
    out2d = linear_residual(h, params["proj_out_w"], params["proj_out_b"],
                            x_cl.reshape(B * T, C))
    # 'b (h w) c -> b c h w'
    return out2d.reshape(B, H, W, C).transpose(0, 3, 1, 2)


if __name__ == "__main__":
    B, C, H, W = 2, 8, 16, 16            # batch, in_channels, spatial
    n_heads, d_head, depth = 2, 32, 1    # inner_dim = 64
    num_groups = 4                       # GroupNorm groups (must divide C)

    key = jax.random.PRNGKey(0)
    kx, kp = jax.random.split(key)
    x = jax.random.normal(kx, (B, C, H, W), jnp.float32)
    params = init_params(kp, C, n_heads, d_head, depth)

    fwd = jax.jit(functools.partial(spatial_transformer_forward,
                                    n_heads=n_heads, d_head=d_head,
                                    num_groups=num_groups))
    y = fwd(x, params)
    jax.block_until_ready(y)
    assert y.shape == (B, C, H, W) and y.dtype == jnp.float32
    assert bool(jnp.all(jnp.isfinite(y)))
    print("KERNEL_OK")
</pallas_src>

<mosaic_0001>
module attributes {stable_mosaic.version = 11 : i64} {
  func.func @_ln_linear_kernel(%arg0: i32, %arg1: memref<256x64xf32, #tpu.memory_space<vmem>>, %arg2: memref<1x64xf32, #tpu.memory_space<vmem>>, %arg3: memref<1x64xf32, #tpu.memory_space<vmem>>, %arg4: memref<64x192xf32, #tpu.memory_space<vmem>>, %arg5: memref<1x192xf32, #tpu.memory_space<vmem>>, %arg6: memref<256x192xf32, #tpu.memory_space<vmem>>) attributes {dimension_semantics = [#tpu.dimension_semantics<parallel>], iteration_bounds = array<i64: 2>, scalar_prefetch = 0 : i64, scratch_operands = 0 : i64, tpu.core_type = #tpu.core_type<tc>, window_params = [{transform_indices = @transform_0, window_bounds = array<i64: 256, 64>}, {pipeline_mode = #tpu.pipeline_mode<synchronous>, transform_indices = @transform_1, window_bounds = array<i64: 1, 64>}, {pipeline_mode = #tpu.pipeline_mode<synchronous>, transform_indices = @transform_2, window_bounds = array<i64: 1, 64>}, {pipeline_mode = #tpu.pipeline_mode<synchronous>, transform_indices = @transform_3, window_bounds = array<i64: 64, 192>}, {pipeline_mode = #tpu.pipeline_mode<synchronous>, transform_indices = @transform_4, window_bounds = array<i64: 1, 192>}, {transform_indices = @transform_5, window_bounds = array<i64: 256, 192>}]} {
    %c0 = arith.constant 0 : index
    %c0_0 = arith.constant 0 : index
    %0 = vector.load %arg1[%c0, %c0_0] : memref<256x64xf32, #tpu.memory_space<vmem>>, vector<256x64xf32>
    %cst = arith.constant dense<0.000000e+00> : vector<256xf32>
    %1 = vector.multi_reduction <add>, %0, %cst [1] : vector<256x64xf32> to vector<256xf32>
    %2 = vector.shape_cast %1 : vector<256xf32> to vector<256x1xf32>
    %cst_1 = arith.constant 6.400000e+01 : f32
    %3 = vector.broadcast %cst_1 : f32 to vector<256x1xf32>
    %4 = arith.divf %2, %3 : vector<256x1xf32>
    %5 = vector.broadcast %4 : vector<256x1xf32> to vector<256x64xf32>
    %6 = arith.subf %0, %5 : vector<256x64xf32>
    %7 = arith.mulf %6, %6 : vector<256x64xf32>
    %cst_2 = arith.constant dense<0.000000e+00> : vector<256xf32>
    %8 = vector.multi_reduction <add>, %7, %cst_2 [1] : vector<256x64xf32> to vector<256xf32>
    %9 = vector.shape_cast %8 : vector<256xf32> to vector<256x1xf32>
    %cst_3 = arith.constant 6.400000e+01 : f32
    %10 = vector.broadcast %cst_3 : f32 to vector<256x1xf32>
    %11 = arith.divf %9, %10 : vector<256x1xf32>
    %cst_4 = arith.constant 9.99999974E-6 : f32
    %12 = vector.broadcast %cst_4 : f32 to vector<256x1xf32>
    %13 = arith.addf %11, %12 : vector<256x1xf32>
    %14 = math.rsqrt %13 : vector<256x1xf32>
    %15 = vector.broadcast %14 : vector<256x1xf32> to vector<256x64xf32>
    %16 = arith.mulf %6, %15 : vector<256x64xf32>
    %c0_5 = arith.constant 0 : index
    %c0_6 = arith.constant 0 : index
    %17 = vector.load %arg2[%c0_5, %c0_6] : memref<1x64xf32, #tpu.memory_space<vmem>>, vector<1x64xf32>
    %18 = vector.broadcast %17 : vector<1x64xf32> to vector<256x64xf32>
    %19 = arith.mulf %16, %18 : vector<256x64xf32>
    %c0_7 = arith.constant 0 : index
    %c0_8 = arith.constant 0 : index
    %20 = vector.load %arg3[%c0_7, %c0_8] : memref<1x64xf32, #tpu.memory_space<vmem>>, vector<1x64xf32>
    %21 = vector.broadcast %20 : vector<1x64xf32> to vector<256x64xf32>
    %22 = arith.addf %19, %21 : vector<256x64xf32>
    %23 = arith.truncf %22 : vector<256x64xf32> to vector<256x64xbf16>
    %c0_9 = arith.constant 0 : index
    %c0_10 = arith.constant 0 : index
    %24 = vector.load %arg4[%c0_9, %c0_10] : memref<64x192xf32, #tpu.memory_space<vmem>>, vector<64x192xf32>
    %25 = arith.truncf %24 : vector<64x192xf32> to vector<64x192xbf16>
    %cst_11 = arith.constant dense<0.000000e+00> : vector<256x192xf32>
    %26 = tpu.matmul %23, %25, %cst_11 {dimension_numbers = #tpu.dot_dimension_numbers<[1], [0], [0], [1], [0, 0, 1, 1], [], []>} : vector<256x64xbf16>, vector<64x192xbf16>, vector<256x192xf32> -> vector<256x192xf32>
    %c0_12 = arith.constant 0 : index
    %c0_13 = arith.constant 0 : index
    %27 = vector.load %arg5[%c0_12, %c0_13] : memref<1x192xf32, #tpu.memory_space<vmem>>, vector<1x192xf32>
    %28 = vector.broadcast %27 : vector<1x192xf32> to vector<256x192xf32>
    %29 = arith.addf %26, %28 : vector<256x192xf32>
    %c0_14 = arith.constant 0 : index
    %c0_15 = arith.constant 0 : index
    %30 = vector.load %arg6[%c0_14, %c0_15] : memref<256x192xf32, #tpu.memory_space<vmem>>, vector<256x192xf32>
    tpu.vector_store %arg6[%c0_14, %c0_15], %29 {strides = array<i32>} : memref<256x192xf32, #tpu.memory_space<vmem>>, vector<256x192xf32>,
    return
  }
  func.func @transform_0(%arg0: i32) -> (i32, i32) {
    %c0_i32 = arith.constant 0 : i32
    %c0_i32_0 = arith.constant 0 : i32
    return %arg0, %c0_i32 : i32, i32
  }
  func.func @transform_1(%arg0: i32) -> (i32, i32) {
    %c0_i32 = arith.constant 0 : i32
    %c0_i32_0 = arith.constant 0 : i32
    %c0_i32_1 = arith.constant 0 : i32
    return %c0_i32, %c0_i32_0 : i32, i32
  }
  func.func @transform_2(%arg0: i32) -> (i32, i32) {
    %c0_i32 = arith.constant 0 : i32
    %c0_i32_0 = arith.constant 0 : i32
    %c0_i32_1 = arith.constant 0 : i32
    return %c0_i32, %c0_i32_0 : i32, i32
  }
  func.func @transform_3(%arg0: i32) -> (i32, i32) {
    %c0_i32 = arith.constant 0 : i32
    %c0_i32_0 = arith.constant 0 : i32
    %c0_i32_1 = arith.constant 0 : i32
    return %c0_i32, %c0_i32_0 : i32, i32
  }
  func.func @transform_4(%arg0: i32) -> (i32, i32) {
    %c0_i32 = arith.constant 0 : i32
    %c0_i32_0 = arith.constant 0 : i32
    %c0_i32_1 = arith.constant 0 : i32
    return %c0_i32, %c0_i32_0 : i32, i32
  }
  func.func @transform_5(%arg0: i32) -> (i32, i32) {
    %c0_i32 = arith.constant 0 : i32
    %c0_i32_0 = arith.constant 0 : i32
    return %arg0, %c0_i32 : i32, i32
  }
}

module attributes {stable_mosaic.version = 11 : i64} {
  func.func @_gn_projin_kernel(%arg0: i32, %arg1: memref<1x256x8xf32, #tpu.memory_space<vmem>>, %arg2: memref<1x8xf32, #tpu.memory_space<vmem>>, %arg3: memref<1x8xf32, #tpu.memory_space<vmem>>, %arg4: memref<8x4xf32, #tpu.memory_space<vmem>>, %arg5: memref<4x8xf32, #tpu.memory_space<vmem>>, %arg6: memref<8x64xf32, #tpu.memory_space<vmem>>, %arg7: memref<1x64xf32, #tpu.memory_space<vmem>>, %arg8: memref<1x256x64xf32, #tpu.memory_space<vmem>>) attributes {dimension_semantics = [#tpu.dimension_semantics<parallel>], iteration_bounds = array<i64: 2>, scalar_prefetch = 0 : i64, scratch_operands = 0 : i64, tpu.core_type = #tpu.core_type<tc>, window_params = [{transform_indices = @transform_0, window_bounds = array<i64: 1, 256, 8>}, {pipeline_mode = #tpu.pipeline_mode<synchronous>, transform_indices = @transform_1, window_bounds = array<i64: 1, 8>}, {pipeline_mode = #tpu.pipeline_mode<synchronous>, transform_indices = @transform_2, window_bounds = array<i64: 1, 8>}, {pipeline_mode = #tpu.pipeline_mode<synchronous>, transform_indices = @transform_3, window_bounds = array<i64: 8, 4>}, {pipeline_mode = #tpu.pipeline_mode<synchronous>, transform_indices = @transform_4, window_bounds = array<i64: 4, 8>}, {pipeline_mode = #tpu.pipeline_mode<synchronous>, transform_indices = @transform_5, window_bounds = array<i64: 8, 64>}, {pipeline_mode = #tpu.pipeline_mode<synchronous>, transform_indices = @transform_6, window_bounds = array<i64: 1, 64>}, {transform_indices = @transform_7, window_bounds = array<i64: 1, 256, 64>}]} {
    %c0 = arith.constant 0 : index
    %c0_0 = arith.constant 0 : index
    %c0_1 = arith.constant 0 : index
    %0 = vector.load %arg1[%c0, %c0_0, %c0_1] : memref<1x256x8xf32, #tpu.memory_space<vmem>>, vector<1x256x8xf32>
    %1 = vector.shape_cast %0 : vector<1x256x8xf32> to vector<256x8xf32>
    %c0_2 = arith.constant 0 : index
    %c0_3 = arith.constant 0 : index
    %2 = vector.load %arg4[%c0_2, %c0_3] : memref<8x4xf32, #tpu.memory_space<vmem>>, vector<8x4xf32>
    %c0_4 = arith.constant 0 : index
    %c0_5 = arith.constant 0 : index
    %3 = vector.load %arg5[%c0_4, %c0_5] : memref<4x8xf32, #tpu.memory_space<vmem>>, vector<4x8xf32>
    %cst = arith.constant dense<0.000000e+00> : vector<8xf32>
    %4 = vector.multi_reduction <add>, %1, %cst [0] : vector<256x8xf32> to vector<8xf32>
    %5 = vector.shape_cast %4 : vector<8xf32> to vector<1x8xf32>
    %cst_6 = arith.constant dense<0.000000e+00> : vector<1x4xf32>
    %6 = tpu.matmul %5, %2, %cst_6 {dimension_numbers = #tpu.dot_dimension_numbers<[1], [0], [0], [1], [0, 0, 1, 1], [], []>} : vector<1x8xf32>, vector<8x4xf32>, vector<1x4xf32> -> vector<1x4xf32>
    %cst_7 = arith.constant 5.120000e+02 : f32
    %7 = vector.broadcast %cst_7 : f32 to vector<1x4xf32>
    %8 = arith.divf %6, %7 : vector<1x4xf32>
    %cst_8 = arith.constant dense<0.000000e+00> : vector<1x8xf32>
    %9 = tpu.matmul %8, %3, %cst_8 {dimension_numbers = #tpu.dot_dimension_numbers<[1], [0], [0], [1], [0, 0, 1, 1], [], []>} : vector<1x4xf32>, vector<4x8xf32>, vector<1x8xf32> -> vector<1x8xf32>
    %10 = vector.broadcast %9 : vector<1x8xf32> to vector<256x8xf32>
    %11 = arith.subf %1, %10 : vector<256x8xf32>
    %12 = arith.mulf %11, %11 : vector<256x8xf32>
    %cst_9 = arith.constant dense<0.000000e+00> : vector<8xf32>
    %13 = vector.multi_reduction <add>, %12, %cst_9 [0] : vector<256x8xf32> to vector<8xf32>
    %14 = vector.shape_cast %13 : vector<8xf32> to vector<1x8xf32>
    %cst_10 = arith.constant dense<0.000000e+00> : vector<1x4xf32>
    %15 = tpu.matmul %14, %2, %cst_10 {dimension_numbers = #tpu.dot_dimension_numbers<[1], [0], [0], [1], [0, 0, 1, 1], [], []>} : vector<1x8xf32>, vector<8x4xf32>, vector<1x4xf32> -> vector<1x4xf32>
    %cst_11 = arith.constant 5.120000e+02 : f32
    %16 = vector.broadcast %cst_11 : f32 to vector<1x4xf32>
    %17 = arith.divf %15, %16 : vector<1x4xf32>
    %cst_12 = arith.constant 9.99999997E-7 : f32
    %18 = vector.broadcast %cst_12 : f32 to vector<1x4xf32>
    %19 = arith.addf %17, %18 : vector<1x4xf32>
    %20 = math.rsqrt %19 : vector<1x4xf32>
    %cst_13 = arith.constant dense<0.000000e+00> : vector<1x8xf32>
    %21 = tpu.matmul %20, %3, %cst_13 {dimension_numbers = #tpu.dot_dimension_numbers<[1], [0], [0], [1], [0, 0, 1, 1], [], []>} : vector<1x4xf32>, vector<4x8xf32>, vector<1x8xf32> -> vector<1x8xf32>
    %22 = vector.broadcast %21 : vector<1x8xf32> to vector<256x8xf32>
    %23 = arith.mulf %11, %22 : vector<256x8xf32>
    %c0_14 = arith.constant 0 : index
    %c0_15 = arith.constant 0 : index
    %24 = vector.load %arg2[%c0_14, %c0_15] : memref<1x8xf32, #tpu.memory_space<vmem>>, vector<1x8xf32>
    %25 = vector.broadcast %24 : vector<1x8xf32> to vector<256x8xf32>
    %26 = arith.mulf %23, %25 : vector<256x8xf32>
    %c0_16 = arith.constant 0 : index
    %c0_17 = arith.constant 0 : index
    %27 = vector.load %arg3[%c0_16, %c0_17] : memref<1x8xf32, #tpu.memory_space<vmem>>, vector<1x8xf32>
    %28 = vector.broadcast %27 : vector<1x8xf32> to vector<256x8xf32>
    %29 = arith.addf %26, %28 : vector<256x8xf32>
    %30 = arith.truncf %29 : vector<256x8xf32> to vector<256x8xbf16>
    %c0_18 = arith.constant 0 : index
    %c0_19 = arith.constant 0 : index
    %31 = vector.load %arg6[%c0_18, %c0_19] : memref<8x64xf32, #tpu.memory_space<vmem>>, vector<8x64xf32>
    %32 = arith.truncf %31 : vector<8x64xf32> to vector<8x64xbf16>
    %cst_20 = arith.constant dense<0.000000e+00> : vector<256x64xf32>
    %33 = tpu.matmul %30, %32, %cst_20 {dimension_numbers = #tpu.dot_dimension_numbers<[1], [0], [0], [1], [0, 0, 1, 1], [], []>} : vector<256x8xbf16>, vector<8x64xbf16>, vector<256x64xf32> -> vector<256x64xf32>
    %c0_21 = arith.constant 0 : index
    %c0_22 = arith.constant 0 : index
    %34 = vector.load %arg7[%c0_21, %c0_22] : memref<1x64xf32, #tpu.memory_space<vmem>>, vector<1x64xf32>
    %35 = vector.broadcast %34 : vector<1x64xf32> to vector<256x64xf32>
    %36 = arith.addf %33, %35 : vector<256x64xf32>
    %c0_23 = arith.constant 0 : index
    %c0_24 = arith.constant 0 : index
    %c0_25 = arith.constant 0 : index
    %37 = vector.load %arg8[%c0_23, %c0_24, %c0_25] : memref<1x256x64xf32, #tpu.memory_space<vmem>>, vector<1x256x64xf32>
    %38 = vector.shape_cast %37 : vector<1x256x64xf32> to vector<256x64xf32>
    %39 = vector.shape_cast %36 : vector<256x64xf32> to vector<1x256x64xf32>
    tpu.vector_store %arg8[%c0_23, %c0_24, %c0_25], %39 {strides = array<i32>} : memref<1x256x64xf32, #tpu.memory_space<vmem>>, vector<1x256x64xf32>,
    return
  }
  func.func @transform_0(%arg0: i32) -> (i32, i32, i32) {
    %c0_i32 = arith.constant 0 : i32
    %c0_i32_0 = arith.constant 0 : i32
    %c0_i32_1 = arith.constant 0 : i32
    return %arg0, %c0_i32, %c0_i32_0 : i32, i32, i32
  }
  func.func @transform_1(%arg0: i32) -> (i32, i32) {
    %c0_i32 = arith.constant 0 : i32
    %c0_i32_0 = arith.constant 0 : i32
    %c0_i32_1 = arith.constant 0 : i32
    return %c0_i32, %c0_i32_0 : i32, i32
  }
  func.func @transform_2(%arg0: i32) -> (i32, i32) {
    %c0_i32 = arith.constant 0 : i32
    %c0_i32_0 = arith.constant 0 : i32
    %c0_i32_1 = arith.constant 0 : i32
    return %c0_i32, %c0_i32_0 : i32, i32
  }
  func.func @transform_3(%arg0: i32) -> (i32, i32) {
    %c0_i32 = arith.constant 0 : i32
    %c0_i32_0 = arith.constant 0 : i32
    %c0_i32_1 = arith.constant 0 : i32
    return %c0_i32, %c0_i32_0 : i32, i32
  }
  func.func @transform_4(%arg0: i32) -> (i32, i32) {
    %c0_i32 = arith.constant 0 : i32
    %c0_i32_0 = arith.constant 0 : i32
    %c0_i32_1 = arith.constant 0 : i32
    return %c0_i32, %c0_i32_0 : i32, i32
  }
  func.func @transform_5(%arg0: i32) -> (i32, i32) {
    %c0_i32 = arith.constant 0 : i32
    %c0_i32_0 = arith.constant 0 : i32
    %c0_i32_1 = arith.constant 0 : i32
    return %c0_i32, %c0_i32_0 : i32, i32
  }
  func.func @transform_6(%arg0: i32) -> (i32, i32) {
    %c0_i32 = arith.constant 0 : i32
    %c0_i32_0 = arith.constant 0 : i32
    %c0_i32_1 = arith.constant 0 : i32
    return %c0_i32, %c0_i32_0 : i32, i32
  }
  func.func @transform_7(%arg0: i32) -> (i32, i32, i32) {
    %c0_i32 = arith.constant 0 : i32
    %c0_i32_0 = arith.constant 0 : i32
    %c0_i32_1 = arith.constant 0 : i32
    return %arg0, %c0_i32, %c0_i32_0 : i32, i32, i32
  }
}

module attributes {stable_mosaic.version = 11 : i64} {
  func.func @_attention_kernel(%arg0: i32, %arg1: memref<1x2x256x32xf32, #tpu.memory_space<vmem>>, %arg2: memref<1x2x256x32xf32, #tpu.memory_space<vmem>>, %arg3: memref<1x2x256x32xf32, #tpu.memory_space<vmem>>, %arg4: memref<1x2x256x32xf32, #tpu.memory_space<vmem>>) attributes {dimension_semantics = [#tpu.dimension_semantics<parallel>], iteration_bounds = array<i64: 2>, scalar_prefetch = 0 : i64, scratch_operands = 0 : i64, tpu.core_type = #tpu.core_type<tc>, window_params = [{transform_indices = @transform_0, window_bounds = array<i64: 1, 2, 256, 32>}, {transform_indices = @transform_1, window_bounds = array<i64: 1, 2, 256, 32>}, {transform_indices = @transform_2, window_bounds = array<i64: 1, 2, 256, 32>}, {transform_indices = @transform_3, window_bounds = array<i64: 1, 2, 256, 32>}]} {
    %c0 = arith.constant 0 : index
    %c0_0 = arith.constant 0 : index
    %c0_1 = arith.constant 0 : index
    %c0_2 = arith.constant 0 : index
    %0 = vector.load %arg1[%c0, %c0_0, %c0_1, %c0_2] : memref<1x2x256x32xf32, #tpu.memory_space<vmem>>, vector<1x2x256x32xf32>
    %1 = vector.shape_cast %0 : vector<1x2x256x32xf32> to vector<2x256x32xf32>
    %cst = arith.constant 0.176776692 : f32
    %2 = vector.broadcast %cst : f32 to vector<2x256x32xf32>
    %3 = arith.mulf %1, %2 : vector<2x256x32xf32>
    %4 = arith.truncf %3 : vector<2x256x32xf32> to vector<2x256x32xbf16>
    %c0_3 = arith.constant 0 : index
    %c0_4 = arith.constant 0 : index
    %c0_5 = arith.constant 0 : index
    %c0_6 = arith.constant 0 : index
    %5 = vector.load %arg2[%c0_3, %c0_4, %c0_5, %c0_6] : memref<1x2x256x32xf32, #tpu.memory_space<vmem>>, vector<1x2x256x32xf32>
    %6 = vector.shape_cast %5 : vector<1x2x256x32xf32> to vector<2x256x32xf32>
    %7 = arith.truncf %6 : vector<2x256x32xf32> to vector<2x256x32xbf16>
    %c0_7 = arith.constant 0 : index
    %c0_8 = arith.constant 0 : index
    %c0_9 = arith.constant 0 : index
    %c0_10 = arith.constant 0 : index
    %8 = vector.load %arg3[%c0_7, %c0_8, %c0_9, %c0_10] : memref<1x2x256x32xf32, #tpu.memory_space<vmem>>, vector<1x2x256x32xf32>
    %9 = vector.shape_cast %8 : vector<1x2x256x32xf32> to vector<2x256x32xf32>
    %10 = arith.truncf %9 : vector<2x256x32xf32> to vector<2x256x32xbf16>
    "tpu.trace_start"() <{level = 10 : i32, message = "hqd,hkd->hqk"}> : () -> ()
    %cst_11 = arith.constant dense<0.000000e+00> : vector<2x256x256xf32>
    %11 = tpu.matmul %4, %7, %cst_11 {dimension_numbers = #tpu.dot_dimension_numbers<[2], [2], [1], [1], [0, 0, 0, 1, 1, 1], [0], [0]>} : vector<2x256x32xbf16>, vector<2x256x32xbf16>, vector<2x256x256xf32> -> vector<2x256x256xf32>
    "tpu.trace_stop"() : () -> ()
    %cst_12 = arith.constant dense<0xFF800000> : vector<2x256xf32>
    %12 = vector.multi_reduction <maximumf>, %11, %cst_12 [2] : vector<2x256x256xf32> to vector<2x256xf32>
    %13 = vector.shape_cast %12 : vector<2x256xf32> to vector<2x256x1xf32>
    %14 = vector.broadcast %13 : vector<2x256x1xf32> to vector<2x256x256xf32>
    %15 = arith.subf %11, %14 : vector<2x256x256xf32>
    %16 = math.exp %15 : vector<2x256x256xf32>
    %cst_13 = arith.constant dense<0.000000e+00> : vector<2x256xf32>
    %17 = vector.multi_reduction <add>, %16, %cst_13 [2] : vector<2x256x256xf32> to vector<2x256xf32>
    %18 = vector.shape_cast %17 : vector<2x256xf32> to vector<2x256x1xf32>
    %19 = tpu.reciprocal %18 {approx = true} : vector<2x256x1xf32> -> vector<2x256x1xf32>
    %20 = vector.broadcast %19 : vector<2x256x1xf32> to vector<2x256x256xf32>
    %21 = arith.mulf %16, %20 : vector<2x256x256xf32>
    %22 = arith.truncf %21 : vector<2x256x256xf32> to vector<2x256x256xbf16>
    "tpu.trace_start"() <{level = 10 : i32, message = "hqk,hkd->hqd"}> : () -> ()
    %cst_14 = arith.constant dense<0.000000e+00> : vector<2x256x32xf32>
    %23 = tpu.matmul %22, %10, %cst_14 {dimension_numbers = #tpu.dot_dimension_numbers<[2], [1], [1], [2], [0, 0, 0, 1, 1, 2], [0], [0]>} : vector<2x256x256xbf16>, vector<2x256x32xbf16>, vector<2x256x32xf32> -> vector<2x256x32xf32>
    "tpu.trace_stop"() : () -> ()
    %c0_15 = arith.constant 0 : index
    %c0_16 = arith.constant 0 : index
    %c0_17 = arith.constant 0 : index
    %c0_18 = arith.constant 0 : index
    %24 = vector.load %arg4[%c0_15, %c0_16, %c0_17, %c0_18] : memref<1x2x256x32xf32, #tpu.memory_space<vmem>>, vector<1x2x256x32xf32>
    %25 = vector.shape_cast %24 : vector<1x2x256x32xf32> to vector<2x256x32xf32>
    %26 = vector.shape_cast %23 : vector<2x256x32xf32> to vector<1x2x256x32xf32>
    tpu.vector_store %arg4[%c0_15, %c0_16, %c0_17, %c0_18], %26 {strides = array<i32>} : memref<1x2x256x32xf32, #tpu.memory_space<vmem>>, vector<1x2x256x32xf32>,
    return
  }
  func.func @transform_0(%arg0: i32) -> (i32, i32, i32, i32) {
    %c0_i32 = arith.constant 0 : i32
    %c0_i32_0 = arith.constant 0 : i32
    %c0_i32_1 = arith.constant 0 : i32
    %c0_i32_2 = arith.constant 0 : i32
    return %arg0, %c0_i32, %c0_i32_0, %c0_i32_1 : i32, i32, i32, i32
  }
  func.func @transform_1(%arg0: i32) -> (i32, i32, i32, i32) {
    %c0_i32 = arith.constant 0 : i32
    %c0_i32_0 = arith.constant 0 : i32
    %c0_i32_1 = arith.constant 0 : i32
    %c0_i32_2 = arith.constant 0 : i32
    return %arg0, %c0_i32, %c0_i32_0, %c0_i32_1 : i32, i32, i32, i32
  }
  func.func @transform_2(%arg0: i32) -> (i32, i32, i32, i32) {
    %c0_i32 = arith.constant 0 : i32
    %c0_i32_0 = arith.constant 0 : i32
    %c0_i32_1 = arith.constant 0 : i32
    %c0_i32_2 = arith.constant 0 : i32
    return %arg0, %c0_i32, %c0_i32_0, %c0_i32_1 : i32, i32, i32, i32
  }
  func.func @transform_3(%arg0: i32) -> (i32, i32, i32, i32) {
    %c0_i32 = arith.constant 0 : i32
    %c0_i32_0 = arith.constant 0 : i32
    %c0_i32_1 = arith.constant 0 : i32
    %c0_i32_2 = arith.constant 0 : i32
    return %arg0, %c0_i32, %c0_i32_0, %c0_i32_1 : i32, i32, i32, i32
  }
}

module attributes {stable_mosaic.version = 11 : i64} {
  func.func @_linear_res_kernel(%arg0: i32, %arg1: memref<256x64xf32, #tpu.memory_space<vmem>>, %arg2: memref<64x64xf32, #tpu.memory_space<vmem>>, %arg3: memref<1x64xf32, #tpu.memory_space<vmem>>, %arg4: memref<256x64xf32, #tpu.memory_space<vmem>>, %arg5: memref<256x64xf32, #tpu.memory_space<vmem>>) attributes {dimension_semantics = [#tpu.dimension_semantics<parallel>], iteration_bounds = array<i64: 2>, scalar_prefetch = 0 : i64, scratch_operands = 0 : i64, tpu.core_type = #tpu.core_type<tc>, window_params = [{transform_indices = @transform_0, window_bounds = array<i64: 256, 64>}, {pipeline_mode = #tpu.pipeline_mode<synchronous>, transform_indices = @transform_1, window_bounds = array<i64: 64, 64>}, {pipeline_mode = #tpu.pipeline_mode<synchronous>, transform_indices = @transform_2, window_bounds = array<i64: 1, 64>}, {transform_indices = @transform_3, window_bounds = array<i64: 256, 64>}, {transform_indices = @transform_4, window_bounds = array<i64: 256, 64>}]} {
    %c0 = arith.constant 0 : index
    %c0_0 = arith.constant 0 : index
    %0 = vector.load %arg1[%c0, %c0_0] : memref<256x64xf32, #tpu.memory_space<vmem>>, vector<256x64xf32>
    %1 = arith.truncf %0 : vector<256x64xf32> to vector<256x64xbf16>
    %c0_1 = arith.constant 0 : index
    %c0_2 = arith.constant 0 : index
    %2 = vector.load %arg2[%c0_1, %c0_2] : memref<64x64xf32, #tpu.memory_space<vmem>>, vector<64x64xf32>
    %3 = arith.truncf %2 : vector<64x64xf32> to vector<64x64xbf16>
    %cst = arith.constant dense<0.000000e+00> : vector<256x64xf32>
    %4 = tpu.matmul %1, %3, %cst {dimension_numbers = #tpu.dot_dimension_numbers<[1], [0], [0], [1], [0, 0, 1, 1], [], []>} : vector<256x64xbf16>, vector<64x64xbf16>, vector<256x64xf32> -> vector<256x64xf32>
    %c0_3 = arith.constant 0 : index
    %c0_4 = arith.constant 0 : index
    %5 = vector.load %arg3[%c0_3, %c0_4] : memref<1x64xf32, #tpu.memory_space<vmem>>, vector<1x64xf32>
    %6 = vector.broadcast %5 : vector<1x64xf32> to vector<256x64xf32>
    %7 = arith.addf %4, %6 : vector<256x64xf32>
    %c0_5 = arith.constant 0 : index
    %c0_6 = arith.constant 0 : index
    %8 = vector.load %arg4[%c0_5, %c0_6] : memref<256x64xf32, #tpu.memory_space<vmem>>, vector<256x64xf32>
    %9 = arith.addf %7, %8 : vector<256x64xf32>
    %c0_7 = arith.constant 0 : index
    %c0_8 = arith.constant 0 : index
    %10 = vector.load %arg5[%c0_7, %c0_8] : memref<256x64xf32, #tpu.memory_space<vmem>>, vector<256x64xf32>
    tpu.vector_store %arg5[%c0_7, %c0_8], %9 {strides = array<i32>} : memref<256x64xf32, #tpu.memory_space<vmem>>, vector<256x64xf32>,
    return
  }
  func.func @transform_0(%arg0: i32) -> (i32, i32) {
    %c0_i32 = arith.constant 0 : i32
    %c0_i32_0 = arith.constant 0 : i32
    return %arg0, %c0_i32 : i32, i32
  }
  func.func @transform_1(%arg0: i32) -> (i32, i32) {
    %c0_i32 = arith.constant 0 : i32
    %c0_i32_0 = arith.constant 0 : i32
    %c0_i32_1 = arith.constant 0 : i32
    return %c0_i32, %c0_i32_0 : i32, i32
  }
  func.func @transform_2(%arg0: i32) -> (i32, i32) {
    %c0_i32 = arith.constant 0 : i32
    %c0_i32_0 = arith.constant 0 : i32
    %c0_i32_1 = arith.constant 0 : i32
    return %c0_i32, %c0_i32_0 : i32, i32
  }
  func.func @transform_3(%arg0: i32) -> (i32, i32) {
    %c0_i32 = arith.constant 0 : i32
    %c0_i32_0 = arith.constant 0 : i32
    return %arg0, %c0_i32 : i32, i32
  }
  func.func @transform_4(%arg0: i32) -> (i32, i32) {
    %c0_i32 = arith.constant 0 : i32
    %c0_i32_0 = arith.constant 0 : i32
    return %arg0, %c0_i32 : i32, i32
  }
}

module attributes {stable_mosaic.version = 11 : i64} {
  func.func @_linear_res_kernel(%arg0: i32, %arg1: memref<256x64xf32, #tpu.memory_space<vmem>>, %arg2: memref<64x8xf32, #tpu.memory_space<vmem>>, %arg3: memref<1x8xf32, #tpu.memory_space<vmem>>, %arg4: memref<256x8xf32, #tpu.memory_space<vmem>>, %arg5: memref<256x8xf32, #tpu.memory_space<vmem>>) attributes {dimension_semantics = [#tpu.dimension_semantics<parallel>], iteration_bounds = array<i64: 2>, scalar_prefetch = 0 : i64, scratch_operands = 0 : i64, tpu.core_type = #tpu.core_type<tc>, window_params = [{transform_indices = @transform_0, window_bounds = array<i64: 256, 64>}, {pipeline_mode = #tpu.pipeline_mode<synchronous>, transform_indices = @transform_1, window_bounds = array<i64: 64, 8>}, {pipeline_mode = #tpu.pipeline_mode<synchronous>, transform_indices = @transform_2, window_bounds = array<i64: 1, 8>}, {transform_indices = @transform_3, window_bounds = array<i64: 256, 8>}, {transform_indices = @transform_4, window_bounds = array<i64: 256, 8>}]} {
    %c0 = arith.constant 0 : index
    %c0_0 = arith.constant 0 : index
    %0 = vector.load %arg1[%c0, %c0_0] : memref<256x64xf32, #tpu.memory_space<vmem>>, vector<256x64xf32>
    %1 = arith.truncf %0 : vector<256x64xf32> to vector<256x64xbf16>
    %c0_1 = arith.constant 0 : index
    %c0_2 = arith.constant 0 : index
    %2 = vector.load %arg2[%c0_1, %c0_2] : memref<64x8xf32, #tpu.memory_space<vmem>>, vector<64x8xf32>
    %3 = arith.truncf %2 : vector<64x8xf32> to vector<64x8xbf16>
    %cst = arith.constant dense<0.000000e+00> : vector<256x8xf32>
    %4 = tpu.matmul %1, %3, %cst {dimension_numbers = #tpu.dot_dimension_numbers<[1], [0], [0], [1], [0, 0, 1, 1], [], []>} : vector<256x64xbf16>, vector<64x8xbf16>, vector<256x8xf32> -> vector<256x8xf32>
    %c0_3 = arith.constant 0 : index
    %c0_4 = arith.constant 0 : index
    %5 = vector.load %arg3[%c0_3, %c0_4] : memref<1x8xf32, #tpu.memory_space<vmem>>, vector<1x8xf32>
    %6 = vector.broadcast %5 : vector<1x8xf32> to vector<256x8xf32>
    %7 = arith.addf %4, %6 : vector<256x8xf32>
    %c0_5 = arith.constant 0 : index
    %c0_6 = arith.constant 0 : index
    %8 = vector.load %arg4[%c0_5, %c0_6] : memref<256x8xf32, #tpu.memory_space<vmem>>, vector<256x8xf32>
    %9 = arith.addf %7, %8 : vector<256x8xf32>
    %c0_7 = arith.constant 0 : index
    %c0_8 = arith.constant 0 : index
    %10 = vector.load %arg5[%c0_7, %c0_8] : memref<256x8xf32, #tpu.memory_space<vmem>>, vector<256x8xf32>
    tpu.vector_store %arg5[%c0_7, %c0_8], %9 {strides = array<i32>} : memref<256x8xf32, #tpu.memory_space<vmem>>, vector<256x8xf32>,
    return
  }
  func.func @transform_0(%arg0: i32) -> (i32, i32) {
    %c0_i32 = arith.constant 0 : i32
    %c0_i32_0 = arith.constant 0 : i32
    return %arg0, %c0_i32 : i32, i32
  }
  func.func @transform_1(%arg0: i32) -> (i32, i32) {
    %c0_i32 = arith.constant 0 : i32
    %c0_i32_0 = arith.constant 0 : i32
    %c0_i32_1 = arith.constant 0 : i32
    return %c0_i32, %c0_i32_0 : i32, i32
  }
  func.func @transform_2(%arg0: i32) -> (i32, i32) {
    %c0_i32 = arith.constant 0 : i32
    %c0_i32_0 = arith.constant 0 : i32
    %c0_i32_1 = arith.constant 0 : i32
    return %c0_i32, %c0_i32_0 : i32, i32
  }
  func.func @transform_3(%arg0: i32) -> (i32, i32) {
    %c0_i32 = arith.constant 0 : i32
    %c0_i32_0 = arith.constant 0 : i32
    return %arg0, %c0_i32 : i32, i32
  }
  func.func @transform_4(%arg0: i32) -> (i32, i32) {
    %c0_i32 = arith.constant 0 : i32
    %c0_i32_0 = arith.constant 0 : i32
    return %arg0, %c0_i32 : i32, i32
  }
}

module attributes {stable_mosaic.version = 11 : i64} {
  func.func @_ln_ffn_kernel(%arg0: i32, %arg1: memref<256x64xf32, #tpu.memory_space<vmem>>, %arg2: memref<1x64xf32, #tpu.memory_space<vmem>>, %arg3: memref<1x64xf32, #tpu.memory_space<vmem>>, %arg4: memref<64x256xf32, #tpu.memory_space<vmem>>, %arg5: memref<1x256xf32, #tpu.memory_space<vmem>>, %arg6: memref<64x256xf32, #tpu.memory_space<vmem>>, %arg7: memref<1x256xf32, #tpu.memory_space<vmem>>, %arg8: memref<256x64xf32, #tpu.memory_space<vmem>>, %arg9: memref<1x64xf32, #tpu.memory_space<vmem>>, %arg10: memref<256x64xf32, #tpu.memory_space<vmem>>) attributes {dimension_semantics = [#tpu.dimension_semantics<parallel>], iteration_bounds = array<i64: 2>, scalar_prefetch = 0 : i64, scratch_operands = 0 : i64, tpu.core_type = #tpu.core_type<tc>, window_params = [{transform_indices = @transform_0, window_bounds = array<i64: 256, 64>}, {pipeline_mode = #tpu.pipeline_mode<synchronous>, transform_indices = @transform_1, window_bounds = array<i64: 1, 64>}, {pipeline_mode = #tpu.pipeline_mode<synchronous>, transform_indices = @transform_2, window_bounds = array<i64: 1, 64>}, {pipeline_mode = #tpu.pipeline_mode<synchronous>, transform_indices = @transform_3, window_bounds = array<i64: 64, 256>}, {pipeline_mode = #tpu.pipeline_mode<synchronous>, transform_indices = @transform_4, window_bounds = array<i64: 1, 256>}, {pipeline_mode = #tpu.pipeline_mode<synchronous>, transform_indices = @transform_5, window_bounds = array<i64: 64, 256>}, {pipeline_mode = #tpu.pipeline_mode<synchronous>, transform_indices = @transform_6, window_bounds = array<i64: 1, 256>}, {pipeline_mode = #tpu.pipeline_mode<synchronous>, transform_indices = @transform_7, window_bounds = array<i64: 256, 64>}, {pipeline_mode = #tpu.pipeline_mode<synchronous>, transform_indices = @transform_8, window_bounds = array<i64: 1, 64>}, {transform_indices = @transform_9, window_bounds = array<i64: 256, 64>}]} {
    %c0 = arith.constant 0 : index
    %c0_0 = arith.constant 0 : index
    %0 = vector.load %arg1[%c0, %c0_0] : memref<256x64xf32, #tpu.memory_space<vmem>>, vector<256x64xf32>
    %cst = arith.constant dense<0.000000e+00> : vector<256xf32>
    %1 = vector.multi_reduction <add>, %0, %cst [1] : vector<256x64xf32> to vector<256xf32>
    %2 = vector.shape_cast %1 : vector<256xf32> to vector<256x1xf32>
    %cst_1 = arith.constant 6.400000e+01 : f32
    %3 = vector.broadcast %cst_1 : f32 to vector<256x1xf32>
    %4 = arith.divf %2, %3 : vector<256x1xf32>
    %5 = vector.broadcast %4 : vector<256x1xf32> to vector<256x64xf32>
    %6 = arith.subf %0, %5 : vector<256x64xf32>
    %7 = arith.mulf %6, %6 : vector<256x64xf32>
    %cst_2 = arith.constant dense<0.000000e+00> : vector<256xf32>
    %8 = vector.multi_reduction <add>, %7, %cst_2 [1] : vector<256x64xf32> to vector<256xf32>
    %9 = vector.shape_cast %8 : vector<256xf32> to vector<256x1xf32>
    %cst_3 = arith.constant 6.400000e+01 : f32
    %10 = vector.broadcast %cst_3 : f32 to vector<256x1xf32>
    %11 = arith.divf %9, %10 : vector<256x1xf32>
    %cst_4 = arith.constant 9.99999974E-6 : f32
    %12 = vector.broadcast %cst_4 : f32 to vector<256x1xf32>
    %13 = arith.addf %11, %12 : vector<256x1xf32>
    %14 = math.rsqrt %13 : vector<256x1xf32>
    %15 = vector.broadcast %14 : vector<256x1xf32> to vector<256x64xf32>
    %16 = arith.mulf %6, %15 : vector<256x64xf32>
    %c0_5 = arith.constant 0 : index
    %c0_6 = arith.constant 0 : index
    %17 = vector.load %arg2[%c0_5, %c0_6] : memref<1x64xf32, #tpu.memory_space<vmem>>, vector<1x64xf32>
    %18 = vector.broadcast %17 : vector<1x64xf32> to vector<256x64xf32>
    %19 = arith.mulf %16, %18 : vector<256x64xf32>
    %c0_7 = arith.constant 0 : index
    %c0_8 = arith.constant 0 : index
    %20 = vector.load %arg3[%c0_7, %c0_8] : memref<1x64xf32, #tpu.memory_space<vmem>>, vector<1x64xf32>
    %21 = vector.broadcast %20 : vector<1x64xf32> to vector<256x64xf32>
    %22 = arith.addf %19, %21 : vector<256x64xf32>
    %23 = arith.truncf %22 : vector<256x64xf32> to vector<256x64xbf16>
    %c0_9 = arith.constant 0 : index
    %c0_10 = arith.constant 0 : index
    %24 = vector.load %arg4[%c0_9, %c0_10] : memref<64x256xf32, #tpu.memory_space<vmem>>, vector<64x256xf32>
    %25 = arith.truncf %24 : vector<64x256xf32> to vector<64x256xbf16>
    %cst_11 = arith.constant dense<0.000000e+00> : vector<256x256xf32>
    %26 = tpu.matmul %23, %25, %cst_11 {dimension_numbers = #tpu.dot_dimension_numbers<[1], [0], [0], [1], [0, 0, 1, 1], [], []>} : vector<256x64xbf16>, vector<64x256xbf16>, vector<256x256xf32> -> vector<256x256xf32>
    %c0_12 = arith.constant 0 : index
    %c0_13 = arith.constant 0 : index
    %27 = vector.load %arg5[%c0_12, %c0_13] : memref<1x256xf32, #tpu.memory_space<vmem>>, vector<1x256xf32>
    %28 = vector.broadcast %27 : vector<1x256xf32> to vector<256x256xf32>
    %29 = arith.addf %26, %28 : vector<256x256xf32>
    %c0_14 = arith.constant 0 : index
    %c0_15 = arith.constant 0 : index
    %30 = vector.load %arg6[%c0_14, %c0_15] : memref<64x256xf32, #tpu.memory_space<vmem>>, vector<64x256xf32>
    %31 = arith.truncf %30 : vector<64x256xf32> to vector<64x256xbf16>
    %cst_16 = arith.constant dense<0.000000e+00> : vector<256x256xf32>
    %32 = tpu.matmul %23, %31, %cst_16 {dimension_numbers = #tpu.dot_dimension_numbers<[1], [0], [0], [1], [0, 0, 1, 1], [], []>} : vector<256x64xbf16>, vector<64x256xbf16>, vector<256x256xf32> -> vector<256x256xf32>
    %c0_17 = arith.constant 0 : index
    %c0_18 = arith.constant 0 : index
    %33 = vector.load %arg7[%c0_17, %c0_18] : memref<1x256xf32, #tpu.memory_space<vmem>>, vector<1x256xf32>
    %34 = vector.broadcast %33 : vector<1x256xf32> to vector<256x256xf32>
    %35 = arith.addf %32, %34 : vector<256x256xf32>
    %36 = arith.mulf %35, %35 : vector<256x256xf32>
    %37 = arith.mulf %35, %36 : vector<256x256xf32>
    %cst_19 = arith.constant 4.471500e-02 : f32
    %38 = vector.broadcast %cst_19 : f32 to vector<256x256xf32>
    %39 = arith.mulf %38, %37 : vector<256x256xf32>
    %40 = arith.addf %35, %39 : vector<256x256xf32>
    %cst_20 = arith.constant 0.797884583 : f32
    %41 = vector.broadcast %cst_20 : f32 to vector<256x256xf32>
    %42 = arith.mulf %41, %40 : vector<256x256xf32>
    %43 = math.tanh %42 : vector<256x256xf32>
    %cst_21 = arith.constant 1.000000e+00 : f32
    %44 = vector.broadcast %cst_21 : f32 to vector<256x256xf32>
    %45 = arith.addf %44, %43 : vector<256x256xf32>
    %cst_22 = arith.constant 5.000000e-01 : f32
    %46 = vector.broadcast %cst_22 : f32 to vector<256x256xf32>
    %47 = arith.mulf %46, %45 : vector<256x256xf32>
    %48 = arith.mulf %35, %47 : vector<256x256xf32>
    %49 = arith.mulf %29, %48 : vector<256x256xf32>
    %50 = arith.truncf %49 : vector<256x256xf32> to vector<256x256xbf16>
    %c0_23 = arith.constant 0 : index
    %c0_24 = arith.constant 0 : index
    %51 = vector.load %arg8[%c0_23, %c0_24] : memref<256x64xf32, #tpu.memory_space<vmem>>, vector<256x64xf32>
    %52 = arith.truncf %51 : vector<256x64xf32> to vector<256x64xbf16>
    %cst_25 = arith.constant dense<0.000000e+00> : vector<256x64xf32>
    %53 = tpu.matmul %50, %52, %cst_25 {dimension_numbers = #tpu.dot_dimension_numbers<[1], [0], [0], [1], [0, 0, 1, 1], [], []>} : vector<256x256xbf16>, vector<256x64xbf16>, vector<256x64xf32> -> vector<256x64xf32>
    %c0_26 = arith.constant 0 : index
    %c0_27 = arith.constant 0 : index
    %54 = vector.load %arg9[%c0_26, %c0_27] : memref<1x64xf32, #tpu.memory_space<vmem>>, vector<1x64xf32>
    %55 = vector.broadcast %54 : vector<1x64xf32> to vector<256x64xf32>
    %56 = arith.addf %53, %55 : vector<256x64xf32>
    %57 = arith.addf %56, %0 : vector<256x64xf32>
    %c0_28 = arith.constant 0 : index
    %c0_29 = arith.constant 0 : index
    %58 = vector.load %arg10[%c0_28, %c0_29] : memref<256x64xf32, #tpu.memory_space<vmem>>, vector<256x64xf32>
    tpu.vector_store %arg10[%c0_28, %c0_29], %57 {strides = array<i32>} : memref<256x64xf32, #tpu.memory_space<vmem>>, vector<256x64xf32>,
    return
  }
  func.func @transform_0(%arg0: i32) -> (i32, i32) {
    %c0_i32 = arith.constant 0 : i32
    %c0_i32_0 = arith.constant 0 : i32
    return %arg0, %c0_i32 : i32, i32
  }
  func.func @transform_1(%arg0: i32) -> (i32, i32) {
    %c0_i32 = arith.constant 0 : i32
    %c0_i32_0 = arith.constant 0 : i32
    %c0_i32_1 = arith.constant 0 : i32
    return %c0_i32, %c0_i32_0 : i32, i32
  }
  func.func @transform_2(%arg0: i32) -> (i32, i32) {
    %c0_i32 = arith.constant 0 : i32
    %c0_i32_0 = arith.constant 0 : i32
    %c0_i32_1 = arith.constant 0 : i32
    return %c0_i32, %c0_i32_0 : i32, i32
  }
  func.func @transform_3(%arg0: i32) -> (i32, i32) {
    %c0_i32 = arith.constant 0 : i32
    %c0_i32_0 = arith.constant 0 : i32
    %c0_i32_1 = arith.constant 0 : i32
    return %c0_i32, %c0_i32_0 : i32, i32
  }
  func.func @transform_4(%arg0: i32) -> (i32, i32) {
    %c0_i32 = arith.constant 0 : i32
    %c0_i32_0 = arith.constant 0 : i32
    %c0_i32_1 = arith.constant 0 : i32
    return %c0_i32, %c0_i32_0 : i32, i32
  }
  func.func @transform_5(%arg0: i32) -> (i32, i32) {
    %c0_i32 = arith.constant 0 : i32
    %c0_i32_0 = arith.constant 0 : i32
    %c0_i32_1 = arith.constant 0 : i32
    return %c0_i32, %c0_i32_0 : i32, i32
  }
  func.func @transform_6(%arg0: i32) -> (i32, i32) {
    %c0_i32 = arith.constant 0 : i32
    %c0_i32_0 = arith.constant 0 : i32
    %c0_i32_1 = arith.constant 0 : i32
    return %c0_i32, %c0_i32_0 : i32, i32
  }
  func.func @transform_7(%arg0: i32) -> (i32, i32) {
    %c0_i32 = arith.constant 0 : i32
    %c0_i32_0 = arith.constant 0 : i32
    %c0_i32_1 = arith.constant 0 : i32
    return %c0_i32, %c0_i32_0 : i32, i32
  }
  func.func @transform_8(%arg0: i32) -> (i32, i32) {
    %c0_i32 = arith.constant 0 : i32
    %c0_i32_0 = arith.constant 0 : i32
    %c0_i32_1 = arith.constant 0 : i32
    return %c0_i32, %c0_i32_0 : i32, i32
  }
  func.func @transform_9(%arg0: i32) -> (i32, i32) {
    %c0_i32 = arith.constant 0 : i32
    %c0_i32_0 = arith.constant 0 : i32
    return %arg0, %c0_i32 : i32, i32
  }
}

</mosaic_0001>

<llo_original>
// kernel: spatial_transformer_forward.9
$region0: #{spatial_transformer_forward.9}
  #allocation0 [shape = 'u32[]', space=smem, size = 0x4, offset = 0x4, fixed_abs, tag = 'smem constant byte address 0x4 - core index']
  #allocation1 [shape = 'u32[72,128]{1,0:T(1,128)}', space=vmem, size = 0x9000, scoped, tag = 'internal scratch']
  %s0 = inlined_call_operand.vmem [shape: f32[2,256,8], index: 0, kind: input, shape index: {}]
  %s1 = inlined_call_operand.vmem [shape: f32[1,8], index: 1, kind: input, shape index: {}]
  %s2 = inlined_call_operand.vmem [shape: f32[1,8], index: 2, kind: input, shape index: {}]
  %s3 = inlined_call_operand.vmem [shape: f32[8,4], index: 3, kind: input, shape index: {}]
  %s4 = inlined_call_operand.vmem [shape: f32[4,8], index: 4, kind: input, shape index: {}]
  %s5 = inlined_call_operand.vmem [shape: f32[8,64], index: 5, kind: input, shape index: {}]
  %s6 = inlined_call_operand.vmem [shape: f32[1,64], index: 6, kind: input, shape index: {}]
  %s7 = inlined_call_operand.vmem [shape: f32[2,256,64], index: 7, kind: output, shape index: {}]
  %s8 = sld [smem:[#allocation0]]
  $region61: #{spatial_transformer_forward.9} parent=0
    _
  %s10 = ssub.s32 1, %s8
  %s11 = scalar_select 0, %s10, %s8
  loop: start=0, step=1, limit=4
  $region2: #{spatial_transformer_forward.9} parent=0 // loop_pre_header
    _
  $region3: #{spatial_transformer_forward.9} parent=0 // loop_header
    %s13 = sphi 0, %s17
    %p14 = scmp.ge.s32.totalorder %s13, 4
    %s23 = sphi 0, %s25
    %s26 = sphi 0, %s23
    %s27 = sphi 0, %s26
    %s43 = sphi 0, %s27
    %s47 = sphi 0, %s47
    %s49 = sphi 0, %s47
    %s50 = sphi 0, %s49
    %s64 = sphi 0, %s50
    %s68 = sphi 0, %s68
    %s70 = sphi 0, %s68
    %s71 = sphi 0, %s70
    %s85 = sphi 0, %s71
    %s89 = sphi 0, %s89
    %s91 = sphi 0, %s89
    %s92 = sphi 0, %s91
    %s106 = sphi 0, %s92
    %s110 = sphi 0, %s110
    %s112 = sphi 0, %s110
    %s113 = sphi 0, %s112
    %s127 = sphi 0, %s113
    %s131 = sphi 0, %s131
    %s133 = sphi 0, %s131
    %s134 = sphi 0, %s133
    %s148 = sphi 0, %s134
    %s152 = sphi 0, %s152
    %s154 = sphi 0, %s152
    %s155 = sphi 0, %s154
    %s169 = sphi 0, %s155
    %s175 = sphi 0, %s177
    %s178 = sphi 0, %s175
    %s179 = sphi 0, %s178
    %s195 = sphi 0, %s179
  $region4: #{spatial_transformer_forward.9} parent=0 // loop_header_branch
    %16 = sbr.rel (%p14) target = $region8
  $region5: #{spatial_transformer_forward.9} parent=0 // loop_body
    %s18 = ssub.s32 %s13, 1
    %s19 = ssub.s32 %s13, 2
    %s20 = sadd.s32 %s13, 1
    %s21 = ssub.s32 %s13, %s20
    %p22 = scmp.eq.s32.totalorder %s21, 0
    %s24 = sadd.s32 %s23, 1
    %s25 = scalar_select %p22, %s23, %s24
    %p28 = pneg %p22
    %p29 = scmp.eq.s32.totalorder %s13, 1
    %p30 = por %p28, %p29
    %p31 = scmp.ne.s32.totalorder %s23, %s26
    %p32 = scmp.eq.s32.totalorder %s13, 0
    %p33 = por %p31, %p32
    %p34 = scmp.ne.s32.totalorder %s23, %s26
    %p35 = scmp.eq.s32.totalorder %s18, 1
    %p36 = por %p34, %p35
    %p37 = scmp.ne.s32.totalorder %s26, %s27
    %p38 = scmp.eq.s32.totalorder %s18, 0
    %p39 = por %p37, %p38
    %p40 = scmp.ne.s32.totalorder %s26, %s27
    %p41 = scmp.eq.s32.totalorder %s19, 1
    %p42 = por %p40, %p41
    %p44 = scmp.ne.s32.totalorder %s27, %s43
    %p45 = scmp.eq.s32.totalorder %s19, 0
    %p46 = por %p44, %p45
    %s48 = sadd.s32 %s47, 1
    %p51 = scmp.eq.s32.totalorder %s13, 1
    %p52 = scmp.ne.s32.totalorder %s47, %s49
    %p53 = scmp.eq.s32.totalorder %s13, 0
    %p54 = por %p52, %p53
    %p55 = scmp.ne.s32.totalorder %s47, %s49
    %p56 = scmp.eq.s32.totalorder %s18, 1
    %p57 = por %p55, %p56
    %p58 = scmp.ne.s32.totalorder %s49, %s50
    %p59 = scmp.eq.s32.totalorder %s18, 0
    %p60 = por %p58, %p59
    %p61 = scmp.ne.s32.totalorder %s49, %s50
    %p62 = scmp.eq.s32.totalorder %s19, 1
    %p63 = por %p61, %p62
    %p65 = scmp.ne.s32.totalorder %s50, %s64
    %p66 = scmp.eq.s32.totalorder %s19, 0
    %p67 = por %p65, %p66
    %s69 = sadd.s32 %s68, 1
    %p72 = scmp.eq.s32.totalorder %s13, 1
    %p73 = scmp.ne.s32.totalorder %s68, %s70
    %p74 = scmp.eq.s32.totalorder %s13, 0
    %p75 = por %p73, %p74
    %p76 = scmp.ne.s32.totalorder %s68, %s70
    %p77 = scmp.eq.s32.totalorder %s18, 1
    %p78 = por %p76, %p77
    %p79 = scmp.ne.s32.totalorder %s70, %s71
    %p80 = scmp.eq.s32.totalorder %s18, 0
    %p81 = por %p79, %p80
    %p82 = scmp.ne.s32.totalorder %s70, %s71
    %p83 = scmp.eq.s32.totalorder %s19, 1
    %p84 = por %p82, %p83
    %p86 = scmp.ne.s32.totalorder %s71, %s85
    %p87 = scmp.eq.s32.totalorder %s19, 0
    %p88 = por %p86, %p87
    %s90 = sadd.s32 %s89, 1
    %p93 = scmp.eq.s32.totalorder %s13, 1
    %p94 = scmp.ne.s32.totalorder %s89, %s91
    %p95 = scmp.eq.s32.totalorder %s13, 0
    %p96 = por %p94, %p95
    %p97 = scmp.ne.s32.totalorder %s89, %s91
    %p98 = scmp.eq.s32.totalorder %s18, 1
    %p99 = por %p97, %p98
    %p100 = scmp.ne.s32.totalorder %s91, %s92
    %p101 = scmp.eq.s32.totalorder %s18, 0
    %p102 = por %p100, %p101
    %p103 = scmp.ne.s32.totalorder %s91, %s92
    %p104 = scmp.eq.s32.totalorder %s19, 1
    %p105 = por %p103, %p104
    %p107 = scmp.ne.s32.totalorder %s92, %s106
    %p108 = scmp.eq.s32.totalorder %s19, 0
    %p109 = por %p107, %p108
    %s111 = sadd.s32 %s110, 1
    %p114 = scmp.eq.s32.totalorder %s13, 1
    %p115 = scmp.ne.s32.totalorder %s110, %s112
    %p116 = scmp.eq.s32.totalorder %s13, 0
    %p117 = por %p115, %p116
    %p118 = scmp.ne.s32.totalorder %s110, %s112
    %p119 = scmp.eq.s32.totalorder %s18, 1
    %p120 = por %p118, %p119
    %p121 = scmp.ne.s32.totalorder %s112, %s113
    %p122 = scmp.eq.s32.totalorder %s18, 0
    %p123 = por %p121, %p122
    %p124 = scmp.ne.s32.totalorder %s112, %s113
    %p125 = scmp.eq.s32.totalorder %s19, 1
    %p126 = por %p124, %p125
    %p128 = scmp.ne.s32.totalorder %s113, %s127
    %p129 = scmp.eq.s32.totalorder %s19, 0
    %p130 = por %p128, %p129
    %s132 = sadd.s32 %s131, 1
    %p135 = scmp.eq.s32.totalorder %s13, 1
    %p136 = scmp.ne.s32.totalorder %s131, %s133
    %p137 = scmp.eq.s32.totalorder %s13, 0
    %p138 = por %p136, %p137
    %p139 = scmp.ne.s32.totalorder %s131, %s133
    %p140 = scmp.eq.s32.totalorder %s18, 1
    %p141 = por %p139, %p140
    %p142 = scmp.ne.s32.totalorder %s133, %s134
    %p143 = scmp.eq.s32.totalorder %s18, 0
    %p144 = por %p142, %p143
    %p145 = scmp.ne.s32.totalorder %s133, %s134
    %p146 = scmp.eq.s32.totalorder %s19, 1
    %p147 = por %p145, %p146
    %p149 = scmp.ne.s32.totalorder %s134, %s148
    %p150 = scmp.eq.s32.totalorder %s19, 0
    %p151 = por %p149, %p150
    %s153 = sadd.s32 %s152, 1
    %p156 = scmp.eq.s32.totalorder %s13, 1
    %p157 = scmp.ne.s32.totalorder %s152, %s154
    %p158 = scmp.eq.s32.totalorder %s13, 0
    %p159 = por %p157, %p158
    %p160 = scmp.ne.s32.totalorder %s152, %s154
    %p161 = scmp.eq.s32.totalorder %s18, 1
    %p162 = por %p160, %p161
    %p163 = scmp.ne.s32.totalorder %s154, %s155
    %p164 = scmp.eq.s32.totalorder %s18, 0
    %p165 = por %p163, %p164
    %p166 = scmp.ne.s32.totalorder %s154, %s155
    %p167 = scmp.eq.s32.totalorder %s19, 1
    %p168 = por %p166, %p167
    %p170 = scmp.ne.s32.totalorder %s155, %s169
    %p171 = scmp.eq.s32.totalorder %s19, 0
    %p172 = por %p170, %p171
    %s173 = ssub.s32 %s13, %s20
    %p174 = scmp.eq.s32.totalorder %s173, 0
    %s176 = sadd.s32 %s175, 1
    %s177 = scalar_select %p174, %s175, %s176
    %p180 = pneg %p174
    %p181 = scmp.eq.s32.totalorder %s13, 1
    %p182 = por %p180, %p181
    %p183 = scmp.ne.s32.totalorder %s175, %s178
    %p184 = scmp.eq.s32.totalorder %s13, 0
    %p185 = por %p183, %p184
    %p186 = scmp.ne.s32.totalorder %s175, %s178
    %p187 = scmp.eq.s32.totalorder %s18, 1
    %p188 = por %p186, %p187
    %p189 = scmp.ne.s32.totalorder %s178, %s179
    %p190 = scmp.eq.s32.totalorder %s18, 0
    %p191 = por %p189, %p190
    %p192 = scmp.ne.s32.totalorder %s178, %s179
    %p193 = scmp.eq.s32.totalorder %s19, 1
    %p194 = por %p192, %p193
    %p196 = scmp.ne.s32.totalorder %s179, %s195
    %p197 = scmp.eq.s32.totalorder %s19, 0
    %p198 = por %p196, %p197
    %p199 = scmp.le.s32.totalorder 1, %s13
    %p200 = scmp.lt.s32.totalorder %s13, 3
    %p201 = pnand %p199, %p200
    %p202 = pneg %p201
    // Predicated region
    $region9: #{spatial_transformer_forward.9} parent=5 // pred_check
      _
    $region10: #{spatial_transformer_forward.9} parent=5 // pred_check_branch
      %204 = sbr.rel (%p201) target = $region12
    $region11: #{spatial_transformer_forward.9} parent=5 // pred_region
      %s205 = ssub.s32 %s13, 1
      // Predicated region
      $region13: #{spatial_transformer_forward.9} parent=11 // pred_check
        %p206 = pneg %p60
      $region14: #{spatial_transformer_forward.9} parent=11 // pred_check_branch
        %208 = sbr.rel (%p206) target = $region16
      $region15: #{spatial_transformer_forward.9} parent=11 // pred_region
        _
      $region16: #{spatial_transformer_forward.9} parent=11 // pred_fallthru
        _
      // Predicated region
      $region17: #{spatial_transformer_forward.9} parent=11 // pred_check
        %p209 = pneg %p81
      $region18: #{spatial_transformer_forward.9} parent=11 // pred_check_branch
        %211 = sbr.rel (%p209) target = $region20
      $region19: #{spatial_transformer_forward.9} parent=11 // pred_region
        _
      $region20: #{spatial_transformer_forward.9} parent=11 // pred_fallthru
        _
      // Predicated region
      $region21: #{spatial_transformer_forward.9} parent=11 // pred_check
        %p212 = pneg %p102
      $region22: #{spatial_transformer_forward.9} parent=11 // pred_check_branch
        %214 = sbr.rel (%p212) target = $region24
      $region23: #{spatial_transformer_forward.9} parent=11 // pred_region
        _
      $region24: #{spatial_transformer_forward.9} parent=11 // pred_fallthru
        _
      // Predicated region
      $region25: #{spatial_transformer_forward.9} parent=11 // pred_check
        %p215 = pneg %p123
      $region26: #{spatial_transformer_forward.9} parent=11 // pred_check_branch
        %217 = sbr.rel (%p215) target = $region28
      $region27: #{spatial_transformer_forward.9} parent=11 // pred_region
        _
      $region28: #{spatial_transformer_forward.9} parent=11 // pred_fallthru
        _
      // Predicated region
      $region29: #{spatial_transformer_forward.9} parent=11 // pred_check
        %p218 = pneg %p144
      $region30: #{spatial_transformer_forward.9} parent=11 // pred_check_branch
        %220 = sbr.rel (%p218) target = $region32
      $region31: #{spatial_transformer_forward.9} parent=11 // pred_region
        _
      $region32: #{spatial_transformer_forward.9} parent=11 // pred_fallthru
        _
      // Predicated region
      $region33: #{spatial_transformer_forward.9} parent=11 // pred_check
        %p221 = pneg %p165
      $region34: #{spatial_transformer_forward.9} parent=11 // pred_check_branch
        %223 = sbr.rel (%p221) target = $region36
      $region35: #{spatial_transformer_forward.9} parent=11 // pred_region
        _
      $region36: #{spatial_transformer_forward.9} parent=11 // pred_fallthru
        _
    $region12: #{spatial_transformer_forward.9} parent=5 // pred_fallthru
      _
    %p224 = scmp.lt.s32.totalorder %s13, 2
    // Predicated region
    $region37: #{spatial_transformer_forward.9} parent=5 // pred_check
      %p225 = pneg %p224
    $region38: #{spatial_transformer_forward.9} parent=5 // pred_check_branch
      %227 = sbr.rel (%p225) target = $region40
    $region39: #{spatial_transformer_forward.9} parent=5 // pred_region
      // Predicated region
      $region41: #{spatial_transformer_forward.9} parent=39 // pred_check
        %p228 = pneg %p33
      $region42: #{spatial_transformer_forward.9} parent=39 // pred_check_branch
        %230 = sbr.rel (%p228) target = $region44
      $region43: #{spatial_transformer_forward.9} parent=39 // pred_region
        %p231 = scmp.lt.s32.totalorder %s13, 1
        %s232 = scalar_select %p231, %s13, 1
        %s233 = smul.addr %s232, 32
        %s234 = smul.addr %s233, 8
        %s235 = scalar_lea.vmem %s0, %s234
      $region44: #{spatial_transformer_forward.9} parent=39 // pred_fallthru
        _
    $region40: #{spatial_transformer_forward.9} parent=5 // pred_fallthru
      _
    %p236 = scmp.le.s32.totalorder 1, %s13
    %p237 = scmp.lt.s32.totalorder %s13, 3
    %p238 = pnand %p236, %p237
    %p239 = pneg %p238
    // Predicated region
    $region45: #{spatial_transformer_forward.9} parent=5 // pred_check
      _
    $region46: #{spatial_transformer_forward.9} parent=5 // pred_check_branch
      %241 = sbr.rel (%p238) target = $region48
    $region47: #{spatial_transformer_forward.9} parent=5 // pred_region
      %s242 = ssub.s32 %s13, 1
      %p243 = scmp.lt.s32.totalorder %s18, 1
      %s244 = scalar_select %p243, %s18, 1
      %s245 = smul.addr %s244, 32
      %s246 = smul.addr %s245, 8
      %s247 = scalar_lea.vmem %s0, %s246
      %p248 = pneg %p39
      %p249 = pneg %p36
      %p250 = pneg %p60
      %p251 = pneg %p57
      %p252 = pneg %p81
      %p253 = pneg %p78
      %p254 = pneg %p102
      %p255 = pneg %p99
      %p256 = pneg %p123
      %p257 = pneg %p120
      %p258 = pneg %p144
      %p259 = pneg %p141
      %p260 = pneg %p165
      %p261 = pneg %p162
      %p262 = pneg %p191
      %p263 = pneg %p188
      %p264 = scmp.lt.s32.totalorder %s18, 1
      %s265 = scalar_select %p264, %s18, 1
      %s266 = smul.addr %s265, 32
      %s267 = smul.addr %s266, 8
      %s268 = scalar_lea.vmem %s7, %s267
      %p269 = scmp.lt.s32.totalorder %s18, 1
      %s270 = scalar_select %p269, %s18, 1
      %s271 = smul.addr %s270, 32
      %s272 = smul.addr %s271, 8
      %s273 = scalar_lea.vmem %s0, %s272
      %p274 = scmp.lt.s32.totalorder %s18, 1
      %s275 = scalar_select %p274, %s18, 1
      %s276 = smul.addr %s275, 32
      %s277 = smul.addr %s276, 8
      %s278 = scalar_lea.vmem %s7, %s277
      %v280 = vld [vmem:[%s273] sm:$0xff]
      %v281 = vld [vmem:[%s273 + $0x8] sm:$0xff]
      %v282 = vld [vmem:[%s273 + $0x10] sm:$0xff]
      %v283 = vld [vmem:[%s273 + $0x18] sm:$0xff]
      %v284 = vld [vmem:[%s273 + $0x20] sm:$0xff]
      %v285 = vld [vmem:[%s273 + $0x28] sm:$0xff]
      %v286 = vld [vmem:[%s273 + $0x30] sm:$0xff]
      %v287 = vld [vmem:[%s273 + $0x38] sm:$0xff]
      %v288 = vld [vmem:[%s273 + $0x40] sm:$0xff]
      %v289 = vld [vmem:[%s273 + $0x48] sm:$0xff]
      %v290 = vld [vmem:[%s273 + $0x50] sm:$0xff]
      %v291 = vld [vmem:[%s273 + $0x58] sm:$0xff]
      %v292 = vld [vmem:[%s273 + $0x60] sm:$0xff]
      %v293 = vld [vmem:[%s273 + $0x68] sm:$0xff]
      %v294 = vld [vmem:[%s273 + $0x70] sm:$0xff]
      %v295 = vld [vmem:[%s273 + $0x78] sm:$0xff]
      %v296 = vld [vmem:[%s273 + $0x80] sm:$0xff]
      %v297 = vld [vmem:[%s273 + $0x88] sm:$0xff]
      %v298 = vld [vmem:[%s273 + $0x90] sm:$0xff]
      %v299 = vld [vmem:[%s273 + $0x98] sm:$0xff]
      %v300 = vld [vmem:[%s273 + $0xa0] sm:$0xff]
      %v301 = vld [vmem:[%s273 + $0xa8] sm:$0xff]
      %v302 = vld [vmem:[%s273 + $0xb0] sm:$0xff]
      %v303 = vld [vmem:[%s273 + $0xb8] sm:$0xff]
      %v304 = vld [vmem:[%s273 + $0xc0] sm:$0xff]
      %v305 = vld [vmem:[%s273 + $0xc8] sm:$0xff]
      %v306 = vld [vmem:[%s273 + $0xd0] sm:$0xff]
      %v307 = vld [vmem:[%s273 + $0xd8] sm:$0xff]
      %v308 = vld [vmem:[%s273 + $0xe0] sm:$0xff]
      %v309 = vld [vmem:[%s273 + $0xe8] sm:$0xff]
      %v310 = vld [vmem:[%s273 + $0xf0] sm:$0xff]
      %v311 = vld [vmem:[%s273 + $0xf8] sm:$0xff]
      %v312 = vld [vmem:[%s3] sm:$0xff]
      %v313 = vld [vmem:[%s4] sm:$0xf]
      %vm314 = vcmask 64512
      %v315 = vsel %vm314, %v280, 0.0
      %v316 = vsel %vm314, %v281, 0.0
      %v317 = vadd.f32 %v315, %v316
      %v318 = vsel %vm314, %v282, 0.0
      %v319 = vadd.f32 %v317, %v318
      %v320 = vsel %vm314, %v283, 0.0
      %v321 = vadd.f32 %v319, %v320
      %v322 = vsel %vm314, %v284, 0.0
      %v323 = vadd.f32 %v321, %v322
      %v324 = vsel %vm314, %v285, 0.0
      %v325 = vadd.f32 %v323, %v324
      %v326 = vsel %vm314, %v286, 0.0
      %v327 = vadd.f32 %v325, %v326
      %v328 = vsel %vm314, %v287, 0.0
      %v329 = vadd.f32 %v327, %v328
      %v330 = vsel %vm314, %v288, 0.0
      %v331 = vadd.f32 %v329, %v330
      %v332 = vsel %vm314, %v289, 0.0
      %v333 = vadd.f32 %v331, %v332
      %v334 = vsel %vm314, %v290, 0.0
      %v335 = vadd.f32 %v333, %v334
      %v336 = vsel %vm314, %v291, 0.0
      %v337 = vadd.f32 %v335, %v336
      %v338 = vsel %vm314, %v292, 0.0
      %v339 = vadd.f32 %v337, %v338
      %v340 = vsel %vm314, %v293, 0.0
      %v341 = vadd.f32 %v339, %v340
      %v342 = vsel %vm314, %v294, 0.0
      %v343 = vadd.f32 %v341, %v342
      %v344 = vsel %vm314, %v295, 0.0
      %v345 = vadd.f32 %v343, %v344
      %v346 = vsel %vm314, %v296, 0.0
      %v347 = vadd.f32 %v345, %v346
      %v348 = vsel %vm314, %v297, 0.0
      %v349 = vadd.f32 %v347, %v348
      %v350 = vsel %vm314, %v298, 0.0
      %v351 = vadd.f32 %v349, %v350
      %v352 = vsel %vm314, %v299, 0.0
      %v353 = vadd.f32 %v351, %v352
      %v354 = vsel %vm314, %v300, 0.0
      %v355 = vadd.f32 %v353, %v354
      %v356 = vsel %vm314, %v301, 0.0
      %v357 = vadd.f32 %v355, %v356
      %v358 = vsel %vm314, %v302, 0.0
      %v359 = vadd.f32 %v357, %v358
      %v360 = vsel %vm314, %v303, 0.0
      %v361 = vadd.f32 %v359, %v360
      %v362 = vsel %vm314, %v304, 0.0
      %v363 = vadd.f32 %v361, %v362
      %v364 = vsel %vm314, %v305, 0.0
      %v365 = vadd.f32 %v363, %v364
      %v366 = vsel %vm314, %v306, 0.0
      %v367 = vadd.f32 %v365, %v366
      %v368 = vsel %vm314, %v307, 0.0
      %v369 = vadd.f32 %v367, %v368
      %v370 = vsel %vm314, %v308, 0.0
      %v371 = vadd.f32 %v369, %v370
      %v372 = vsel %vm314, %v309, 0.0
      %v373 = vadd.f32 %v371, %v372
      %v374 = vsel %vm314, %v310, 0.0
      %v375 = vadd.f32 %v373, %v374
      %v376 = vsel %vm314, %v311, 0.0
      %v377 = vadd.f32 %v375, %v376
      %v378 = vrot.slane %v377, 4
      %v379 = vadd.f32 %v377, %v378
      %v380 = vrot.slane %v379, 2
      %v381 = vadd.f32 %v379, %v380
      %v382 = vrot.slane %v381, 1
      %v383 = vadd.f32 %v381, %v382
      %v385 = vsel %vm314, %v383, 0
      %387 = vmatpush.msra.mxu0 0.0
      %388 = vmatpush.msra.mxu0 0.0
      %389 = vmatpush.msra.mxu0 0.0
      %390 = vmatpush.msra.mxu0 0.0
      %391 = vmatpush.msra.mxu0 0.0
      %392 = vmatpush.msra.mxu0 0.0
      %393 = vmatpush.msra.mxu0 0.0
      %394 = vmatpush.msra.mxu0 0.0
      %395 = vmatpush.msra.mxu0 0.0
      %396 = vmatpush.msra.mxu0 0.0
      %397 = vmatpush.msra.mxu0 0.0
      %398 = vmatpush.msra.mxu0 0.0
      %399 = vmatpush.msra.mxu0 0.0
      %400 = vmatpush.msra.mxu0 0.0
      %401 = vmatpush.msra.mxu0 0.0
      %402 = vmatpush.msra.mxu0 %v312
      %403 = vmatmul.f32.gmra.mxu0 %v385
      %v404 = vpop.f32.mrf.mxu0
      %v405 = vadd.f32 0.0, %v404
      %406 = vdwg.mxu0
      %v407 = vrcp.pop 512.0
      %v408 = vmul.f32 512.0, %v407
      %v409 = vsub.f32 1.0, %v408
      %v410 = vmul.f32 %v407, %v409
      %v411 = vadd.f32 %v407, %v410
      %vm412 = vweird.f32 %v407
      %v413 = vsel %vm412, %v407, %v411
      %v414 = vmul.f32 %v405, %v413
      %vm415 = vcmask 31744
      %v417 = vsel %vm415, %v414, 0
      %vm419 = vcmask 1043456
      %v421 = vsel %vm419, %v313, 0
      %423 = vmatpush.msra.mxu0 0.0
      %424 = vmatpush.msra.mxu0 0.0
      %425 = vmatpush.msra.mxu0 0.0
      %426 = vmatpush.msra.mxu0 0.0
      %427 = vmatpush.msra.mxu0 0.0
      %428 = vmatpush.msra.mxu0 0.0
      %429 = vmatpush.msra.mxu0 0.0
      %430 = vmatpush.msra.mxu0 0.0
      %431 = vmatpush.msra.mxu0 0.0
      %432 = vmatpush.msra.mxu0 0.0
      %433 = vmatpush.msra.mxu0 0.0
      %434 = vmatpush.msra.mxu0 0.0
      %435 = vmatpush.msra.mxu0 0.0
      %436 = vmatpush.msra.mxu0 0.0
      %437 = vmatpush.msra.mxu0 0.0
      %438 = vmatpush.msra.mxu0 %v421
      %439 = vmatmul.f32.gmra.mxu0 %v417
      %v440 = vpop.f32.mrf.mxu0
      %v441 = vadd.f32 0.0, %v440
      %442 = vdwg.mxu0
      %v443 = vperm.slane %v441, 0
      %v444 = vsub.f32 %v280, %v443
      %v445 = vsub.f32 %v281, %v443
      %v446 = vsub.f32 %v282, %v443
      %v447 = vsub.f32 %v283, %v443
      %v448 = vsub.f32 %v284, %v443
      %v449 = vsub.f32 %v285, %v443
      %v450 = vsub.f32 %v286, %v443
      %v451 = vsub.f32 %v287, %v443
      %v452 = vsub.f32 %v288, %v443
      %v453 = vsub.f32 %v289, %v443
      %v454 = vsub.f32 %v290, %v443
      %v455 = vsub.f32 %v291, %v443
      %v456 = vsub.f32 %v292, %v443
      %v457 = vsub.f32 %v293, %v443
      %v458 = vsub.f32 %v294, %v443
      %v459 = vsub.f32 %v295, %v443
      %v460 = vsub.f32 %v296, %v443
      %v461 = vsub.f32 %v297, %v443
      %v462 = vsub.f32 %v298, %v443
      %v463 = vsub.f32 %v299, %v443
      %v464 = vsub.f32 %v300, %v443
      %v465 = vsub.f32 %v301, %v443
      %v466 = vsub.f32 %v302, %v443
      %v467 = vsub.f32 %v303, %v443
      %v468 = vsub.f32 %v304, %v443
      %v469 = vsub.f32 %v305, %v443
      %v470 = vsub.f32 %v306, %v443
      %v471 = vsub.f32 %v307, %v443
      %v472 = vsub.f32 %v308, %v443
      %v473 = vsub.f32 %v309, %v443
      %v474 = vsub.f32 %v310, %v443
      %v475 = vsub.f32 %v311, %v443
      %v476 = vmul.f32 %v444, %v444
      %v477 = vmul.f32 %v445, %v445
      %v478 = vmul.f32 %v446, %v446
      %v479 = vmul.f32 %v447, %v447
      %v480 = vmul.f32 %v448, %v448
      %v481 = vmul.f32 %v449, %v449
      %v482 = vmul.f32 %v450, %v450
      %v483 = vmul.f32 %v451, %v451
      %v484 = vmul.f32 %v452, %v452
      %v485 = vmul.f32 %v453, %v453
      %v486 = vmul.f32 %v454, %v454
      %v487 = vmul.f32 %v455, %v455
      %v488 = vmul.f32 %v456, %v456
      %v489 = vmul.f32 %v457, %v457
      %v490 = vmul.f32 %v458, %v458
      %v491 = vmul.f32 %v459, %v459
      %v492 = vmul.f32 %v460, %v460
      %v493 = vmul.f32 %v461, %v461
      %v494 = vmul.f32 %v462, %v462
      %v495 = vmul.f32 %v463, %v463
      %v496 = vmul.f32 %v464, %v464
      %v497 = vmul.f32 %v465, %v465
      %v498 = vmul.f32 %v466, %v466
      %v499 = vmul.f32 %v467, %v467
      %v500 = vmul.f32 %v468, %v468
      %v501 = vmul.f32 %v469, %v469
      %v502 = vmul.f32 %v470, %v470
      %v503 = vmul.f32 %v471, %v471
      %v504 = vmul.f32 %v472, %v472
      %v505 = vmul.f32 %v473, %v473
      %v506 = vmul.f32 %v474, %v474
      %v507 = vmul.f32 %v475, %v475
      %v508 = vsel %vm314, %v476, 0.0
      %v509 = vsel %vm314, %v477, 0.0
      %v510 = vadd.f32 %v508, %v509
      %v511 = vsel %vm314, %v478, 0.0
      %v512 = vadd.f32 %v510, %v511
      %v513 = vsel %vm314, %v479, 0.0
      %v514 = vadd.f32 %v512, %v513
      %v515 = vsel %vm314, %v480, 0.0
      %v516 = vadd.f32 %v514, %v515
      %v517 = vsel %vm314, %v481, 0.0
      %v518 = vadd.f32 %v516, %v517
      %v519 = vsel %vm314, %v482, 0.0
      %v520 = vadd.f32 %v518, %v519
      %v521 = vsel %vm314, %v483, 0.0
      %v522 = vadd.f32 %v520, %v521
      %v523 = vsel %vm314, %v484, 0.0
      %v524 = vadd.f32 %v522, %v523
      %v525 = vsel %vm314, %v485, 0.0
      %v526 = vadd.f32 %v524, %v525
      %v527 = vsel %vm314, %v486, 0.0
      %v528 = vadd.f32 %v526, %v527
      %v529 = vsel %vm314, %v487, 0.0
      %v530 = vadd.f32 %v528, %v529
      %v531 = vsel %vm314, %v488, 0.0
      %v532 = vadd.f32 %v530, %v531
      %v533 = vsel %vm314, %v489, 0.0
      %v534 = vadd.f32 %v532, %v533
      %v535 = vsel %vm314, %v490, 0.0
      %v536 = vadd.f32 %v534, %v535
      %v537 = vsel %vm314, %v491, 0.0
      %v538 = vadd.f32 %v536, %v537
      %v539 = vsel %vm314, %v492, 0.0
      %v540 = vadd.f32 %v538, %v539
      %v541 = vsel %vm314, %v493, 0.0
      %v542 = vadd.f32 %v540, %v541
      %v543 = vsel %vm314, %v494, 0.0
      %v544 = vadd.f32 %v542, %v543
      %v545 = vsel %vm314, %v495, 0.0
      %v546 = vadd.f32 %v544, %v545
      %v547 = vsel %vm314, %v496, 0.0
      %v548 = vadd.f32 %v546, %v547
      %v549 = vsel %vm314, %v497, 0.0
      %v550 = vadd.f32 %v548, %v549
      %v551 = vsel %vm314, %v498, 0.0
      %v552 = vadd.f32 %v550, %v551
      %v553 = vsel %vm314, %v499, 0.0
      %v554 = vadd.f32 %v552, %v553
      %v555 = vsel %vm314, %v500, 0.0
      %v556 = vadd.f32 %v554, %v555
      %v557 = vsel %vm314, %v501, 0.0
      %v558 = vadd.f32 %v556, %v557
      %v559 = vsel %vm314, %v502, 0.0
      %v560 = vadd.f32 %v558, %v559
      %v561 = vsel %vm314, %v503, 0.0
      %v562 = vadd.f32 %v560, %v561
      %v563 = vsel %vm314, %v504, 0.0
      %v564 = vadd.f32 %v562, %v563
      %v565 = vsel %vm314, %v505, 0.0
      %v566 = vadd.f32 %v564, %v565
      %v567 = vsel %vm314, %v506, 0.0
      %v568 = vadd.f32 %v566, %v567
      %v569 = vsel %vm314, %v507, 0.0
      %v570 = vadd.f32 %v568, %v569
      %v571 = vrot.slane %v570, 4
      %v572 = vadd.f32 %v570, %v571
      %v573 = vrot.slane %v572, 2
      %v574 = vadd.f32 %v572, %v573
      %v575 = vrot.slane %v574, 1
      %v576 = vadd.f32 %v574, %v575
      %v578 = vsel %vm314, %v576, 0
      %580 = vmatpush.msra.mxu0 0.0
      %581 = vmatpush.msra.mxu0 0.0
      %582 = vmatpush.msra.mxu0 0.0
      %583 = vmatpush.msra.mxu0 0.0
      %584 = vmatpush.msra.mxu0 0.0
      %585 = vmatpush.msra.mxu0 0.0
      %586 = vmatpush.msra.mxu0 0.0
      %587 = vmatpush.msra.mxu0 0.0
      %588 = vmatpush.msra.mxu0 0.0
      %589 = vmatpush.msra.mxu0 0.0
      %590 = vmatpush.msra.mxu0 0.0
      %591 = vmatpush.msra.mxu0 0.0
      %592 = vmatpush.msra.mxu0 0.0
      %593 = vmatpush.msra.mxu0 0.0
      %594 = vmatpush.msra.mxu0 0.0
      %595 = vmatpush.msra.mxu0 %v312
      %596 = vmatmul.f32.gmra.mxu0 %v578
      %v597 = vpop.f32.mrf.mxu0
      %v598 = vadd.f32 0.0, %v597
      %599 = vdwg.mxu0
      %v600 = vmul.f32 %v598, %v413
      %v601 = vadd.f32 %v600, 1e-06
      %v602 = vrsqrt.pop %v601
      %v603 = vmul.f32 %v602, %v601
      %v604 = vmul.f32 %v603, %v602
      %v605 = vmul.f32 0.5, %v604
      %v606 = vsub.f32 1.5, %v605
      %v607 = vmul.f32 %v602, %v606
      %vm608 = vweird.f32 %v601
      %vm609 = vweird.f32 %v602
      %vm610 = vmor %vm608, %vm609
      %v611 = vsel %vm610, %v602, %v607
      %v613 = vsel %vm415, %v611, 0
      %615 = vmatpush.msra.mxu0 0.0
      %616 = vmatpush.msra.mxu0 0.0
      %617 = vmatpush.msra.mxu0 0.0
      %618 = vmatpush.msra.mxu0 0.0
      %619 = vmatpush.msra.mxu0 0.0
      %620 = vmatpush.msra.mxu0 0.0
      %621 = vmatpush.msra.mxu0 0.0
      %622 = vmatpush.msra.mxu0 0.0
      %623 = vmatpush.msra.mxu0 0.0
      %624 = vmatpush.msra.mxu0 0.0
      %625 = vmatpush.msra.mxu0 0.0
      %626 = vmatpush.msra.mxu0 0.0
      %627 = vmatpush.msra.mxu0 0.0
      %628 = vmatpush.msra.mxu0 0.0
      %629 = vmatpush.msra.mxu0 0.0
      %630 = vmatpush.msra.mxu0 %v421
      %631 = vmatmul.f32.gmra.mxu0 %v613
      %v632 = vpop.f32.mrf.mxu0
      %v633 = vadd.f32 0.0, %v632
      %634 = vdwg.mxu0
      %v635 = vperm.slane %v633, 0
      %v636 = vmul.f32 %v444, %v635
      %v637 = vmul.f32 %v445, %v635
      %v638 = vmul.f32 %v446, %v635
      %v639 = vmul.f32 %v447, %v635
      %v640 = vmul.f32 %v448, %v635
      %v641 = vmul.f32 %v449, %v635
      %v642 = vmul.f32 %v450, %v635
      %v643 = vmul.f32 %v451, %v635
      %v644 = vmul.f32 %v452, %v635
      %v645 = vmul.f32 %v453, %v635
      %v646 = vmul.f32 %v454, %v635
      %v647 = vmul.f32 %v455, %v635
      %v648 = vmul.f32 %v456, %v635
      %v649 = vmul.f32 %v457, %v635
      %v650 = vmul.f32 %v458, %v635
      %v651 = vmul.f32 %v459, %v635
      %v652 = vmul.f32 %v460, %v635
      %v653 = vmul.f32 %v461, %v635
      %v654 = vmul.f32 %v462, %v635
      %v655 = vmul.f32 %v463, %v635
      %v656 = vmul.f32 %v464, %v635
      %v657 = vmul.f32 %v465, %v635
      %v658 = vmul.f32 %v466, %v635
      %v659 = vmul.f32 %v467, %v635
      %v660 = vmul.f32 %v468, %v635
      %v661 = vmul.f32 %v469, %v635
      %v662 = vmul.f32 %v470, %v635
      %v663 = vmul.f32 %v471, %v635
      %v664 = vmul.f32 %v472, %v635
      %v665 = vmul.f32 %v473, %v635
      %v666 = vmul.f32 %v474, %v635
      %v667 = vmul.f32 %v475, %v635
      %v668 = vld [vmem:[%s1] sm:$0x1]
      %v670 = vperm.slane %v668, 0
      %v672 = vmul.f32 %v636, %v670
      %v673 = vmul.f32 %v637, %v670
      %v674 = vmul.f32 %v638, %v670
      %v675 = vmul.f32 %v639, %v670
      %v676 = vmul.f32 %v640, %v670
      %v677 = vmul.f32 %v641, %v670
      %v678 = vmul.f32 %v642, %v670
      %v679 = vmul.f32 %v643, %v670
      %v680 = vmul.f32 %v644, %v670
      %v681 = vmul.f32 %v645, %v670
      %v682 = vmul.f32 %v646, %v670
      %v683 = vmul.f32 %v647, %v670
      %v684 = vmul.f32 %v648, %v670
      %v685 = vmul.f32 %v649, %v670
      %v686 = vmul.f32 %v650, %v670
      %v687 = vmul.f32 %v651, %v670
      %v688 = vmul.f32 %v652, %v670
      %v689 = vmul.f32 %v653, %v670
      %v690 = vmul.f32 %v654, %v670
      %v691 = vmul.f32 %v655, %v670
      %v692 = vmul.f32 %v656, %v670
      %v693 = vmul.f32 %v657, %v670
      %v694 = vmul.f32 %v658, %v670
      %v695 = vmul.f32 %v659, %v670
      %v696 = vmul.f32 %v660, %v670
      %v697 = vmul.f32 %v661, %v670
      %v698 = vmul.f32 %v662, %v670
      %v699 = vmul.f32 %v663, %v670
      %v700 = vmul.f32 %v664, %v670
      %v701 = vmul.f32 %v665, %v670
      %v702 = vmul.f32 %v666, %v670
      %v703 = vmul.f32 %v667, %v670
      %v704 = vld [vmem:[%s2] sm:$0x1]
      %v706 = vperm.slane %v704, 0
      %v708 = vadd.f32 %v672, %v706
      %v709 = vadd.f32 %v673, %v706
      %v710 = vadd.f32 %v674, %v706
      %v711 = vadd.f32 %v675, %v706
      %v712 = vadd.f32 %v676, %v706
      %v713 = vadd.f32 %v677, %v706
      %v714 = vadd.f32 %v678, %v706
      %v715 = vadd.f32 %v679, %v706
      %v716 = vadd.f32 %v680, %v706
      %v717 = vadd.f32 %v681, %v706
      %v718 = vadd.f32 %v682, %v706
      %v719 = vadd.f32 %v683, %v706
      %v720 = vadd.f32 %v684, %v706
      %v721 = vadd.f32 %v685, %v706
      %v722 = vadd.f32 %v686, %v706
      %v723 = vadd.f32 %v687, %v706
      %v724 = vadd.f32 %v688, %v706
      %v725 = vadd.f32 %v689, %v706
      %v726 = vadd.f32 %v690, %v706
      %v727 = vadd.f32 %v691, %v706
      %v728 = vadd.f32 %v692, %v706
      %v729 = vadd.f32 %v693, %v706
      %v730 = vadd.f32 %v694, %v706
      %v731 = vadd.f32 %v695, %v706
      %v732 = vadd.f32 %v696, %v706
      %v733 = vadd.f32 %v697, %v706
      %v734 = vadd.f32 %v698, %v706
      %v735 = vadd.f32 %v699, %v706
      %v736 = vadd.f32 %v700, %v706
      %v737 = vadd.f32 %v701, %v706
      %v738 = vadd.f32 %v702, %v706
      %v739 = vadd.f32 %v703, %v706
      %v740 = vpack.c.bf16 %v709, %v708
      %v741 = vpack.c.bf16 %v711, %v710
      %v742 = vpack.c.bf16 %v713, %v712
      %v743 = vpack.c.bf16 %v715, %v714
      %v744 = vpack.c.bf16 %v717, %v716
      %v745 = vpack.c.bf16 %v719, %v718
      %v746 = vpack.c.bf16 %v721, %v720
      %v747 = vpack.c.bf16 %v723, %v722
      %v748 = vpack.c.bf16 %v725, %v724
      %v749 = vpack.c.bf16 %v727, %v726
      %v750 = vpack.c.bf16 %v729, %v728
      %v751 = vpack.c.bf16 %v731, %v730
      %v752 = vpack.c.bf16 %v733, %v732
      %v753 = vpack.c.bf16 %v735, %v734
      %v754 = vpack.c.bf16 %v737, %v736
      %v755 = vpack.c.bf16 %v739, %v738
      %v756 = vld [vmem:[%s5] sm:$0xff]
      %v757 = vpack.c.bf16 %v756, %v756
      %v758 = vld [vmem:[%s6] sm:$0x1]
      %v760 = vperm.slane %v758, 0
      %v763 = vsel %vm314, %v740, 0
      %v766 = vsel %vm314, %v741, 0
      %v769 = vsel %vm314, %v742, 0
      %v772 = vsel %vm314, %v743, 0
      %v775 = vsel %vm314, %v744, 0
      %v778 = vsel %vm314, %v745, 0
      %v781 = vsel %vm314, %v746, 0
      %v784 = vsel %vm314, %v747, 0
      %v787 = vsel %vm314, %v748, 0
      %v790 = vsel %vm314, %v749, 0
      %v793 = vsel %vm314, %v750, 0
      %v796 = vsel %vm314, %v751, 0
      %v799 = vsel %vm314, %v752, 0
      %v802 = vsel %vm314, %v753, 0
      %v805 = vsel %vm314, %v754, 0
      %v808 = vsel %vm314, %v755, 0
      %v811 = vsel %vm419, %v757, 0
      %813 = vmatpush.bf16.msra.mxu0 0
      %814 = vmatpush.bf16.msra.mxu0 0
      %815 = vmatpush.bf16.msra.mxu0 0
      %816 = vmatpush.bf16.msra.mxu0 0
      %817 = vmatpush.bf16.msra.mxu0 0
      %818 = vmatpush.bf16.msra.mxu0 0
      %819 = vmatpush.bf16.msra.mxu0 0
      %820 = vmatpush.bf16.msra.mxu0 %v811
      %821 = vmatmul.bf16.gmra.mxu0 %v763
      %v822 = vpop.f32.mrf.mxu0
      %v823 = vadd.f32 %v760, %v822
      %v824 = vpop.f32.mrf.mxu0
      %v825 = vadd.f32 %v760, %v824
      %826 = vmatmul.bf16.gmra.mxu0 %v766
      %v827 = vpop.f32.mrf.mxu0
      %v828 = vadd.f32 %v760, %v827
      %v829 = vpop.f32.mrf.mxu0
      %v830 = vadd.f32 %v760, %v829
      %831 = vmatmul.bf16.gmra.mxu0 %v769
      %v832 = vpop.f32.mrf.mxu0
      %v833 = vadd.f32 %v760, %v832
      %v834 = vpop.f32.mrf.mxu0
      %v835 = vadd.f32 %v760, %v834
      %836 = vmatmul.bf16.gmra.mxu0 %v772
      %v837 = vpop.f32.mrf.mxu0
      %v838 = vadd.f32 %v760, %v837
      %v839 = vpop.f32.mrf.mxu0
      %v840 = vadd.f32 %v760, %v839
      %841 = vmatmul.bf16.gmra.mxu0 %v775
      %v842 = vpop.f32.mrf.mxu0
      %v843 = vadd.f32 %v760, %v842
      %v844 = vpop.f32.mrf.mxu0
      %v845 = vadd.f32 %v760, %v844
      %846 = vmatmul.bf16.gmra.mxu0 %v778
      %v847 = vpop.f32.mrf.mxu0
      %v848 = vadd.f32 %v760, %v847
      %v849 = vpop.f32.mrf.mxu0
      %v850 = vadd.f32 %v760, %v849
      %851 = vmatmul.bf16.gmra.mxu0 %v781
      %v852 = vpop.f32.mrf.mxu0
      %v853 = vadd.f32 %v760, %v852
      %v854 = vpop.f32.mrf.mxu0
      %v855 = vadd.f32 %v760, %v854
      %856 = vmatmul.bf16.gmra.mxu0 %v784
      %v857 = vpop.f32.mrf.mxu0
      %v858 = vadd.f32 %v760, %v857
      %v859 = vpop.f32.mrf.mxu0
      %v860 = vadd.f32 %v760, %v859
      %861 = vmatmul.bf16.gmra.mxu0 %v787
      %v862 = vpop.f32.mrf.mxu0
      %v863 = vadd.f32 %v760, %v862
      %v864 = vpop.f32.mrf.mxu0
      %v865 = vadd.f32 %v760, %v864
      %866 = vmatmul.bf16.gmra.mxu0 %v790
      %v867 = vpop.f32.mrf.mxu0
      %v868 = vadd.f32 %v760, %v867
      %v869 = vpop.f32.mrf.mxu0
      %v870 = vadd.f32 %v760, %v869
      %871 = vmatmul.bf16.gmra.mxu0 %v793
      %v872 = vpop.f32.mrf.mxu0
      %v873 = vadd.f32 %v760, %v872
      %v874 = vpop.f32.mrf.mxu0
      %v875 = vadd.f32 %v760, %v874
      %876 = vmatmul.bf16.gmra.mxu0 %v796
      %v877 = vpop.f32.mrf.mxu0
      %v878 = vadd.f32 %v760, %v877
      %v879 = vpop.f32.mrf.mxu0
      %v880 = vadd.f32 %v760, %v879
      %881 = vmatmul.bf16.gmra.mxu0 %v799
      %v882 = vpop.f32.mrf.mxu0
      %v883 = vadd.f32 %v760, %v882
      %v884 = vpop.f32.mrf.mxu0
      %v885 = vadd.f32 %v760, %v884
      %886 = vmatmul.bf16.gmra.mxu0 %v802
      %v887 = vpop.f32.mrf.mxu0
      %v888 = vadd.f32 %v760, %v887
      %v889 = vpop.f32.mrf.mxu0
      %v890 = vadd.f32 %v760, %v889
      %891 = vmatmul.bf16.gmra.mxu0 %v805
      %v892 = vpop.f32.mrf.mxu0
      %v893 = vadd.f32 %v760, %v892
      %v894 = vpop.f32.mrf.mxu0
      %v895 = vadd.f32 %v760, %v894
      %896 = vmatmul.bf16.gmra.mxu0 %v808
      %v897 = vpop.f32.mrf.mxu0
      %v898 = vadd.f32 %v760, %v897
      %v899 = vpop.f32.mrf.mxu0
      %v900 = vadd.f32 %v760, %v899
      %901 = vdwg.mxu0
      %vm902 = vcmask 523264
      %903 = vst.msk [vmem:[%s278] sm:$0xff] %vm902, %v823
      %904 = vst.msk [vmem:[%s278 + $0x8] sm:$0xff] %vm902, %v825
      %905 = vst.msk [vmem:[%s278 + $0x10] sm:$0xff] %vm902, %v828
      %906 = vst.msk [vmem:[%s278 + $0x18] sm:$0xff] %vm902, %v830
      %907 = vst.msk [vmem:[%s278 + $0x20] sm:$0xff] %vm902, %v833
      %908 = vst.msk [vmem:[%s278 + $0x28] sm:$0xff] %vm902, %v835
      %909 = vst.msk [vmem:[%s278 + $0x30] sm:$0xff] %vm902, %v838
      %910 = vst.msk [vmem:[%s278 + $0x38] sm:$0xff] %vm902, %v840
      %911 = vst.msk [vmem:[%s278 + $0x40] sm:$0xff] %vm902, %v843
      %912 = vst.msk [vmem:[%s278 + $0x48] sm:$0xff] %vm902, %v845
      %913 = vst.msk [vmem:[%s278 + $0x50] sm:$0xff] %vm902, %v848
      %914 = vst.msk [vmem:[%s278 + $0x58] sm:$0xff] %vm902, %v850
      %915 = vst.msk [vmem:[%s278 + $0x60] sm:$0xff] %vm902, %v853
      %916 = vst.msk [vmem:[%s278 + $0x68] sm:$0xff] %vm902, %v855
      %917 = vst.msk [vmem:[%s278 + $0x70] sm:$0xff] %vm902, %v858
      %918 = vst.msk [vmem:[%s278 + $0x78] sm:$0xff] %vm902, %v860
      %919 = vst.msk [vmem:[%s278 + $0x80] sm:$0xff] %vm902, %v863
      %920 = vst.msk [vmem:[%s278 + $0x88] sm:$0xff] %vm902, %v865
      %921 = vst.msk [vmem:[%s278 + $0x90] sm:$0xff] %vm902, %v868
      %922 = vst.msk [vmem:[%s278 + $0x98] sm:$0xff] %vm902, %v870
      %923 = vst.msk [vmem:[%s278 + $0xa0] sm:$0xff] %vm902, %v873
      %924 = vst.msk [vmem:[%s278 + $0xa8] sm:$0xff] %vm902, %v875
      %925 = vst.msk [vmem:[%s278 + $0xb0] sm:$0xff] %vm902, %v878
      %926 = vst.msk [vmem:[%s278 + $0xb8] sm:$0xff] %vm902, %v880
      %927 = vst.msk [vmem:[%s278 + $0xc0] sm:$0xff] %vm902, %v883
      %928 = vst.msk [vmem:[%s278 + $0xc8] sm:$0xff] %vm902, %v885
      %929 = vst.msk [vmem:[%s278 + $0xd0] sm:$0xff] %vm902, %v888
      %930 = vst.msk [vmem:[%s278 + $0xd8] sm:$0xff] %vm902, %v890
      %931 = vst.msk [vmem:[%s278 + $0xe0] sm:$0xff] %vm902, %v893
      %932 = vst.msk [vmem:[%s278 + $0xe8] sm:$0xff] %vm902, %v895
      %933 = vst.msk [vmem:[%s278 + $0xf0] sm:$0xff] %vm902, %v898
      %934 = vst.msk [vmem:[%s278 + $0xf8] sm:$0xff] %vm902, %v900
      %p935 = scmp.lt.s32.totalorder %s18, 1
      %s936 = scalar_select %p935, %s18, 1
      %s937 = smul.addr %s936, 32
      %s938 = smul.addr %s937, 8
      %s939 = scalar_lea.vmem %s7, %s938
      // Predicated region
      $region49: #{spatial_transformer_forward.9} parent=47 // pred_check
        %p940 = pneg %p188
      $region50: #{spatial_transformer_forward.9} parent=47 // pred_check_branch
        %942 = sbr.rel (%p940) target = $region52
      $region51: #{spatial_transformer_forward.9} parent=47 // pred_region
        _
      $region52: #{spatial_transformer_forward.9} parent=47 // pred_fallthru
        _
    $region48: #{spatial_transformer_forward.9} parent=5 // pred_fallthru
      _
    %p943 = scmp.le.s32.totalorder 2, %s13
    // Predicated region
    $region53: #{spatial_transformer_forward.9} parent=5 // pred_check
      %p944 = pneg %p943
    $region54: #{spatial_transformer_forward.9} parent=5 // pred_check_branch
      %946 = sbr.rel (%p944) target = $region56
    $region55: #{spatial_transformer_forward.9} parent=5 // pred_region
      %s947 = ssub.s32 %s13, 2
      // Predicated region
      $region57: #{spatial_transformer_forward.9} parent=55 // pred_check
        %p948 = pneg %p194
      $region58: #{spatial_transformer_forward.9} parent=55 // pred_check_branch
        %950 = sbr.rel (%p948) target = $region60
      $region59: #{spatial_transformer_forward.9} parent=55 // pred_region
        %p951 = scmp.lt.s32.totalorder %s19, 1
        %s952 = scalar_select %p951, %s19, 1
        %s953 = smul.addr %s952, 32
        %s954 = smul.addr %s953, 8
        %s955 = scalar_lea.vmem %s7, %s954
      $region60: #{spatial_transformer_forward.9} parent=55 // pred_fallthru
        _
    $region56: #{spatial_transformer_forward.9} parent=5 // pred_fallthru
      _
  $region6: #{spatial_transformer_forward.9} parent=0 // loop_footer
    %s17 = sadd.s32 1, %s13
  $region7: #{spatial_transformer_forward.9} parent=0 // loop_footer_branch
    %12 = sbr.rel target = $region3
  $region8: #{spatial_transformer_forward.9} parent=0 // loop_exit
    _

// kernel: spatial_transformer_forward.10
$region0: #{spatial_transformer_forward.10}
  #allocation0 [shape = 'u32[]', space=smem, size = 0x4, offset = 0x4, fixed_abs, tag = 'smem constant byte address 0x4 - core index']
  #allocation1 [shape = 'u32[72,128]{1,0:T(1,128)}', space=vmem, size = 0x9000, scoped, tag = 'internal scratch']
  %s0 = inlined_call_operand.vmem [shape: f32[512,64], index: 0, kind: input, shape index: {}]
  %s1 = inlined_call_operand.vmem [shape: f32[1,64], index: 1, kind: input, shape index: {}]
  %s2 = inlined_call_operand.vmem [shape: f32[1,64], index: 2, kind: input, shape index: {}]
  %s3 = inlined_call_operand.vmem [shape: f32[64,192], index: 3, kind: input, shape index: {}]
  %s4 = inlined_call_operand.vmem [shape: f32[1,192], index: 4, kind: input, shape index: {}]
  %s5 = inlined_call_operand.vmem [shape: f32[512,192], index: 5, kind: output, shape index: {}]
  %s6 = sld [smem:[#allocation0]]
  $region53: #{spatial_transformer_forward.10} parent=0
    _
  %s8 = ssub.s32 1, %s6
  %s9 = scalar_select 0, %s8, %s6
  loop: start=0, step=1, limit=4
  $region2: #{spatial_transformer_forward.10} parent=0 // loop_pre_header
    _
  $region3: #{spatial_transformer_forward.10} parent=0 // loop_header
    %s11 = sphi 0, %s15
    %p12 = scmp.ge.s32.totalorder %s11, 4
    %s21 = sphi 0, %s23
    %s24 = sphi 0, %s21
    %s25 = sphi 0, %s24
    %s41 = sphi 0, %s25
    %s45 = sphi 0, %s45
    %s47 = sphi 0, %s45
    %s48 = sphi 0, %s47
    %s62 = sphi 0, %s48
    %s66 = sphi 0, %s66
    %s68 = sphi 0, %s66
    %s69 = sphi 0, %s68
    %s83 = sphi 0, %s69
    %s87 = sphi 0, %s87
    %s89 = sphi 0, %s87
    %s90 = sphi 0, %s89
    %s104 = sphi 0, %s90
    %s108 = sphi 0, %s108
    %s110 = sphi 0, %s108
    %s111 = sphi 0, %s110
    %s125 = sphi 0, %s111
    %s131 = sphi 0, %s133
    %s134 = sphi 0, %s131
    %s135 = sphi 0, %s134
    %s151 = sphi 0, %s135
  $region4: #{spatial_transformer_forward.10} parent=0 // loop_header_branch
    %14 = sbr.rel (%p12) target = $region8
  $region5: #{spatial_transformer_forward.10} parent=0 // loop_body
    %s16 = ssub.s32 %s11, 1
    %s17 = ssub.s32 %s11, 2
    %s18 = sadd.s32 %s11, 1
    %s19 = ssub.s32 %s11, %s18
    %p20 = scmp.eq.s32.totalorder %s19, 0
    %s22 = sadd.s32 %s21, 1
    %s23 = scalar_select %p20, %s21, %s22
    %p26 = pneg %p20
    %p27 = scmp.eq.s32.totalorder %s11, 1
    %p28 = por %p26, %p27
    %p29 = scmp.ne.s32.totalorder %s21, %s24
    %p30 = scmp.eq.s32.totalorder %s11, 0
    %p31 = por %p29, %p30
    %p32 = scmp.ne.s32.totalorder %s21, %s24
    %p33 = scmp.eq.s32.totalorder %s16, 1
    %p34 = por %p32, %p33
    %p35 = scmp.ne.s32.totalorder %s24, %s25
    %p36 = scmp.eq.s32.totalorder %s16, 0
    %p37 = por %p35, %p36
    %p38 = scmp.ne.s32.totalorder %s24, %s25
    %p39 = scmp.eq.s32.totalorder %s17, 1
    %p40 = por %p38, %p39
    %p42 = scmp.ne.s32.totalorder %s25, %s41
    %p43 = scmp.eq.s32.totalorder %s17, 0
    %p44 = por %p42, %p43
    %s46 = sadd.s32 %s45, 1
    %p49 = scmp.eq.s32.totalorder %s11, 1
    %p50 = scmp.ne.s32.totalorder %s45, %s47
    %p51 = scmp.eq.s32.totalorder %s11, 0
    %p52 = por %p50, %p51
    %p53 = scmp.ne.s32.totalorder %s45, %s47
    %p54 = scmp.eq.s32.totalorder %s16, 1
    %p55 = por %p53, %p54
    %p56 = scmp.ne.s32.totalorder %s47, %s48
    %p57 = scmp.eq.s32.totalorder %s16, 0
    %p58 = por %p56, %p57
    %p59 = scmp.ne.s32.totalorder %s47, %s48
    %p60 = scmp.eq.s32.totalorder %s17, 1
    %p61 = por %p59, %p60
    %p63 = scmp.ne.s32.totalorder %s48, %s62
    %p64 = scmp.eq.s32.totalorder %s17, 0
    %p65 = por %p63, %p64
    %s67 = sadd.s32 %s66, 1
    %p70 = scmp.eq.s32.totalorder %s11, 1
    %p71 = scmp.ne.s32.totalorder %s66, %s68
    %p72 = scmp.eq.s32.totalorder %s11, 0
    %p73 = por %p71, %p72
    %p74 = scmp.ne.s32.totalorder %s66, %s68
    %p75 = scmp.eq.s32.totalorder %s16, 1
    %p76 = por %p74, %p75
    %p77 = scmp.ne.s32.totalorder %s68, %s69
    %p78 = scmp.eq.s32.totalorder %s16, 0
    %p79 = por %p77, %p78
    %p80 = scmp.ne.s32.totalorder %s68, %s69
    %p81 = scmp.eq.s32.totalorder %s17, 1
    %p82 = por %p80, %p81
    %p84 = scmp.ne.s32.totalorder %s69, %s83
    %p85 = scmp.eq.s32.totalorder %s17, 0
    %p86 = por %p84, %p85
    %s88 = sadd.s32 %s87, 1
    %p91 = scmp.eq.s32.totalorder %s11, 1
    %p92 = scmp.ne.s32.totalorder %s87, %s89
    %p93 = scmp.eq.s32.totalorder %s11, 0
    %p94 = por %p92, %p93
    %p95 = scmp.ne.s32.totalorder %s87, %s89
    %p96 = scmp.eq.s32.totalorder %s16, 1
    %p97 = por %p95, %p96
    %p98 = scmp.ne.s32.totalorder %s89, %s90
    %p99 = scmp.eq.s32.totalorder %s16, 0
    %p100 = por %p98, %p99
    %p101 = scmp.ne.s32.totalorder %s89, %s90
    %p102 = scmp.eq.s32.totalorder %s17, 1
    %p103 = por %p101, %p102
    %p105 = scmp.ne.s32.totalorder %s90, %s104
    %p106 = scmp.eq.s32.totalorder %s17, 0
    %p107 = por %p105, %p106
    %s109 = sadd.s32 %s108, 1
    %p112 = scmp.eq.s32.totalorder %s11, 1
    %p113 = scmp.ne.s32.totalorder %s108, %s110
    %p114 = scmp.eq.s32.totalorder %s11, 0
    %p115 = por %p113, %p114
    %p116 = scmp.ne.s32.totalorder %s108, %s110
    %p117 = scmp.eq.s32.totalorder %s16, 1
    %p118 = por %p116, %p117
    %p119 = scmp.ne.s32.totalorder %s110, %s111
    %p120 = scmp.eq.s32.totalorder %s16, 0
    %p121 = por %p119, %p120
    %p122 = scmp.ne.s32.totalorder %s110, %s111
    %p123 = scmp.eq.s32.totalorder %s17, 1
    %p124 = por %p122, %p123
    %p126 = scmp.ne.s32.totalorder %s111, %s125
    %p127 = scmp.eq.s32.totalorder %s17, 0
    %p128 = por %p126, %p127
    %s129 = ssub.s32 %s11, %s18
    %p130 = scmp.eq.s32.totalorder %s129, 0
    %s132 = sadd.s32 %s131, 1
    %s133 = scalar_select %p130, %s131, %s132
    %p136 = pneg %p130
    %p137 = scmp.eq.s32.totalorder %s11, 1
    %p138 = por %p136, %p137
    %p139 = scmp.ne.s32.totalorder %s131, %s134
    %p140 = scmp.eq.s32.totalorder %s11, 0
    %p141 = por %p139, %p140
    %p142 = scmp.ne.s32.totalorder %s131, %s134
    %p143 = scmp.eq.s32.totalorder %s16, 1
    %p144 = por %p142, %p143
    %p145 = scmp.ne.s32.totalorder %s134, %s135
    %p146 = scmp.eq.s32.totalorder %s16, 0
    %p147 = por %p145, %p146
    %p148 = scmp.ne.s32.totalorder %s134, %s135
    %p149 = scmp.eq.s32.totalorder %s17, 1
    %p150 = por %p148, %p149
    %p152 = scmp.ne.s32.totalorder %s135, %s151
    %p153 = scmp.eq.s32.totalorder %s17, 0
    %p154 = por %p152, %p153
    %p155 = scmp.le.s32.totalorder 1, %s11
    %p156 = scmp.lt.s32.totalorder %s11, 3
    %p157 = pnand %p155, %p156
    %p158 = pneg %p157
    // Predicated region
    $region9: #{spatial_transformer_forward.10} parent=5 // pred_check
      _
    $region10: #{spatial_transformer_forward.10} parent=5 // pred_check_branch
      %160 = sbr.rel (%p157) target = $region12
    $region11: #{spatial_transformer_forward.10} parent=5 // pred_region
      %s161 = ssub.s32 %s11, 1
      // Predicated region
      $region13: #{spatial_transformer_forward.10} parent=11 // pred_check
        %p162 = pneg %p58
      $region14: #{spatial_transformer_forward.10} parent=11 // pred_check_branch
        %164 = sbr.rel (%p162) target = $region16
      $region15: #{spatial_transformer_forward.10} parent=11 // pred_region
        _
      $region16: #{spatial_transformer_forward.10} parent=11 // pred_fallthru
        _
      // Predicated region
      $region17: #{spatial_transformer_forward.10} parent=11 // pred_check
        %p165 = pneg %p79
      $region18: #{spatial_transformer_forward.10} parent=11 // pred_check_branch
        %167 = sbr.rel (%p165) target = $region20
      $region19: #{spatial_transformer_forward.10} parent=11 // pred_region
        _
      $region20: #{spatial_transformer_forward.10} parent=11 // pred_fallthru
        _
      // Predicated region
      $region21: #{spatial_transformer_forward.10} parent=11 // pred_check
        %p168 = pneg %p100
      $region22: #{spatial_transformer_forward.10} parent=11 // pred_check_branch
        %170 = sbr.rel (%p168) target = $region24
      $region23: #{spatial_transformer_forward.10} parent=11 // pred_region
        _
      $region24: #{spatial_transformer_forward.10} parent=11 // pred_fallthru
        _
      // Predicated region
      $region25: #{spatial_transformer_forward.10} parent=11 // pred_check
        %p171 = pneg %p121
      $region26: #{spatial_transformer_forward.10} parent=11 // pred_check_branch
        %173 = sbr.rel (%p171) target = $region28
      $region27: #{spatial_transformer_forward.10} parent=11 // pred_region
        _
      $region28: #{spatial_transformer_forward.10} parent=11 // pred_fallthru
        _
    $region12: #{spatial_transformer_forward.10} parent=5 // pred_fallthru
      _
    %p174 = scmp.lt.s32.totalorder %s11, 2
    // Predicated region
    $region29: #{spatial_transformer_forward.10} parent=5 // pred_check
      %p175 = pneg %p174
    $region30: #{spatial_transformer_forward.10} parent=5 // pred_check_branch
      %177 = sbr.rel (%p175) target = $region32
    $region31: #{spatial_transformer_forward.10} parent=5 // pred_region
      // Predicated region
      $region33: #{spatial_transformer_forward.10} parent=31 // pred_check
        %p178 = pneg %p31
      $region34: #{spatial_transformer_forward.10} parent=31 // pred_check_branch
        %180 = sbr.rel (%p178) target = $region36
      $region35: #{spatial_transformer_forward.10} parent=31 // pred_region
        %s181 = smul.u32 32, %s11
        %p182 = scmp.lt.s32.totalorder %s181, 63
        %s183 = scalar_select %p182, %s181, 63
        %s184 = smul.addr %s183, 8
        %s185 = scalar_lea.vmem %s0, %s184
        %s186 = smul.u32 32, %s11
      $region36: #{spatial_transformer_forward.10} parent=31 // pred_fallthru
        _
    $region32: #{spatial_transformer_forward.10} parent=5 // pred_fallthru
      _
    %p187 = scmp.le.s32.totalorder 1, %s11
    %p188 = scmp.lt.s32.totalorder %s11, 3
    %p189 = pnand %p187, %p188
    %p190 = pneg %p189
    // Predicated region
    $region37: #{spatial_transformer_forward.10} parent=5 // pred_check
      _
    $region38: #{spatial_transformer_forward.10} parent=5 // pred_check_branch
      %192 = sbr.rel (%p189) target = $region40
    $region39: #{spatial_transformer_forward.10} parent=5 // pred_region
      %s193 = ssub.s32 %s11, 1
      %s194 = smul.u32 32, %s16
      %p195 = scmp.lt.s32.totalorder %s194, 63
      %s196 = scalar_select %p195, %s194, 63
      %s197 = smul.addr %s196, 8
      %s198 = scalar_lea.vmem %s0, %s197
      %p199 = pneg %p37
      %p200 = pneg %p34
      %p201 = pneg %p58
      %p202 = pneg %p55
      %p203 = pneg %p79
      %p204 = pneg %p76
      %p205 = pneg %p100
      %p206 = pneg %p97
      %p207 = pneg %p121
      %p208 = pneg %p118
      %p209 = pneg %p147
      %p210 = pneg %p144
      %s211 = smul.u32 32, %s16
      %p212 = scmp.lt.s32.totalorder %s211, 63
      %s213 = scalar_select %p212, %s211, 63
      %s214 = smul.addr %s213, 2
      %s215 = smul.addr %s214, 8
      %s216 = scalar_lea.vmem %s5, %s215
      %s217 = smul.u32 32, %s16
      %p218 = scmp.lt.s32.totalorder %s217, 63
      %s219 = scalar_select %p218, %s217, 63
      %s220 = smul.addr %s219, 8
      %s221 = scalar_lea.vmem %s0, %s220
      %s222 = smul.u32 32, %s16
      %s223 = smul.u32 32, %s16
      %p224 = scmp.lt.s32.totalorder %s223, 63
      %s225 = scalar_select %p224, %s223, 63
      %s226 = smul.addr %s225, 2
      %s227 = smul.addr %s226, 8
      %s228 = scalar_lea.vmem %s5, %s227
      %s229 = smul.u32 32, %s16
      %v231 = vld [vmem:[%s221] sm:$0xff]
      %v232 = vld [vmem:[%s221 + $0x8] sm:$0xff]
      %v233 = vld [vmem:[%s221 + $0x10] sm:$0xff]
      %v234 = vld [vmem:[%s221 + $0x18] sm:$0xff]
      %v235 = vld [vmem:[%s221 + $0x20] sm:$0xff]
      %v236 = vld [vmem:[%s221 + $0x28] sm:$0xff]
      %v237 = vld [vmem:[%s221 + $0x30] sm:$0xff]
      %v238 = vld [vmem:[%s221 + $0x38] sm:$0xff]
      %v239 = vld [vmem:[%s221 + $0x40] sm:$0xff]
      %v240 = vld [vmem:[%s221 + $0x48] sm:$0xff]
      %v241 = vld [vmem:[%s221 + $0x50] sm:$0xff]
      %v242 = vld [vmem:[%s221 + $0x58] sm:$0xff]
      %v243 = vld [vmem:[%s221 + $0x60] sm:$0xff]
      %v244 = vld [vmem:[%s221 + $0x68] sm:$0xff]
      %v245 = vld [vmem:[%s221 + $0x70] sm:$0xff]
      %v246 = vld [vmem:[%s221 + $0x78] sm:$0xff]
      %v247 = vld [vmem:[%s221 + $0x80] sm:$0xff]
      %v248 = vld [vmem:[%s221 + $0x88] sm:$0xff]
      %v249 = vld [vmem:[%s221 + $0x90] sm:$0xff]
      %v250 = vld [vmem:[%s221 + $0x98] sm:$0xff]
      %v251 = vld [vmem:[%s221 + $0xa0] sm:$0xff]
      %v252 = vld [vmem:[%s221 + $0xa8] sm:$0xff]
      %v253 = vld [vmem:[%s221 + $0xb0] sm:$0xff]
      %v254 = vld [vmem:[%s221 + $0xb8] sm:$0xff]
      %v255 = vld [vmem:[%s221 + $0xc0] sm:$0xff]
      %v256 = vld [vmem:[%s221 + $0xc8] sm:$0xff]
      %v257 = vld [vmem:[%s221 + $0xd0] sm:$0xff]
      %v258 = vld [vmem:[%s221 + $0xd8] sm:$0xff]
      %v259 = vld [vmem:[%s221 + $0xe0] sm:$0xff]
      %v260 = vld [vmem:[%s221 + $0xe8] sm:$0xff]
      %v261 = vld [vmem:[%s221 + $0xf0] sm:$0xff]
      %v262 = vld [vmem:[%s221 + $0xf8] sm:$0xff]
      %vm263 = vcmask 523264
      %v264 = vsel %vm263, %v231, 0.0
      %265 = vadd.xlane.f32.xlu0 %v264
      %v266 = vpop.xlane.xlu0 %265
      %v267 = vsel %vm263, %v232, 0.0
      %268 = vadd.xlane.f32.xlu0 %v267
      %v269 = vpop.xlane.xlu0 %268
      %v270 = vsel %vm263, %v233, 0.0
      %271 = vadd.xlane.f32.xlu0 %v270
      %v272 = vpop.xlane.xlu0 %271
      %v273 = vsel %vm263, %v234, 0.0
      %274 = vadd.xlane.f32.xlu0 %v273
      %v275 = vpop.xlane.xlu0 %274
      %v276 = vsel %vm263, %v235, 0.0
      %277 = vadd.xlane.f32.xlu0 %v276
      %v278 = vpop.xlane.xlu0 %277
      %v279 = vsel %vm263, %v236, 0.0
      %280 = vadd.xlane.f32.xlu0 %v279
      %v281 = vpop.xlane.xlu0 %280
      %v282 = vsel %vm263, %v237, 0.0
      %283 = vadd.xlane.f32.xlu0 %v282
      %v284 = vpop.xlane.xlu0 %283
      %v285 = vsel %vm263, %v238, 0.0
      %286 = vadd.xlane.f32.xlu0 %v285
      %v287 = vpop.xlane.xlu0 %286
      %v288 = vsel %vm263, %v239, 0.0
      %289 = vadd.xlane.f32.xlu0 %v288
      %v290 = vpop.xlane.xlu0 %289
      %v291 = vsel %vm263, %v240, 0.0
      %292 = vadd.xlane.f32.xlu0 %v291
      %v293 = vpop.xlane.xlu0 %292
      %v294 = vsel %vm263, %v241, 0.0
      %295 = vadd.xlane.f32.xlu0 %v294
      %v296 = vpop.xlane.xlu0 %295
      %v297 = vsel %vm263, %v242, 0.0
      %298 = vadd.xlane.f32.xlu0 %v297
      %v299 = vpop.xlane.xlu0 %298
      %v300 = vsel %vm263, %v243, 0.0
      %301 = vadd.xlane.f32.xlu0 %v300
      %v302 = vpop.xlane.xlu0 %301
      %v303 = vsel %vm263, %v244, 0.0
      %304 = vadd.xlane.f32.xlu0 %v303
      %v305 = vpop.xlane.xlu0 %304
      %v306 = vsel %vm263, %v245, 0.0
      %307 = vadd.xlane.f32.xlu0 %v306
      %v308 = vpop.xlane.xlu0 %307
      %v309 = vsel %vm263, %v246, 0.0
      %310 = vadd.xlane.f32.xlu0 %v309
      %v311 = vpop.xlane.xlu0 %310
      %v312 = vsel %vm263, %v247, 0.0
      %313 = vadd.xlane.f32.xlu0 %v312
      %v314 = vpop.xlane.xlu0 %313
      %v315 = vsel %vm263, %v248, 0.0
      %316 = vadd.xlane.f32.xlu0 %v315
      %v317 = vpop.xlane.xlu0 %316
      %v318 = vsel %vm263, %v249, 0.0
      %319 = vadd.xlane.f32.xlu0 %v318
      %v320 = vpop.xlane.xlu0 %319
      %v321 = vsel %vm263, %v250, 0.0
      %322 = vadd.xlane.f32.xlu0 %v321
      %v323 = vpop.xlane.xlu0 %322
      %v324 = vsel %vm263, %v251, 0.0
      %325 = vadd.xlane.f32.xlu0 %v324
      %v326 = vpop.xlane.xlu0 %325
      %v327 = vsel %vm263, %v252, 0.0
      %328 = vadd.xlane.f32.xlu0 %v327
      %v329 = vpop.xlane.xlu0 %328
      %v330 = vsel %vm263, %v253, 0.0
      %331 = vadd.xlane.f32.xlu0 %v330
      %v332 = vpop.xlane.xlu0 %331
      %v333 = vsel %vm263, %v254, 0.0
      %334 = vadd.xlane.f32.xlu0 %v333
      %v335 = vpop.xlane.xlu0 %334
      %v336 = vsel %vm263, %v255, 0.0
      %337 = vadd.xlane.f32.xlu0 %v336
      %v338 = vpop.xlane.xlu0 %337
      %v339 = vsel %vm263, %v256, 0.0
      %340 = vadd.xlane.f32.xlu0 %v339
      %v341 = vpop.xlane.xlu0 %340
      %v342 = vsel %vm263, %v257, 0.0
      %343 = vadd.xlane.f32.xlu0 %v342
      %v344 = vpop.xlane.xlu0 %343
      %v345 = vsel %vm263, %v258, 0.0
      %346 = vadd.xlane.f32.xlu0 %v345
      %v347 = vpop.xlane.xlu0 %346
      %v348 = vsel %vm263, %v259, 0.0
      %349 = vadd.xlane.f32.xlu0 %v348
      %v350 = vpop.xlane.xlu0 %349
      %v351 = vsel %vm263, %v260, 0.0
      %352 = vadd.xlane.f32.xlu0 %v351
      %v353 = vpop.xlane.xlu0 %352
      %v354 = vsel %vm263, %v261, 0.0
      %355 = vadd.xlane.f32.xlu0 %v354
      %v356 = vpop.xlane.xlu0 %355
      %v357 = vsel %vm263, %v262, 0.0
      %358 = vadd.xlane.f32.xlu0 %v357
      %v359 = vpop.xlane.xlu0 %358
      %v360 = vrcp.pop 64.0
      %v361 = vmul.f32 64.0, %v360
      %v362 = vsub.f32 1.0, %v361
      %v363 = vmul.f32 %v360, %v362
      %v364 = vadd.f32 %v360, %v363
      %vm365 = vweird.f32 %v360
      %v366 = vsel %vm365, %v360, %v364
      %v367 = vmul.f32 %v266, %v366
      %v368 = vmul.f32 %v269, %v366
      %v369 = vmul.f32 %v272, %v366
      %v370 = vmul.f32 %v275, %v366
      %v371 = vmul.f32 %v278, %v366
      %v372 = vmul.f32 %v281, %v366
      %v373 = vmul.f32 %v284, %v366
      %v374 = vmul.f32 %v287, %v366
      %v375 = vmul.f32 %v290, %v366
      %v376 = vmul.f32 %v293, %v366
      %v377 = vmul.f32 %v296, %v366
      %v378 = vmul.f32 %v299, %v366
      %v379 = vmul.f32 %v302, %v366
      %v380 = vmul.f32 %v305, %v366
      %v381 = vmul.f32 %v308, %v366
      %v382 = vmul.f32 %v311, %v366
      %v383 = vmul.f32 %v314, %v366
      %v384 = vmul.f32 %v317, %v366
      %v385 = vmul.f32 %v320, %v366
      %v386 = vmul.f32 %v323, %v366
      %v387 = vmul.f32 %v326, %v366
      %v388 = vmul.f32 %v329, %v366
      %v389 = vmul.f32 %v332, %v366
      %v390 = vmul.f32 %v335, %v366
      %v391 = vmul.f32 %v338, %v366
      %v392 = vmul.f32 %v341, %v366
      %v393 = vmul.f32 %v344, %v366
      %v394 = vmul.f32 %v347, %v366
      %v395 = vmul.f32 %v350, %v366
      %v396 = vmul.f32 %v353, %v366
      %v397 = vmul.f32 %v356, %v366
      %v398 = vmul.f32 %v359, %v366
      %v399 = vsub.f32 %v231, %v367
      %v400 = vsub.f32 %v232, %v368
      %v401 = vsub.f32 %v233, %v369
      %v402 = vsub.f32 %v234, %v370
      %v403 = vsub.f32 %v235, %v371
      %v404 = vsub.f32 %v236, %v372
      %v405 = vsub.f32 %v237, %v373
      %v406 = vsub.f32 %v238, %v374
      %v407 = vsub.f32 %v239, %v375
      %v408 = vsub.f32 %v240, %v376
      %v409 = vsub.f32 %v241, %v377
      %v410 = vsub.f32 %v242, %v378
      %v411 = vsub.f32 %v243, %v379
      %v412 = vsub.f32 %v244, %v380
      %v413 = vsub.f32 %v245, %v381
      %v414 = vsub.f32 %v246, %v382
      %v415 = vsub.f32 %v247, %v383
      %v416 = vsub.f32 %v248, %v384
      %v417 = vsub.f32 %v249, %v385
      %v418 = vsub.f32 %v250, %v386
      %v419 = vsub.f32 %v251, %v387
      %v420 = vsub.f32 %v252, %v388
      %v421 = vsub.f32 %v253, %v389
      %v422 = vsub.f32 %v254, %v390
      %v423 = vsub.f32 %v255, %v391
      %v424 = vsub.f32 %v256, %v392
      %v425 = vsub.f32 %v257, %v393
      %v426 = vsub.f32 %v258, %v394
      %v427 = vsub.f32 %v259, %v395
      %v428 = vsub.f32 %v260, %v396
      %v429 = vsub.f32 %v261, %v397
      %v430 = vsub.f32 %v262, %v398
      %v431 = vmul.f32 %v399, %v399
      %v432 = vmul.f32 %v400, %v400
      %v433 = vmul.f32 %v401, %v401
      %v434 = vmul.f32 %v402, %v402
      %v435 = vmul.f32 %v403, %v403
      %v436 = vmul.f32 %v404, %v404
      %v437 = vmul.f32 %v405, %v405
      %v438 = vmul.f32 %v406, %v406
      %v439 = vmul.f32 %v407, %v407
      %v440 = vmul.f32 %v408, %v408
      %v441 = vmul.f32 %v409, %v409
      %v442 = vmul.f32 %v410, %v410
      %v443 = vmul.f32 %v411, %v411
      %v444 = vmul.f32 %v412, %v412
      %v445 = vmul.f32 %v413, %v413
      %v446 = vmul.f32 %v414, %v414
      %v447 = vmul.f32 %v415, %v415
      %v448 = vmul.f32 %v416, %v416
      %v449 = vmul.f32 %v417, %v417
      %v450 = vmul.f32 %v418, %v418
      %v451 = vmul.f32 %v419, %v419
      %v452 = vmul.f32 %v420, %v420
      %v453 = vmul.f32 %v421, %v421
      %v454 = vmul.f32 %v422, %v422
      %v455 = vmul.f32 %v423, %v423
      %v456 = vmul.f32 %v424, %v424
      %v457 = vmul.f32 %v425, %v425
      %v458 = vmul.f32 %v426, %v426
      %v459 = vmul.f32 %v427, %v427
      %v460 = vmul.f32 %v428, %v428
      %v461 = vmul.f32 %v429, %v429
      %v462 = vmul.f32 %v430, %v430
      %v463 = vsel %vm263, %v431, 0.0
      %464 = vadd.xlane.f32.xlu0 %v463
      %v465 = vpop.xlane.xlu0 %464
      %v466 = vsel %vm263, %v432, 0.0
      %467 = vadd.xlane.f32.xlu0 %v466
      %v468 = vpop.xlane.xlu0 %467
      %v469 = vsel %vm263, %v433, 0.0
      %470 = vadd.xlane.f32.xlu0 %v469
      %v471 = vpop.xlane.xlu0 %470
      %v472 = vsel %vm263, %v434, 0.0
      %473 = vadd.xlane.f32.xlu0 %v472
      %v474 = vpop.xlane.xlu0 %473
      %v475 = vsel %vm263, %v435, 0.0
      %476 = vadd.xlane.f32.xlu0 %v475
      %v477 = vpop.xlane.xlu0 %476
      %v478 = vsel %vm263, %v436, 0.0
      %479 = vadd.xlane.f32.xlu0 %v478
      %v480 = vpop.xlane.xlu0 %479
      %v481 = vsel %vm263, %v437, 0.0
      %482 = vadd.xlane.f32.xlu0 %v481
      %v483 = vpop.xlane.xlu0 %482
      %v484 = vsel %vm263, %v438, 0.0
      %485 = vadd.xlane.f32.xlu0 %v484
      %v486 = vpop.xlane.xlu0 %485
      %v487 = vsel %vm263, %v439, 0.0
      %488 = vadd.xlane.f32.xlu0 %v487
      %v489 = vpop.xlane.xlu0 %488
      %v490 = vsel %vm263, %v440, 0.0
      %491 = vadd.xlane.f32.xlu0 %v490
      %v492 = vpop.xlane.xlu0 %491
      %v493 = vsel %vm263, %v441, 0.0
      %494 = vadd.xlane.f32.xlu0 %v493
      %v495 = vpop.xlane.xlu0 %494
      %v496 = vsel %vm263, %v442, 0.0
      %497 = vadd.xlane.f32.xlu0 %v496
      %v498 = vpop.xlane.xlu0 %497
      %v499 = vsel %vm263, %v443, 0.0
      %500 = vadd.xlane.f32.xlu0 %v499
      %v501 = vpop.xlane.xlu0 %500
      %v502 = vsel %vm263, %v444, 0.0
      %503 = vadd.xlane.f32.xlu0 %v502
      %v504 = vpop.xlane.xlu0 %503
      %v505 = vsel %vm263, %v445, 0.0
      %506 = vadd.xlane.f32.xlu0 %v505
      %v507 = vpop.xlane.xlu0 %506
      %v508 = vsel %vm263, %v446, 0.0
      %509 = vadd.xlane.f32.xlu0 %v508
      %v510 = vpop.xlane.xlu0 %509
      %v511 = vsel %vm263, %v447, 0.0
      %512 = vadd.xlane.f32.xlu0 %v511
      %v513 = vpop.xlane.xlu0 %512
      %v514 = vsel %vm263, %v448, 0.0
      %515 = vadd.xlane.f32.xlu0 %v514
      %v516 = vpop.xlane.xlu0 %515
      %v517 = vsel %vm263, %v449, 0.0
      %518 = vadd.xlane.f32.xlu0 %v517
      %v519 = vpop.xlane.xlu0 %518
      %v520 = vsel %vm263, %v450, 0.0
      %521 = vadd.xlane.f32.xlu0 %v520
      %v522 = vpop.xlane.xlu0 %521
      %v523 = vsel %vm263, %v451, 0.0
      %524 = vadd.xlane.f32.xlu0 %v523
      %v525 = vpop.xlane.xlu0 %524
      %v526 = vsel %vm263, %v452, 0.0
      %527 = vadd.xlane.f32.xlu0 %v526
      %v528 = vpop.xlane.xlu0 %527
      %v529 = vsel %vm263, %v453, 0.0
      %530 = vadd.xlane.f32.xlu0 %v529
      %v531 = vpop.xlane.xlu0 %530
      %v532 = vsel %vm263, %v454, 0.0
      %533 = vadd.xlane.f32.xlu0 %v532
      %v534 = vpop.xlane.xlu0 %533
      %v535 = vsel %vm263, %v455, 0.0
      %536 = vadd.xlane.f32.xlu0 %v535
      %v537 = vpop.xlane.xlu0 %536
      %v538 = vsel %vm263, %v456, 0.0
      %539 = vadd.xlane.f32.xlu0 %v538
      %v540 = vpop.xlane.xlu0 %539
      %v541 = vsel %vm263, %v457, 0.0
      %542 = vadd.xlane.f32.xlu0 %v541
      %v543 = vpop.xlane.xlu0 %542
      %v544 = vsel %vm263, %v458, 0.0
      %545 = vadd.xlane.f32.xlu0 %v544
      %v546 = vpop.xlane.xlu0 %545
      %v547 = vsel %vm263, %v459, 0.0
      %548 = vadd.xlane.f32.xlu0 %v547
      %v549 = vpop.xlane.xlu0 %548
      %v550 = vsel %vm263, %v460, 0.0
      %551 = vadd.xlane.f32.xlu0 %v550
      %v552 = vpop.xlane.xlu0 %551
      %v553 = vsel %vm263, %v461, 0.0
      %554 = vadd.xlane.f32.xlu0 %v553
      %v555 = vpop.xlane.xlu0 %554
      %v556 = vsel %vm263, %v462, 0.0
      %557 = vadd.xlane.f32.xlu0 %v556
      %v558 = vpop.xlane.xlu0 %557
      %v559 = vmul.f32 %v465, %v366
      %v560 = vmul.f32 %v468, %v366
      %v561 = vmul.f32 %v471, %v366
      %v562 = vmul.f32 %v474, %v366
      %v563 = vmul.f32 %v477, %v366
      %v564 = vmul.f32 %v480, %v366
      %v565 = vmul.f32 %v483, %v366
      %v566 = vmul.f32 %v486, %v366
      %v567 = vmul.f32 %v489, %v366
      %v568 = vmul.f32 %v492, %v366
      %v569 = vmul.f32 %v495, %v366
      %v570 = vmul.f32 %v498, %v366
      %v571 = vmul.f32 %v501, %v366
      %v572 = vmul.f32 %v504, %v366
      %v573 = vmul.f32 %v507, %v366
      %v574 = vmul.f32 %v510, %v366
      %v575 = vmul.f32 %v513, %v366
      %v576 = vmul.f32 %v516, %v366
      %v577 = vmul.f32 %v519, %v366
      %v578 = vmul.f32 %v522, %v366
      %v579 = vmul.f32 %v525, %v366
      %v580 = vmul.f32 %v528, %v366
      %v581 = vmul.f32 %v531, %v366
      %v582 = vmul.f32 %v534, %v366
      %v583 = vmul.f32 %v537, %v366
      %v584 = vmul.f32 %v540, %v366
      %v585 = vmul.f32 %v543, %v366
      %v586 = vmul.f32 %v546, %v366
      %v587 = vmul.f32 %v549, %v366
      %v588 = vmul.f32 %v552, %v366
      %v589 = vmul.f32 %v555, %v366
      %v590 = vmul.f32 %v558, %v366
      %v591 = vadd.f32 %v559, 1e-05
      %v592 = vadd.f32 %v560, 1e-05
      %v593 = vadd.f32 %v561, 1e-05
      %v594 = vadd.f32 %v562, 1e-05
      %v595 = vadd.f32 %v563, 1e-05
      %v596 = vadd.f32 %v564, 1e-05
      %v597 = vadd.f32 %v565, 1e-05
      %v598 = vadd.f32 %v566, 1e-05
      %v599 = vadd.f32 %v567, 1e-05
      %v600 = vadd.f32 %v568, 1e-05
      %v601 = vadd.f32 %v569, 1e-05
      %v602 = vadd.f32 %v570, 1e-05
      %v603 = vadd.f32 %v571, 1e-05
      %v604 = vadd.f32 %v572, 1e-05
      %v605 = vadd.f32 %v573, 1e-05
      %v606 = vadd.f32 %v574, 1e-05
      %v607 = vadd.f32 %v575, 1e-05
      %v608 = vadd.f32 %v576, 1e-05
      %v609 = vadd.f32 %v577, 1e-05
      %v610 = vadd.f32 %v578, 1e-05
      %v611 = vadd.f32 %v579, 1e-05
      %v612 = vadd.f32 %v580, 1e-05
      %v613 = vadd.f32 %v581, 1e-05
      %v614 = vadd.f32 %v582, 1e-05
      %v615 = vadd.f32 %v583, 1e-05
      %v616 = vadd.f32 %v584, 1e-05
      %v617 = vadd.f32 %v585, 1e-05
      %v618 = vadd.f32 %v586, 1e-05
      %v619 = vadd.f32 %v587, 1e-05
      %v620 = vadd.f32 %v588, 1e-05
      %v621 = vadd.f32 %v589, 1e-05
      %v622 = vadd.f32 %v590, 1e-05
      %v623 = vrsqrt.pop %v591
      %v624 = vmul.f32 %v623, %v591
      %v625 = vmul.f32 %v624, %v623
      %v626 = vmul.f32 0.5, %v625
      %v627 = vsub.f32 1.5, %v626
      %v628 = vmul.f32 %v623, %v627
      %vm629 = vweird.f32 %v591
      %vm630 = vweird.f32 %v623
      %vm631 = vmor %vm629, %vm630
      %v632 = vsel %vm631, %v623, %v628
      %v633 = vrsqrt.pop %v592
      %v634 = vmul.f32 %v633, %v592
      %v635 = vmul.f32 %v634, %v633
      %v636 = vmul.f32 0.5, %v635
      %v637 = vsub.f32 1.5, %v636
      %v638 = vmul.f32 %v633, %v637
      %vm639 = vweird.f32 %v592
      %vm640 = vweird.f32 %v633
      %vm641 = vmor %vm639, %vm640
      %v642 = vsel %vm641, %v633, %v638
      %v643 = vrsqrt.pop %v593
      %v644 = vmul.f32 %v643, %v593
      %v645 = vmul.f32 %v644, %v643
      %v646 = vmul.f32 0.5, %v645
      %v647 = vsub.f32 1.5, %v646
      %v648 = vmul.f32 %v643, %v647
      %vm649 = vweird.f32 %v593
      %vm650 = vweird.f32 %v643
      %vm651 = vmor %vm649, %vm650
      %v652 = vsel %vm651, %v643, %v648
      %v653 = vrsqrt.pop %v594
      %v654 = vmul.f32 %v653, %v594
      %v655 = vmul.f32 %v654, %v653
      %v656 = vmul.f32 0.5, %v655
      %v657 = vsub.f32 1.5, %v656
      %v658 = vmul.f32 %v653, %v657
      %vm659 = vweird.f32 %v594
      %vm660 = vweird.f32 %v653
      %vm661 = vmor %vm659, %vm660
      %v662 = vsel %vm661, %v653, %v658
      %v663 = vrsqrt.pop %v595
      %v664 = vmul.f32 %v663, %v595
      %v665 = vmul.f32 %v664, %v663
      %v666 = vmul.f32 0.5, %v665
      %v667 = vsub.f32 1.5, %v666
      %v668 = vmul.f32 %v663, %v667
      %vm669 = vweird.f32 %v595
      %vm670 = vweird.f32 %v663
      %vm671 = vmor %vm669, %vm670
      %v672 = vsel %vm671, %v663, %v668
      %v673 = vrsqrt.pop %v596
      %v674 = vmul.f32 %v673, %v596
      %v675 = vmul.f32 %v674, %v673
      %v676 = vmul.f32 0.5, %v675
      %v677 = vsub.f32 1.5, %v676
      %v678 = vmul.f32 %v673, %v677
      %vm679 = vweird.f32 %v596
      %vm680 = vweird.f32 %v673
      %vm681 = vmor %vm679, %vm680
      %v682 = vsel %vm681, %v673, %v678
      %v683 = vrsqrt.pop %v597
      %v684 = vmul.f32 %v683, %v597
      %v685 = vmul.f32 %v684, %v683
      %v686 = vmul.f32 0.5, %v685
      %v687 = vsub.f32 1.5, %v686
      %v688 = vmul.f32 %v683, %v687
      %vm689 = vweird.f32 %v597
      %vm690 = vweird.f32 %v683
      %vm691 = vmor %vm689, %vm690
      %v692 = vsel %vm691, %v683, %v688
      %v693 = vrsqrt.pop %v598
      %v694 = vmul.f32 %v693, %v598
      %v695 = vmul.f32 %v694, %v693
      %v696 = vmul.f32 0.5, %v695
      %v697 = vsub.f32 1.5, %v696
      %v698 = vmul.f32 %v693, %v697
      %vm699 = vweird.f32 %v598
      %vm700 = vweird.f32 %v693
      %vm701 = vmor %vm699, %vm700
      %v702 = vsel %vm701, %v693, %v698
      %v703 = vrsqrt.pop %v599
      %v704 = vmul.f32 %v703, %v599
      %v705 = vmul.f32 %v704, %v703
      %v706 = vmul.f32 0.5, %v705
      %v707 = vsub.f32 1.5, %v706
      %v708 = vmul.f32 %v703, %v707
      %vm709 = vweird.f32 %v599
      %vm710 = vweird.f32 %v703
      %vm711 = vmor %vm709, %vm710
      %v712 = vsel %vm711, %v703, %v708
      %v713 = vrsqrt.pop %v600
      %v714 = vmul.f32 %v713, %v600
      %v715 = vmul.f32 %v714, %v713
      %v716 = vmul.f32 0.5, %v715
      %v717 = vsub.f32 1.5, %v716
      %v718 = vmul.f32 %v713, %v717
      %vm719 = vweird.f32 %v600
      %vm720 = vweird.f32 %v713
      %vm721 = vmor %vm719, %vm720
      %v722 = vsel %vm721, %v713, %v718
      %v723 = vrsqrt.pop %v601
      %v724 = vmul.f32 %v723, %v601
      %v725 = vmul.f32 %v724, %v723
      %v726 = vmul.f32 0.5, %v725
      %v727 = vsub.f32 1.5, %v726
      %v728 = vmul.f32 %v723, %v727
      %vm729 = vweird.f32 %v601
      %vm730 = vweird.f32 %v723
      %vm731 = vmor %vm729, %vm730
      %v732 = vsel %vm731, %v723, %v728
      %v733 = vrsqrt.pop %v602
      %v734 = vmul.f32 %v733, %v602
      %v735 = vmul.f32 %v734, %v733
      %v736 = vmul.f32 0.5, %v735
      %v737 = vsub.f32 1.5, %v736
      %v738 = vmul.f32 %v733, %v737
      %vm739 = vweird.f32 %v602
      %vm740 = vweird.f32 %v733
      %vm741 = vmor %vm739, %vm740
      %v742 = vsel %vm741, %v733, %v738
      %v743 = vrsqrt.pop %v603
      %v744 = vmul.f32 %v743, %v603
      %v745 = vmul.f32 %v744, %v743
      %v746 = vmul.f32 0.5, %v745
      %v747 = vsub.f32 1.5, %v746
      %v748 = vmul.f32 %v743, %v747
      %vm749 = vweird.f32 %v603
      %vm750 = vweird.f32 %v743
      %vm751 = vmor %vm749, %vm750
      %v752 = vsel %vm751, %v743, %v748
      %v753 = vrsqrt.pop %v604
      %v754 = vmul.f32 %v753, %v604
      %v755 = vmul.f32 %v754, %v753
      %v756 = vmul.f32 0.5, %v755
      %v757 = vsub.f32 1.5, %v756
      %v758 = vmul.f32 %v753, %v757
      %vm759 = vweird.f32 %v604
      %vm760 = vweird.f32 %v753
      %vm761 = vmor %vm759, %vm760
      %v762 = vsel %vm761, %v753, %v758
      %v763 = vrsqrt.pop %v605
      %v764 = vmul.f32 %v763, %v605
      %v765 = vmul.f32 %v764, %v763
      %v766 = vmul.f32 0.5, %v765
      %v767 = vsub.f32 1.5, %v766
      %v768 = vmul.f32 %v763, %v767
      %vm769 = vweird.f32 %v605
      %vm770 = vweird.f32 %v763
      %vm771 = vmor %vm769, %vm770
      %v772 = vsel %vm771, %v763, %v768
      %v773 = vrsqrt.pop %v606
      %v774 = vmul.f32 %v773, %v606
      %v775 = vmul.f32 %v774, %v773
      %v776 = vmul.f32 0.5, %v775
      %v777 = vsub.f32 1.5, %v776
      %v778 = vmul.f32 %v773, %v777
      %vm779 = vweird.f32 %v606
      %vm780 = vweird.f32 %v773
      %vm781 = vmor %vm779, %vm780
      %v782 = vsel %vm781, %v773, %v778
      %v783 = vrsqrt.pop %v607
      %v784 = vmul.f32 %v783, %v607
      %v785 = vmul.f32 %v784, %v783
      %v786 = vmul.f32 0.5, %v785
      %v787 = vsub.f32 1.5, %v786
      %v788 = vmul.f32 %v783, %v787
      %vm789 = vweird.f32 %v607
      %vm790 = vweird.f32 %v783
      %vm791 = vmor %vm789, %vm790
      %v792 = vsel %vm791, %v783, %v788
      %v793 = vrsqrt.pop %v608
      %v794 = vmul.f32 %v793, %v608
      %v795 = vmul.f32 %v794, %v793
      %v796 = vmul.f32 0.5, %v795
      %v797 = vsub.f32 1.5, %v796
      %v798 = vmul.f32 %v793, %v797
      %vm799 = vweird.f32 %v608
      %vm800 = vweird.f32 %v793
      %vm801 = vmor %vm799, %vm800
      %v802 = vsel %vm801, %v793, %v798
      %v803 = vrsqrt.pop %v609
      %v804 = vmul.f32 %v803, %v609
      %v805 = vmul.f32 %v804, %v803
      %v806 = vmul.f32 0.5, %v805
      %v807 = vsub.f32 1.5, %v806
      %v808 = vmul.f32 %v803, %v807
      %vm809 = vweird.f32 %v609
      %vm810 = vweird.f32 %v803
      %vm811 = vmor %vm809, %vm810
      %v812 = vsel %vm811, %v803, %v808
      %v813 = vrsqrt.pop %v610
      %v814 = vmul.f32 %v813, %v610
      %v815 = vmul.f32 %v814, %v813
      %v816 = vmul.f32 0.5, %v815
      %v817 = vsub.f32 1.5, %v816
      %v818 = vmul.f32 %v813, %v817
      %vm819 = vweird.f32 %v610
      %vm820 = vweird.f32 %v813
      %vm821 = vmor %vm819, %vm820
      %v822 = vsel %vm821, %v813, %v818
      %v823 = vrsqrt.pop %v611
      %v824 = vmul.f32 %v823, %v611
      %v825 = vmul.f32 %v824, %v823
      %v826 = vmul.f32 0.5, %v825
      %v827 = vsub.f32 1.5, %v826
      %v828 = vmul.f32 %v823, %v827
      %vm829 = vweird.f32 %v611
      %vm830 = vweird.f32 %v823
      %vm831 = vmor %vm829, %vm830
      %v832 = vsel %vm831, %v823, %v828
      %v833 = vrsqrt.pop %v612
      %v834 = vmul.f32 %v833, %v612
      %v835 = vmul.f32 %v834, %v833
      %v836 = vmul.f32 0.5, %v835
      %v837 = vsub.f32 1.5, %v836
      %v838 = vmul.f32 %v833, %v837
      %vm839 = vweird.f32 %v612
      %vm840 = vweird.f32 %v833
      %vm841 = vmor %vm839, %vm840
      %v842 = vsel %vm841, %v833, %v838
      %v843 = vrsqrt.pop %v613
      %v844 = vmul.f32 %v843, %v613
      %v845 = vmul.f32 %v844, %v843
      %v846 = vmul.f32 0.5, %v845
      %v847 = vsub.f32 1.5, %v846
      %v848 = vmul.f32 %v843, %v847
      %vm849 = vweird.f32 %v613
      %vm850 = vweird.f32 %v843
      %vm851 = vmor %vm849, %vm850
      %v852 = vsel %vm851, %v843, %v848
      %v853 = vrsqrt.pop %v614
      %v854 = vmul.f32 %v853, %v614
      %v855 = vmul.f32 %v854, %v853
      %v856 = vmul.f32 0.5, %v855
      %v857 = vsub.f32 1.5, %v856
      %v858 = vmul.f32 %v853, %v857
      %vm859 = vweird.f32 %v614
      %vm860 = vweird.f32 %v853
      %vm861 = vmor %vm859, %vm860
      %v862 = vsel %vm861, %v853, %v858
      %v863 = vrsqrt.pop %v615
      %v864 = vmul.f32 %v863, %v615
      %v865 = vmul.f32 %v864, %v863
      %v866 = vmul.f32 0.5, %v865
      %v867 = vsub.f32 1.5, %v866
      %v868 = vmul.f32 %v863, %v867
      %vm869 = vweird.f32 %v615
      %vm870 = vweird.f32 %v863
      %vm871 = vmor %vm869, %vm870
      %v872 = vsel %vm871, %v863, %v868
      %v873 = vrsqrt.pop %v616
      %v874 = vmul.f32 %v873, %v616
      %v875 = vmul.f32 %v874, %v873
      %v876 = vmul.f32 0.5, %v875
      %v877 = vsub.f32 1.5, %v876
      %v878 = vmul.f32 %v873, %v877
      %vm879 = vweird.f32 %v616
      %vm880 = vweird.f32 %v873
      %vm881 = vmor %vm879, %vm880
      %v882 = vsel %vm881, %v873, %v878
      %v883 = vrsqrt.pop %v617
      %v884 = vmul.f32 %v883, %v617
      %v885 = vmul.f32 %v884, %v883
      %v886 = vmul.f32 0.5, %v885
      %v887 = vsub.f32 1.5, %v886
      %v888 = vmul.f32 %v883, %v887
      %vm889 = vweird.f32 %v617
      %vm890 = vweird.f32 %v883
      %vm891 = vmor %vm889, %vm890
      %v892 = vsel %vm891, %v883, %v888
      %v893 = vrsqrt.pop %v618
      %v894 = vmul.f32 %v893, %v618
      %v895 = vmul.f32 %v894, %v893
      %v896 = vmul.f32 0.5, %v895
      %v897 = vsub.f32 1.5, %v896
      %v898 = vmul.f32 %v893, %v897
      %vm899 = vweird.f32 %v618
      %vm900 = vweird.f32 %v893
      %vm901 = vmor %vm899, %vm900
      %v902 = vsel %vm901, %v893, %v898
      %v903 = vrsqrt.pop %v619
      %v904 = vmul.f32 %v903, %v619
      %v905 = vmul.f32 %v904, %v903
      %v906 = vmul.f32 0.5, %v905
      %v907 = vsub.f32 1.5, %v906
      %v908 = vmul.f32 %v903, %v907
      %vm909 = vweird.f32 %v619
      %vm910 = vweird.f32 %v903
      %vm911 = vmor %vm909, %vm910
      %v912 = vsel %vm911, %v903, %v908
      %v913 = vrsqrt.pop %v620
      %v914 = vmul.f32 %v913, %v620
      %v915 = vmul.f32 %v914, %v913
      %v916 = vmul.f32 0.5, %v915
      %v917 = vsub.f32 1.5, %v916
      %v918 = vmul.f32 %v913, %v917
      %vm919 = vweird.f32 %v620
      %vm920 = vweird.f32 %v913
      %vm921 = vmor %vm919, %vm920
      %v922 = vsel %vm921, %v913, %v918
      %v923 = vrsqrt.pop %v621
      %v924 = vmul.f32 %v923, %v621
      %v925 = vmul.f32 %v924, %v923
      %v926 = vmul.f32 0.5, %v925
      %v927 = vsub.f32 1.5, %v926
      %v928 = vmul.f32 %v923, %v927
      %vm929 = vweird.f32 %v621
      %vm930 = vweird.f32 %v923
      %vm931 = vmor %vm929, %vm930
      %v932 = vsel %vm931, %v923, %v928
      %v933 = vrsqrt.pop %v622
      %v934 = vmul.f32 %v933, %v622
      %v935 = vmul.f32 %v934, %v933
      %v936 = vmul.f32 0.5, %v935
      %v937 = vsub.f32 1.5, %v936
      %v938 = vmul.f32 %v933, %v937
      %vm939 = vweird.f32 %v622
      %vm940 = vweird.f32 %v933
      %vm941 = vmor %vm939, %vm940
      %v942 = vsel %vm941, %v933, %v938
      %v943 = vmul.f32 %v399, %v632
      %v944 = vmul.f32 %v400, %v642
      %v945 = vmul.f32 %v401, %v652
      %v946 = vmul.f32 %v402, %v662
      %v947 = vmul.f32 %v403, %v672
      %v948 = vmul.f32 %v404, %v682
      %v949 = vmul.f32 %v405, %v692
      %v950 = vmul.f32 %v406, %v702
      %v951 = vmul.f32 %v407, %v712
      %v952 = vmul.f32 %v408, %v722
      %v953 = vmul.f32 %v409, %v732
      %v954 = vmul.f32 %v410, %v742
      %v955 = vmul.f32 %v411, %v752
      %v956 = vmul.f32 %v412, %v762
      %v957 = vmul.f32 %v413, %v772
      %v958 = vmul.f32 %v414, %v782
      %v959 = vmul.f32 %v415, %v792
      %v960 = vmul.f32 %v416, %v802
      %v961 = vmul.f32 %v417, %v812
      %v962 = vmul.f32 %v418, %v822
      %v963 = vmul.f32 %v419, %v832
      %v964 = vmul.f32 %v420, %v842
      %v965 = vmul.f32 %v421, %v852
      %v966 = vmul.f32 %v422, %v862
      %v967 = vmul.f32 %v423, %v872
      %v968 = vmul.f32 %v424, %v882
      %v969 = vmul.f32 %v425, %v892
      %v970 = vmul.f32 %v426, %v902
      %v971 = vmul.f32 %v427, %v912
      %v972 = vmul.f32 %v428, %v922
      %v973 = vmul.f32 %v429, %v932
      %v974 = vmul.f32 %v430, %v942
      %v975 = vld [vmem:[%s1] sm:$0x1]
      %v977 = vperm.slane %v975, 0
      %v979 = vmul.f32 %v943, %v977
      %v980 = vmul.f32 %v944, %v977
      %v981 = vmul.f32 %v945, %v977
      %v982 = vmul.f32 %v946, %v977
      %v983 = vmul.f32 %v947, %v977
      %v984 = vmul.f32 %v948, %v977
      %v985 = vmul.f32 %v949, %v977
      %v986 = vmul.f32 %v950, %v977
      %v987 = vmul.f32 %v951, %v977
      %v988 = vmul.f32 %v952, %v977
      %v989 = vmul.f32 %v953, %v977
      %v990 = vmul.f32 %v954, %v977
      %v991 = vmul.f32 %v955, %v977
      %v992 = vmul.f32 %v956, %v977
      %v993 = vmul.f32 %v957, %v977
      %v994 = vmul.f32 %v958, %v977
      %v995 = vmul.f32 %v959, %v977
      %v996 = vmul.f32 %v960, %v977
      %v997 = vmul.f32 %v961, %v977
      %v998 = vmul.f32 %v962, %v977
      %v999 = vmul.f32 %v963, %v977
      %v1000 = vmul.f32 %v964, %v977
      %v1001 = vmul.f32 %v965, %v977
      %v1002 = vmul.f32 %v966, %v977
      %v1003 = vmul.f32 %v967, %v977
      %v1004 = vmul.f32 %v968, %v977
      %v1005 = vmul.f32 %v969, %v977
      %v1006 = vmul.f32 %v970, %v977
      %v1007 = vmul.f32 %v971, %v977
      %v1008 = vmul.f32 %v972, %v977
      %v1009 = vmul.f32 %v973, %v977
      %v1010 = vmul.f32 %v974, %v977
      %v1011 = vld [vmem:[%s2] sm:$0x1]
      %v1013 = vperm.slane %v1011, 0
      %v1015 = vadd.f32 %v979, %v1013
      %v1016 = vadd.f32 %v980, %v1013
      %v1017 = vadd.f32 %v981, %v1013
      %v1018 = vadd.f32 %v982, %v1013
      %v1019 = vadd.f32 %v983, %v1013
      %v1020 = vadd.f32 %v984, %v1013
      %v1021 = vadd.f32 %v985, %v1013
      %v1022 = vadd.f32 %v986, %v1013
      %v1023 = vadd.f32 %v987, %v1013
      %v1024 = vadd.f32 %v988, %v1013
      %v1025 = vadd.f32 %v989, %v1013
      %v1026 = vadd.f32 %v990, %v1013
      %v1027 = vadd.f32 %v991, %v1013
      %v1028 = vadd.f32 %v992, %v1013
      %v1029 = vadd.f32 %v993, %v1013
      %v1030 = vadd.f32 %v994, %v1013
      %v1031 = vadd.f32 %v995, %v1013
      %v1032 = vadd.f32 %v996, %v1013
      %v1033 = vadd.f32 %v997, %v1013
      %v1034 = vadd.f32 %v998, %v1013
      %v1035 = vadd.f32 %v999, %v1013
      %v1036 = vadd.f32 %v1000, %v1013
      %v1037 = vadd.f32 %v1001, %v1013
      %v1038 = vadd.f32 %v1002, %v1013
      %v1039 = vadd.f32 %v1003, %v1013
      %v1040 = vadd.f32 %v1004, %v1013
      %v1041 = vadd.f32 %v1005, %v1013
      %v1042 = vadd.f32 %v1006, %v1013
      %v1043 = vadd.f32 %v1007, %v1013
      %v1044 = vadd.f32 %v1008, %v1013
      %v1045 = vadd.f32 %v1009, %v1013
      %v1046 = vadd.f32 %v1010, %v1013
      %v1047 = vpack.c.bf16 %v1016, %v1015
      %v1048 = vpack.c.bf16 %v1018, %v1017
      %v1049 = vpack.c.bf16 %v1020, %v1019
      %v1050 = vpack.c.bf16 %v1022, %v1021
      %v1051 = vpack.c.bf16 %v1024, %v1023
      %v1052 = vpack.c.bf16 %v1026, %v1025
      %v1053 = vpack.c.bf16 %v1028, %v1027
      %v1054 = vpack.c.bf16 %v1030, %v1029
      %v1055 = vpack.c.bf16 %v1032, %v1031
      %v1056 = vpack.c.bf16 %v1034, %v1033
      %v1057 = vpack.c.bf16 %v1036, %v1035
      %v1058 = vpack.c.bf16 %v1038, %v1037
      %v1059 = vpack.c.bf16 %v1040, %v1039
      %v1060 = vpack.c.bf16 %v1042, %v1041
      %v1061 = vpack.c.bf16 %v1044, %v1043
      %v1062 = vpack.c.bf16 %v1046, %v1045
      %v1063 = vld [vmem:[%s3] sm:$0xff]
      %v1064 = vld [vmem:[%s3 + $0x8] sm:$0xff]
      %v1065 = vld [vmem:[%s3 + $0x10] sm:$0xff]
      %v1066 = vld [vmem:[%s3 + $0x18] sm:$0xff]
      %v1067 = vld [vmem:[%s3 + $0x20] sm:$0xff]
      %v1068 = vld [vmem:[%s3 + $0x28] sm:$0xff]
      %v1069 = vld [vmem:[%s3 + $0x30] sm:$0xff]
      %v1070 = vld [vmem:[%s3 + $0x38] sm:$0xff]
      %v1071 = vld [vmem:[%s3 + $0x40] sm:$0xff]
      %v1072 = vld [vmem:[%s3 + $0x48] sm:$0xff]
      %v1073 = vld [vmem:[%s3 + $0x50] sm:$0xff]
      %v1074 = vld [vmem:[%s3 + $0x58] sm:$0xff]
      %v1075 = vld [vmem:[%s3 + $0x60] sm:$0xff]
      %v1076 = vld [vmem:[%s3 + $0x68] sm:$0xff]
      %v1077 = vld [vmem:[%s3 + $0x70] sm:$0xff]
      %v1078 = vld [vmem:[%s3 + $0x78] sm:$0xff]
      %v1079 = vpack.c.bf16 %v1065, %v1063
      %v1080 = vpack.c.bf16 %v1066, %v1064
      %v1081 = vpack.c.bf16 %v1069, %v1067
      %v1082 = vpack.c.bf16 %v1070, %v1068
      %v1083 = vpack.c.bf16 %v1073, %v1071
      %v1084 = vpack.c.bf16 %v1074, %v1072
      %v1085 = vpack.c.bf16 %v1077, %v1075
      %v1086 = vpack.c.bf16 %v1078, %v1076
      %v1087 = vld [vmem:[%s4] sm:$0x3]
      %v1089 = vperm.slane %v1087, 0
      %v1090 = vperm.slane %v1087, 1
      %v1094 = vsel %vm263, %v1047, 0
      %v1097 = vsel %vm263, %v1048, 0
      %v1100 = vsel %vm263, %v1049, 0
      %v1103 = vsel %vm263, %v1050, 0
      %v1106 = vsel %vm263, %v1051, 0
      %v1109 = vsel %vm263, %v1052, 0
      %v1112 = vsel %vm263, %v1053, 0
      %v1115 = vsel %vm263, %v1054, 0
      %v1118 = vsel %vm263, %v1055, 0
      %v1121 = vsel %vm263, %v1056, 0
      %v1124 = vsel %vm263, %v1057, 0
      %v1127 = vsel %vm263, %v1058, 0
      %v1130 = vsel %vm263, %v1059, 0
      %v1133 = vsel %vm263, %v1060, 0
      %v1136 = vsel %vm263, %v1061, 0
      %v1139 = vsel %vm263, %v1062, 0
      %1141 = vmatpush.bf16.msra.mxu0 0
      %1142 = vmatpush.bf16.msra.mxu0 0
      %1143 = vmatpush.bf16.msra.mxu0 0
      %1144 = vmatpush.bf16.msra.mxu0 0
      %1145 = vmatpush.bf16.msra.mxu0 %v1085
      %1146 = vmatpush.bf16.msra.mxu0 %v1083
      %1147 = vmatpush.bf16.msra.mxu0 %v1081
      %1148 = vmatpush.bf16.msra.mxu0 %v1079
      %1149 = vmatmul.bf16.gmra.mxu0 %v1094
      %v1150 = vpop.f32.mrf.mxu0
      %v1151 = vadd.f32 %v1089, %v1150
      %v1152 = vpop.f32.mrf.mxu0
      %v1153 = vadd.f32 %v1089, %v1152
      %1154 = vmatmul.bf16.gmra.mxu0 %v1097
      %v1155 = vpop.f32.mrf.mxu0
      %v1156 = vadd.f32 %v1089, %v1155
      %v1157 = vpop.f32.mrf.mxu0
      %v1158 = vadd.f32 %v1089, %v1157
      %1159 = vmatmul.bf16.gmra.mxu0 %v1100
      %v1160 = vpop.f32.mrf.mxu0
      %v1161 = vadd.f32 %v1089, %v1160
      %v1162 = vpop.f32.mrf.mxu0
      %v1163 = vadd.f32 %v1089, %v1162
      %1164 = vmatmul.bf16.gmra.mxu0 %v1103
      %v1165 = vpop.f32.mrf.mxu0
      %v1166 = vadd.f32 %v1089, %v1165
      %v1167 = vpop.f32.mrf.mxu0
      %v1168 = vadd.f32 %v1089, %v1167
      %1169 = vmatmul.bf16.gmra.mxu0 %v1106
      %v1170 = vpop.f32.mrf.mxu0
      %v1171 = vadd.f32 %v1089, %v1170
      %v1172 = vpop.f32.mrf.mxu0
      %v1173 = vadd.f32 %v1089, %v1172
      %1174 = vmatmul.bf16.gmra.mxu0 %v1109
      %v1175 = vpop.f32.mrf.mxu0
      %v1176 = vadd.f32 %v1089, %v1175
      %v1177 = vpop.f32.mrf.mxu0
      %v1178 = vadd.f32 %v1089, %v1177
      %1179 = vmatmul.bf16.gmra.mxu0 %v1112
      %v1180 = vpop.f32.mrf.mxu0
      %v1181 = vadd.f32 %v1089, %v1180
      %v1182 = vpop.f32.mrf.mxu0
      %v1183 = vadd.f32 %v1089, %v1182
      %1184 = vmatmul.bf16.gmra.mxu0 %v1115
      %v1185 = vpop.f32.mrf.mxu0
      %v1186 = vadd.f32 %v1089, %v1185
      %v1187 = vpop.f32.mrf.mxu0
      %v1188 = vadd.f32 %v1089, %v1187
      %1189 = vmatmul.bf16.gmra.mxu0 %v1118
      %v1190 = vpop.f32.mrf.mxu0
      %v1191 = vadd.f32 %v1089, %v1190
      %v1192 = vpop.f32.mrf.mxu0
      %v1193 = vadd.f32 %v1089, %v1192
      %1194 = vmatmul.bf16.gmra.mxu0 %v1121
      %v1195 = vpop.f32.mrf.mxu0
      %v1196 = vadd.f32 %v1089, %v1195
      %v1197 = vpop.f32.mrf.mxu0
      %v1198 = vadd.f32 %v1089, %v1197
      %1199 = vmatmul.bf16.gmra.mxu0 %v1124
      %v1200 = vpop.f32.mrf.mxu0
      %v1201 = vadd.f32 %v1089, %v1200
      %v1202 = vpop.f32.mrf.mxu0
      %v1203 = vadd.f32 %v1089, %v1202
      %1204 = vmatmul.bf16.gmra.mxu0 %v1127
      %v1205 = vpop.f32.mrf.mxu0
      %v1206 = vadd.f32 %v1089, %v1205
      %v1207 = vpop.f32.mrf.mxu0
      %v1208 = vadd.f32 %v1089, %v1207
      %1209 = vmatmul.bf16.gmra.mxu0 %v1130
      %v1210 = vpop.f32.mrf.mxu0
      %v1211 = vadd.f32 %v1089, %v1210
      %v1212 = vpop.f32.mrf.mxu0
      %v1213 = vadd.f32 %v1089, %v1212
      %1214 = vmatmul.bf16.gmra.mxu0 %v1133
      %v1215 = vpop.f32.mrf.mxu0
      %v1216 = vadd.f32 %v1089, %v1215
      %v1217 = vpop.f32.mrf.mxu0
      %v1218 = vadd.f32 %v1089, %v1217
      %1219 = vmatmul.bf16.gmra.mxu0 %v1136
      %v1220 = vpop.f32.mrf.mxu0
      %v1221 = vadd.f32 %v1089, %v1220
      %v1222 = vpop.f32.mrf.mxu0
      %v1223 = vadd.f32 %v1089, %v1222
      %1224 = vmatmul.bf16.gmra.mxu0 %v1139
      %v1225 = vpop.f32.mrf.mxu0
      %v1226 = vadd.f32 %v1089, %v1225
      %v1227 = vpop.f32.mrf.mxu0
      %v1228 = vadd.f32 %v1089, %v1227
      %1229 = vdwg.mxu0
      %1230 = vmatpush.bf16.msra.mxu0 0
      %1231 = vmatpush.bf16.msra.mxu0 0
      %1232 = vmatpush.bf16.msra.mxu0 0
      %1233 = vmatpush.bf16.msra.mxu0 0
      %1234 = vmatpush.bf16.msra.mxu0 %v1086
      %1235 = vmatpush.bf16.msra.mxu0 %v1084
      %1236 = vmatpush.bf16.msra.mxu0 %v1082
      %1237 = vmatpush.bf16.msra.mxu0 %v1080
      %1238 = vmatmul.bf16.gmra.mxu0 %v1094
      %v1239 = vpop.f32.mrf.mxu0
      %v1240 = vadd.f32 %v1090, %v1239
      %v1241 = vpop.f32.mrf.mxu0
      %v1242 = vadd.f32 %v1090, %v1241
      %1243 = vmatmul.bf16.gmra.mxu0 %v1097
      %v1244 = vpop.f32.mrf.mxu0
      %v1245 = vadd.f32 %v1090, %v1244
      %v1246 = vpop.f32.mrf.mxu0
      %v1247 = vadd.f32 %v1090, %v1246
      %1248 = vmatmul.bf16.gmra.mxu0 %v1100
      %v1249 = vpop.f32.mrf.mxu0
      %v1250 = vadd.f32 %v1090, %v1249
      %v1251 = vpop.f32.mrf.mxu0
      %v1252 = vadd.f32 %v1090, %v1251
      %1253 = vmatmul.bf16.gmra.mxu0 %v1103
      %v1254 = vpop.f32.mrf.mxu0
      %v1255 = vadd.f32 %v1090, %v1254
      %v1256 = vpop.f32.mrf.mxu0
      %v1257 = vadd.f32 %v1090, %v1256
      %1258 = vmatmul.bf16.gmra.mxu0 %v1106
      %v1259 = vpop.f32.mrf.mxu0
      %v1260 = vadd.f32 %v1090, %v1259
      %v1261 = vpop.f32.mrf.mxu0
      %v1262 = vadd.f32 %v1090, %v1261
      %1263 = vmatmul.bf16.gmra.mxu0 %v1109
      %v1264 = vpop.f32.mrf.mxu0
      %v1265 = vadd.f32 %v1090, %v1264
      %v1266 = vpop.f32.mrf.mxu0
      %v1267 = vadd.f32 %v1090, %v1266
      %1268 = vmatmul.bf16.gmra.mxu0 %v1112
      %v1269 = vpop.f32.mrf.mxu0
      %v1270 = vadd.f32 %v1090, %v1269
      %v1271 = vpop.f32.mrf.mxu0
      %v1272 = vadd.f32 %v1090, %v1271
      %1273 = vmatmul.bf16.gmra.mxu0 %v1115
      %v1274 = vpop.f32.mrf.mxu0
      %v1275 = vadd.f32 %v1090, %v1274
      %v1276 = vpop.f32.mrf.mxu0
      %v1277 = vadd.f32 %v1090, %v1276
      %1278 = vmatmul.bf16.gmra.mxu0 %v1118
      %v1279 = vpop.f32.mrf.mxu0
      %v1280 = vadd.f32 %v1090, %v1279
      %v1281 = vpop.f32.mrf.mxu0
      %v1282 = vadd.f32 %v1090, %v1281
      %1283 = vmatmul.bf16.gmra.mxu0 %v1121
      %v1284 = vpop.f32.mrf.mxu0
      %v1285 = vadd.f32 %v1090, %v1284
      %v1286 = vpop.f32.mrf.mxu0
      %v1287 = vadd.f32 %v1090, %v1286
      %1288 = vmatmul.bf16.gmra.mxu0 %v1124
      %v1289 = vpop.f32.mrf.mxu0
      %v1290 = vadd.f32 %v1090, %v1289
      %v1291 = vpop.f32.mrf.mxu0
      %v1292 = vadd.f32 %v1090, %v1291
      %1293 = vmatmul.bf16.gmra.mxu0 %v1127
      %v1294 = vpop.f32.mrf.mxu0
      %v1295 = vadd.f32 %v1090, %v1294
      %v1296 = vpop.f32.mrf.mxu0
      %v1297 = vadd.f32 %v1090, %v1296
      %1298 = vmatmul.bf16.gmra.mxu0 %v1130
      %v1299 = vpop.f32.mrf.mxu0
      %v1300 = vadd.f32 %v1090, %v1299
      %v1301 = vpop.f32.mrf.mxu0
      %v1302 = vadd.f32 %v1090, %v1301
      %1303 = vmatmul.bf16.gmra.mxu0 %v1133
      %v1304 = vpop.f32.mrf.mxu0
      %v1305 = vadd.f32 %v1090, %v1304
      %v1306 = vpop.f32.mrf.mxu0
      %v1307 = vadd.f32 %v1090, %v1306
      %1308 = vmatmul.bf16.gmra.mxu0 %v1136
      %v1309 = vpop.f32.mrf.mxu0
      %v1310 = vadd.f32 %v1090, %v1309
      %v1311 = vpop.f32.mrf.mxu0
      %v1312 = vadd.f32 %v1090, %v1311
      %1313 = vmatmul.bf16.gmra.mxu0 %v1139
      %v1314 = vpop.f32.mrf.mxu0
      %v1315 = vadd.f32 %v1090, %v1314
      %v1316 = vpop.f32.mrf.mxu0
      %v1317 = vadd.f32 %v1090, %v1316
      %1318 = vdwg.mxu0
      %1319 = vst [vmem:[%s228] sm:$0xff] %v1151
      %1320 = vst.msk [vmem:[%s228 + $0x8] sm:$0xff] %vm263, %v1240
      %1321 = vst [vmem:[%s228 + $0x10] sm:$0xff] %v1153
      %1322 = vst.msk [vmem:[%s228 + $0x18] sm:$0xff] %vm263, %v1242
      %1323 = vst [vmem:[%s228 + $0x20] sm:$0xff] %v1156
      %1324 = vst.msk [vmem:[%s228 + $0x28] sm:$0xff] %vm263, %v1245
      %1325 = vst [vmem:[%s228 + $0x30] sm:$0xff] %v1158
      %1326 = vst.msk [vmem:[%s228 + $0x38] sm:$0xff] %vm263, %v1247
      %1327 = vst [vmem:[%s228 + $0x40] sm:$0xff] %v1161
      %1328 = vst.msk [vmem:[%s228 + $0x48] sm:$0xff] %vm263, %v1250
      %1329 = vst [vmem:[%s228 + $0x50] sm:$0xff] %v1163
      %1330 = vst.msk [vmem:[%s228 + $0x58] sm:$0xff] %vm263, %v1252
      %1331 = vst [vmem:[%s228 + $0x60] sm:$0xff] %v1166
      %1332 = vst.msk [vmem:[%s228 + $0x68] sm:$0xff] %vm263, %v1255
      %1333 = vst [vmem:[%s228 + $0x70] sm:$0xff] %v1168
      %1334 = vst.msk [vmem:[%s228 + $0x78] sm:$0xff] %vm263, %v1257
      %1335 = vst [vmem:[%s228 + $0x80] sm:$0xff] %v1171
      %1336 = vst.msk [vmem:[%s228 + $0x88] sm:$0xff] %vm263, %v1260
      %1337 = vst [vmem:[%s228 + $0x90] sm:$0xff] %v1173
      %1338 = vst.msk [vmem:[%s228 + $0x98] sm:$0xff] %vm263, %v1262
      %1339 = vst [vmem:[%s228 + $0xa0] sm:$0xff] %v1176
      %1340 = vst.msk [vmem:[%s228 + $0xa8] sm:$0xff] %vm263, %v1265
      %1341 = vst [vmem:[%s228 + $0xb0] sm:$0xff] %v1178
      %1342 = vst.msk [vmem:[%s228 + $0xb8] sm:$0xff] %vm263, %v1267
      %1343 = vst [vmem:[%s228 + $0xc0] sm:$0xff] %v1181
      %1344 = vst.msk [vmem:[%s228 + $0xc8] sm:$0xff] %vm263, %v1270
      %1345 = vst [vmem:[%s228 + $0xd0] sm:$0xff] %v1183
      %1346 = vst.msk [vmem:[%s228 + $0xd8] sm:$0xff] %vm263, %v1272
      %1347 = vst [vmem:[%s228 + $0xe0] sm:$0xff] %v1186
      %1348 = vst.msk [vmem:[%s228 + $0xe8] sm:$0xff] %vm263, %v1275
      %1349 = vst [vmem:[%s228 + $0xf0] sm:$0xff] %v1188
      %1350 = vst.msk [vmem:[%s228 + $0xf8] sm:$0xff] %vm263, %v1277
      %1351 = vst [vmem:[%s228 + $0x100] sm:$0xff] %v1191
      %1352 = vst.msk [vmem:[%s228 + $0x108] sm:$0xff] %vm263, %v1280
      %1353 = vst [vmem:[%s228 + $0x110] sm:$0xff] %v1193
      %1354 = vst.msk [vmem:[%s228 + $0x118] sm:$0xff] %vm263, %v1282
      %1355 = vst [vmem:[%s228 + $0x120] sm:$0xff] %v1196
      %1356 = vst.msk [vmem:[%s228 + $0x128] sm:$0xff] %vm263, %v1285
      %1357 = vst [vmem:[%s228 + $0x130] sm:$0xff] %v1198
      %1358 = vst.msk [vmem:[%s228 + $0x138] sm:$0xff] %vm263, %v1287
      %1359 = vst [vmem:[%s228 + $0x140] sm:$0xff] %v1201
      %1360 = vst.msk [vmem:[%s228 + $0x148] sm:$0xff] %vm263, %v1290
      %1361 = vst [vmem:[%s228 + $0x150] sm:$0xff] %v1203
      %1362 = vst.msk [vmem:[%s228 + $0x158] sm:$0xff] %vm263, %v1292
      %1363 = vst [vmem:[%s228 + $0x160] sm:$0xff] %v1206
      %1364 = vst.msk [vmem:[%s228 + $0x168] sm:$0xff] %vm263, %v1295
      %1365 = vst [vmem:[%s228 + $0x170] sm:$0xff] %v1208
      %1366 = vst.msk [vmem:[%s228 + $0x178] sm:$0xff] %vm263, %v1297
      %1367 = vst [vmem:[%s228 + $0x180] sm:$0xff] %v1211
      %1368 = vst.msk [vmem:[%s228 + $0x188] sm:$0xff] %vm263, %v1300
      %1369 = vst [vmem:[%s228 + $0x190] sm:$0xff] %v1213
      %1370 = vst.msk [vmem:[%s228 + $0x198] sm:$0xff] %vm263, %v1302
      %1371 = vst [vmem:[%s228 + $0x1a0] sm:$0xff] %v1216
      %1372 = vst.msk [vmem:[%s228 + $0x1a8] sm:$0xff] %vm263, %v1305
      %1373 = vst [vmem:[%s228 + $0x1b0] sm:$0xff] %v1218
      %1374 = vst.msk [vmem:[%s228 + $0x1b8] sm:$0xff] %vm263, %v1307
      %1375 = vst [vmem:[%s228 + $0x1c0] sm:$0xff] %v1221
      %1376 = vst.msk [vmem:[%s228 + $0x1c8] sm:$0xff] %vm263, %v1310
      %1377 = vst [vmem:[%s228 + $0x1d0] sm:$0xff] %v1223
      %1378 = vst.msk [vmem:[%s228 + $0x1d8] sm:$0xff] %vm263, %v1312
      %1379 = vst [vmem:[%s228 + $0x1e0] sm:$0xff] %v1226
      %1380 = vst.msk [vmem:[%s228 + $0x1e8] sm:$0xff] %vm263, %v1315
      %1381 = vst [vmem:[%s228 + $0x1f0] sm:$0xff] %v1228
      %1382 = vst.msk [vmem:[%s228 + $0x1f8] sm:$0xff] %vm263, %v1317
      %s1383 = smul.u32 32, %s16
      %p1384 = scmp.lt.s32.totalorder %s1383, 63
      %s1385 = scalar_select %p1384, %s1383, 63
      %s1386 = smul.addr %s1385, 2
      %s1387 = smul.addr %s1386, 8
      %s1388 = scalar_lea.vmem %s5, %s1387
      // Predicated region
      $region41: #{spatial_transformer_forward.10} parent=39 // pred_check
        %p1389 = pneg %p144
      $region42: #{spatial_transformer_forward.10} parent=39 // pred_check_branch
        %1391 = sbr.rel (%p1389) target = $region44
      $region43: #{spatial_transformer_forward.10} parent=39 // pred_region
        %s1392 = smul.u32 32, %s16
      $region44: #{spatial_transformer_forward.10} parent=39 // pred_fallthru
        _
    $region40: #{spatial_transformer_forward.10} parent=5 // pred_fallthru
      _
    %p1393 = scmp.le.s32.totalorder 2, %s11
    // Predicated region
    $region45: #{spatial_transformer_forward.10} parent=5 // pred_check
      %p1394 = pneg %p1393
    $region46: #{spatial_transformer_forward.10} parent=5 // pred_check_branch
      %1396 = sbr.rel (%p1394) target = $region48
    $region47: #{spatial_transformer_forward.10} parent=5 // pred_region
      %s1397 = ssub.s32 %s11, 2
      // Predicated region
      $region49: #{spatial_transformer_forward.10} parent=47 // pred_check
        %p1398 = pneg %p150
      $region50: #{spatial_transformer_forward.10} parent=47 // pred_check_branch
        %1400 = sbr.rel (%p1398) target = $region52
      $region51: #{spatial_transformer_forward.10} parent=47 // pred_region
        %s1401 = smul.u32 32, %s17
        %p1402 = scmp.lt.s32.totalorder %s1401, 63
        %s1403 = scalar_select %p1402, %s1401, 63
        %s1404 = smul.addr %s1403, 2
        %s1405 = smul.addr %s1404, 8
        %s1406 = scalar_lea.vmem %s5, %s1405
      $region52: #{spatial_transformer_forward.10} parent=47 // pred_fallthru
        _
    $region48: #{spatial_transformer_forward.10} parent=5 // pred_fallthru
      _
  $region6: #{spatial_transformer_forward.10} parent=0 // loop_footer
    %s15 = sadd.s32 1, %s11
  $region7: #{spatial_transformer_forward.10} parent=0 // loop_footer_branch
    %10 = sbr.rel target = $region3
  $region8: #{spatial_transformer_forward.10} parent=0 // loop_exit
    _

// kernel: spatial_transformer_forward.12
$region0: #{spatial_transformer_forward.12}
  #allocation0 [shape = 'u32[]', space=smem, size = 0x4, offset = 0x4, fixed_abs, tag = 'smem constant byte address 0x4 - core index']
  #allocation1 [shape = 'u32[72,128]{1,0:T(1,128)}', space=vmem, size = 0x9000, scoped, tag = 'internal scratch']
  %s0 = inlined_call_operand.vmem [shape: f32[512,64], index: 0, kind: input, shape index: {}]
  %s1 = inlined_call_operand.vmem [shape: f32[64,64], index: 1, kind: input, shape index: {}]
  %s2 = inlined_call_operand.vmem [shape: f32[1,64], index: 2, kind: input, shape index: {}]
  %s3 = inlined_call_operand.vmem [shape: f32[512,64], index: 3, kind: input, shape index: {}]
  %s4 = inlined_call_operand.vmem [shape: f32[512,64], index: 4, kind: output, shape index: {}]
  %s5 = sld [smem:[#allocation0]]
  $region49: #{spatial_transformer_forward.12} parent=0
    _
  %s7 = ssub.s32 1, %s5
  %s8 = scalar_select 0, %s7, %s5
  loop: start=0, step=1, limit=4
  $region2: #{spatial_transformer_forward.12} parent=0 // loop_pre_header
    _
  $region3: #{spatial_transformer_forward.12} parent=0 // loop_header
    %s10 = sphi 0, %s14
    %p11 = scmp.ge.s32.totalorder %s10, 4
    %s20 = sphi 0, %s22
    %s23 = sphi 0, %s20
    %s24 = sphi 0, %s23
    %s40 = sphi 0, %s24
    %s44 = sphi 0, %s44
    %s46 = sphi 0, %s44
    %s47 = sphi 0, %s46
    %s61 = sphi 0, %s47
    %s65 = sphi 0, %s65
    %s67 = sphi 0, %s65
    %s68 = sphi 0, %s67
    %s82 = sphi 0, %s68
    %s88 = sphi 0, %s90
    %s91 = sphi 0, %s88
    %s92 = sphi 0, %s91
    %s108 = sphi 0, %s92
    %s114 = sphi 0, %s116
    %s117 = sphi 0, %s114
    %s118 = sphi 0, %s117
    %s134 = sphi 0, %s118
  $region4: #{spatial_transformer_forward.12} parent=0 // loop_header_branch
    %13 = sbr.rel (%p11) target = $region8
  $region5: #{spatial_transformer_forward.12} parent=0 // loop_body
    %s15 = ssub.s32 %s10, 1
    %s16 = ssub.s32 %s10, 2
    %s17 = sadd.s32 %s10, 1
    %s18 = ssub.s32 %s10, %s17
    %p19 = scmp.eq.s32.totalorder %s18, 0
    %s21 = sadd.s32 %s20, 1
    %s22 = scalar_select %p19, %s20, %s21
    %p25 = pneg %p19
    %p26 = scmp.eq.s32.totalorder %s10, 1
    %p27 = por %p25, %p26
    %p28 = scmp.ne.s32.totalorder %s20, %s23
    %p29 = scmp.eq.s32.totalorder %s10, 0
    %p30 = por %p28, %p29
    %p31 = scmp.ne.s32.totalorder %s20, %s23
    %p32 = scmp.eq.s32.totalorder %s15, 1
    %p33 = por %p31, %p32
    %p34 = scmp.ne.s32.totalorder %s23, %s24
    %p35 = scmp.eq.s32.totalorder %s15, 0
    %p36 = por %p34, %p35
    %p37 = scmp.ne.s32.totalorder %s23, %s24
    %p38 = scmp.eq.s32.totalorder %s16, 1
    %p39 = por %p37, %p38
    %p41 = scmp.ne.s32.totalorder %s24, %s40
    %p42 = scmp.eq.s32.totalorder %s16, 0
    %p43 = por %p41, %p42
    %s45 = sadd.s32 %s44, 1
    %p48 = scmp.eq.s32.totalorder %s10, 1
    %p49 = scmp.ne.s32.totalorder %s44, %s46
    %p50 = scmp.eq.s32.totalorder %s10, 0
    %p51 = por %p49, %p50
    %p52 = scmp.ne.s32.totalorder %s44, %s46
    %p53 = scmp.eq.s32.totalorder %s15, 1
    %p54 = por %p52, %p53
    %p55 = scmp.ne.s32.totalorder %s46, %s47
    %p56 = scmp.eq.s32.totalorder %s15, 0
    %p57 = por %p55, %p56
    %p58 = scmp.ne.s32.totalorder %s46, %s47
    %p59 = scmp.eq.s32.totalorder %s16, 1
    %p60 = por %p58, %p59
    %p62 = scmp.ne.s32.totalorder %s47, %s61
    %p63 = scmp.eq.s32.totalorder %s16, 0
    %p64 = por %p62, %p63
    %s66 = sadd.s32 %s65, 1
    %p69 = scmp.eq.s32.totalorder %s10, 1
    %p70 = scmp.ne.s32.totalorder %s65, %s67
    %p71 = scmp.eq.s32.totalorder %s10, 0
    %p72 = por %p70, %p71
    %p73 = scmp.ne.s32.totalorder %s65, %s67
    %p74 = scmp.eq.s32.totalorder %s15, 1
    %p75 = por %p73, %p74
    %p76 = scmp.ne.s32.totalorder %s67, %s68
    %p77 = scmp.eq.s32.totalorder %s15, 0
    %p78 = por %p76, %p77
    %p79 = scmp.ne.s32.totalorder %s67, %s68
    %p80 = scmp.eq.s32.totalorder %s16, 1
    %p81 = por %p79, %p80
    %p83 = scmp.ne.s32.totalorder %s68, %s82
    %p84 = scmp.eq.s32.totalorder %s16, 0
    %p85 = por %p83, %p84
    %s86 = ssub.s32 %s10, %s17
    %p87 = scmp.eq.s32.totalorder %s86, 0
    %s89 = sadd.s32 %s88, 1
    %s90 = scalar_select %p87, %s88, %s89
    %p93 = pneg %p87
    %p94 = scmp.eq.s32.totalorder %s10, 1
    %p95 = por %p93, %p94
    %p96 = scmp.ne.s32.totalorder %s88, %s91
    %p97 = scmp.eq.s32.totalorder %s10, 0
    %p98 = por %p96, %p97
    %p99 = scmp.ne.s32.totalorder %s88, %s91
    %p100 = scmp.eq.s32.totalorder %s15, 1
    %p101 = por %p99, %p100
    %p102 = scmp.ne.s32.totalorder %s91, %s92
    %p103 = scmp.eq.s32.totalorder %s15, 0
    %p104 = por %p102, %p103
    %p105 = scmp.ne.s32.totalorder %s91, %s92
    %p106 = scmp.eq.s32.totalorder %s16, 1
    %p107 = por %p105, %p106
    %p109 = scmp.ne.s32.totalorder %s92, %s108
    %p110 = scmp.eq.s32.totalorder %s16, 0
    %p111 = por %p109, %p110
    %s112 = ssub.s32 %s10, %s17
    %p113 = scmp.eq.s32.totalorder %s112, 0
    %s115 = sadd.s32 %s114, 1
    %s116 = scalar_select %p113, %s114, %s115
    %p119 = pneg %p113
    %p120 = scmp.eq.s32.totalorder %s10, 1
    %p121 = por %p119, %p120
    %p122 = scmp.ne.s32.totalorder %s114, %s117
    %p123 = scmp.eq.s32.totalorder %s10, 0
    %p124 = por %p122, %p123
    %p125 = scmp.ne.s32.totalorder %s114, %s117
    %p126 = scmp.eq.s32.totalorder %s15, 1
    %p127 = por %p125, %p126
    %p128 = scmp.ne.s32.totalorder %s117, %s118
    %p129 = scmp.eq.s32.totalorder %s15, 0
    %p130 = por %p128, %p129
    %p131 = scmp.ne.s32.totalorder %s117, %s118
    %p132 = scmp.eq.s32.totalorder %s16, 1
    %p133 = por %p131, %p132
    %p135 = scmp.ne.s32.totalorder %s118, %s134
    %p136 = scmp.eq.s32.totalorder %s16, 0
    %p137 = por %p135, %p136
    %p138 = scmp.le.s32.totalorder 1, %s10
    %p139 = scmp.lt.s32.totalorder %s10, 3
    %p140 = pnand %p138, %p139
    %p141 = pneg %p140
    // Predicated region
    $region9: #{spatial_transformer_forward.12} parent=5 // pred_check
      _
    $region10: #{spatial_transformer_forward.12} parent=5 // pred_check_branch
      %143 = sbr.rel (%p140) target = $region12
    $region11: #{spatial_transformer_forward.12} parent=5 // pred_region
      %s144 = ssub.s32 %s10, 1
      // Predicated region
      $region13: #{spatial_transformer_forward.12} parent=11 // pred_check
        %p145 = pneg %p57
      $region14: #{spatial_transformer_forward.12} parent=11 // pred_check_branch
        %147 = sbr.rel (%p145) target = $region16
      $region15: #{spatial_transformer_forward.12} parent=11 // pred_region
        _
      $region16: #{spatial_transformer_forward.12} parent=11 // pred_fallthru
        _
      // Predicated region
      $region17: #{spatial_transformer_forward.12} parent=11 // pred_check
        %p148 = pneg %p78
      $region18: #{spatial_transformer_forward.12} parent=11 // pred_check_branch
        %150 = sbr.rel (%p148) target = $region20
      $region19: #{spatial_transformer_forward.12} parent=11 // pred_region
        _
      $region20: #{spatial_transformer_forward.12} parent=11 // pred_fallthru
        _
    $region12: #{spatial_transformer_forward.12} parent=5 // pred_fallthru
      _
    %p151 = scmp.lt.s32.totalorder %s10, 2
    // Predicated region
    $region21: #{spatial_transformer_forward.12} parent=5 // pred_check
      %p152 = pneg %p151
    $region22: #{spatial_transformer_forward.12} parent=5 // pred_check_branch
      %154 = sbr.rel (%p152) target = $region24
    $region23: #{spatial_transformer_forward.12} parent=5 // pred_region
      // Predicated region
      $region25: #{spatial_transformer_forward.12} parent=23 // pred_check
        %p155 = pneg %p30
      $region26: #{spatial_transformer_forward.12} parent=23 // pred_check_branch
        %157 = sbr.rel (%p155) target = $region28
      $region27: #{spatial_transformer_forward.12} parent=23 // pred_region
        %s158 = smul.u32 32, %s10
        %p159 = scmp.lt.s32.totalorder %s158, 63
        %s160 = scalar_select %p159, %s158, 63
        %s161 = smul.addr %s160, 8
        %s162 = scalar_lea.vmem %s0, %s161
        %s163 = smul.u32 32, %s10
      $region28: #{spatial_transformer_forward.12} parent=23 // pred_fallthru
        _
      // Predicated region
      $region29: #{spatial_transformer_forward.12} parent=23 // pred_check
        %p164 = pneg %p98
      $region30: #{spatial_transformer_forward.12} parent=23 // pred_check_branch
        %166 = sbr.rel (%p164) target = $region32
      $region31: #{spatial_transformer_forward.12} parent=23 // pred_region
        %s167 = smul.u32 32, %s10
        %p168 = scmp.lt.s32.totalorder %s167, 63
        %s169 = scalar_select %p168, %s167, 63
        %s170 = smul.addr %s169, 8
        %s171 = scalar_lea.vmem %s3, %s170
        %s172 = smul.u32 32, %s10
      $region32: #{spatial_transformer_forward.12} parent=23 // pred_fallthru
        _
    $region24: #{spatial_transformer_forward.12} parent=5 // pred_fallthru
      _
    %p173 = scmp.le.s32.totalorder 1, %s10
    %p174 = scmp.lt.s32.totalorder %s10, 3
    %p175 = pnand %p173, %p174
    %p176 = pneg %p175
    // Predicated region
    $region33: #{spatial_transformer_forward.12} parent=5 // pred_check
      _
    $region34: #{spatial_transformer_forward.12} parent=5 // pred_check_branch
      %178 = sbr.rel (%p175) target = $region36
    $region35: #{spatial_transformer_forward.12} parent=5 // pred_region
      %s179 = ssub.s32 %s10, 1
      %s180 = smul.u32 32, %s15
      %p181 = scmp.lt.s32.totalorder %s180, 63
      %s182 = scalar_select %p181, %s180, 63
      %s183 = smul.addr %s182, 8
      %s184 = scalar_lea.vmem %s0, %s183
      %p185 = pneg %p36
      %p186 = pneg %p33
      %p187 = pneg %p57
      %p188 = pneg %p54
      %p189 = pneg %p78
      %p190 = pneg %p75
      %s191 = smul.u32 32, %s15
      %p192 = scmp.lt.s32.totalorder %s191, 63
      %s193 = scalar_select %p192, %s191, 63
      %s194 = smul.addr %s193, 8
      %s195 = scalar_lea.vmem %s3, %s194
      %p196 = pneg %p104
      %p197 = pneg %p101
      %p198 = pneg %p130
      %p199 = pneg %p127
      %s200 = smul.u32 32, %s15
      %p201 = scmp.lt.s32.totalorder %s200, 63
      %s202 = scalar_select %p201, %s200, 63
      %s203 = smul.addr %s202, 8
      %s204 = scalar_lea.vmem %s4, %s203
      %s205 = smul.u32 32, %s15
      %p206 = scmp.lt.s32.totalorder %s205, 63
      %s207 = scalar_select %p206, %s205, 63
      %s208 = smul.addr %s207, 8
      %s209 = scalar_lea.vmem %s0, %s208
      %s210 = smul.u32 32, %s15
      %s211 = smul.u32 32, %s15
      %p212 = scmp.lt.s32.totalorder %s211, 63
      %s213 = scalar_select %p212, %s211, 63
      %s214 = smul.addr %s213, 8
      %s215 = scalar_lea.vmem %s3, %s214
      %s216 = smul.u32 32, %s15
      %s217 = smul.u32 32, %s15
      %p218 = scmp.lt.s32.totalorder %s217, 63
      %s219 = scalar_select %p218, %s217, 63
      %s220 = smul.addr %s219, 8
      %s221 = scalar_lea.vmem %s4, %s220
      %s222 = smul.u32 32, %s15
      %v224 = vld [vmem:[%s209] sm:$0xff]
      %v225 = vld [vmem:[%s209 + $0x8] sm:$0xff]
      %v226 = vld [vmem:[%s209 + $0x10] sm:$0xff]
      %v227 = vld [vmem:[%s209 + $0x18] sm:$0xff]
      %v228 = vld [vmem:[%s209 + $0x20] sm:$0xff]
      %v229 = vld [vmem:[%s209 + $0x28] sm:$0xff]
      %v230 = vld [vmem:[%s209 + $0x30] sm:$0xff]
      %v231 = vld [vmem:[%s209 + $0x38] sm:$0xff]
      %v232 = vld [vmem:[%s209 + $0x40] sm:$0xff]
      %v233 = vld [vmem:[%s209 + $0x48] sm:$0xff]
      %v234 = vld [vmem:[%s209 + $0x50] sm:$0xff]
      %v235 = vld [vmem:[%s209 + $0x58] sm:$0xff]
      %v236 = vld [vmem:[%s209 + $0x60] sm:$0xff]
      %v237 = vld [vmem:[%s209 + $0x68] sm:$0xff]
      %v238 = vld [vmem:[%s209 + $0x70] sm:$0xff]
      %v239 = vld [vmem:[%s209 + $0x78] sm:$0xff]
      %v240 = vld [vmem:[%s209 + $0x80] sm:$0xff]
      %v241 = vld [vmem:[%s209 + $0x88] sm:$0xff]
      %v242 = vld [vmem:[%s209 + $0x90] sm:$0xff]
      %v243 = vld [vmem:[%s209 + $0x98] sm:$0xff]
      %v244 = vld [vmem:[%s209 + $0xa0] sm:$0xff]
      %v245 = vld [vmem:[%s209 + $0xa8] sm:$0xff]
      %v246 = vld [vmem:[%s209 + $0xb0] sm:$0xff]
      %v247 = vld [vmem:[%s209 + $0xb8] sm:$0xff]
      %v248 = vld [vmem:[%s209 + $0xc0] sm:$0xff]
      %v249 = vld [vmem:[%s209 + $0xc8] sm:$0xff]
      %v250 = vld [vmem:[%s209 + $0xd0] sm:$0xff]
      %v251 = vld [vmem:[%s209 + $0xd8] sm:$0xff]
      %v252 = vld [vmem:[%s209 + $0xe0] sm:$0xff]
      %v253 = vld [vmem:[%s209 + $0xe8] sm:$0xff]
      %v254 = vld [vmem:[%s209 + $0xf0] sm:$0xff]
      %v255 = vld [vmem:[%s209 + $0xf8] sm:$0xff]
      %v256 = vpack.c.bf16 %v225, %v224
      %v257 = vpack.c.bf16 %v227, %v226
      %v258 = vpack.c.bf16 %v229, %v228
      %v259 = vpack.c.bf16 %v231, %v230
      %v260 = vpack.c.bf16 %v233, %v232
      %v261 = vpack.c.bf16 %v235, %v234
      %v262 = vpack.c.bf16 %v237, %v236
      %v263 = vpack.c.bf16 %v239, %v238
      %v264 = vpack.c.bf16 %v241, %v240
      %v265 = vpack.c.bf16 %v243, %v242
      %v266 = vpack.c.bf16 %v245, %v244
      %v267 = vpack.c.bf16 %v247, %v246
      %v268 = vpack.c.bf16 %v249, %v248
      %v269 = vpack.c.bf16 %v251, %v250
      %v270 = vpack.c.bf16 %v253, %v252
      %v271 = vpack.c.bf16 %v255, %v254
      %v272 = vld [vmem:[%s1] sm:$0xff]
      %v273 = vld [vmem:[%s1 + $0x8] sm:$0xff]
      %v274 = vld [vmem:[%s1 + $0x10] sm:$0xff]
      %v275 = vld [vmem:[%s1 + $0x18] sm:$0xff]
      %v276 = vld [vmem:[%s1 + $0x20] sm:$0xff]
      %v277 = vld [vmem:[%s1 + $0x28] sm:$0xff]
      %v278 = vld [vmem:[%s1 + $0x30] sm:$0xff]
      %v279 = vld [vmem:[%s1 + $0x38] sm:$0xff]
      %v280 = vpack.c.bf16 %v273, %v272
      %v281 = vpack.c.bf16 %v275, %v274
      %v282 = vpack.c.bf16 %v277, %v276
      %v283 = vpack.c.bf16 %v279, %v278
      %v284 = vld [vmem:[%s2] sm:$0x1]
      %v286 = vperm.slane %v284, 0
      %vm288 = vcmask 523264
      %v290 = vsel %vm288, %v256, 0
      %v293 = vsel %vm288, %v257, 0
      %v296 = vsel %vm288, %v258, 0
      %v299 = vsel %vm288, %v259, 0
      %v302 = vsel %vm288, %v260, 0
      %v305 = vsel %vm288, %v261, 0
      %v308 = vsel %vm288, %v262, 0
      %v311 = vsel %vm288, %v263, 0
      %v314 = vsel %vm288, %v264, 0
      %v317 = vsel %vm288, %v265, 0
      %v320 = vsel %vm288, %v266, 0
      %v323 = vsel %vm288, %v267, 0
      %v326 = vsel %vm288, %v268, 0
      %v329 = vsel %vm288, %v269, 0
      %v332 = vsel %vm288, %v270, 0
      %v335 = vsel %vm288, %v271, 0
      %337 = vmatpush.bf16.msra.mxu0 0
      %338 = vmatpush.bf16.msra.mxu0 0
      %339 = vmatpush.bf16.msra.mxu0 0
      %340 = vmatpush.bf16.msra.mxu0 0
      %341 = vmatpush.bf16.msra.mxu0 %v283
      %342 = vmatpush.bf16.msra.mxu0 %v282
      %343 = vmatpush.bf16.msra.mxu0 %v281
      %344 = vmatpush.bf16.msra.mxu0 %v280
      %345 = vmatmul.bf16.gmra.mxu0 %v290
      %v346 = vpop.f32.mrf.mxu0
      %v347 = vadd.f32 %v286, %v346
      %v348 = vpop.f32.mrf.mxu0
      %v349 = vadd.f32 %v286, %v348
      %350 = vmatmul.bf16.gmra.mxu0 %v293
      %v351 = vpop.f32.mrf.mxu0
      %v352 = vadd.f32 %v286, %v351
      %v353 = vpop.f32.mrf.mxu0
      %v354 = vadd.f32 %v286, %v353
      %355 = vmatmul.bf16.gmra.mxu0 %v296
      %v356 = vpop.f32.mrf.mxu0
      %v357 = vadd.f32 %v286, %v356
      %v358 = vpop.f32.mrf.mxu0
      %v359 = vadd.f32 %v286, %v358
      %360 = vmatmul.bf16.gmra.mxu0 %v299
      %v361 = vpop.f32.mrf.mxu0
      %v362 = vadd.f32 %v286, %v361
      %v363 = vpop.f32.mrf.mxu0
      %v364 = vadd.f32 %v286, %v363
      %365 = vmatmul.bf16.gmra.mxu0 %v302
      %v366 = vpop.f32.mrf.mxu0
      %v367 = vadd.f32 %v286, %v366
      %v368 = vpop.f32.mrf.mxu0
      %v369 = vadd.f32 %v286, %v368
      %370 = vmatmul.bf16.gmra.mxu0 %v305
      %v371 = vpop.f32.mrf.mxu0
      %v372 = vadd.f32 %v286, %v371
      %v373 = vpop.f32.mrf.mxu0
      %v374 = vadd.f32 %v286, %v373
      %375 = vmatmul.bf16.gmra.mxu0 %v308
      %v376 = vpop.f32.mrf.mxu0
      %v377 = vadd.f32 %v286, %v376
      %v378 = vpop.f32.mrf.mxu0
      %v379 = vadd.f32 %v286, %v378
      %380 = vmatmul.bf16.gmra.mxu0 %v311
      %v381 = vpop.f32.mrf.mxu0
      %v382 = vadd.f32 %v286, %v381
      %v383 = vpop.f32.mrf.mxu0
      %v384 = vadd.f32 %v286, %v383
      %385 = vmatmul.bf16.gmra.mxu0 %v314
      %v386 = vpop.f32.mrf.mxu0
      %v387 = vadd.f32 %v286, %v386
      %v388 = vpop.f32.mrf.mxu0
      %v389 = vadd.f32 %v286, %v388
      %390 = vmatmul.bf16.gmra.mxu0 %v317
      %v391 = vpop.f32.mrf.mxu0
      %v392 = vadd.f32 %v286, %v391
      %v393 = vpop.f32.mrf.mxu0
      %v394 = vadd.f32 %v286, %v393
      %395 = vmatmul.bf16.gmra.mxu0 %v320
      %v396 = vpop.f32.mrf.mxu0
      %v397 = vadd.f32 %v286, %v396
      %v398 = vpop.f32.mrf.mxu0
      %v399 = vadd.f32 %v286, %v398
      %400 = vmatmul.bf16.gmra.mxu0 %v323
      %v401 = vpop.f32.mrf.mxu0
      %v402 = vadd.f32 %v286, %v401
      %v403 = vpop.f32.mrf.mxu0
      %v404 = vadd.f32 %v286, %v403
      %405 = vmatmul.bf16.gmra.mxu0 %v326
      %v406 = vpop.f32.mrf.mxu0
      %v407 = vadd.f32 %v286, %v406
      %v408 = vpop.f32.mrf.mxu0
      %v409 = vadd.f32 %v286, %v408
      %410 = vmatmul.bf16.gmra.mxu0 %v329
      %v411 = vpop.f32.mrf.mxu0
      %v412 = vadd.f32 %v286, %v411
      %v413 = vpop.f32.mrf.mxu0
      %v414 = vadd.f32 %v286, %v413
      %415 = vmatmul.bf16.gmra.mxu0 %v332
      %v416 = vpop.f32.mrf.mxu0
      %v417 = vadd.f32 %v286, %v416
      %v418 = vpop.f32.mrf.mxu0
      %v419 = vadd.f32 %v286, %v418
      %420 = vmatmul.bf16.gmra.mxu0 %v335
      %v421 = vpop.f32.mrf.mxu0
      %v422 = vadd.f32 %v286, %v421
      %v423 = vpop.f32.mrf.mxu0
      %v424 = vadd.f32 %v286, %v423
      %425 = vdwg.mxu0
      %v426 = vld [vmem:[%s215] sm:$0xff]
      %v427 = vld [vmem:[%s215 + $0x8] sm:$0xff]
      %v428 = vld [vmem:[%s215 + $0x10] sm:$0xff]
      %v429 = vld [vmem:[%s215 + $0x18] sm:$0xff]
      %v430 = vld [vmem:[%s215 + $0x20] sm:$0xff]
      %v431 = vld [vmem:[%s215 + $0x28] sm:$0xff]
      %v432 = vld [vmem:[%s215 + $0x30] sm:$0xff]
      %v433 = vld [vmem:[%s215 + $0x38] sm:$0xff]
      %v434 = vld [vmem:[%s215 + $0x40] sm:$0xff]
      %v435 = vld [vmem:[%s215 + $0x48] sm:$0xff]
      %v436 = vld [vmem:[%s215 + $0x50] sm:$0xff]
      %v437 = vld [vmem:[%s215 + $0x58] sm:$0xff]
      %v438 = vld [vmem:[%s215 + $0x60] sm:$0xff]
      %v439 = vld [vmem:[%s215 + $0x68] sm:$0xff]
      %v440 = vld [vmem:[%s215 + $0x70] sm:$0xff]
      %v441 = vld [vmem:[%s215 + $0x78] sm:$0xff]
      %v442 = vld [vmem:[%s215 + $0x80] sm:$0xff]
      %v443 = vld [vmem:[%s215 + $0x88] sm:$0xff]
      %v444 = vld [vmem:[%s215 + $0x90] sm:$0xff]
      %v445 = vld [vmem:[%s215 + $0x98] sm:$0xff]
      %v446 = vld [vmem:[%s215 + $0xa0] sm:$0xff]
      %v447 = vld [vmem:[%s215 + $0xa8] sm:$0xff]
      %v448 = vld [vmem:[%s215 + $0xb0] sm:$0xff]
      %v449 = vld [vmem:[%s215 + $0xb8] sm:$0xff]
      %v450 = vld [vmem:[%s215 + $0xc0] sm:$0xff]
      %v451 = vld [vmem:[%s215 + $0xc8] sm:$0xff]
      %v452 = vld [vmem:[%s215 + $0xd0] sm:$0xff]
      %v453 = vld [vmem:[%s215 + $0xd8] sm:$0xff]
      %v454 = vld [vmem:[%s215 + $0xe0] sm:$0xff]
      %v455 = vld [vmem:[%s215 + $0xe8] sm:$0xff]
      %v456 = vld [vmem:[%s215 + $0xf0] sm:$0xff]
      %v457 = vld [vmem:[%s215 + $0xf8] sm:$0xff]
      %v458 = vadd.f32 %v347, %v426
      %v459 = vadd.f32 %v349, %v427
      %v460 = vadd.f32 %v352, %v428
      %v461 = vadd.f32 %v354, %v429
      %v462 = vadd.f32 %v357, %v430
      %v463 = vadd.f32 %v359, %v431
      %v464 = vadd.f32 %v362, %v432
      %v465 = vadd.f32 %v364, %v433
      %v466 = vadd.f32 %v367, %v434
      %v467 = vadd.f32 %v369, %v435
      %v468 = vadd.f32 %v372, %v436
      %v469 = vadd.f32 %v374, %v437
      %v470 = vadd.f32 %v377, %v438
      %v471 = vadd.f32 %v379, %v439
      %v472 = vadd.f32 %v382, %v440
      %v473 = vadd.f32 %v384, %v441
      %v474 = vadd.f32 %v387, %v442
      %v475 = vadd.f32 %v389, %v443
      %v476 = vadd.f32 %v392, %v444
      %v477 = vadd.f32 %v394, %v445
      %v478 = vadd.f32 %v397, %v446
      %v479 = vadd.f32 %v399, %v447
      %v480 = vadd.f32 %v402, %v448
      %v481 = vadd.f32 %v404, %v449
      %v482 = vadd.f32 %v407, %v450
      %v483 = vadd.f32 %v409, %v451
      %v484 = vadd.f32 %v412, %v452
      %v485 = vadd.f32 %v414, %v453
      %v486 = vadd.f32 %v417, %v454
      %v487 = vadd.f32 %v419, %v455
      %v488 = vadd.f32 %v422, %v456
      %v489 = vadd.f32 %v424, %v457
      %490 = vst.msk [vmem:[%s221] sm:$0xff] %vm288, %v458
      %491 = vst.msk [vmem:[%s221 + $0x8] sm:$0xff] %vm288, %v459
      %492 = vst.msk [vmem:[%s221 + $0x10] sm:$0xff] %vm288, %v460
      %493 = vst.msk [vmem:[%s221 + $0x18] sm:$0xff] %vm288, %v461
      %494 = vst.msk [vmem:[%s221 + $0x20] sm:$0xff] %vm288, %v462
      %495 = vst.msk [vmem:[%s221 + $0x28] sm:$0xff] %vm288, %v463
      %496 = vst.msk [vmem:[%s221 + $0x30] sm:$0xff] %vm288, %v464
      %497 = vst.msk [vmem:[%s221 + $0x38] sm:$0xff] %vm288, %v465
      %498 = vst.msk [vmem:[%s221 + $0x40] sm:$0xff] %vm288, %v466
      %499 = vst.msk [vmem:[%s221 + $0x48] sm:$0xff] %vm288, %v467
      %500 = vst.msk [vmem:[%s221 + $0x50] sm:$0xff] %vm288, %v468
      %501 = vst.msk [vmem:[%s221 + $0x58] sm:$0xff] %vm288, %v469
      %502 = vst.msk [vmem:[%s221 + $0x60] sm:$0xff] %vm288, %v470
      %503 = vst.msk [vmem:[%s221 + $0x68] sm:$0xff] %vm288, %v471
      %504 = vst.msk [vmem:[%s221 + $0x70] sm:$0xff] %vm288, %v472
      %505 = vst.msk [vmem:[%s221 + $0x78] sm:$0xff] %vm288, %v473
      %506 = vst.msk [vmem:[%s221 + $0x80] sm:$0xff] %vm288, %v474
      %507 = vst.msk [vmem:[%s221 + $0x88] sm:$0xff] %vm288, %v475
      %508 = vst.msk [vmem:[%s221 + $0x90] sm:$0xff] %vm288, %v476
      %509 = vst.msk [vmem:[%s221 + $0x98] sm:$0xff] %vm288, %v477
      %510 = vst.msk [vmem:[%s221 + $0xa0] sm:$0xff] %vm288, %v478
      %511 = vst.msk [vmem:[%s221 + $0xa8] sm:$0xff] %vm288, %v479
      %512 = vst.msk [vmem:[%s221 + $0xb0] sm:$0xff] %vm288, %v480
      %513 = vst.msk [vmem:[%s221 + $0xb8] sm:$0xff] %vm288, %v481
      %514 = vst.msk [vmem:[%s221 + $0xc0] sm:$0xff] %vm288, %v482
      %515 = vst.msk [vmem:[%s221 + $0xc8] sm:$0xff] %vm288, %v483
      %516 = vst.msk [vmem:[%s221 + $0xd0] sm:$0xff] %vm288, %v484
      %517 = vst.msk [vmem:[%s221 + $0xd8] sm:$0xff] %vm288, %v485
      %518 = vst.msk [vmem:[%s221 + $0xe0] sm:$0xff] %vm288, %v486
      %519 = vst.msk [vmem:[%s221 + $0xe8] sm:$0xff] %vm288, %v487
      %520 = vst.msk [vmem:[%s221 + $0xf0] sm:$0xff] %vm288, %v488
      %521 = vst.msk [vmem:[%s221 + $0xf8] sm:$0xff] %vm288, %v489
      %s522 = smul.u32 32, %s15
      %p523 = scmp.lt.s32.totalorder %s522, 63
      %s524 = scalar_select %p523, %s522, 63
      %s525 = smul.addr %s524, 8
      %s526 = scalar_lea.vmem %s4, %s525
      // Predicated region
      $region37: #{spatial_transformer_forward.12} parent=35 // pred_check
        %p527 = pneg %p127
      $region38: #{spatial_transformer_forward.12} parent=35 // pred_check_branch
        %529 = sbr.rel (%p527) target = $region40
      $region39: #{spatial_transformer_forward.12} parent=35 // pred_region
        %s530 = smul.u32 32, %s15
      $region40: #{spatial_transformer_forward.12} parent=35 // pred_fallthru
        _
    $region36: #{spatial_transformer_forward.12} parent=5 // pred_fallthru
      _
    %p531 = scmp.le.s32.totalorder 2, %s10
    // Predicated region
    $region41: #{spatial_transformer_forward.12} parent=5 // pred_check
      %p532 = pneg %p531
    $region42: #{spatial_transformer_forward.12} parent=5 // pred_check_branch
      %534 = sbr.rel (%p532) target = $region44
    $region43: #{spatial_transformer_forward.12} parent=5 // pred_region
      %s535 = ssub.s32 %s10, 2
      // Predicated region
      $region45: #{spatial_transformer_forward.12} parent=43 // pred_check
        %p536 = pneg %p133
      $region46: #{spatial_transformer_forward.12} parent=43 // pred_check_branch
        %538 = sbr.rel (%p536) target = $region48
      $region47: #{spatial_transformer_forward.12} parent=43 // pred_region
        %s539 = smul.u32 32, %s16
        %p540 = scmp.lt.s32.totalorder %s539, 63
        %s541 = scalar_select %p540, %s539, 63
        %s542 = smul.addr %s541, 8
        %s543 = scalar_lea.vmem %s4, %s542
      $region48: #{spatial_transformer_forward.12} parent=43 // pred_fallthru
        _
    $region44: #{spatial_transformer_forward.12} parent=5 // pred_fallthru
      _
  $region6: #{spatial_transformer_forward.12} parent=0 // loop_footer
    %s14 = sadd.s32 1, %s10
  $region7: #{spatial_transformer_forward.12} parent=0 // loop_footer_branch
    %9 = sbr.rel target = $region3
  $region8: #{spatial_transformer_forward.12} parent=0 // loop_exit
    _

// kernel: spatial_transformer_forward.11
$region0: #{spatial_transformer_forward.11}
  #allocation0 [shape = 'u32[]', space=smem, size = 0x4, offset = 0x4, fixed_abs, tag = 'smem constant byte address 0x4 - core index']
  #allocation1 [shape = 'u32[72,128]{1,0:T(1,128)}', space=vmem, size = 0x9000, scoped, tag = 'internal scratch']
  %s0 = inlined_call_operand.vmem [shape: f32[2,2,256,32], index: 0, kind: input, shape index: {}]
  %s1 = inlined_call_operand.vmem [shape: f32[2,2,256,32], index: 1, kind: input, shape index: {}]
  %s2 = inlined_call_operand.vmem [shape: f32[2,2,256,32], index: 2, kind: input, shape index: {}]
  %s3 = inlined_call_operand.vmem [shape: f32[2,2,256,32], index: 3, kind: output, shape index: {}]
  %s4 = sld [smem:[#allocation0]]
  $region45: #{spatial_transformer_forward.11} parent=0
    _
  %s6 = ssub.s32 1, %s4
  %s7 = scalar_select 0, %s6, %s4
  loop: start=0, step=1, limit=4
  $region2: #{spatial_transformer_forward.11} parent=0 // loop_pre_header
    _
  $region3: #{spatial_transformer_forward.11} parent=0 // loop_header
    %s9 = sphi 0, %s13
    %p10 = scmp.ge.s32.totalorder %s9, 4
    %s19 = sphi 0, %s21
    %s22 = sphi 0, %s19
    %s23 = sphi 0, %s22
    %s39 = sphi 0, %s23
    %s45 = sphi 0, %s47
    %s48 = sphi 0, %s45
    %s49 = sphi 0, %s48
    %s65 = sphi 0, %s49
    %s71 = sphi 0, %s73
    %s74 = sphi 0, %s71
    %s75 = sphi 0, %s74
    %s91 = sphi 0, %s75
    %s97 = sphi 0, %s99
    %s100 = sphi 0, %s97
    %s101 = sphi 0, %s100
    %s117 = sphi 0, %s101
  $region4: #{spatial_transformer_forward.11} parent=0 // loop_header_branch
    %12 = sbr.rel (%p10) target = $region8
  $region5: #{spatial_transformer_forward.11} parent=0 // loop_body
    %s14 = ssub.s32 %s9, 1
    %s15 = ssub.s32 %s9, 2
    %s16 = sadd.s32 %s9, 1
    %s17 = ssub.s32 %s9, %s16
    %p18 = scmp.eq.s32.totalorder %s17, 0
    %s20 = sadd.s32 %s19, 1
    %s21 = scalar_select %p18, %s19, %s20
    %p24 = pneg %p18
    %p25 = scmp.eq.s32.totalorder %s9, 1
    %p26 = por %p24, %p25
    %p27 = scmp.ne.s32.totalorder %s19, %s22
    %p28 = scmp.eq.s32.totalorder %s9, 0
    %p29 = por %p27, %p28
    %p30 = scmp.ne.s32.totalorder %s19, %s22
    %p31 = scmp.eq.s32.totalorder %s14, 1
    %p32 = por %p30, %p31
    %p33 = scmp.ne.s32.totalorder %s22, %s23
    %p34 = scmp.eq.s32.totalorder %s14, 0
    %p35 = por %p33, %p34
    %p36 = scmp.ne.s32.totalorder %s22, %s23
    %p37 = scmp.eq.s32.totalorder %s15, 1
    %p38 = por %p36, %p37
    %p40 = scmp.ne.s32.totalorder %s23, %s39
    %p41 = scmp.eq.s32.totalorder %s15, 0
    %p42 = por %p40, %p41
    %s43 = ssub.s32 %s9, %s16
    %p44 = scmp.eq.s32.totalorder %s43, 0
    %s46 = sadd.s32 %s45, 1
    %s47 = scalar_select %p44, %s45, %s46
    %p50 = pneg %p44
    %p51 = scmp.eq.s32.totalorder %s9, 1
    %p52 = por %p50, %p51
    %p53 = scmp.ne.s32.totalorder %s45, %s48
    %p54 = scmp.eq.s32.totalorder %s9, 0
    %p55 = por %p53, %p54
    %p56 = scmp.ne.s32.totalorder %s45, %s48
    %p57 = scmp.eq.s32.totalorder %s14, 1
    %p58 = por %p56, %p57
    %p59 = scmp.ne.s32.totalorder %s48, %s49
    %p60 = scmp.eq.s32.totalorder %s14, 0
    %p61 = por %p59, %p60
    %p62 = scmp.ne.s32.totalorder %s48, %s49
    %p63 = scmp.eq.s32.totalorder %s15, 1
    %p64 = por %p62, %p63
    %p66 = scmp.ne.s32.totalorder %s49, %s65
    %p67 = scmp.eq.s32.totalorder %s15, 0
    %p68 = por %p66, %p67
    %s69 = ssub.s32 %s9, %s16
    %p70 = scmp.eq.s32.totalorder %s69, 0
    %s72 = sadd.s32 %s71, 1
    %s73 = scalar_select %p70, %s71, %s72
    %p76 = pneg %p70
    %p77 = scmp.eq.s32.totalorder %s9, 1
    %p78 = por %p76, %p77
    %p79 = scmp.ne.s32.totalorder %s71, %s74
    %p80 = scmp.eq.s32.totalorder %s9, 0
    %p81 = por %p79, %p80
    %p82 = scmp.ne.s32.totalorder %s71, %s74
    %p83 = scmp.eq.s32.totalorder %s14, 1
    %p84 = por %p82, %p83
    %p85 = scmp.ne.s32.totalorder %s74, %s75
    %p86 = scmp.eq.s32.totalorder %s14, 0
    %p87 = por %p85, %p86
    %p88 = scmp.ne.s32.totalorder %s74, %s75
    %p89 = scmp.eq.s32.totalorder %s15, 1
    %p90 = por %p88, %p89
    %p92 = scmp.ne.s32.totalorder %s75, %s91
    %p93 = scmp.eq.s32.totalorder %s15, 0
    %p94 = por %p92, %p93
    %s95 = ssub.s32 %s9, %s16
    %p96 = scmp.eq.s32.totalorder %s95, 0
    %s98 = sadd.s32 %s97, 1
    %s99 = scalar_select %p96, %s97, %s98
    %p102 = pneg %p96
    %p103 = scmp.eq.s32.totalorder %s9, 1
    %p104 = por %p102, %p103
    %p105 = scmp.ne.s32.totalorder %s97, %s100
    %p106 = scmp.eq.s32.totalorder %s9, 0
    %p107 = por %p105, %p106
    %p108 = scmp.ne.s32.totalorder %s97, %s100
    %p109 = scmp.eq.s32.totalorder %s14, 1
    %p110 = por %p108, %p109
    %p111 = scmp.ne.s32.totalorder %s100, %s101
    %p112 = scmp.eq.s32.totalorder %s14, 0
    %p113 = por %p111, %p112
    %p114 = scmp.ne.s32.totalorder %s100, %s101
    %p115 = scmp.eq.s32.totalorder %s15, 1
    %p116 = por %p114, %p115
    %p118 = scmp.ne.s32.totalorder %s101, %s117
    %p119 = scmp.eq.s32.totalorder %s15, 0
    %p120 = por %p118, %p119
    %p121 = scmp.le.s32.totalorder 1, %s9
    %p122 = scmp.lt.s32.totalorder %s9, 3
    %p123 = pnand %p121, %p122
    %p124 = pneg %p123
    // Predicated region
    $region9: #{spatial_transformer_forward.11} parent=5 // pred_check
      _
    $region10: #{spatial_transformer_forward.11} parent=5 // pred_check_branch
      %126 = sbr.rel (%p123) target = $region12
    $region11: #{spatial_transformer_forward.11} parent=5 // pred_region
      %s127 = ssub.s32 %s9, 1
    $region12: #{spatial_transformer_forward.11} parent=5 // pred_fallthru
      _
    %p128 = scmp.lt.s32.totalorder %s9, 2
    // Predicated region
    $region13: #{spatial_transformer_forward.11} parent=5 // pred_check
      %p129 = pneg %p128
    $region14: #{spatial_transformer_forward.11} parent=5 // pred_check_branch
      %131 = sbr.rel (%p129) target = $region16
    $region15: #{spatial_transformer_forward.11} parent=5 // pred_region
      // Predicated region
      $region17: #{spatial_transformer_forward.11} parent=15 // pred_check
        %p132 = pneg %p29
      $region18: #{spatial_transformer_forward.11} parent=15 // pred_check_branch
        %134 = sbr.rel (%p132) target = $region20
      $region19: #{spatial_transformer_forward.11} parent=15 // pred_region
        %p135 = scmp.lt.s32.totalorder %s9, 1
        %s136 = scalar_select %p135, %s9, 1
        %s137 = smul.addr %s136, 64
        %s138 = smul.addr %s137, 8
        %s139 = scalar_lea.vmem %s0, %s138
      $region20: #{spatial_transformer_forward.11} parent=15 // pred_fallthru
        _
      // Predicated region
      $region21: #{spatial_transformer_forward.11} parent=15 // pred_check
        %p140 = pneg %p55
      $region22: #{spatial_transformer_forward.11} parent=15 // pred_check_branch
        %142 = sbr.rel (%p140) target = $region24
      $region23: #{spatial_transformer_forward.11} parent=15 // pred_region
        %p143 = scmp.lt.s32.totalorder %s9, 1
        %s144 = scalar_select %p143, %s9, 1
        %s145 = smul.addr %s144, 64
        %s146 = smul.addr %s145, 8
        %s147 = scalar_lea.vmem %s1, %s146
      $region24: #{spatial_transformer_forward.11} parent=15 // pred_fallthru
        _
      // Predicated region
      $region25: #{spatial_transformer_forward.11} parent=15 // pred_check
        %p148 = pneg %p81
      $region26: #{spatial_transformer_forward.11} parent=15 // pred_check_branch
        %150 = sbr.rel (%p148) target = $region28
      $region27: #{spatial_transformer_forward.11} parent=15 // pred_region
        %p151 = scmp.lt.s32.totalorder %s9, 1
        %s152 = scalar_select %p151, %s9, 1
        %s153 = smul.addr %s152, 64
        %s154 = smul.addr %s153, 8
        %s155 = scalar_lea.vmem %s2, %s154
      $region28: #{spatial_transformer_forward.11} parent=15 // pred_fallthru
        _
    $region16: #{spatial_transformer_forward.11} parent=5 // pred_fallthru
      _
    %p156 = scmp.le.s32.totalorder 1, %s9
    %p157 = scmp.lt.s32.totalorder %s9, 3
    %p158 = pnand %p156, %p157
    %p159 = pneg %p158
    // Predicated region
    $region29: #{spatial_transformer_forward.11} parent=5 // pred_check
      _
    $region30: #{spatial_transformer_forward.11} parent=5 // pred_check_branch
      %161 = sbr.rel (%p158) target = $region32
    $region31: #{spatial_transformer_forward.11} parent=5 // pred_region
      %s162 = ssub.s32 %s9, 1
      %p163 = scmp.lt.s32.totalorder %s14, 1
      %s164 = scalar_select %p163, %s14, 1
      %s165 = smul.addr %s164, 64
      %s166 = smul.addr %s165, 8
      %s167 = scalar_lea.vmem %s0, %s166
      %p168 = pneg %p35
      %p169 = pneg %p32
      %p170 = scmp.lt.s32.totalorder %s14, 1
      %s171 = scalar_select %p170, %s14, 1
      %s172 = smul.addr %s171, 64
      %s173 = smul.addr %s172, 8
      %s174 = scalar_lea.vmem %s1, %s173
      %p175 = pneg %p61
      %p176 = pneg %p58
      %p177 = scmp.lt.s32.totalorder %s14, 1
      %s178 = scalar_select %p177, %s14, 1
      %s179 = smul.addr %s178, 64
      %s180 = smul.addr %s179, 8
      %s181 = scalar_lea.vmem %s2, %s180
      %p182 = pneg %p87
      %p183 = pneg %p84
      %p184 = pneg %p113
      %p185 = pneg %p110
      %p186 = scmp.lt.s32.totalorder %s14, 1
      %s187 = scalar_select %p186, %s14, 1
      %s188 = smul.addr %s187, 64
      %s189 = smul.addr %s188, 8
      %s190 = scalar_lea.vmem %s3, %s189
      %p191 = scmp.lt.s32.totalorder %s14, 1
      %s192 = scalar_select %p191, %s14, 1
      %s193 = smul.addr %s192, 64
      %s194 = smul.addr %s193, 8
      %s195 = scalar_lea.vmem %s0, %s194
      %p196 = scmp.lt.s32.totalorder %s14, 1
      %s197 = scalar_select %p196, %s14, 1
      %s198 = smul.addr %s197, 64
      %s199 = smul.addr %s198, 8
      %s200 = scalar_lea.vmem %s1, %s199
      %p201 = scmp.lt.s32.totalorder %s14, 1
      %s202 = scalar_select %p201, %s14, 1
      %s203 = smul.addr %s202, 64
      %s204 = smul.addr %s203, 8
      %s205 = scalar_lea.vmem %s2, %s204
      %p206 = scmp.lt.s32.totalorder %s14, 1
      %s207 = scalar_select %p206, %s14, 1
      %s208 = smul.addr %s207, 64
      %s209 = smul.addr %s208, 8
      %s210 = scalar_lea.vmem %s3, %s209
      %v211 = vld [vmem:[%s195] sm:$0xff]
      %v212 = vld [vmem:[%s195 + $0x8] sm:$0xff]
      %v213 = vld [vmem:[%s195 + $0x10] sm:$0xff]
      %v214 = vld [vmem:[%s195 + $0x18] sm:$0xff]
      %v215 = vld [vmem:[%s195 + $0x20] sm:$0xff]
      %v216 = vld [vmem:[%s195 + $0x28] sm:$0xff]
      %v217 = vld [vmem:[%s195 + $0x30] sm:$0xff]
      %v218 = vld [vmem:[%s195 + $0x38] sm:$0xff]
      %v219 = vld [vmem:[%s195 + $0x40] sm:$0xff]
      %v220 = vld [vmem:[%s195 + $0x48] sm:$0xff]
      %v221 = vld [vmem:[%s195 + $0x50] sm:$0xff]
      %v222 = vld [vmem:[%s195 + $0x58] sm:$0xff]
      %v223 = vld [vmem:[%s195 + $0x60] sm:$0xff]
      %v224 = vld [vmem:[%s195 + $0x68] sm:$0xff]
      %v225 = vld [vmem:[%s195 + $0x70] sm:$0xff]
      %v226 = vld [vmem:[%s195 + $0x78] sm:$0xff]
      %v227 = vld [vmem:[%s195 + $0x80] sm:$0xff]
      %v228 = vld [vmem:[%s195 + $0x88] sm:$0xff]
      %v229 = vld [vmem:[%s195 + $0x90] sm:$0xff]
      %v230 = vld [vmem:[%s195 + $0x98] sm:$0xff]
      %v231 = vld [vmem:[%s195 + $0xa0] sm:$0xff]
      %v232 = vld [vmem:[%s195 + $0xa8] sm:$0xff]
      %v233 = vld [vmem:[%s195 + $0xb0] sm:$0xff]
      %v234 = vld [vmem:[%s195 + $0xb8] sm:$0xff]
      %v235 = vld [vmem:[%s195 + $0xc0] sm:$0xff]
      %v236 = vld [vmem:[%s195 + $0xc8] sm:$0xff]
      %v237 = vld [vmem:[%s195 + $0xd0] sm:$0xff]
      %v238 = vld [vmem:[%s195 + $0xd8] sm:$0xff]
      %v239 = vld [vmem:[%s195 + $0xe0] sm:$0xff]
      %v240 = vld [vmem:[%s195 + $0xe8] sm:$0xff]
      %v241 = vld [vmem:[%s195 + $0xf0] sm:$0xff]
      %v242 = vld [vmem:[%s195 + $0xf8] sm:$0xff]
      %v243 = vld [vmem:[%s195 + $0x100] sm:$0xff]
      %v244 = vld [vmem:[%s195 + $0x108] sm:$0xff]
      %v245 = vld [vmem:[%s195 + $0x110] sm:$0xff]
      %v246 = vld [vmem:[%s195 + $0x118] sm:$0xff]
      %v247 = vld [vmem:[%s195 + $0x120] sm:$0xff]
      %v248 = vld [vmem:[%s195 + $0x128] sm:$0xff]
      %v249 = vld [vmem:[%s195 + $0x130] sm:$0xff]
      %v250 = vld [vmem:[%s195 + $0x138] sm:$0xff]
      %v251 = vld [vmem:[%s195 + $0x140] sm:$0xff]
      %v252 = vld [vmem:[%s195 + $0x148] sm:$0xff]
      %v253 = vld [vmem:[%s195 + $0x150] sm:$0xff]
      %v254 = vld [vmem:[%s195 + $0x158] sm:$0xff]
      %v255 = vld [vmem:[%s195 + $0x160] sm:$0xff]
      %v256 = vld [vmem:[%s195 + $0x168] sm:$0xff]
      %v257 = vld [vmem:[%s195 + $0x170] sm:$0xff]
      %v258 = vld [vmem:[%s195 + $0x178] sm:$0xff]
      %v259 = vld [vmem:[%s195 + $0x180] sm:$0xff]
      %v260 = vld [vmem:[%s195 + $0x188] sm:$0xff]
      %v261 = vld [vmem:[%s195 + $0x190] sm:$0xff]
      %v262 = vld [vmem:[%s195 + $0x198] sm:$0xff]
      %v263 = vld [vmem:[%s195 + $0x1a0] sm:$0xff]
      %v264 = vld [vmem:[%s195 + $0x1a8] sm:$0xff]
      %v265 = vld [vmem:[%s195 + $0x1b0] sm:$0xff]
      %v266 = vld [vmem:[%s195 + $0x1b8] sm:$0xff]
      %v267 = vld [vmem:[%s195 + $0x1c0] sm:$0xff]
      %v268 = vld [vmem:[%s195 + $0x1c8] sm:$0xff]
      %v269 = vld [vmem:[%s195 + $0x1d0] sm:$0xff]
      %v270 = vld [vmem:[%s195 + $0x1d8] sm:$0xff]
      %v271 = vld [vmem:[%s195 + $0x1e0] sm:$0xff]
      %v272 = vld [vmem:[%s195 + $0x1e8] sm:$0xff]
      %v273 = vld [vmem:[%s195 + $0x1f0] sm:$0xff]
      %v274 = vld [vmem:[%s195 + $0x1f8] sm:$0xff]
      %v275 = vmul.f32 %v211, 0.17677669
      %v276 = vmul.f32 %v212, 0.17677669
      %v277 = vmul.f32 %v213, 0.17677669
      %v278 = vmul.f32 %v214, 0.17677669
      %v279 = vmul.f32 %v215, 0.17677669
      %v280 = vmul.f32 %v216, 0.17677669
      %v281 = vmul.f32 %v217, 0.17677669
      %v282 = vmul.f32 %v218, 0.17677669
      %v283 = vmul.f32 %v219, 0.17677669
      %v284 = vmul.f32 %v220, 0.17677669
      %v285 = vmul.f32 %v221, 0.17677669
      %v286 = vmul.f32 %v222, 0.17677669
      %v287 = vmul.f32 %v223, 0.17677669
      %v288 = vmul.f32 %v224, 0.17677669
      %v289 = vmul.f32 %v225, 0.17677669
      %v290 = vmul.f32 %v226, 0.17677669
      %v291 = vmul.f32 %v227, 0.17677669
      %v292 = vmul.f32 %v228, 0.17677669
      %v293 = vmul.f32 %v229, 0.17677669
      %v294 = vmul.f32 %v230, 0.17677669
      %v295 = vmul.f32 %v231, 0.17677669
      %v296 = vmul.f32 %v232, 0.17677669
      %v297 = vmul.f32 %v233, 0.17677669
      %v298 = vmul.f32 %v234, 0.17677669
      %v299 = vmul.f32 %v235, 0.17677669
      %v300 = vmul.f32 %v236, 0.17677669
      %v301 = vmul.f32 %v237, 0.17677669
      %v302 = vmul.f32 %v238, 0.17677669
      %v303 = vmul.f32 %v239, 0.17677669
      %v304 = vmul.f32 %v240, 0.17677669
      %v305 = vmul.f32 %v241, 0.17677669
      %v306 = vmul.f32 %v242, 0.17677669
      %v307 = vmul.f32 %v243, 0.17677669
      %v308 = vmul.f32 %v244, 0.17677669
      %v309 = vmul.f32 %v245, 0.17677669
      %v310 = vmul.f32 %v246, 0.17677669
      %v311 = vmul.f32 %v247, 0.17677669
      %v312 = vmul.f32 %v248, 0.17677669
      %v313 = vmul.f32 %v249, 0.17677669
      %v314 = vmul.f32 %v250, 0.17677669
      %v315 = vmul.f32 %v251, 0.17677669
      %v316 = vmul.f32 %v252, 0.17677669
      %v317 = vmul.f32 %v253, 0.17677669
      %v318 = vmul.f32 %v254, 0.17677669
      %v319 = vmul.f32 %v255, 0.17677669
      %v320 = vmul.f32 %v256, 0.17677669
      %v321 = vmul.f32 %v257, 0.17677669
      %v322 = vmul.f32 %v258, 0.17677669
      %v323 = vmul.f32 %v259, 0.17677669
      %v324 = vmul.f32 %v260, 0.17677669
      %v325 = vmul.f32 %v261, 0.17677669
      %v326 = vmul.f32 %v262, 0.17677669
      %v327 = vmul.f32 %v263, 0.17677669
      %v328 = vmul.f32 %v264, 0.17677669
      %v329 = vmul.f32 %v265, 0.17677669
      %v330 = vmul.f32 %v266, 0.17677669
      %v331 = vmul.f32 %v267, 0.17677669
      %v332 = vmul.f32 %v268, 0.17677669
      %v333 = vmul.f32 %v269, 0.17677669
      %v334 = vmul.f32 %v270, 0.17677669
      %v335 = vmul.f32 %v271, 0.17677669
      %v336 = vmul.f32 %v272, 0.17677669
      %v337 = vmul.f32 %v273, 0.17677669
      %v338 = vmul.f32 %v274, 0.17677669
      %v339 = vpack.c.bf16 %v275, %v275
      %v340 = vpack.c.bf16 %v276, %v276
      %v341 = vpack.c.bf16 %v277, %v277
      %v342 = vpack.c.bf16 %v278, %v278
      %v343 = vpack.c.bf16 %v279, %v279
      %v344 = vpack.c.bf16 %v280, %v280
      %v345 = vpack.c.bf16 %v281, %v281
      %v346 = vpack.c.bf16 %v282, %v282
      %v347 = vpack.c.bf16 %v283, %v283
      %v348 = vpack.c.bf16 %v284, %v284
      %v349 = vpack.c.bf16 %v285, %v285
      %v350 = vpack.c.bf16 %v286, %v286
      %v351 = vpack.c.bf16 %v287, %v287
      %v352 = vpack.c.bf16 %v288, %v288
      %v353 = vpack.c.bf16 %v289, %v289
      %v354 = vpack.c.bf16 %v290, %v290
      %v355 = vpack.c.bf16 %v291, %v291
      %v356 = vpack.c.bf16 %v292, %v292
      %v357 = vpack.c.bf16 %v293, %v293
      %v358 = vpack.c.bf16 %v294, %v294
      %v359 = vpack.c.bf16 %v295, %v295
      %v360 = vpack.c.bf16 %v296, %v296
      %v361 = vpack.c.bf16 %v297, %v297
      %v362 = vpack.c.bf16 %v298, %v298
      %v363 = vpack.c.bf16 %v299, %v299
      %v364 = vpack.c.bf16 %v300, %v300
      %v365 = vpack.c.bf16 %v301, %v301
      %v366 = vpack.c.bf16 %v302, %v302
      %v367 = vpack.c.bf16 %v303, %v303
      %v368 = vpack.c.bf16 %v304, %v304
      %v369 = vpack.c.bf16 %v305, %v305
      %v370 = vpack.c.bf16 %v306, %v306
      %v371 = vpack.c.bf16 %v307, %v307
      %v372 = vpack.c.bf16 %v308, %v308
      %v373 = vpack.c.bf16 %v309, %v309
      %v374 = vpack.c.bf16 %v310, %v310
      %v375 = vpack.c.bf16 %v311, %v311
      %v376 = vpack.c.bf16 %v312, %v312
      %v377 = vpack.c.bf16 %v313, %v313
      %v378 = vpack.c.bf16 %v314, %v314
      %v379 = vpack.c.bf16 %v315, %v315
      %v380 = vpack.c.bf16 %v316, %v316
      %v381 = vpack.c.bf16 %v317, %v317
      %v382 = vpack.c.bf16 %v318, %v318
      %v383 = vpack.c.bf16 %v319, %v319
      %v384 = vpack.c.bf16 %v320, %v320
      %v385 = vpack.c.bf16 %v321, %v321
      %v386 = vpack.c.bf16 %v322, %v322
      %v387 = vpack.c.bf16 %v323, %v323
      %v388 = vpack.c.bf16 %v324, %v324
      %v389 = vpack.c.bf16 %v325, %v325
      %v390 = vpack.c.bf16 %v326, %v326
      %v391 = vpack.c.bf16 %v327, %v327
      %v392 = vpack.c.bf16 %v328, %v328
      %v393 = vpack.c.bf16 %v329, %v329
      %v394 = vpack.c.bf16 %v330, %v330
      %v395 = vpack.c.bf16 %v331, %v331
      %v396 = vpack.c.bf16 %v332, %v332
      %v397 = vpack.c.bf16 %v333, %v333
      %v398 = vpack.c.bf16 %v334, %v334
      %v399 = vpack.c.bf16 %v335, %v335
      %v400 = vpack.c.bf16 %v336, %v336
      %v401 = vpack.c.bf16 %v337, %v337
      %v402 = vpack.c.bf16 %v338, %v338
      %v403 = vld [vmem:[%s200] sm:$0xff]
      %v404 = vld [vmem:[%s200 + $0x8] sm:$0xff]
      %v405 = vld [vmem:[%s200 + $0x10] sm:$0xff]
      %v406 = vld [vmem:[%s200 + $0x18] sm:$0xff]
      %v407 = vld [vmem:[%s200 + $0x20] sm:$0xff]
      %v408 = vld [vmem:[%s200 + $0x28] sm:$0xff]
      %v409 = vld [vmem:[%s200 + $0x30] sm:$0xff]
      %v410 = vld [vmem:[%s200 + $0x38] sm:$0xff]
      %v411 = vld [vmem:[%s200 + $0x40] sm:$0xff]
      %v412 = vld [vmem:[%s200 + $0x48] sm:$0xff]
      %v413 = vld [vmem:[%s200 + $0x50] sm:$0xff]
      %v414 = vld [vmem:[%s200 + $0x58] sm:$0xff]
      %v415 = vld [vmem:[%s200 + $0x60] sm:$0xff]
      %v416 = vld [vmem:[%s200 + $0x68] sm:$0xff]
      %v417 = vld [vmem:[%s200 + $0x70] sm:$0xff]
      %v418 = vld [vmem:[%s200 + $0x78] sm:$0xff]
      %v419 = vld [vmem:[%s200 + $0x80] sm:$0xff]
      %v420 = vld [vmem:[%s200 + $0x88] sm:$0xff]
      %v421 = vld [vmem:[%s200 + $0x90] sm:$0xff]
      %v422 = vld [vmem:[%s200 + $0x98] sm:$0xff]
      %v423 = vld [vmem:[%s200 + $0xa0] sm:$0xff]
      %v424 = vld [vmem:[%s200 + $0xa8] sm:$0xff]
      %v425 = vld [vmem:[%s200 + $0xb0] sm:$0xff]
      %v426 = vld [vmem:[%s200 + $0xb8] sm:$0xff]
      %v427 = vld [vmem:[%s200 + $0xc0] sm:$0xff]
      %v428 = vld [vmem:[%s200 + $0xc8] sm:$0xff]
      %v429 = vld [vmem:[%s200 + $0xd0] sm:$0xff]
      %v430 = vld [vmem:[%s200 + $0xd8] sm:$0xff]
      %v431 = vld [vmem:[%s200 + $0xe0] sm:$0xff]
      %v432 = vld [vmem:[%s200 + $0xe8] sm:$0xff]
      %v433 = vld [vmem:[%s200 + $0xf0] sm:$0xff]
      %v434 = vld [vmem:[%s200 + $0xf8] sm:$0xff]
      %v435 = vld [vmem:[%s200 + $0x100] sm:$0xff]
      %v436 = vld [vmem:[%s200 + $0x108] sm:$0xff]
      %v437 = vld [vmem:[%s200 + $0x110] sm:$0xff]
      %v438 = vld [vmem:[%s200 + $0x118] sm:$0xff]
      %v439 = vld [vmem:[%s200 + $0x120] sm:$0xff]
      %v440 = vld [vmem:[%s200 + $0x128] sm:$0xff]
      %v441 = vld [vmem:[%s200 + $0x130] sm:$0xff]
      %v442 = vld [vmem:[%s200 + $0x138] sm:$0xff]
      %v443 = vld [vmem:[%s200 + $0x140] sm:$0xff]
      %v444 = vld [vmem:[%s200 + $0x148] sm:$0xff]
      %v445 = vld [vmem:[%s200 + $0x150] sm:$0xff]
      %v446 = vld [vmem:[%s200 + $0x158] sm:$0xff]
      %v447 = vld [vmem:[%s200 + $0x160] sm:$0xff]
      %v448 = vld [vmem:[%s200 + $0x168] sm:$0xff]
      %v449 = vld [vmem:[%s200 + $0x170] sm:$0xff]
      %v450 = vld [vmem:[%s200 + $0x178] sm:$0xff]
      %v451 = vld [vmem:[%s200 + $0x180] sm:$0xff]
      %v452 = vld [vmem:[%s200 + $0x188] sm:$0xff]
      %v453 = vld [vmem:[%s200 + $0x190] sm:$0xff]
      %v454 = vld [vmem:[%s200 + $0x198] sm:$0xff]
      %v455 = vld [vmem:[%s200 + $0x1a0] sm:$0xff]
      %v456 = vld [vmem:[%s200 + $0x1a8] sm:$0xff]
      %v457 = vld [vmem:[%s200 + $0x1b0] sm:$0xff]
      %v458 = vld [vmem:[%s200 + $0x1b8] sm:$0xff]
      %v459 = vld [vmem:[%s200 + $0x1c0] sm:$0xff]
      %v460 = vld [vmem:[%s200 + $0x1c8] sm:$0xff]
      %v461 = vld [vmem:[%s200 + $0x1d0] sm:$0xff]
      %v462 = vld [vmem:[%s200 + $0x1d8] sm:$0xff]
      %v463 = vld [vmem:[%s200 + $0x1e0] sm:$0xff]
      %v464 = vld [vmem:[%s200 + $0x1e8] sm:$0xff]
      %v465 = vld [vmem:[%s200 + $0x1f0] sm:$0xff]
      %v466 = vld [vmem:[%s200 + $0x1f8] sm:$0xff]
      %v467 = vpack.c.bf16 %v403, %v403
      %v468 = vpack.c.bf16 %v404, %v404
      %v469 = vpack.c.bf16 %v405, %v405
      %v470 = vpack.c.bf16 %v406, %v406
      %v471 = vpack.c.bf16 %v407, %v407
      %v472 = vpack.c.bf16 %v408, %v408
      %v473 = vpack.c.bf16 %v409, %v409
      %v474 = vpack.c.bf16 %v410, %v410
      %v475 = vpack.c.bf16 %v411, %v411
      %v476 = vpack.c.bf16 %v412, %v412
      %v477 = vpack.c.bf16 %v413, %v413
      %v478 = vpack.c.bf16 %v414, %v414
      %v479 = vpack.c.bf16 %v415, %v415
      %v480 = vpack.c.bf16 %v416, %v416
      %v481 = vpack.c.bf16 %v417, %v417
      %v482 = vpack.c.bf16 %v418, %v418
      %v483 = vpack.c.bf16 %v419, %v419
      %v484 = vpack.c.bf16 %v420, %v420
      %v485 = vpack.c.bf16 %v421, %v421
      %v486 = vpack.c.bf16 %v422, %v422
      %v487 = vpack.c.bf16 %v423, %v423
      %v488 = vpack.c.bf16 %v424, %v424
      %v489 = vpack.c.bf16 %v425, %v425
      %v490 = vpack.c.bf16 %v426, %v426
      %v491 = vpack.c.bf16 %v427, %v427
      %v492 = vpack.c.bf16 %v428, %v428
      %v493 = vpack.c.bf16 %v429, %v429
      %v494 = vpack.c.bf16 %v430, %v430
      %v495 = vpack.c.bf16 %v431, %v431
      %v496 = vpack.c.bf16 %v432, %v432
      %v497 = vpack.c.bf16 %v433, %v433
      %v498 = vpack.c.bf16 %v434, %v434
      %v499 = vpack.c.bf16 %v435, %v435
      %v500 = vpack.c.bf16 %v436, %v436
      %v501 = vpack.c.bf16 %v437, %v437
      %v502 = vpack.c.bf16 %v438, %v438
      %v503 = vpack.c.bf16 %v439, %v439
      %v504 = vpack.c.bf16 %v440, %v440
      %v505 = vpack.c.bf16 %v441, %v441
      %v506 = vpack.c.bf16 %v442, %v442
      %v507 = vpack.c.bf16 %v443, %v443
      %v508 = vpack.c.bf16 %v444, %v444
      %v509 = vpack.c.bf16 %v445, %v445
      %v510 = vpack.c.bf16 %v446, %v446
      %v511 = vpack.c.bf16 %v447, %v447
      %v512 = vpack.c.bf16 %v448, %v448
      %v513 = vpack.c.bf16 %v449, %v449
      %v514 = vpack.c.bf16 %v450, %v450
      %v515 = vpack.c.bf16 %v451, %v451
      %v516 = vpack.c.bf16 %v452, %v452
      %v517 = vpack.c.bf16 %v453, %v453
      %v518 = vpack.c.bf16 %v454, %v454
      %v519 = vpack.c.bf16 %v455, %v455
      %v520 = vpack.c.bf16 %v456, %v456
      %v521 = vpack.c.bf16 %v457, %v457
      %v522 = vpack.c.bf16 %v458, %v458
      %v523 = vpack.c.bf16 %v459, %v459
      %v524 = vpack.c.bf16 %v460, %v460
      %v525 = vpack.c.bf16 %v461, %v461
      %v526 = vpack.c.bf16 %v462, %v462
      %v527 = vpack.c.bf16 %v463, %v463
      %v528 = vpack.c.bf16 %v464, %v464
      %v529 = vpack.c.bf16 %v465, %v465
      %v530 = vpack.c.bf16 %v466, %v466
      %v531 = vld [vmem:[%s205] sm:$0xff]
      %v532 = vld [vmem:[%s205 + $0x8] sm:$0xff]
      %v533 = vld [vmem:[%s205 + $0x10] sm:$0xff]
      %v534 = vld [vmem:[%s205 + $0x18] sm:$0xff]
      %v535 = vld [vmem:[%s205 + $0x20] sm:$0xff]
      %v536 = vld [vmem:[%s205 + $0x28] sm:$0xff]
      %v537 = vld [vmem:[%s205 + $0x30] sm:$0xff]
      %v538 = vld [vmem:[%s205 + $0x38] sm:$0xff]
      %v539 = vld [vmem:[%s205 + $0x40] sm:$0xff]
      %v540 = vld [vmem:[%s205 + $0x48] sm:$0xff]
      %v541 = vld [vmem:[%s205 + $0x50] sm:$0xff]
      %v542 = vld [vmem:[%s205 + $0x58] sm:$0xff]
      %v543 = vld [vmem:[%s205 + $0x60] sm:$0xff]
      %v544 = vld [vmem:[%s205 + $0x68] sm:$0xff]
      %v545 = vld [vmem:[%s205 + $0x70] sm:$0xff]
      %v546 = vld [vmem:[%s205 + $0x78] sm:$0xff]
      %v547 = vld [vmem:[%s205 + $0x80] sm:$0xff]
      %v548 = vld [vmem:[%s205 + $0x88] sm:$0xff]
      %v549 = vld [vmem:[%s205 + $0x90] sm:$0xff]
      %v550 = vld [vmem:[%s205 + $0x98] sm:$0xff]
      %v551 = vld [vmem:[%s205 + $0xa0] sm:$0xff]
      %v552 = vld [vmem:[%s205 + $0xa8] sm:$0xff]
      %v553 = vld [vmem:[%s205 + $0xb0] sm:$0xff]
      %v554 = vld [vmem:[%s205 + $0xb8] sm:$0xff]
      %v555 = vld [vmem:[%s205 + $0xc0] sm:$0xff]
      %v556 = vld [vmem:[%s205 + $0xc8] sm:$0xff]
      %v557 = vld [vmem:[%s205 + $0xd0] sm:$0xff]
      %v558 = vld [vmem:[%s205 + $0xd8] sm:$0xff]
      %v559 = vld [vmem:[%s205 + $0xe0] sm:$0xff]
      %v560 = vld [vmem:[%s205 + $0xe8] sm:$0xff]
      %v561 = vld [vmem:[%s205 + $0xf0] sm:$0xff]
      %v562 = vld [vmem:[%s205 + $0xf8] sm:$0xff]
      %v563 = vld [vmem:[%s205 + $0x100] sm:$0xff]
      %v564 = vld [vmem:[%s205 + $0x108] sm:$0xff]
      %v565 = vld [vmem:[%s205 + $0x110] sm:$0xff]
      %v566 = vld [vmem:[%s205 + $0x118] sm:$0xff]
      %v567 = vld [vmem:[%s205 + $0x120] sm:$0xff]
      %v568 = vld [vmem:[%s205 + $0x128] sm:$0xff]
      %v569 = vld [vmem:[%s205 + $0x130] sm:$0xff]
      %v570 = vld [vmem:[%s205 + $0x138] sm:$0xff]
      %v571 = vld [vmem:[%s205 + $0x140] sm:$0xff]
      %v572 = vld [vmem:[%s205 + $0x148] sm:$0xff]
      %v573 = vld [vmem:[%s205 + $0x150] sm:$0xff]
      %v574 = vld [vmem:[%s205 + $0x158] sm:$0xff]
      %v575 = vld [vmem:[%s205 + $0x160] sm:$0xff]
      %v576 = vld [vmem:[%s205 + $0x168] sm:$0xff]
      %v577 = vld [vmem:[%s205 + $0x170] sm:$0xff]
      %v578 = vld [vmem:[%s205 + $0x178] sm:$0xff]
      %v579 = vld [vmem:[%s205 + $0x180] sm:$0xff]
      %v580 = vld [vmem:[%s205 + $0x188] sm:$0xff]
      %v581 = vld [vmem:[%s205 + $0x190] sm:$0xff]
      %v582 = vld [vmem:[%s205 + $0x198] sm:$0xff]
      %v583 = vld [vmem:[%s205 + $0x1a0] sm:$0xff]
      %v584 = vld [vmem:[%s205 + $0x1a8] sm:$0xff]
      %v585 = vld [vmem:[%s205 + $0x1b0] sm:$0xff]
      %v586 = vld [vmem:[%s205 + $0x1b8] sm:$0xff]
      %v587 = vld [vmem:[%s205 + $0x1c0] sm:$0xff]
      %v588 = vld [vmem:[%s205 + $0x1c8] sm:$0xff]
      %v589 = vld [vmem:[%s205 + $0x1d0] sm:$0xff]
      %v590 = vld [vmem:[%s205 + $0x1d8] sm:$0xff]
      %v591 = vld [vmem:[%s205 + $0x1e0] sm:$0xff]
      %v592 = vld [vmem:[%s205 + $0x1e8] sm:$0xff]
      %v593 = vld [vmem:[%s205 + $0x1f0] sm:$0xff]
      %v594 = vld [vmem:[%s205 + $0x1f8] sm:$0xff]
      %v595 = vpack.c.bf16 %v531, %v531
      %v596 = vpack.c.bf16 %v532, %v532
      %v597 = vpack.c.bf16 %v533, %v533
      %v598 = vpack.c.bf16 %v534, %v534
      %v599 = vpack.c.bf16 %v535, %v535
      %v600 = vpack.c.bf16 %v536, %v536
      %v601 = vpack.c.bf16 %v537, %v537
      %v602 = vpack.c.bf16 %v538, %v538
      %v603 = vpack.c.bf16 %v539, %v539
      %v604 = vpack.c.bf16 %v540, %v540
      %v605 = vpack.c.bf16 %v541, %v541
      %v606 = vpack.c.bf16 %v542, %v542
      %v607 = vpack.c.bf16 %v543, %v543
      %v608 = vpack.c.bf16 %v544, %v544
      %v609 = vpack.c.bf16 %v545, %v545
      %v610 = vpack.c.bf16 %v546, %v546
      %v611 = vpack.c.bf16 %v547, %v547
      %v612 = vpack.c.bf16 %v548, %v548
      %v613 = vpack.c.bf16 %v549, %v549
      %v614 = vpack.c.bf16 %v550, %v550
      %v615 = vpack.c.bf16 %v551, %v551
      %v616 = vpack.c.bf16 %v552, %v552
      %v617 = vpack.c.bf16 %v553, %v553
      %v618 = vpack.c.bf16 %v554, %v554
      %v619 = vpack.c.bf16 %v555, %v555
      %v620 = vpack.c.bf16 %v556, %v556
      %v621 = vpack.c.bf16 %v557, %v557
      %v622 = vpack.c.bf16 %v558, %v558
      %v623 = vpack.c.bf16 %v559, %v559
      %v624 = vpack.c.bf16 %v560, %v560
      %v625 = vpack.c.bf16 %v561, %v561
      %v626 = vpack.c.bf16 %v562, %v562
      %v627 = vpack.c.bf16 %v563, %v563
      %v628 = vpack.c.bf16 %v564, %v564
      %v629 = vpack.c.bf16 %v565, %v565
      %v630 = vpack.c.bf16 %v566, %v566
      %v631 = vpack.c.bf16 %v567, %v567
      %v632 = vpack.c.bf16 %v568, %v568
      %v633 = vpack.c.bf16 %v569, %v569
      %v634 = vpack.c.bf16 %v570, %v570
      %v635 = vpack.c.bf16 %v571, %v571
      %v636 = vpack.c.bf16 %v572, %v572
      %v637 = vpack.c.bf16 %v573, %v573
      %v638 = vpack.c.bf16 %v574, %v574
      %v639 = vpack.c.bf16 %v575, %v575
      %v640 = vpack.c.bf16 %v576, %v576
      %v641 = vpack.c.bf16 %v577, %v577
      %v642 = vpack.c.bf16 %v578, %v578
      %v643 = vpack.c.bf16 %v579, %v579
      %v644 = vpack.c.bf16 %v580, %v580
      %v645 = vpack.c.bf16 %v581, %v581
      %v646 = vpack.c.bf16 %v582, %v582
      %v647 = vpack.c.bf16 %v583, %v583
      %v648 = vpack.c.bf16 %v584, %v584
      %v649 = vpack.c.bf16 %v585, %v585
      %v650 = vpack.c.bf16 %v586, %v586
      %v651 = vpack.c.bf16 %v587, %v587
      %v652 = vpack.c.bf16 %v588, %v588
      %v653 = vpack.c.bf16 %v589, %v589
      %v654 = vpack.c.bf16 %v590, %v590
      %v655 = vpack.c.bf16 %v591, %v591
      %v656 = vpack.c.bf16 %v592, %v592
      %v657 = vpack.c.bf16 %v593, %v593
      %v658 = vpack.c.bf16 %v594, %v594
      %v691 = vunpack.c.l.b16 %v339
      %v692 = vunpack.c.l.b16 %v340
      %v693 = vunpack.c.l.b16 %v341
      %v694 = vunpack.c.l.b16 %v342
      %v695 = vunpack.c.l.b16 %v343
      %v696 = vunpack.c.l.b16 %v344
      %v697 = vunpack.c.l.b16 %v345
      %v698 = vunpack.c.l.b16 %v346
      %v699 = vunpack.c.l.b16 %v347
      %v700 = vunpack.c.l.b16 %v348
      %v701 = vunpack.c.l.b16 %v349
      %v702 = vunpack.c.l.b16 %v350
      %v703 = vunpack.c.l.b16 %v351
      %v704 = vunpack.c.l.b16 %v352
      %v705 = vunpack.c.l.b16 %v353
      %v706 = vunpack.c.l.b16 %v354
      %v707 = vunpack.c.l.b16 %v355
      %v708 = vunpack.c.l.b16 %v356
      %v709 = vunpack.c.l.b16 %v357
      %v710 = vunpack.c.l.b16 %v358
      %v711 = vunpack.c.l.b16 %v359
      %v712 = vunpack.c.l.b16 %v360
      %v713 = vunpack.c.l.b16 %v361
      %v714 = vunpack.c.l.b16 %v362
      %v715 = vunpack.c.l.b16 %v363
      %v716 = vunpack.c.l.b16 %v364
      %v717 = vunpack.c.l.b16 %v365
      %v718 = vunpack.c.l.b16 %v366
      %v719 = vunpack.c.l.b16 %v367
      %v720 = vunpack.c.l.b16 %v368
      %v721 = vunpack.c.l.b16 %v369
      %v722 = vunpack.c.l.b16 %v370
      %v723 = vpack.c.b16 %v692, %v691
      %v724 = vpack.c.b16 %v694, %v693
      %v725 = vpack.c.b16 %v696, %v695
      %v726 = vpack.c.b16 %v698, %v697
      %v727 = vpack.c.b16 %v700, %v699
      %v728 = vpack.c.b16 %v702, %v701
      %v729 = vpack.c.b16 %v704, %v703
      %v730 = vpack.c.b16 %v706, %v705
      %v731 = vpack.c.b16 %v708, %v707
      %v732 = vpack.c.b16 %v710, %v709
      %v733 = vpack.c.b16 %v712, %v711
      %v734 = vpack.c.b16 %v714, %v713
      %v735 = vpack.c.b16 %v716, %v715
      %v736 = vpack.c.b16 %v718, %v717
      %v737 = vpack.c.b16 %v720, %v719
      %v738 = vpack.c.b16 %v722, %v721
      %v771 = vunpack.c.l.b16 %v467
      %v772 = vunpack.c.l.b16 %v468
      %v773 = vunpack.c.l.b16 %v469
      %v774 = vunpack.c.l.b16 %v470
      %v775 = vunpack.c.l.b16 %v471
      %v776 = vunpack.c.l.b16 %v472
      %v777 = vunpack.c.l.b16 %v473
      %v778 = vunpack.c.l.b16 %v474
      %v779 = vunpack.c.l.b16 %v475
      %v780 = vunpack.c.l.b16 %v476
      %v781 = vunpack.c.l.b16 %v477
      %v782 = vunpack.c.l.b16 %v478
      %v783 = vunpack.c.l.b16 %v479
      %v784 = vunpack.c.l.b16 %v480
      %v785 = vunpack.c.l.b16 %v481
      %v786 = vunpack.c.l.b16 %v482
      %v787 = vunpack.c.l.b16 %v483
      %v788 = vunpack.c.l.b16 %v484
      %v789 = vunpack.c.l.b16 %v485
      %v790 = vunpack.c.l.b16 %v486
      %v791 = vunpack.c.l.b16 %v487
      %v792 = vunpack.c.l.b16 %v488
      %v793 = vunpack.c.l.b16 %v489
      %v794 = vunpack.c.l.b16 %v490
      %v795 = vunpack.c.l.b16 %v491
      %v796 = vunpack.c.l.b16 %v492
      %v797 = vunpack.c.l.b16 %v493
      %v798 = vunpack.c.l.b16 %v494
      %v799 = vunpack.c.l.b16 %v495
      %v800 = vunpack.c.l.b16 %v496
      %v801 = vunpack.c.l.b16 %v497
      %v802 = vunpack.c.l.b16 %v498
      %v803 = vpack.c.b16 %v772, %v771
      %v804 = vpack.c.b16 %v774, %v773
      %v805 = vpack.c.b16 %v776, %v775
      %v806 = vpack.c.b16 %v778, %v777
      %v807 = vpack.c.b16 %v780, %v779
      %v808 = vpack.c.b16 %v782, %v781
      %v809 = vpack.c.b16 %v784, %v783
      %v810 = vpack.c.b16 %v786, %v785
      %v811 = vpack.c.b16 %v788, %v787
      %v812 = vpack.c.b16 %v790, %v789
      %v813 = vpack.c.b16 %v792, %v791
      %v814 = vpack.c.b16 %v794, %v793
      %v815 = vpack.c.b16 %v796, %v795
      %v816 = vpack.c.b16 %v798, %v797
      %v817 = vpack.c.b16 %v800, %v799
      %v818 = vpack.c.b16 %v802, %v801
      %vm819 = vcmask 261120
      %v821 = vsel %vm819, %v723, 0
      %v824 = vsel %vm819, %v724, 0
      %v827 = vsel %vm819, %v725, 0
      %v830 = vsel %vm819, %v726, 0
      %v833 = vsel %vm819, %v727, 0
      %v836 = vsel %vm819, %v728, 0
      %v839 = vsel %vm819, %v729, 0
      %v842 = vsel %vm819, %v730, 0
      %v845 = vsel %vm819, %v731, 0
      %v848 = vsel %vm819, %v732, 0
      %v851 = vsel %vm819, %v733, 0
      %v854 = vsel %vm819, %v734, 0
      %v857 = vsel %vm819, %v735, 0
      %v860 = vsel %vm819, %v736, 0
      %v863 = vsel %vm819, %v737, 0
      %v866 = vsel %vm819, %v738, 0
      %v869 = vsel %vm819, %v803, 0
      %v872 = vsel %vm819, %v804, 0
      %v875 = vsel %vm819, %v805, 0
      %v878 = vsel %vm819, %v806, 0
      %v881 = vsel %vm819, %v807, 0
      %v884 = vsel %vm819, %v808, 0
      %v887 = vsel %vm819, %v809, 0
      %v890 = vsel %vm819, %v810, 0
      %v893 = vsel %vm819, %v811, 0
      %v896 = vsel %vm819, %v812, 0
      %v899 = vsel %vm819, %v813, 0
      %v902 = vsel %vm819, %v814, 0
      %v905 = vsel %vm819, %v815, 0
      %v908 = vsel %vm819, %v816, 0
      %v911 = vsel %vm819, %v817, 0
      %v914 = vsel %vm819, %v818, 0
      %916 = vmatpush.bf16.xpose.msra.mxu0 %v890
      %917 = vmatpush.bf16.xpose.msra.mxu0 %v887
      %918 = vmatpush.bf16.xpose.msra.mxu0 %v884
      %919 = vmatpush.bf16.xpose.msra.mxu0 %v881
      %920 = vmatpush.bf16.xpose.msra.mxu0 %v878
      %921 = vmatpush.bf16.xpose.msra.mxu0 %v875
      %922 = vmatpush.bf16.xpose.msra.mxu0 %v872
      %923 = vmatpush.bf16.xpose.msra.mxu0 %v869
      %924 = vmatmul.bf16.gmra.mxu0 %v821
      %v925 = vpop.f32.mrf.mxu0
      %v926 = vadd.f32 0.0, %v925
      %v927 = vpop.f32.mrf.mxu0
      %v928 = vadd.f32 0.0, %v927
      %929 = vmatmul.bf16.gmra.mxu0 %v824
      %v930 = vpop.f32.mrf.mxu0
      %v931 = vadd.f32 0.0, %v930
      %v932 = vpop.f32.mrf.mxu0
      %v933 = vadd.f32 0.0, %v932
      %934 = vmatmul.bf16.gmra.mxu0 %v827
      %v935 = vpop.f32.mrf.mxu0
      %v936 = vadd.f32 0.0, %v935
      %v937 = vpop.f32.mrf.mxu0
      %v938 = vadd.f32 0.0, %v937
      %939 = vmatmul.bf16.gmra.mxu0 %v830
      %v940 = vpop.f32.mrf.mxu0
      %v941 = vadd.f32 0.0, %v940
      %v942 = vpop.f32.mrf.mxu0
      %v943 = vadd.f32 0.0, %v942
      %944 = vmatmul.bf16.gmra.mxu0 %v833
      %v945 = vpop.f32.mrf.mxu0
      %v946 = vadd.f32 0.0, %v945
      %v947 = vpop.f32.mrf.mxu0
      %v948 = vadd.f32 0.0, %v947
      %949 = vmatmul.bf16.gmra.mxu0 %v836
      %v950 = vpop.f32.mrf.mxu0
      %v951 = vadd.f32 0.0, %v950
      %v952 = vpop.f32.mrf.mxu0
      %v953 = vadd.f32 0.0, %v952
      %954 = vmatmul.bf16.gmra.mxu0 %v839
      %v955 = vpop.f32.mrf.mxu0
      %v956 = vadd.f32 0.0, %v955
      %v957 = vpop.f32.mrf.mxu0
      %v958 = vadd.f32 0.0, %v957
      %959 = vmatmul.bf16.gmra.mxu0 %v842
      %v960 = vpop.f32.mrf.mxu0
      %v961 = vadd.f32 0.0, %v960
      %v962 = vpop.f32.mrf.mxu0
      %v963 = vadd.f32 0.0, %v962
      %964 = vmatmul.bf16.gmra.mxu0 %v845
      %v965 = vpop.f32.mrf.mxu0
      %v966 = vadd.f32 0.0, %v965
      %v967 = vpop.f32.mrf.mxu0
      %v968 = vadd.f32 0.0, %v967
      %969 = vmatmul.bf16.gmra.mxu0 %v848
      %v970 = vpop.f32.mrf.mxu0
      %v971 = vadd.f32 0.0, %v970
      %v972 = vpop.f32.mrf.mxu0
      %v973 = vadd.f32 0.0, %v972
      %974 = vmatmul.bf16.gmra.mxu0 %v851
      %v975 = vpop.f32.mrf.mxu0
      %v976 = vadd.f32 0.0, %v975
      %v977 = vpop.f32.mrf.mxu0
      %v978 = vadd.f32 0.0, %v977
      %979 = vmatmul.bf16.gmra.mxu0 %v854
      %v980 = vpop.f32.mrf.mxu0
      %v981 = vadd.f32 0.0, %v980
      %v982 = vpop.f32.mrf.mxu0
      %v983 = vadd.f32 0.0, %v982
      %984 = vmatmul.bf16.gmra.mxu0 %v857
      %v985 = vpop.f32.mrf.mxu0
      %v986 = vadd.f32 0.0, %v985
      %v987 = vpop.f32.mrf.mxu0
      %v988 = vadd.f32 0.0, %v987
      %989 = vmatmul.bf16.gmra.mxu0 %v860
      %v990 = vpop.f32.mrf.mxu0
      %v991 = vadd.f32 0.0, %v990
      %v992 = vpop.f32.mrf.mxu0
      %v993 = vadd.f32 0.0, %v992
      %994 = vmatmul.bf16.gmra.mxu0 %v863
      %v995 = vpop.f32.mrf.mxu0
      %v996 = vadd.f32 0.0, %v995
      %v997 = vpop.f32.mrf.mxu0
      %v998 = vadd.f32 0.0, %v997
      %999 = vmatmul.bf16.gmra.mxu0 %v866
      %v1000 = vpop.f32.mrf.mxu0
      %v1001 = vadd.f32 0.0, %v1000
      %v1002 = vpop.f32.mrf.mxu0
      %v1003 = vadd.f32 0.0, %v1002
      %1004 = vdwg.mxu0
      %1005 = vmatpush.bf16.xpose.msra.mxu0 %v914
      %1006 = vmatpush.bf16.xpose.msra.mxu0 %v911
      %1007 = vmatpush.bf16.xpose.msra.mxu0 %v908
      %1008 = vmatpush.bf16.xpose.msra.mxu0 %v905
      %1009 = vmatpush.bf16.xpose.msra.mxu0 %v902
      %1010 = vmatpush.bf16.xpose.msra.mxu0 %v899
      %1011 = vmatpush.bf16.xpose.msra.mxu0 %v896
      %1012 = vmatpush.bf16.xpose.msra.mxu0 %v893
      %1013 = vmatmul.bf16.gmra.mxu0 %v821
      %v1014 = vpop.f32.mrf.mxu0
      %v1015 = vadd.f32 0.0, %v1014
      %v1016 = vpop.f32.mrf.mxu0
      %v1017 = vadd.f32 0.0, %v1016
      %1018 = vmatmul.bf16.gmra.mxu0 %v824
      %v1019 = vpop.f32.mrf.mxu0
      %v1020 = vadd.f32 0.0, %v1019
      %v1021 = vpop.f32.mrf.mxu0
      %v1022 = vadd.f32 0.0, %v1021
      %1023 = vmatmul.bf16.gmra.mxu0 %v827
      %v1024 = vpop.f32.mrf.mxu0
      %v1025 = vadd.f32 0.0, %v1024
      %v1026 = vpop.f32.mrf.mxu0
      %v1027 = vadd.f32 0.0, %v1026
      %1028 = vmatmul.bf16.gmra.mxu0 %v830
      %v1029 = vpop.f32.mrf.mxu0
      %v1030 = vadd.f32 0.0, %v1029
      %v1031 = vpop.f32.mrf.mxu0
      %v1032 = vadd.f32 0.0, %v1031
      %1033 = vmatmul.bf16.gmra.mxu0 %v833
      %v1034 = vpop.f32.mrf.mxu0
      %v1035 = vadd.f32 0.0, %v1034
      %v1036 = vpop.f32.mrf.mxu0
      %v1037 = vadd.f32 0.0, %v1036
      %1038 = vmatmul.bf16.gmra.mxu0 %v836
      %v1039 = vpop.f32.mrf.mxu0
      %v1040 = vadd.f32 0.0, %v1039
      %v1041 = vpop.f32.mrf.mxu0
      %v1042 = vadd.f32 0.0, %v1041
      %1043 = vmatmul.bf16.gmra.mxu0 %v839
      %v1044 = vpop.f32.mrf.mxu0
      %v1045 = vadd.f32 0.0, %v1044
      %v1046 = vpop.f32.mrf.mxu0
      %v1047 = vadd.f32 0.0, %v1046
      %1048 = vmatmul.bf16.gmra.mxu0 %v842
      %v1049 = vpop.f32.mrf.mxu0
      %v1050 = vadd.f32 0.0, %v1049
      %v1051 = vpop.f32.mrf.mxu0
      %v1052 = vadd.f32 0.0, %v1051
      %1053 = vmatmul.bf16.gmra.mxu0 %v845
      %v1054 = vpop.f32.mrf.mxu0
      %v1055 = vadd.f32 0.0, %v1054
      %v1056 = vpop.f32.mrf.mxu0
      %v1057 = vadd.f32 0.0, %v1056
      %1058 = vmatmul.bf16.gmra.mxu0 %v848
      %v1059 = vpop.f32.mrf.mxu0
      %v1060 = vadd.f32 0.0, %v1059
      %v1061 = vpop.f32.mrf.mxu0
      %v1062 = vadd.f32 0.0, %v1061
      %1063 = vmatmul.bf16.gmra.mxu0 %v851
      %v1064 = vpop.f32.mrf.mxu0
      %v1065 = vadd.f32 0.0, %v1064
      %v1066 = vpop.f32.mrf.mxu0
      %v1067 = vadd.f32 0.0, %v1066
      %1068 = vmatmul.bf16.gmra.mxu0 %v854
      %v1069 = vpop.f32.mrf.mxu0
      %v1070 = vadd.f32 0.0, %v1069
      %v1071 = vpop.f32.mrf.mxu0
      %v1072 = vadd.f32 0.0, %v1071
      %1073 = vmatmul.bf16.gmra.mxu0 %v857
      %v1074 = vpop.f32.mrf.mxu0
      %v1075 = vadd.f32 0.0, %v1074
      %v1076 = vpop.f32.mrf.mxu0
      %v1077 = vadd.f32 0.0, %v1076
      %1078 = vmatmul.bf16.gmra.mxu0 %v860
      %v1079 = vpop.f32.mrf.mxu0
      %v1080 = vadd.f32 0.0, %v1079
      %v1081 = vpop.f32.mrf.mxu0
      %v1082 = vadd.f32 0.0, %v1081
      %1083 = vmatmul.bf16.gmra.mxu0 %v863
      %v1084 = vpop.f32.mrf.mxu0
      %v1085 = vadd.f32 0.0, %v1084
      %v1086 = vpop.f32.mrf.mxu0
      %v1087 = vadd.f32 0.0, %v1086
      %1088 = vmatmul.bf16.gmra.mxu0 %v866
      %v1089 = vpop.f32.mrf.mxu0
      %v1090 = vadd.f32 0.0, %v1089
      %v1091 = vpop.f32.mrf.mxu0
      %v1092 = vadd.f32 0.0, %v1091
      %1093 = vdwg.mxu0
      %v1126 = vunpack.c.l.b16 %v371
      %v1127 = vunpack.c.l.b16 %v372
      %v1128 = vunpack.c.l.b16 %v373
      %v1129 = vunpack.c.l.b16 %v374
      %v1130 = vunpack.c.l.b16 %v375
      %v1131 = vunpack.c.l.b16 %v376
      %v1132 = vunpack.c.l.b16 %v377
      %v1133 = vunpack.c.l.b16 %v378
      %v1134 = vunpack.c.l.b16 %v379
      %v1135 = vunpack.c.l.b16 %v380
      %v1136 = vunpack.c.l.b16 %v381
      %v1137 = vunpack.c.l.b16 %v382
      %v1138 = vunpack.c.l.b16 %v383
      %v1139 = vunpack.c.l.b16 %v384
      %v1140 = vunpack.c.l.b16 %v385
      %v1141 = vunpack.c.l.b16 %v386
      %v1142 = vunpack.c.l.b16 %v387
      %v1143 = vunpack.c.l.b16 %v388
      %v1144 = vunpack.c.l.b16 %v389
      %v1145 = vunpack.c.l.b16 %v390
      %v1146 = vunpack.c.l.b16 %v391
      %v1147 = vunpack.c.l.b16 %v392
      %v1148 = vunpack.c.l.b16 %v393
      %v1149 = vunpack.c.l.b16 %v394
      %v1150 = vunpack.c.l.b16 %v395
      %v1151 = vunpack.c.l.b16 %v396
      %v1152 = vunpack.c.l.b16 %v397
      %v1153 = vunpack.c.l.b16 %v398
      %v1154 = vunpack.c.l.b16 %v399
      %v1155 = vunpack.c.l.b16 %v400
      %v1156 = vunpack.c.l.b16 %v401
      %v1157 = vunpack.c.l.b16 %v402
      %v1158 = vpack.c.b16 %v1127, %v1126
      %v1159 = vpack.c.b16 %v1129, %v1128
      %v1160 = vpack.c.b16 %v1131, %v1130
      %v1161 = vpack.c.b16 %v1133, %v1132
      %v1162 = vpack.c.b16 %v1135, %v1134
      %v1163 = vpack.c.b16 %v1137, %v1136
      %v1164 = vpack.c.b16 %v1139, %v1138
      %v1165 = vpack.c.b16 %v1141, %v1140
      %v1166 = vpack.c.b16 %v1143, %v1142
      %v1167 = vpack.c.b16 %v1145, %v1144
      %v1168 = vpack.c.b16 %v1147, %v1146
      %v1169 = vpack.c.b16 %v1149, %v1148
      %v1170 = vpack.c.b16 %v1151, %v1150
      %v1171 = vpack.c.b16 %v1153, %v1152
      %v1172 = vpack.c.b16 %v1155, %v1154
      %v1173 = vpack.c.b16 %v1157, %v1156
      %v1206 = vunpack.c.l.b16 %v499
      %v1207 = vunpack.c.l.b16 %v500
      %v1208 = vunpack.c.l.b16 %v501
      %v1209 = vunpack.c.l.b16 %v502
      %v1210 = vunpack.c.l.b16 %v503
      %v1211 = vunpack.c.l.b16 %v504
      %v1212 = vunpack.c.l.b16 %v505
      %v1213 = vunpack.c.l.b16 %v506
      %v1214 = vunpack.c.l.b16 %v507
      %v1215 = vunpack.c.l.b16 %v508
      %v1216 = vunpack.c.l.b16 %v509
      %v1217 = vunpack.c.l.b16 %v510
      %v1218 = vunpack.c.l.b16 %v511
      %v1219 = vunpack.c.l.b16 %v512
      %v1220 = vunpack.c.l.b16 %v513
      %v1221 = vunpack.c.l.b16 %v514
      %v1222 = vunpack.c.l.b16 %v515
      %v1223 = vunpack.c.l.b16 %v516
      %v1224 = vunpack.c.l.b16 %v517
      %v1225 = vunpack.c.l.b16 %v518
      %v1226 = vunpack.c.l.b16 %v519
      %v1227 = vunpack.c.l.b16 %v520
      %v1228 = vunpack.c.l.b16 %v521
      %v1229 = vunpack.c.l.b16 %v522
      %v1230 = vunpack.c.l.b16 %v523
      %v1231 = vunpack.c.l.b16 %v524
      %v1232 = vunpack.c.l.b16 %v525
      %v1233 = vunpack.c.l.b16 %v526
      %v1234 = vunpack.c.l.b16 %v527
      %v1235 = vunpack.c.l.b16 %v528
      %v1236 = vunpack.c.l.b16 %v529
      %v1237 = vunpack.c.l.b16 %v530
      %v1238 = vpack.c.b16 %v1207, %v1206
      %v1239 = vpack.c.b16 %v1209, %v1208
      %v1240 = vpack.c.b16 %v1211, %v1210
      %v1241 = vpack.c.b16 %v1213, %v1212
      %v1242 = vpack.c.b16 %v1215, %v1214
      %v1243 = vpack.c.b16 %v1217, %v1216
      %v1244 = vpack.c.b16 %v1219, %v1218
      %v1245 = vpack.c.b16 %v1221, %v1220
      %v1246 = vpack.c.b16 %v1223, %v1222
      %v1247 = vpack.c.b16 %v1225, %v1224
      %v1248 = vpack.c.b16 %v1227, %v1226
      %v1249 = vpack.c.b16 %v1229, %v1228
      %v1250 = vpack.c.b16 %v1231, %v1230
      %v1251 = vpack.c.b16 %v1233, %v1232
      %v1252 = vpack.c.b16 %v1235, %v1234
      %v1253 = vpack.c.b16 %v1237, %v1236
      %v1255 = vsel %vm819, %v1158, 0
      %v1258 = vsel %vm819, %v1159, 0
      %v1261 = vsel %vm819, %v1160, 0
      %v1264 = vsel %vm819, %v1161, 0
      %v1267 = vsel %vm819, %v1162, 0
      %v1270 = vsel %vm819, %v1163, 0
      %v1273 = vsel %vm819, %v1164, 0
      %v1276 = vsel %vm819, %v1165, 0
      %v1279 = vsel %vm819, %v1166, 0
      %v1282 = vsel %vm819, %v1167, 0
      %v1285 = vsel %vm819, %v1168, 0
      %v1288 = vsel %vm819, %v1169, 0
      %v1291 = vsel %vm819, %v1170, 0
      %v1294 = vsel %vm819, %v1171, 0
      %v1297 = vsel %vm819, %v1172, 0
      %v1300 = vsel %vm819, %v1173, 0
      %v1303 = vsel %vm819, %v1238, 0
      %v1306 = vsel %vm819, %v1239, 0
      %v1309 = vsel %vm819, %v1240, 0
      %v1312 = vsel %vm819, %v1241, 0
      %v1315 = vsel %vm819, %v1242, 0
      %v1318 = vsel %vm819, %v1243, 0
      %v1321 = vsel %vm819, %v1244, 0
      %v1324 = vsel %vm819, %v1245, 0
      %v1327 = vsel %vm819, %v1246, 0
      %v1330 = vsel %vm819, %v1247, 0
      %v1333 = vsel %vm819, %v1248, 0
      %v1336 = vsel %vm819, %v1249, 0
      %v1339 = vsel %vm819, %v1250, 0
      %v1342 = vsel %vm819, %v1251, 0
      %v1345 = vsel %vm819, %v1252, 0
      %v1348 = vsel %vm819, %v1253, 0
      %1350 = vmatpush.bf16.xpose.msra.mxu0 %v1324
      %1351 = vmatpush.bf16.xpose.msra.mxu0 %v1321
      %1352 = vmatpush.bf16.xpose.msra.mxu0 %v1318
      %1353 = vmatpush.bf16.xpose.msra.mxu0 %v1315
      %1354 = vmatpush.bf16.xpose.msra.mxu0 %v1312
      %1355 = vmatpush.bf16.xpose.msra.mxu0 %v1309
      %1356 = vmatpush.bf16.xpose.msra.mxu0 %v1306
      %1357 = vmatpush.bf16.xpose.msra.mxu0 %v1303
      %1358 = vmatmul.bf16.gmra.mxu0 %v1255
      %v1359 = vpop.f32.mrf.mxu0
      %v1360 = vadd.f32 0.0, %v1359
      %v1361 = vpop.f32.mrf.mxu0
      %v1362 = vadd.f32 0.0, %v1361
      %1363 = vmatmul.bf16.gmra.mxu0 %v1258
      %v1364 = vpop.f32.mrf.mxu0
      %v1365 = vadd.f32 0.0, %v1364
      %v1366 = vpop.f32.mrf.mxu0
      %v1367 = vadd.f32 0.0, %v1366
      %1368 = vmatmul.bf16.gmra.mxu0 %v1261
      %v1369 = vpop.f32.mrf.mxu0
      %v1370 = vadd.f32 0.0, %v1369
      %v1371 = vpop.f32.mrf.mxu0
      %v1372 = vadd.f32 0.0, %v1371
      %1373 = vmatmul.bf16.gmra.mxu0 %v1264
      %v1374 = vpop.f32.mrf.mxu0
      %v1375 = vadd.f32 0.0, %v1374
      %v1376 = vpop.f32.mrf.mxu0
      %v1377 = vadd.f32 0.0, %v1376
      %1378 = vmatmul.bf16.gmra.mxu0 %v1267
      %v1379 = vpop.f32.mrf.mxu0
      %v1380 = vadd.f32 0.0, %v1379
      %v1381 = vpop.f32.mrf.mxu0
      %v1382 = vadd.f32 0.0, %v1381
      %1383 = vmatmul.bf16.gmra.mxu0 %v1270
      %v1384 = vpop.f32.mrf.mxu0
      %v1385 = vadd.f32 0.0, %v1384
      %v1386 = vpop.f32.mrf.mxu0
      %v1387 = vadd.f32 0.0, %v1386
      %1388 = vmatmul.bf16.gmra.mxu0 %v1273
      %v1389 = vpop.f32.mrf.mxu0
      %v1390 = vadd.f32 0.0, %v1389
      %v1391 = vpop.f32.mrf.mxu0
      %v1392 = vadd.f32 0.0, %v1391
      %1393 = vmatmul.bf16.gmra.mxu0 %v1276
      %v1394 = vpop.f32.mrf.mxu0
      %v1395 = vadd.f32 0.0, %v1394
      %v1396 = vpop.f32.mrf.mxu0
      %v1397 = vadd.f32 0.0, %v1396
      %1398 = vmatmul.bf16.gmra.mxu0 %v1279
      %v1399 = vpop.f32.mrf.mxu0
      %v1400 = vadd.f32 0.0, %v1399
      %v1401 = vpop.f32.mrf.mxu0
      %v1402 = vadd.f32 0.0, %v1401
      %1403 = vmatmul.bf16.gmra.mxu0 %v1282
      %v1404 = vpop.f32.mrf.mxu0
      %v1405 = vadd.f32 0.0, %v1404
      %v1406 = vpop.f32.mrf.mxu0
      %v1407 = vadd.f32 0.0, %v1406
      %1408 = vmatmul.bf16.gmra.mxu0 %v1285
      %v1409 = vpop.f32.mrf.mxu0
      %v1410 = vadd.f32 0.0, %v1409
      %v1411 = vpop.f32.mrf.mxu0
      %v1412 = vadd.f32 0.0, %v1411
      %1413 = vmatmul.bf16.gmra.mxu0 %v1288
      %v1414 = vpop.f32.mrf.mxu0
      %v1415 = vadd.f32 0.0, %v1414
      %v1416 = vpop.f32.mrf.mxu0
      %v1417 = vadd.f32 0.0, %v1416
      %1418 = vmatmul.bf16.gmra.mxu0 %v1291
      %v1419 = vpop.f32.mrf.mxu0
      %v1420 = vadd.f32 0.0, %v1419
      %v1421 = vpop.f32.mrf.mxu0
      %v1422 = vadd.f32 0.0, %v1421
      %1423 = vmatmul.bf16.gmra.mxu0 %v1294
      %v1424 = vpop.f32.mrf.mxu0
      %v1425 = vadd.f32 0.0, %v1424
      %v1426 = vpop.f32.mrf.mxu0
      %v1427 = vadd.f32 0.0, %v1426
      %1428 = vmatmul.bf16.gmra.mxu0 %v1297
      %v1429 = vpop.f32.mrf.mxu0
      %v1430 = vadd.f32 0.0, %v1429
      %v1431 = vpop.f32.mrf.mxu0
      %v1432 = vadd.f32 0.0, %v1431
      %1433 = vmatmul.bf16.gmra.mxu0 %v1300
      %v1434 = vpop.f32.mrf.mxu0
      %v1435 = vadd.f32 0.0, %v1434
      %v1436 = vpop.f32.mrf.mxu0
      %v1437 = vadd.f32 0.0, %v1436
      %1438 = vdwg.mxu0
      %1439 = vmatpush.bf16.xpose.msra.mxu0 %v1348
      %1440 = vmatpush.bf16.xpose.msra.mxu0 %v1345
      %1441 = vmatpush.bf16.xpose.msra.mxu0 %v1342
      %1442 = vmatpush.bf16.xpose.msra.mxu0 %v1339
      %1443 = vmatpush.bf16.xpose.msra.mxu0 %v1336
      %1444 = vmatpush.bf16.xpose.msra.mxu0 %v1333
      %1445 = vmatpush.bf16.xpose.msra.mxu0 %v1330
      %1446 = vmatpush.bf16.xpose.msra.mxu0 %v1327
      %1447 = vmatmul.bf16.gmra.mxu0 %v1255
      %v1448 = vpop.f32.mrf.mxu0
      %v1449 = vadd.f32 0.0, %v1448
      %v1450 = vpop.f32.mrf.mxu0
      %v1451 = vadd.f32 0.0, %v1450
      %1452 = vmatmul.bf16.gmra.mxu0 %v1258
      %v1453 = vpop.f32.mrf.mxu0
      %v1454 = vadd.f32 0.0, %v1453
      %v1455 = vpop.f32.mrf.mxu0
      %v1456 = vadd.f32 0.0, %v1455
      %1457 = vmatmul.bf16.gmra.mxu0 %v1261
      %v1458 = vpop.f32.mrf.mxu0
      %v1459 = vadd.f32 0.0, %v1458
      %v1460 = vpop.f32.mrf.mxu0
      %v1461 = vadd.f32 0.0, %v1460
      %1462 = vmatmul.bf16.gmra.mxu0 %v1264
      %v1463 = vpop.f32.mrf.mxu0
      %v1464 = vadd.f32 0.0, %v1463
      %v1465 = vpop.f32.mrf.mxu0
      %v1466 = vadd.f32 0.0, %v1465
      %1467 = vmatmul.bf16.gmra.mxu0 %v1267
      %v1468 = vpop.f32.mrf.mxu0
      %v1469 = vadd.f32 0.0, %v1468
      %v1470 = vpop.f32.mrf.mxu0
      %v1471 = vadd.f32 0.0, %v1470
      %1472 = vmatmul.bf16.gmra.mxu0 %v1270
      %v1473 = vpop.f32.mrf.mxu0
      %v1474 = vadd.f32 0.0, %v1473
      %v1475 = vpop.f32.mrf.mxu0
      %v1476 = vadd.f32 0.0, %v1475
      %1477 = vmatmul.bf16.gmra.mxu0 %v1273
      %v1478 = vpop.f32.mrf.mxu0
      %v1479 = vadd.f32 0.0, %v1478
      %v1480 = vpop.f32.mrf.mxu0
      %v1481 = vadd.f32 0.0, %v1480
      %1482 = vmatmul.bf16.gmra.mxu0 %v1276
      %v1483 = vpop.f32.mrf.mxu0
      %v1484 = vadd.f32 0.0, %v1483
      %v1485 = vpop.f32.mrf.mxu0
      %v1486 = vadd.f32 0.0, %v1485
      %1487 = vmatmul.bf16.gmra.mxu0 %v1279
      %v1488 = vpop.f32.mrf.mxu0
      %v1489 = vadd.f32 0.0, %v1488
      %v1490 = vpop.f32.mrf.mxu0
      %v1491 = vadd.f32 0.0, %v1490
      %1492 = vmatmul.bf16.gmra.mxu0 %v1282
      %v1493 = vpop.f32.mrf.mxu0
      %v1494 = vadd.f32 0.0, %v1493
      %v1495 = vpop.f32.mrf.mxu0
      %v1496 = vadd.f32 0.0, %v1495
      %1497 = vmatmul.bf16.gmra.mxu0 %v1285
      %v1498 = vpop.f32.mrf.mxu0
      %v1499 = vadd.f32 0.0, %v1498
      %v1500 = vpop.f32.mrf.mxu0
      %v1501 = vadd.f32 0.0, %v1500
      %1502 = vmatmul.bf16.gmra.mxu0 %v1288
      %v1503 = vpop.f32.mrf.mxu0
      %v1504 = vadd.f32 0.0, %v1503
      %v1505 = vpop.f32.mrf.mxu0
      %v1506 = vadd.f32 0.0, %v1505
      %1507 = vmatmul.bf16.gmra.mxu0 %v1291
      %v1508 = vpop.f32.mrf.mxu0
      %v1509 = vadd.f32 0.0, %v1508
      %v1510 = vpop.f32.mrf.mxu0
      %v1511 = vadd.f32 0.0, %v1510
      %1512 = vmatmul.bf16.gmra.mxu0 %v1294
      %v1513 = vpop.f32.mrf.mxu0
      %v1514 = vadd.f32 0.0, %v1513
      %v1515 = vpop.f32.mrf.mxu0
      %v1516 = vadd.f32 0.0, %v1515
      %1517 = vmatmul.bf16.gmra.mxu0 %v1297
      %v1518 = vpop.f32.mrf.mxu0
      %v1519 = vadd.f32 0.0, %v1518
      %v1520 = vpop.f32.mrf.mxu0
      %v1521 = vadd.f32 0.0, %v1520
      %1522 = vmatmul.bf16.gmra.mxu0 %v1300
      %v1523 = vpop.f32.mrf.mxu0
      %v1524 = vadd.f32 0.0, %v1523
      %v1525 = vpop.f32.mrf.mxu0
      %v1526 = vadd.f32 0.0, %v1525
      %1527 = vdwg.mxu0
      %v1528 = vmax.f32 %v926, %v1015
      %1529 = vmax.xlane.f32.xlu0 %v1528
      %v1530 = vpop.xlane.xlu0 %1529
      %v1531 = vmax.f32 %v928, %v1017
      %1532 = vmax.xlane.f32.xlu0 %v1531
      %v1533 = vpop.xlane.xlu0 %1532
      %v1534 = vmax.f32 %v931, %v1020
      %1535 = vmax.xlane.f32.xlu0 %v1534
      %v1536 = vpop.xlane.xlu0 %1535
      %v1537 = vmax.f32 %v933, %v1022
      %1538 = vmax.xlane.f32.xlu0 %v1537
      %v1539 = vpop.xlane.xlu0 %1538
      %v1540 = vmax.f32 %v936, %v1025
      %1541 = vmax.xlane.f32.xlu0 %v1540
      %v1542 = vpop.xlane.xlu0 %1541
      %v1543 = vmax.f32 %v938, %v1027
      %1544 = vmax.xlane.f32.xlu0 %v1543
      %v1545 = vpop.xlane.xlu0 %1544
      %v1546 = vmax.f32 %v941, %v1030
      %1547 = vmax.xlane.f32.xlu0 %v1546
      %v1548 = vpop.xlane.xlu0 %1547
      %v1549 = vmax.f32 %v943, %v1032
      %1550 = vmax.xlane.f32.xlu0 %v1549
      %v1551 = vpop.xlane.xlu0 %1550
      %v1552 = vmax.f32 %v946, %v1035
      %1553 = vmax.xlane.f32.xlu0 %v1552
      %v1554 = vpop.xlane.xlu0 %1553
      %v1555 = vmax.f32 %v948, %v1037
      %1556 = vmax.xlane.f32.xlu0 %v1555
      %v1557 = vpop.xlane.xlu0 %1556
      %v1558 = vmax.f32 %v951, %v1040
      %1559 = vmax.xlane.f32.xlu0 %v1558
      %v1560 = vpop.xlane.xlu0 %1559
      %v1561 = vmax.f32 %v953, %v1042
      %1562 = vmax.xlane.f32.xlu0 %v1561
      %v1563 = vpop.xlane.xlu0 %1562
      %v1564 = vmax.f32 %v956, %v1045
      %1565 = vmax.xlane.f32.xlu0 %v1564
      %v1566 = vpop.xlane.xlu0 %1565
      %v1567 = vmax.f32 %v958, %v1047
      %1568 = vmax.xlane.f32.xlu0 %v1567
      %v1569 = vpop.xlane.xlu0 %1568
      %v1570 = vmax.f32 %v961, %v1050
      %1571 = vmax.xlane.f32.xlu0 %v1570
      %v1572 = vpop.xlane.xlu0 %1571
      %v1573 = vmax.f32 %v963, %v1052
      %1574 = vmax.xlane.f32.xlu0 %v1573
      %v1575 = vpop.xlane.xlu0 %1574
      %v1576 = vmax.f32 %v966, %v1055
      %1577 = vmax.xlane.f32.xlu0 %v1576
      %v1578 = vpop.xlane.xlu0 %1577
      %v1579 = vmax.f32 %v968, %v1057
      %1580 = vmax.xlane.f32.xlu0 %v1579
      %v1581 = vpop.xlane.xlu0 %1580
      %v1582 = vmax.f32 %v971, %v1060
      %1583 = vmax.xlane.f32.xlu0 %v1582
      %v1584 = vpop.xlane.xlu0 %1583
      %v1585 = vmax.f32 %v973, %v1062
      %1586 = vmax.xlane.f32.xlu0 %v1585
      %v1587 = vpop.xlane.xlu0 %1586
      %v1588 = vmax.f32 %v976, %v1065
      %1589 = vmax.xlane.f32.xlu0 %v1588
      %v1590 = vpop.xlane.xlu0 %1589
      %v1591 = vmax.f32 %v978, %v1067
      %1592 = vmax.xlane.f32.xlu0 %v1591
      %v1593 = vpop.xlane.xlu0 %1592
      %v1594 = vmax.f32 %v981, %v1070
      %1595 = vmax.xlane.f32.xlu0 %v1594
      %v1596 = vpop.xlane.xlu0 %1595
      %v1597 = vmax.f32 %v983, %v1072
      %1598 = vmax.xlane.f32.xlu0 %v1597
      %v1599 = vpop.xlane.xlu0 %1598
      %v1600 = vmax.f32 %v986, %v1075
      %1601 = vmax.xlane.f32.xlu0 %v1600
      %v1602 = vpop.xlane.xlu0 %1601
      %v1603 = vmax.f32 %v988, %v1077
      %1604 = vmax.xlane.f32.xlu0 %v1603
      %v1605 = vpop.xlane.xlu0 %1604
      %v1606 = vmax.f32 %v991, %v1080
      %1607 = vmax.xlane.f32.xlu0 %v1606
      %v1608 = vpop.xlane.xlu0 %1607
      %v1609 = vmax.f32 %v993, %v1082
      %1610 = vmax.xlane.f32.xlu0 %v1609
      %v1611 = vpop.xlane.xlu0 %1610
      %v1612 = vmax.f32 %v996, %v1085
      %1613 = vmax.xlane.f32.xlu0 %v1612
      %v1614 = vpop.xlane.xlu0 %1613
      %v1615 = vmax.f32 %v998, %v1087
      %1616 = vmax.xlane.f32.xlu0 %v1615
      %v1617 = vpop.xlane.xlu0 %1616
      %v1618 = vmax.f32 %v1001, %v1090
      %1619 = vmax.xlane.f32.xlu0 %v1618
      %v1620 = vpop.xlane.xlu0 %1619
      %v1621 = vmax.f32 %v1003, %v1092
      %1622 = vmax.xlane.f32.xlu0 %v1621
      %v1623 = vpop.xlane.xlu0 %1622
      %v1624 = vmax.f32 %v1360, %v1449
      %1625 = vmax.xlane.f32.xlu0 %v1624
      %v1626 = vpop.xlane.xlu0 %1625
      %v1627 = vmax.f32 %v1362, %v1451
      %1628 = vmax.xlane.f32.xlu0 %v1627
      %v1629 = vpop.xlane.xlu0 %1628
      %v1630 = vmax.f32 %v1365, %v1454
      %1631 = vmax.xlane.f32.xlu0 %v1630
      %v1632 = vpop.xlane.xlu0 %1631
      %v1633 = vmax.f32 %v1367, %v1456
      %1634 = vmax.xlane.f32.xlu0 %v1633
      %v1635 = vpop.xlane.xlu0 %1634
      %v1636 = vmax.f32 %v1370, %v1459
      %1637 = vmax.xlane.f32.xlu0 %v1636
      %v1638 = vpop.xlane.xlu0 %1637
      %v1639 = vmax.f32 %v1372, %v1461
      %1640 = vmax.xlane.f32.xlu0 %v1639
      %v1641 = vpop.xlane.xlu0 %1640
      %v1642 = vmax.f32 %v1375, %v1464
      %1643 = vmax.xlane.f32.xlu0 %v1642
      %v1644 = vpop.xlane.xlu0 %1643
      %v1645 = vmax.f32 %v1377, %v1466
      %1646 = vmax.xlane.f32.xlu0 %v1645
      %v1647 = vpop.xlane.xlu0 %1646
      %v1648 = vmax.f32 %v1380, %v1469
      %1649 = vmax.xlane.f32.xlu0 %v1648
      %v1650 = vpop.xlane.xlu0 %1649
      %v1651 = vmax.f32 %v1382, %v1471
      %1652 = vmax.xlane.f32.xlu0 %v1651
      %v1653 = vpop.xlane.xlu0 %1652
      %v1654 = vmax.f32 %v1385, %v1474
      %1655 = vmax.xlane.f32.xlu0 %v1654
      %v1656 = vpop.xlane.xlu0 %1655
      %v1657 = vmax.f32 %v1387, %v1476
      %1658 = vmax.xlane.f32.xlu0 %v1657
      %v1659 = vpop.xlane.xlu0 %1658
      %v1660 = vmax.f32 %v1390, %v1479
      %1661 = vmax.xlane.f32.xlu0 %v1660
      %v1662 = vpop.xlane.xlu0 %1661
      %v1663 = vmax.f32 %v1392, %v1481
      %1664 = vmax.xlane.f32.xlu0 %v1663
      %v1665 = vpop.xlane.xlu0 %1664
      %v1666 = vmax.f32 %v1395, %v1484
      %1667 = vmax.xlane.f32.xlu0 %v1666
      %v1668 = vpop.xlane.xlu0 %1667
      %v1669 = vmax.f32 %v1397, %v1486
      %1670 = vmax.xlane.f32.xlu0 %v1669
      %v1671 = vpop.xlane.xlu0 %1670
      %v1672 = vmax.f32 %v1400, %v1489
      %1673 = vmax.xlane.f32.xlu0 %v1672
      %v1674 = vpop.xlane.xlu0 %1673
      %v1675 = vmax.f32 %v1402, %v1491
      %1676 = vmax.xlane.f32.xlu0 %v1675
      %v1677 = vpop.xlane.xlu0 %1676
      %v1678 = vmax.f32 %v1405, %v1494
      %1679 = vmax.xlane.f32.xlu0 %v1678
      %v1680 = vpop.xlane.xlu0 %1679
      %v1681 = vmax.f32 %v1407, %v1496
      %1682 = vmax.xlane.f32.xlu0 %v1681
      %v1683 = vpop.xlane.xlu0 %1682
      %v1684 = vmax.f32 %v1410, %v1499
      %1685 = vmax.xlane.f32.xlu0 %v1684
      %v1686 = vpop.xlane.xlu0 %1685
      %v1687 = vmax.f32 %v1412, %v1501
      %1688 = vmax.xlane.f32.xlu0 %v1687
      %v1689 = vpop.xlane.xlu0 %1688
      %v1690 = vmax.f32 %v1415, %v1504
      %1691 = vmax.xlane.f32.xlu0 %v1690
      %v1692 = vpop.xlane.xlu0 %1691
      %v1693 = vmax.f32 %v1417, %v1506
      %1694 = vmax.xlane.f32.xlu0 %v1693
      %v1695 = vpop.xlane.xlu0 %1694
      %v1696 = vmax.f32 %v1420, %v1509
      %1697 = vmax.xlane.f32.xlu0 %v1696
      %v1698 = vpop.xlane.xlu0 %1697
      %v1699 = vmax.f32 %v1422, %v1511
      %1700 = vmax.xlane.f32.xlu0 %v1699
      %v1701 = vpop.xlane.xlu0 %1700
      %v1702 = vmax.f32 %v1425, %v1514
      %1703 = vmax.xlane.f32.xlu0 %v1702
      %v1704 = vpop.xlane.xlu0 %1703
      %v1705 = vmax.f32 %v1427, %v1516
      %1706 = vmax.xlane.f32.xlu0 %v1705
      %v1707 = vpop.xlane.xlu0 %1706
      %v1708 = vmax.f32 %v1430, %v1519
      %1709 = vmax.xlane.f32.xlu0 %v1708
      %v1710 = vpop.xlane.xlu0 %1709
      %v1711 = vmax.f32 %v1432, %v1521
      %1712 = vmax.xlane.f32.xlu0 %v1711
      %v1713 = vpop.xlane.xlu0 %1712
      %v1714 = vmax.f32 %v1435, %v1524
      %1715 = vmax.xlane.f32.xlu0 %v1714
      %v1716 = vpop.xlane.xlu0 %1715
      %v1717 = vmax.f32 %v1437, %v1526
      %1718 = vmax.xlane.f32.xlu0 %v1717
      %v1719 = vpop.xlane.xlu0 %1718
      %v1720 = vsub.f32 %v926, %v1530
      %v1721 = vsub.f32 %v1015, %v1530
      %v1722 = vsub.f32 %v928, %v1533
      %v1723 = vsub.f32 %v1017, %v1533
      %v1724 = vsub.f32 %v931, %v1536
      %v1725 = vsub.f32 %v1020, %v1536
      %v1726 = vsub.f32 %v933, %v1539
      %v1727 = vsub.f32 %v1022, %v1539
      %v1728 = vsub.f32 %v936, %v1542
      %v1729 = vsub.f32 %v1025, %v1542
      %v1730 = vsub.f32 %v938, %v1545
      %v1731 = vsub.f32 %v1027, %v1545
      %v1732 = vsub.f32 %v941, %v1548
      %v1733 = vsub.f32 %v1030, %v1548
      %v1734 = vsub.f32 %v943, %v1551
      %v1735 = vsub.f32 %v1032, %v1551
      %v1736 = vsub.f32 %v946, %v1554
      %v1737 = vsub.f32 %v1035, %v1554
      %v1738 = vsub.f32 %v948, %v1557
      %v1739 = vsub.f32 %v1037, %v1557
      %v1740 = vsub.f32 %v951, %v1560
      %v1741 = vsub.f32 %v1040, %v1560
      %v1742 = vsub.f32 %v953, %v1563
      %v1743 = vsub.f32 %v1042, %v1563
      %v1744 = vsub.f32 %v956, %v1566
      %v1745 = vsub.f32 %v1045, %v1566
      %v1746 = vsub.f32 %v958, %v1569
      %v1747 = vsub.f32 %v1047, %v1569
      %v1748 = vsub.f32 %v961, %v1572
      %v1749 = vsub.f32 %v1050, %v1572
      %v1750 = vsub.f32 %v963, %v1575
      %v1751 = vsub.f32 %v1052, %v1575
      %v1752 = vsub.f32 %v966, %v1578
      %v1753 = vsub.f32 %v1055, %v1578
      %v1754 = vsub.f32 %v968, %v1581
      %v1755 = vsub.f32 %v1057, %v1581
      %v1756 = vsub.f32 %v971, %v1584
      %v1757 = vsub.f32 %v1060, %v1584
      %v1758 = vsub.f32 %v973, %v1587
      %v1759 = vsub.f32 %v1062, %v1587
      %v1760 = vsub.f32 %v976, %v1590
      %v1761 = vsub.f32 %v1065, %v1590
      %v1762 = vsub.f32 %v978, %v1593
      %v1763 = vsub.f32 %v1067, %v1593
      %v1764 = vsub.f32 %v981, %v1596
      %v1765 = vsub.f32 %v1070, %v1596
      %v1766 = vsub.f32 %v983, %v1599
      %v1767 = vsub.f32 %v1072, %v1599
      %v1768 = vsub.f32 %v986, %v1602
      %v1769 = vsub.f32 %v1075, %v1602
      %v1770 = vsub.f32 %v988, %v1605
      %v1771 = vsub.f32 %v1077, %v1605
      %v1772 = vsub.f32 %v991, %v1608
      %v1773 = vsub.f32 %v1080, %v1608
      %v1774 = vsub.f32 %v993, %v1611
      %v1775 = vsub.f32 %v1082, %v1611
      %v1776 = vsub.f32 %v996, %v1614
      %v1777 = vsub.f32 %v1085, %v1614
      %v1778 = vsub.f32 %v998, %v1617
      %v1779 = vsub.f32 %v1087, %v1617
      %v1780 = vsub.f32 %v1001, %v1620
      %v1781 = vsub.f32 %v1090, %v1620
      %v1782 = vsub.f32 %v1003, %v1623
      %v1783 = vsub.f32 %v1092, %v1623
      %v1784 = vsub.f32 %v1360, %v1626
      %v1785 = vsub.f32 %v1449, %v1626
      %v1786 = vsub.f32 %v1362, %v1629
      %v1787 = vsub.f32 %v1451, %v1629
      %v1788 = vsub.f32 %v1365, %v1632
      %v1789 = vsub.f32 %v1454, %v1632
      %v1790 = vsub.f32 %v1367, %v1635
      %v1791 = vsub.f32 %v1456, %v1635
      %v1792 = vsub.f32 %v1370, %v1638
      %v1793 = vsub.f32 %v1459, %v1638
      %v1794 = vsub.f32 %v1372, %v1641
      %v1795 = vsub.f32 %v1461, %v1641
      %v1796 = vsub.f32 %v1375, %v1644
      %v1797 = vsub.f32 %v1464, %v1644
      %v1798 = vsub.f32 %v1377, %v1647
      %v1799 = vsub.f32 %v1466, %v1647
      %v1800 = vsub.f32 %v1380, %v1650
      %v1801 = vsub.f32 %v1469, %v1650
      %v1802 = vsub.f32 %v1382, %v1653
      %v1803 = vsub.f32 %v1471, %v1653
      %v1804 = vsub.f32 %v1385, %v1656
      %v1805 = vsub.f32 %v1474, %v1656
      %v1806 = vsub.f32 %v1387, %v1659
      %v1807 = vsub.f32 %v1476, %v1659
      %v1808 = vsub.f32 %v1390, %v1662
      %v1809 = vsub.f32 %v1479, %v1662
      %v1810 = vsub.f32 %v1392, %v1665
      %v1811 = vsub.f32 %v1481, %v1665
      %v1812 = vsub.f32 %v1395, %v1668
      %v1813 = vsub.f32 %v1484, %v1668
      %v1814 = vsub.f32 %v1397, %v1671
      %v1815 = vsub.f32 %v1486, %v1671
      %v1816 = vsub.f32 %v1400, %v1674
      %v1817 = vsub.f32 %v1489, %v1674
      %v1818 = vsub.f32 %v1402, %v1677
      %v1819 = vsub.f32 %v1491, %v1677
      %v1820 = vsub.f32 %v1405, %v1680
      %v1821 = vsub.f32 %v1494, %v1680
      %v1822 = vsub.f32 %v1407, %v1683
      %v1823 = vsub.f32 %v1496, %v1683
      %v1824 = vsub.f32 %v1410, %v1686
      %v1825 = vsub.f32 %v1499, %v1686
      %v1826 = vsub.f32 %v1412, %v1689
      %v1827 = vsub.f32 %v1501, %v1689
      %v1828 = vsub.f32 %v1415, %v1692
      %v1829 = vsub.f32 %v1504, %v1692
      %v1830 = vsub.f32 %v1417, %v1695
      %v1831 = vsub.f32 %v1506, %v1695
      %v1832 = vsub.f32 %v1420, %v1698
      %v1833 = vsub.f32 %v1509, %v1698
      %v1834 = vsub.f32 %v1422, %v1701
      %v1835 = vsub.f32 %v1511, %v1701
      %v1836 = vsub.f32 %v1425, %v1704
      %v1837 = vsub.f32 %v1514, %v1704
      %v1838 = vsub.f32 %v1427, %v1707
      %v1839 = vsub.f32 %v1516, %v1707
      %v1840 = vsub.f32 %v1430, %v1710
      %v1841 = vsub.f32 %v1519, %v1710
      %v1842 = vsub.f32 %v1432, %v1713
      %v1843 = vsub.f32 %v1521, %v1713
      %v1844 = vsub.f32 %v1435, %v1716
      %v1845 = vsub.f32 %v1524, %v1716
      %v1846 = vsub.f32 %v1437, %v1719
      %v1847 = vsub.f32 %v1526, %v1719
      %v1848 = vmul.f32 %v1720, 1.442695
      %v1849 = vpow.pop %v1848
      %v1850 = vmul.f32 %v1721, 1.442695
      %v1851 = vpow.pop %v1850
      %v1852 = vmul.f32 %v1722, 1.442695
      %v1853 = vpow.pop %v1852
      %v1854 = vmul.f32 %v1723, 1.442695
      %v1855 = vpow.pop %v1854
      %v1856 = vmul.f32 %v1724, 1.442695
      %v1857 = vpow.pop %v1856
      %v1858 = vmul.f32 %v1725, 1.442695
      %v1859 = vpow.pop %v1858
      %v1860 = vmul.f32 %v1726, 1.442695
      %v1861 = vpow.pop %v1860
      %v1862 = vmul.f32 %v1727, 1.442695
      %v1863 = vpow.pop %v1862
      %v1864 = vmul.f32 %v1728, 1.442695
      %v1865 = vpow.pop %v1864
      %v1866 = vmul.f32 %v1729, 1.442695
      %v1867 = vpow.pop %v1866
      %v1868 = vmul.f32 %v1730, 1.442695
      %v1869 = vpow.pop %v1868
      %v1870 = vmul.f32 %v1731, 1.442695
      %v1871 = vpow.pop %v1870
      %v1872 = vmul.f32 %v1732, 1.442695
      %v1873 = vpow.pop %v1872
      %v1874 = vmul.f32 %v1733, 1.442695
      %v1875 = vpow.pop %v1874
      %v1876 = vmul.f32 %v1734, 1.442695
      %v1877 = vpow.pop %v1876
      %v1878 = vmul.f32 %v1735, 1.442695
      %v1879 = vpow.pop %v1878
      %v1880 = vmul.f32 %v1736, 1.442695
      %v1881 = vpow.pop %v1880
      %v1882 = vmul.f32 %v1737, 1.442695
      %v1883 = vpow.pop %v1882
      %v1884 = vmul.f32 %v1738, 1.442695
      %v1885 = vpow.pop %v1884
      %v1886 = vmul.f32 %v1739, 1.442695
      %v1887 = vpow.pop %v1886
      %v1888 = vmul.f32 %v1740, 1.442695
      %v1889 = vpow.pop %v1888
      %v1890 = vmul.f32 %v1741, 1.442695
      %v1891 = vpow.pop %v1890
      %v1892 = vmul.f32 %v1742, 1.442695
      %v1893 = vpow.pop %v1892
      %v1894 = vmul.f32 %v1743, 1.442695
      %v1895 = vpow.pop %v1894
      %v1896 = vmul.f32 %v1744, 1.442695
      %v1897 = vpow.pop %v1896
      %v1898 = vmul.f32 %v1745, 1.442695
      %v1899 = vpow.pop %v1898
      %v1900 = vmul.f32 %v1746, 1.442695
      %v1901 = vpow.pop %v1900
      %v1902 = vmul.f32 %v1747, 1.442695
      %v1903 = vpow.pop %v1902
      %v1904 = vmul.f32 %v1748, 1.442695
      %v1905 = vpow.pop %v1904
      %v1906 = vmul.f32 %v1749, 1.442695
      %v1907 = vpow.pop %v1906
      %v1908 = vmul.f32 %v1750, 1.442695
      %v1909 = vpow.pop %v1908
      %v1910 = vmul.f32 %v1751, 1.442695
      %v1911 = vpow.pop %v1910
      %v1912 = vmul.f32 %v1752, 1.442695
      %v1913 = vpow.pop %v1912
      %v1914 = vmul.f32 %v1753, 1.442695
      %v1915 = vpow.pop %v1914
      %v1916 = vmul.f32 %v1754, 1.442695
      %v1917 = vpow.pop %v1916
      %v1918 = vmul.f32 %v1755, 1.442695
      %v1919 = vpow.pop %v1918
      %v1920 = vmul.f32 %v1756, 1.442695
      %v1921 = vpow.pop %v1920
      %v1922 = vmul.f32 %v1757, 1.442695
      %v1923 = vpow.pop %v1922
      %v1924 = vmul.f32 %v1758, 1.442695
      %v1925 = vpow.pop %v1924
      %v1926 = vmul.f32 %v1759, 1.442695
      %v1927 = vpow.pop %v1926
      %v1928 = vmul.f32 %v1760, 1.442695
      %v1929 = vpow.pop %v1928
      %v1930 = vmul.f32 %v1761, 1.442695
      %v1931 = vpow.pop %v1930
      %v1932 = vmul.f32 %v1762, 1.442695
      %v1933 = vpow.pop %v1932
      %v1934 = vmul.f32 %v1763, 1.442695
      %v1935 = vpow.pop %v1934
      %v1936 = vmul.f32 %v1764, 1.442695
      %v1937 = vpow.pop %v1936
      %v1938 = vmul.f32 %v1765, 1.442695
      %v1939 = vpow.pop %v1938
      %v1940 = vmul.f32 %v1766, 1.442695
      %v1941 = vpow.pop %v1940
      %v1942 = vmul.f32 %v1767, 1.442695
      %v1943 = vpow.pop %v1942
      %v1944 = vmul.f32 %v1768, 1.442695
      %v1945 = vpow.pop %v1944
      %v1946 = vmul.f32 %v1769, 1.442695
      %v1947 = vpow.pop %v1946
      %v1948 = vmul.f32 %v1770, 1.442695
      %v1949 = vpow.pop %v1948
      %v1950 = vmul.f32 %v1771, 1.442695
      %v1951 = vpow.pop %v1950
      %v1952 = vmul.f32 %v1772, 1.442695
      %v1953 = vpow.pop %v1952
      %v1954 = vmul.f32 %v1773, 1.442695
      %v1955 = vpow.pop %v1954
      %v1956 = vmul.f32 %v1774, 1.442695
      %v1957 = vpow.pop %v1956
      %v1958 = vmul.f32 %v1775, 1.442695
      %v1959 = vpow.pop %v1958
      %v1960 = vmul.f32 %v1776, 1.442695
      %v1961 = vpow.pop %v1960
      %v1962 = vmul.f32 %v1777, 1.442695
      %v1963 = vpow.pop %v1962
      %v1964 = vmul.f32 %v1778, 1.442695
      %v1965 = vpow.pop %v1964
      %v1966 = vmul.f32 %v1779, 1.442695
      %v1967 = vpow.pop %v1966
      %v1968 = vmul.f32 %v1780, 1.442695
      %v1969 = vpow.pop %v1968
      %v1970 = vmul.f32 %v1781, 1.442695
      %v1971 = vpow.pop %v1970
      %v1972 = vmul.f32 %v1782, 1.442695
      %v1973 = vpow.pop %v1972
      %v1974 = vmul.f32 %v1783, 1.442695
      %v1975 = vpow.pop %v1974
      %v1976 = vmul.f32 %v1784, 1.442695
      %v1977 = vpow.pop %v1976
      %v1978 = vmul.f32 %v1785, 1.442695
      %v1979 = vpow.pop %v1978
      %v1980 = vmul.f32 %v1786, 1.442695
      %v1981 = vpow.pop %v1980
      %v1982 = vmul.f32 %v1787, 1.442695
      %v1983 = vpow.pop %v1982
      %v1984 = vmul.f32 %v1788, 1.442695
      %v1985 = vpow.pop %v1984
      %v1986 = vmul.f32 %v1789, 1.442695
      %v1987 = vpow.pop %v1986
      %v1988 = vmul.f32 %v1790, 1.442695
      %v1989 = vpow.pop %v1988
      %v1990 = vmul.f32 %v1791, 1.442695
      %v1991 = vpow.pop %v1990
      %v1992 = vmul.f32 %v1792, 1.442695
      %v1993 = vpow.pop %v1992
      %v1994 = vmul.f32 %v1793, 1.442695
      %v1995 = vpow.pop %v1994
      %v1996 = vmul.f32 %v1794, 1.442695
      %v1997 = vpow.pop %v1996
      %v1998 = vmul.f32 %v1795, 1.442695
      %v1999 = vpow.pop %v1998
      %v2000 = vmul.f32 %v1796, 1.442695
      %v2001 = vpow.pop %v2000
      %v2002 = vmul.f32 %v1797, 1.442695
      %v2003 = vpow.pop %v2002
      %v2004 = vmul.f32 %v1798, 1.442695
      %v2005 = vpow.pop %v2004
      %v2006 = vmul.f32 %v1799, 1.442695
      %v2007 = vpow.pop %v2006
      %v2008 = vmul.f32 %v1800, 1.442695
      %v2009 = vpow.pop %v2008
      %v2010 = vmul.f32 %v1801, 1.442695
      %v2011 = vpow.pop %v2010
      %v2012 = vmul.f32 %v1802, 1.442695
      %v2013 = vpow.pop %v2012
      %v2014 = vmul.f32 %v1803, 1.442695
      %v2015 = vpow.pop %v2014
      %v2016 = vmul.f32 %v1804, 1.442695
      %v2017 = vpow.pop %v2016
      %v2018 = vmul.f32 %v1805, 1.442695
      %v2019 = vpow.pop %v2018
      %v2020 = vmul.f32 %v1806, 1.442695
      %v2021 = vpow.pop %v2020
      %v2022 = vmul.f32 %v1807, 1.442695
      %v2023 = vpow.pop %v2022
      %v2024 = vmul.f32 %v1808, 1.442695
      %v2025 = vpow.pop %v2024
      %v2026 = vmul.f32 %v1809, 1.442695
      %v2027 = vpow.pop %v2026
      %v2028 = vmul.f32 %v1810, 1.442695
      %v2029 = vpow.pop %v2028
      %v2030 = vmul.f32 %v1811, 1.442695
      %v2031 = vpow.pop %v2030
      %v2032 = vmul.f32 %v1812, 1.442695
      %v2033 = vpow.pop %v2032
      %v2034 = vmul.f32 %v1813, 1.442695
      %v2035 = vpow.pop %v2034
      %v2036 = vmul.f32 %v1814, 1.442695
      %v2037 = vpow.pop %v2036
      %v2038 = vmul.f32 %v1815, 1.442695
      %v2039 = vpow.pop %v2038
      %v2040 = vmul.f32 %v1816, 1.442695
      %v2041 = vpow.pop %v2040
      %v2042 = vmul.f32 %v1817, 1.442695
      %v2043 = vpow.pop %v2042
      %v2044 = vmul.f32 %v1818, 1.442695
      %v2045 = vpow.pop %v2044
      %v2046 = vmul.f32 %v1819, 1.442695
      %v2047 = vpow.pop %v2046
      %v2048 = vmul.f32 %v1820, 1.442695
      %v2049 = vpow.pop %v2048
      %v2050 = vmul.f32 %v1821, 1.442695
      %v2051 = vpow.pop %v2050
      %v2052 = vmul.f32 %v1822, 1.442695
      %v2053 = vpow.pop %v2052
      %v2054 = vmul.f32 %v1823, 1.442695
      %v2055 = vpow.pop %v2054
      %v2056 = vmul.f32 %v1824, 1.442695
      %v2057 = vpow.pop %v2056
      %v2058 = vmul.f32 %v1825, 1.442695
      %v2059 = vpow.pop %v2058
      %v2060 = vmul.f32 %v1826, 1.442695
      %v2061 = vpow.pop %v2060
      %v2062 = vmul.f32 %v1827, 1.442695
      %v2063 = vpow.pop %v2062
      %v2064 = vmul.f32 %v1828, 1.442695
      %v2065 = vpow.pop %v2064
      %v2066 = vmul.f32 %v1829, 1.442695
      %v2067 = vpow.pop %v2066
      %v2068 = vmul.f32 %v1830, 1.442695
      %v2069 = vpow.pop %v2068
      %v2070 = vmul.f32 %v1831, 1.442695
      %v2071 = vpow.pop %v2070
      %v2072 = vmul.f32 %v1832, 1.442695
      %v2073 = vpow.pop %v2072
      %v2074 = vmul.f32 %v1833, 1.442695
      %v2075 = vpow.pop %v2074
      %v2076 = vmul.f32 %v1834, 1.442695
      %v2077 = vpow.pop %v2076
      %v2078 = vmul.f32 %v1835, 1.442695
      %v2079 = vpow.pop %v2078
      %v2080 = vmul.f32 %v1836, 1.442695
      %v2081 = vpow.pop %v2080
      %v2082 = vmul.f32 %v1837, 1.442695
      %v2083 = vpow.pop %v2082
      %v2084 = vmul.f32 %v1838, 1.442695
      %v2085 = vpow.pop %v2084
      %v2086 = vmul.f32 %v1839, 1.442695
      %v2087 = vpow.pop %v2086
      %v2088 = vmul.f32 %v1840, 1.442695
      %v2089 = vpow.pop %v2088
      %v2090 = vmul.f32 %v1841, 1.442695
      %v2091 = vpow.pop %v2090
      %v2092 = vmul.f32 %v1842, 1.442695
      %v2093 = vpow.pop %v2092
      %v2094 = vmul.f32 %v1843, 1.442695
      %v2095 = vpow.pop %v2094
      %v2096 = vmul.f32 %v1844, 1.442695
      %v2097 = vpow.pop %v2096
      %v2098 = vmul.f32 %v1845, 1.442695
      %v2099 = vpow.pop %v2098
      %v2100 = vmul.f32 %v1846, 1.442695
      %v2101 = vpow.pop %v2100
      %v2102 = vmul.f32 %v1847, 1.442695
      %v2103 = vpow.pop %v2102
      %v2104 = vadd.f32 %v1849, %v1851
      %2105 = vadd.xlane.f32.xlu0 %v2104
      %v2106 = vpop.xlane.xlu0 %2105
      %v2107 = vadd.f32 %v1853, %v1855
      %2108 = vadd.xlane.f32.xlu0 %v2107
      %v2109 = vpop.xlane.xlu0 %2108
      %v2110 = vadd.f32 %v1857, %v1859
      %2111 = vadd.xlane.f32.xlu0 %v2110
      %v2112 = vpop.xlane.xlu0 %2111
      %v2113 = vadd.f32 %v1861, %v1863
      %2114 = vadd.xlane.f32.xlu0 %v2113
      %v2115 = vpop.xlane.xlu0 %2114
      %v2116 = vadd.f32 %v1865, %v1867
      %2117 = vadd.xlane.f32.xlu0 %v2116
      %v2118 = vpop.xlane.xlu0 %2117
      %v2119 = vadd.f32 %v1869, %v1871
      %2120 = vadd.xlane.f32.xlu0 %v2119
      %v2121 = vpop.xlane.xlu0 %2120
      %v2122 = vadd.f32 %v1873, %v1875
      %2123 = vadd.xlane.f32.xlu0 %v2122
      %v2124 = vpop.xlane.xlu0 %2123
      %v2125 = vadd.f32 %v1877, %v1879
      %2126 = vadd.xlane.f32.xlu0 %v2125
      %v2127 = vpop.xlane.xlu0 %2126
      %v2128 = vadd.f32 %v1881, %v1883
      %2129 = vadd.xlane.f32.xlu0 %v2128
      %v2130 = vpop.xlane.xlu0 %2129
      %v2131 = vadd.f32 %v1885, %v1887
      %2132 = vadd.xlane.f32.xlu0 %v2131
      %v2133 = vpop.xlane.xlu0 %2132
      %v2134 = vadd.f32 %v1889, %v1891
      %2135 = vadd.xlane.f32.xlu0 %v2134
      %v2136 = vpop.xlane.xlu0 %2135
      %v2137 = vadd.f32 %v1893, %v1895
      %2138 = vadd.xlane.f32.xlu0 %v2137
      %v2139 = vpop.xlane.xlu0 %2138
      %v2140 = vadd.f32 %v1897, %v1899
      %2141 = vadd.xlane.f32.xlu0 %v2140
      %v2142 = vpop.xlane.xlu0 %2141
      %v2143 = vadd.f32 %v1901, %v1903
      %2144 = vadd.xlane.f32.xlu0 %v2143
      %v2145 = vpop.xlane.xlu0 %2144
      %v2146 = vadd.f32 %v1905, %v1907
      %2147 = vadd.xlane.f32.xlu0 %v2146
      %v2148 = vpop.xlane.xlu0 %2147
      %v2149 = vadd.f32 %v1909, %v1911
      %2150 = vadd.xlane.f32.xlu0 %v2149
      %v2151 = vpop.xlane.xlu0 %2150
      %v2152 = vadd.f32 %v1913, %v1915
      %2153 = vadd.xlane.f32.xlu0 %v2152
      %v2154 = vpop.xlane.xlu0 %2153
      %v2155 = vadd.f32 %v1917, %v1919
      %2156 = vadd.xlane.f32.xlu0 %v2155
      %v2157 = vpop.xlane.xlu0 %2156
      %v2158 = vadd.f32 %v1921, %v1923
      %2159 = vadd.xlane.f32.xlu0 %v2158
      %v2160 = vpop.xlane.xlu0 %2159
      %v2161 = vadd.f32 %v1925, %v1927
      %2162 = vadd.xlane.f32.xlu0 %v2161
      %v2163 = vpop.xlane.xlu0 %2162
      %v2164 = vadd.f32 %v1929, %v1931
      %2165 = vadd.xlane.f32.xlu0 %v2164
      %v2166 = vpop.xlane.xlu0 %2165
      %v2167 = vadd.f32 %v1933, %v1935
      %2168 = vadd.xlane.f32.xlu0 %v2167
      %v2169 = vpop.xlane.xlu0 %2168
      %v2170 = vadd.f32 %v1937, %v1939
      %2171 = vadd.xlane.f32.xlu0 %v2170
      %v2172 = vpop.xlane.xlu0 %2171
      %v2173 = vadd.f32 %v1941, %v1943
      %2174 = vadd.xlane.f32.xlu0 %v2173
      %v2175 = vpop.xlane.xlu0 %2174
      %v2176 = vadd.f32 %v1945, %v1947
      %2177 = vadd.xlane.f32.xlu0 %v2176
      %v2178 = vpop.xlane.xlu0 %2177
      %v2179 = vadd.f32 %v1949, %v1951
      %2180 = vadd.xlane.f32.xlu0 %v2179
      %v2181 = vpop.xlane.xlu0 %2180
      %v2182 = vadd.f32 %v1953, %v1955
      %2183 = vadd.xlane.f32.xlu0 %v2182
      %v2184 = vpop.xlane.xlu0 %2183
      %v2185 = vadd.f32 %v1957, %v1959
      %2186 = vadd.xlane.f32.xlu0 %v2185
      %v2187 = vpop.xlane.xlu0 %2186
      %v2188 = vadd.f32 %v1961, %v1963
      %2189 = vadd.xlane.f32.xlu0 %v2188
      %v2190 = vpop.xlane.xlu0 %2189
      %v2191 = vadd.f32 %v1965, %v1967
      %2192 = vadd.xlane.f32.xlu0 %v2191
      %v2193 = vpop.xlane.xlu0 %2192
      %v2194 = vadd.f32 %v1969, %v1971
      %2195 = vadd.xlane.f32.xlu0 %v2194
      %v2196 = vpop.xlane.xlu0 %2195
      %v2197 = vadd.f32 %v1973, %v1975
      %2198 = vadd.xlane.f32.xlu0 %v2197
      %v2199 = vpop.xlane.xlu0 %2198
      %v2200 = vadd.f32 %v1977, %v1979
      %2201 = vadd.xlane.f32.xlu0 %v2200
      %v2202 = vpop.xlane.xlu0 %2201
      %v2203 = vadd.f32 %v1981, %v1983
      %2204 = vadd.xlane.f32.xlu0 %v2203
      %v2205 = vpop.xlane.xlu0 %2204
      %v2206 = vadd.f32 %v1985, %v1987
      %2207 = vadd.xlane.f32.xlu0 %v2206
      %v2208 = vpop.xlane.xlu0 %2207
      %v2209 = vadd.f32 %v1989, %v1991
      %2210 = vadd.xlane.f32.xlu0 %v2209
      %v2211 = vpop.xlane.xlu0 %2210
      %v2212 = vadd.f32 %v1993, %v1995
      %2213 = vadd.xlane.f32.xlu0 %v2212
      %v2214 = vpop.xlane.xlu0 %2213
      %v2215 = vadd.f32 %v1997, %v1999
      %2216 = vadd.xlane.f32.xlu0 %v2215
      %v2217 = vpop.xlane.xlu0 %2216
      %v2218 = vadd.f32 %v2001, %v2003
      %2219 = vadd.xlane.f32.xlu0 %v2218
      %v2220 = vpop.xlane.xlu0 %2219
      %v2221 = vadd.f32 %v2005, %v2007
      %2222 = vadd.xlane.f32.xlu0 %v2221
      %v2223 = vpop.xlane.xlu0 %2222
      %v2224 = vadd.f32 %v2009, %v2011
      %2225 = vadd.xlane.f32.xlu0 %v2224
      %v2226 = vpop.xlane.xlu0 %2225
      %v2227 = vadd.f32 %v2013, %v2015
      %2228 = vadd.xlane.f32.xlu0 %v2227
      %v2229 = vpop.xlane.xlu0 %2228
      %v2230 = vadd.f32 %v2017, %v2019
      %2231 = vadd.xlane.f32.xlu0 %v2230
      %v2232 = vpop.xlane.xlu0 %2231
      %v2233 = vadd.f32 %v2021, %v2023
      %2234 = vadd.xlane.f32.xlu0 %v2233
      %v2235 = vpop.xlane.xlu0 %2234
      %v2236 = vadd.f32 %v2025, %v2027
      %2237 = vadd.xlane.f32.xlu0 %v2236
      %v2238 = vpop.xlane.xlu0 %2237
      %v2239 = vadd.f32 %v2029, %v2031
      %2240 = vadd.xlane.f32.xlu0 %v2239
      %v2241 = vpop.xlane.xlu0 %2240
      %v2242 = vadd.f32 %v2033, %v2035
      %2243 = vadd.xlane.f32.xlu0 %v2242
      %v2244 = vpop.xlane.xlu0 %2243
      %v2245 = vadd.f32 %v2037, %v2039
      %2246 = vadd.xlane.f32.xlu0 %v2245
      %v2247 = vpop.xlane.xlu0 %2246
      %v2248 = vadd.f32 %v2041, %v2043
      %2249 = vadd.xlane.f32.xlu0 %v2248
      %v2250 = vpop.xlane.xlu0 %2249
      %v2251 = vadd.f32 %v2045, %v2047
      %2252 = vadd.xlane.f32.xlu0 %v2251
      %v2253 = vpop.xlane.xlu0 %2252
      %v2254 = vadd.f32 %v2049, %v2051
      %2255 = vadd.xlane.f32.xlu0 %v2254
      %v2256 = vpop.xlane.xlu0 %2255
      %v2257 = vadd.f32 %v2053, %v2055
      %2258 = vadd.xlane.f32.xlu0 %v2257
      %v2259 = vpop.xlane.xlu0 %2258
      %v2260 = vadd.f32 %v2057, %v2059
      %2261 = vadd.xlane.f32.xlu0 %v2260
      %v2262 = vpop.xlane.xlu0 %2261
      %v2263 = vadd.f32 %v2061, %v2063
      %2264 = vadd.xlane.f32.xlu0 %v2263
      %v2265 = vpop.xlane.xlu0 %2264
      %v2266 = vadd.f32 %v2065, %v2067
      %2267 = vadd.xlane.f32.xlu0 %v2266
      %v2268 = vpop.xlane.xlu0 %2267
      %v2269 = vadd.f32 %v2069, %v2071
      %2270 = vadd.xlane.f32.xlu0 %v2269
      %v2271 = vpop.xlane.xlu0 %2270
      %v2272 = vadd.f32 %v2073, %v2075
      %2273 = vadd.xlane.f32.xlu0 %v2272
      %v2274 = vpop.xlane.xlu0 %2273
      %v2275 = vadd.f32 %v2077, %v2079
      %2276 = vadd.xlane.f32.xlu0 %v2275
      %v2277 = vpop.xlane.xlu0 %2276
      %v2278 = vadd.f32 %v2081, %v2083
      %2279 = vadd.xlane.f32.xlu0 %v2278
      %v2280 = vpop.xlane.xlu0 %2279
      %v2281 = vadd.f32 %v2085, %v2087
      %2282 = vadd.xlane.f32.xlu0 %v2281
      %v2283 = vpop.xlane.xlu0 %2282
      %v2284 = vadd.f32 %v2089, %v2091
      %2285 = vadd.xlane.f32.xlu0 %v2284
      %v2286 = vpop.xlane.xlu0 %2285
      %v2287 = vadd.f32 %v2093, %v2095
      %2288 = vadd.xlane.f32.xlu0 %v2287
      %v2289 = vpop.xlane.xlu0 %2288
      %v2290 = vadd.f32 %v2097, %v2099
      %2291 = vadd.xlane.f32.xlu0 %v2290
      %v2292 = vpop.xlane.xlu0 %2291
      %v2293 = vadd.f32 %v2101, %v2103
      %2294 = vadd.xlane.f32.xlu0 %v2293
      %v2295 = vpop.xlane.xlu0 %2294
      %v2296 = vrcp.pop %v2106
      %v2297 = vrcp.pop %v2109
      %v2298 = vrcp.pop %v2112
      %v2299 = vrcp.pop %v2115
      %v2300 = vrcp.pop %v2118
      %v2301 = vrcp.pop %v2121
      %v2302 = vrcp.pop %v2124
      %v2303 = vrcp.pop %v2127
      %v2304 = vrcp.pop %v2130
      %v2305 = vrcp.pop %v2133
      %v2306 = vrcp.pop %v2136
      %v2307 = vrcp.pop %v2139
      %v2308 = vrcp.pop %v2142
      %v2309 = vrcp.pop %v2145
      %v2310 = vrcp.pop %v2148
      %v2311 = vrcp.pop %v2151
      %v2312 = vrcp.pop %v2154
      %v2313 = vrcp.pop %v2157
      %v2314 = vrcp.pop %v2160
      %v2315 = vrcp.pop %v2163
      %v2316 = vrcp.pop %v2166
      %v2317 = vrcp.pop %v2169
      %v2318 = vrcp.pop %v2172
      %v2319 = vrcp.pop %v2175
      %v2320 = vrcp.pop %v2178
      %v2321 = vrcp.pop %v2181
      %v2322 = vrcp.pop %v2184
      %v2323 = vrcp.pop %v2187
      %v2324 = vrcp.pop %v2190
      %v2325 = vrcp.pop %v2193
      %v2326 = vrcp.pop %v2196
      %v2327 = vrcp.pop %v2199
      %v2328 = vrcp.pop %v2202
      %v2329 = vrcp.pop %v2205
      %v2330 = vrcp.pop %v2208
      %v2331 = vrcp.pop %v2211
      %v2332 = vrcp.pop %v2214
      %v2333 = vrcp.pop %v2217
      %v2334 = vrcp.pop %v2220
      %v2335 = vrcp.pop %v2223
      %v2336 = vrcp.pop %v2226
      %v2337 = vrcp.pop %v2229
      %v2338 = vrcp.pop %v2232
      %v2339 = vrcp.pop %v2235
      %v2340 = vrcp.pop %v2238
      %v2341 = vrcp.pop %v2241
      %v2342 = vrcp.pop %v2244
      %v2343 = vrcp.pop %v2247
      %v2344 = vrcp.pop %v2250
      %v2345 = vrcp.pop %v2253
      %v2346 = vrcp.pop %v2256
      %v2347 = vrcp.pop %v2259
      %v2348 = vrcp.pop %v2262
      %v2349 = vrcp.pop %v2265
      %v2350 = vrcp.pop %v2268
      %v2351 = vrcp.pop %v2271
      %v2352 = vrcp.pop %v2274
      %v2353 = vrcp.pop %v2277
      %v2354 = vrcp.pop %v2280
      %v2355 = vrcp.pop %v2283
      %v2356 = vrcp.pop %v2286
      %v2357 = vrcp.pop %v2289
      %v2358 = vrcp.pop %v2292
      %v2359 = vrcp.pop %v2295
      %v2360 = vmul.f32 %v1849, %v2296
      %v2361 = vmul.f32 %v1851, %v2296
      %v2362 = vmul.f32 %v1853, %v2297
      %v2363 = vmul.f32 %v1855, %v2297
      %v2364 = vmul.f32 %v1857, %v2298
      %v2365 = vmul.f32 %v1859, %v2298
      %v2366 = vmul.f32 %v1861, %v2299
      %v2367 = vmul.f32 %v1863, %v2299
      %v2368 = vmul.f32 %v1865, %v2300
      %v2369 = vmul.f32 %v1867, %v2300
      %v2370 = vmul.f32 %v1869, %v2301
      %v2371 = vmul.f32 %v1871, %v2301
      %v2372 = vmul.f32 %v1873, %v2302
      %v2373 = vmul.f32 %v1875, %v2302
      %v2374 = vmul.f32 %v1877, %v2303
      %v2375 = vmul.f32 %v1879, %v2303
      %v2376 = vmul.f32 %v1881, %v2304
      %v2377 = vmul.f32 %v1883, %v2304
      %v2378 = vmul.f32 %v1885, %v2305
      %v2379 = vmul.f32 %v1887, %v2305
      %v2380 = vmul.f32 %v1889, %v2306
      %v2381 = vmul.f32 %v1891, %v2306
      %v2382 = vmul.f32 %v1893, %v2307
      %v2383 = vmul.f32 %v1895, %v2307
      %v2384 = vmul.f32 %v1897, %v2308
      %v2385 = vmul.f32 %v1899, %v2308
      %v2386 = vmul.f32 %v1901, %v2309
      %v2387 = vmul.f32 %v1903, %v2309
      %v2388 = vmul.f32 %v1905, %v2310
      %v2389 = vmul.f32 %v1907, %v2310
      %v2390 = vmul.f32 %v1909, %v2311
      %v2391 = vmul.f32 %v1911, %v2311
      %v2392 = vmul.f32 %v1913, %v2312
      %v2393 = vmul.f32 %v1915, %v2312
      %v2394 = vmul.f32 %v1917, %v2313
      %v2395 = vmul.f32 %v1919, %v2313
      %v2396 = vmul.f32 %v1921, %v2314
      %v2397 = vmul.f32 %v1923, %v2314
      %v2398 = vmul.f32 %v1925, %v2315
      %v2399 = vmul.f32 %v1927, %v2315
      %v2400 = vmul.f32 %v1929, %v2316
      %v2401 = vmul.f32 %v1931, %v2316
      %v2402 = vmul.f32 %v1933, %v2317
      %v2403 = vmul.f32 %v1935, %v2317
      %v2404 = vmul.f32 %v1937, %v2318
      %v2405 = vmul.f32 %v1939, %v2318
      %v2406 = vmul.f32 %v1941, %v2319
      %v2407 = vmul.f32 %v1943, %v2319
      %v2408 = vmul.f32 %v1945, %v2320
      %v2409 = vmul.f32 %v1947, %v2320
      %v2410 = vmul.f32 %v1949, %v2321
      %v2411 = vmul.f32 %v1951, %v2321
      %v2412 = vmul.f32 %v1953, %v2322
      %v2413 = vmul.f32 %v1955, %v2322
      %v2414 = vmul.f32 %v1957, %v2323
      %v2415 = vmul.f32 %v1959, %v2323
      %v2416 = vmul.f32 %v1961, %v2324
      %v2417 = vmul.f32 %v1963, %v2324
      %v2418 = vmul.f32 %v1965, %v2325
      %v2419 = vmul.f32 %v1967, %v2325
      %v2420 = vmul.f32 %v1969, %v2326
      %v2421 = vmul.f32 %v1971, %v2326
      %v2422 = vmul.f32 %v1973, %v2327
      %v2423 = vmul.f32 %v1975, %v2327
      %v2424 = vmul.f32 %v1977, %v2328
      %v2425 = vmul.f32 %v1979, %v2328
      %v2426 = vmul.f32 %v1981, %v2329
      %v2427 = vmul.f32 %v1983, %v2329
      %v2428 = vmul.f32 %v1985, %v2330
      %v2429 = vmul.f32 %v1987, %v2330
      %v2430 = vmul.f32 %v1989, %v2331
      %v2431 = vmul.f32 %v1991, %v2331
      %v2432 = vmul.f32 %v1993, %v2332
      %v2433 = vmul.f32 %v1995, %v2332
      %v2434 = vmul.f32 %v1997, %v2333
      %v2435 = vmul.f32 %v1999, %v2333
      %v2436 = vmul.f32 %v2001, %v2334
      %v2437 = vmul.f32 %v2003, %v2334
      %v2438 = vmul.f32 %v2005, %v2335
      %v2439 = vmul.f32 %v2007, %v2335
      %v2440 = vmul.f32 %v2009, %v2336
      %v2441 = vmul.f32 %v2011, %v2336
      %v2442 = vmul.f32 %v2013, %v2337
      %v2443 = vmul.f32 %v2015, %v2337
      %v2444 = vmul.f32 %v2017, %v2338
      %v2445 = vmul.f32 %v2019, %v2338
      %v2446 = vmul.f32 %v2021, %v2339
      %v2447 = vmul.f32 %v2023, %v2339
      %v2448 = vmul.f32 %v2025, %v2340
      %v2449 = vmul.f32 %v2027, %v2340
      %v2450 = vmul.f32 %v2029, %v2341
      %v2451 = vmul.f32 %v2031, %v2341
      %v2452 = vmul.f32 %v2033, %v2342
      %v2453 = vmul.f32 %v2035, %v2342
      %v2454 = vmul.f32 %v2037, %v2343
      %v2455 = vmul.f32 %v2039, %v2343
      %v2456 = vmul.f32 %v2041, %v2344
      %v2457 = vmul.f32 %v2043, %v2344
      %v2458 = vmul.f32 %v2045, %v2345
      %v2459 = vmul.f32 %v2047, %v2345
      %v2460 = vmul.f32 %v2049, %v2346
      %v2461 = vmul.f32 %v2051, %v2346
      %v2462 = vmul.f32 %v2053, %v2347
      %v2463 = vmul.f32 %v2055, %v2347
      %v2464 = vmul.f32 %v2057, %v2348
      %v2465 = vmul.f32 %v2059, %v2348
      %v2466 = vmul.f32 %v2061, %v2349
      %v2467 = vmul.f32 %v2063, %v2349
      %v2468 = vmul.f32 %v2065, %v2350
      %v2469 = vmul.f32 %v2067, %v2350
      %v2470 = vmul.f32 %v2069, %v2351
      %v2471 = vmul.f32 %v2071, %v2351
      %v2472 = vmul.f32 %v2073, %v2352
      %v2473 = vmul.f32 %v2075, %v2352
      %v2474 = vmul.f32 %v2077, %v2353
      %v2475 = vmul.f32 %v2079, %v2353
      %v2476 = vmul.f32 %v2081, %v2354
      %v2477 = vmul.f32 %v2083, %v2354
      %v2478 = vmul.f32 %v2085, %v2355
      %v2479 = vmul.f32 %v2087, %v2355
      %v2480 = vmul.f32 %v2089, %v2356
      %v2481 = vmul.f32 %v2091, %v2356
      %v2482 = vmul.f32 %v2093, %v2357
      %v2483 = vmul.f32 %v2095, %v2357
      %v2484 = vmul.f32 %v2097, %v2358
      %v2485 = vmul.f32 %v2099, %v2358
      %v2486 = vmul.f32 %v2101, %v2359
      %v2487 = vmul.f32 %v2103, %v2359
      %v2488 = vpack.c.bf16 %v2361, %v2360
      %v2489 = vpack.c.bf16 %v2363, %v2362
      %v2490 = vpack.c.bf16 %v2365, %v2364
      %v2491 = vpack.c.bf16 %v2367, %v2366
      %v2492 = vpack.c.bf16 %v2369, %v2368
      %v2493 = vpack.c.bf16 %v2371, %v2370
      %v2494 = vpack.c.bf16 %v2373, %v2372
      %v2495 = vpack.c.bf16 %v2375, %v2374
      %v2496 = vpack.c.bf16 %v2377, %v2376
      %v2497 = vpack.c.bf16 %v2379, %v2378
      %v2498 = vpack.c.bf16 %v2381, %v2380
      %v2499 = vpack.c.bf16 %v2383, %v2382
      %v2500 = vpack.c.bf16 %v2385, %v2384
      %v2501 = vpack.c.bf16 %v2387, %v2386
      %v2502 = vpack.c.bf16 %v2389, %v2388
      %v2503 = vpack.c.bf16 %v2391, %v2390
      %v2504 = vpack.c.bf16 %v2393, %v2392
      %v2505 = vpack.c.bf16 %v2395, %v2394
      %v2506 = vpack.c.bf16 %v2397, %v2396
      %v2507 = vpack.c.bf16 %v2399, %v2398
      %v2508 = vpack.c.bf16 %v2401, %v2400
      %v2509 = vpack.c.bf16 %v2403, %v2402
      %v2510 = vpack.c.bf16 %v2405, %v2404
      %v2511 = vpack.c.bf16 %v2407, %v2406
      %v2512 = vpack.c.bf16 %v2409, %v2408
      %v2513 = vpack.c.bf16 %v2411, %v2410
      %v2514 = vpack.c.bf16 %v2413, %v2412
      %v2515 = vpack.c.bf16 %v2415, %v2414
      %v2516 = vpack.c.bf16 %v2417, %v2416
      %v2517 = vpack.c.bf16 %v2419, %v2418
      %v2518 = vpack.c.bf16 %v2421, %v2420
      %v2519 = vpack.c.bf16 %v2423, %v2422
      %v2520 = vpack.c.bf16 %v2425, %v2424
      %v2521 = vpack.c.bf16 %v2427, %v2426
      %v2522 = vpack.c.bf16 %v2429, %v2428
      %v2523 = vpack.c.bf16 %v2431, %v2430
      %v2524 = vpack.c.bf16 %v2433, %v2432
      %v2525 = vpack.c.bf16 %v2435, %v2434
      %v2526 = vpack.c.bf16 %v2437, %v2436
      %v2527 = vpack.c.bf16 %v2439, %v2438
      %v2528 = vpack.c.bf16 %v2441, %v2440
      %v2529 = vpack.c.bf16 %v2443, %v2442
      %v2530 = vpack.c.bf16 %v2445, %v2444
      %v2531 = vpack.c.bf16 %v2447, %v2446
      %v2532 = vpack.c.bf16 %v2449, %v2448
      %v2533 = vpack.c.bf16 %v2451, %v2450
      %v2534 = vpack.c.bf16 %v2453, %v2452
      %v2535 = vpack.c.bf16 %v2455, %v2454
      %v2536 = vpack.c.bf16 %v2457, %v2456
      %v2537 = vpack.c.bf16 %v2459, %v2458
      %v2538 = vpack.c.bf16 %v2461, %v2460
      %v2539 = vpack.c.bf16 %v2463, %v2462
      %v2540 = vpack.c.bf16 %v2465, %v2464
      %v2541 = vpack.c.bf16 %v2467, %v2466
      %v2542 = vpack.c.bf16 %v2469, %v2468
      %v2543 = vpack.c.bf16 %v2471, %v2470
      %v2544 = vpack.c.bf16 %v2473, %v2472
      %v2545 = vpack.c.bf16 %v2475, %v2474
      %v2546 = vpack.c.bf16 %v2477, %v2476
      %v2547 = vpack.c.bf16 %v2479, %v2478
      %v2548 = vpack.c.bf16 %v2481, %v2480
      %v2549 = vpack.c.bf16 %v2483, %v2482
      %v2550 = vpack.c.bf16 %v2485, %v2484
      %v2551 = vpack.c.bf16 %v2487, %v2486
      %v2584 = vunpack.c.l.b16 %v2488
      %v2585 = vunpack.c.h.b16 %v2488
      %v2586 = vunpack.c.l.b16 %v2489
      %v2587 = vunpack.c.h.b16 %v2489
      %v2588 = vunpack.c.l.b16 %v2490
      %v2589 = vunpack.c.h.b16 %v2490
      %v2590 = vunpack.c.l.b16 %v2491
      %v2591 = vunpack.c.h.b16 %v2491
      %v2592 = vunpack.c.l.b16 %v2492
      %v2593 = vunpack.c.h.b16 %v2492
      %v2594 = vunpack.c.l.b16 %v2493
      %v2595 = vunpack.c.h.b16 %v2493
      %v2596 = vunpack.c.l.b16 %v2494
      %v2597 = vunpack.c.h.b16 %v2494
      %v2598 = vunpack.c.l.b16 %v2495
      %v2599 = vunpack.c.h.b16 %v2495
      %v2600 = vunpack.c.l.b16 %v2496
      %v2601 = vunpack.c.h.b16 %v2496
      %v2602 = vunpack.c.l.b16 %v2497
      %v2603 = vunpack.c.h.b16 %v2497
      %v2604 = vunpack.c.l.b16 %v2498
      %v2605 = vunpack.c.h.b16 %v2498
      %v2606 = vunpack.c.l.b16 %v2499
      %v2607 = vunpack.c.h.b16 %v2499
      %v2608 = vunpack.c.l.b16 %v2500
      %v2609 = vunpack.c.h.b16 %v2500
      %v2610 = vunpack.c.l.b16 %v2501
      %v2611 = vunpack.c.h.b16 %v2501
      %v2612 = vunpack.c.l.b16 %v2502
      %v2613 = vunpack.c.h.b16 %v2502
      %v2614 = vunpack.c.l.b16 %v2503
      %v2615 = vunpack.c.h.b16 %v2503
      %v2616 = vunpack.c.l.b16 %v2504
      %v2617 = vunpack.c.h.b16 %v2504
      %v2618 = vunpack.c.l.b16 %v2505
      %v2619 = vunpack.c.h.b16 %v2505
      %v2620 = vunpack.c.l.b16 %v2506
      %v2621 = vunpack.c.h.b16 %v2506
      %v2622 = vunpack.c.l.b16 %v2507
      %v2623 = vunpack.c.h.b16 %v2507
      %v2624 = vunpack.c.l.b16 %v2508
      %v2625 = vunpack.c.h.b16 %v2508
      %v2626 = vunpack.c.l.b16 %v2509
      %v2627 = vunpack.c.h.b16 %v2509
      %v2628 = vunpack.c.l.b16 %v2510
      %v2629 = vunpack.c.h.b16 %v2510
      %v2630 = vunpack.c.l.b16 %v2511
      %v2631 = vunpack.c.h.b16 %v2511
      %v2632 = vunpack.c.l.b16 %v2512
      %v2633 = vunpack.c.h.b16 %v2512
      %v2634 = vunpack.c.l.b16 %v2513
      %v2635 = vunpack.c.h.b16 %v2513
      %v2636 = vunpack.c.l.b16 %v2514
      %v2637 = vunpack.c.h.b16 %v2514
      %v2638 = vunpack.c.l.b16 %v2515
      %v2639 = vunpack.c.h.b16 %v2515
      %v2640 = vunpack.c.l.b16 %v2516
      %v2641 = vunpack.c.h.b16 %v2516
      %v2642 = vunpack.c.l.b16 %v2517
      %v2643 = vunpack.c.h.b16 %v2517
      %v2644 = vunpack.c.l.b16 %v2518
      %v2645 = vunpack.c.h.b16 %v2518
      %v2646 = vunpack.c.l.b16 %v2519
      %v2647 = vunpack.c.h.b16 %v2519
      %v2648 = vpack.c.b16 %v2586, %v2584
      %v2649 = vpack.c.b16 %v2587, %v2585
      %v2650 = vpack.c.b16 %v2590, %v2588
      %v2651 = vpack.c.b16 %v2591, %v2589
      %v2652 = vpack.c.b16 %v2594, %v2592
      %v2653 = vpack.c.b16 %v2595, %v2593
      %v2654 = vpack.c.b16 %v2598, %v2596
      %v2655 = vpack.c.b16 %v2599, %v2597
      %v2656 = vpack.c.b16 %v2602, %v2600
      %v2657 = vpack.c.b16 %v2603, %v2601
      %v2658 = vpack.c.b16 %v2606, %v2604
      %v2659 = vpack.c.b16 %v2607, %v2605
      %v2660 = vpack.c.b16 %v2610, %v2608
      %v2661 = vpack.c.b16 %v2611, %v2609
      %v2662 = vpack.c.b16 %v2614, %v2612
      %v2663 = vpack.c.b16 %v2615, %v2613
      %v2664 = vpack.c.b16 %v2618, %v2616
      %v2665 = vpack.c.b16 %v2619, %v2617
      %v2666 = vpack.c.b16 %v2622, %v2620
      %v2667 = vpack.c.b16 %v2623, %v2621
      %v2668 = vpack.c.b16 %v2626, %v2624
      %v2669 = vpack.c.b16 %v2627, %v2625
      %v2670 = vpack.c.b16 %v2630, %v2628
      %v2671 = vpack.c.b16 %v2631, %v2629
      %v2672 = vpack.c.b16 %v2634, %v2632
      %v2673 = vpack.c.b16 %v2635, %v2633
      %v2674 = vpack.c.b16 %v2638, %v2636
      %v2675 = vpack.c.b16 %v2639, %v2637
      %v2676 = vpack.c.b16 %v2642, %v2640
      %v2677 = vpack.c.b16 %v2643, %v2641
      %v2678 = vpack.c.b16 %v2646, %v2644
      %v2679 = vpack.c.b16 %v2647, %v2645
      %v2744 = vunpack.c.l.b16 %v595
      %v2745 = vunpack.c.l.b16 %v596
      %v2746 = vunpack.c.l.b16 %v597
      %v2747 = vunpack.c.l.b16 %v598
      %v2748 = vunpack.c.l.b16 %v599
      %v2749 = vunpack.c.l.b16 %v600
      %v2750 = vunpack.c.l.b16 %v601
      %v2751 = vunpack.c.l.b16 %v602
      %v2752 = vunpack.c.l.b16 %v603
      %v2753 = vunpack.c.l.b16 %v604
      %v2754 = vunpack.c.l.b16 %v605
      %v2755 = vunpack.c.l.b16 %v606
      %v2756 = vunpack.c.l.b16 %v607
      %v2757 = vunpack.c.l.b16 %v608
      %v2758 = vunpack.c.l.b16 %v609
      %v2759 = vunpack.c.l.b16 %v610
      %v2760 = vunpack.c.l.b16 %v611
      %v2761 = vunpack.c.l.b16 %v612
      %v2762 = vunpack.c.l.b16 %v613
      %v2763 = vunpack.c.l.b16 %v614
      %v2764 = vunpack.c.l.b16 %v615
      %v2765 = vunpack.c.l.b16 %v616
      %v2766 = vunpack.c.l.b16 %v617
      %v2767 = vunpack.c.l.b16 %v618
      %v2768 = vunpack.c.l.b16 %v619
      %v2769 = vunpack.c.l.b16 %v620
      %v2770 = vunpack.c.l.b16 %v621
      %v2771 = vunpack.c.l.b16 %v622
      %v2772 = vunpack.c.l.b16 %v623
      %v2773 = vunpack.c.l.b16 %v624
      %v2774 = vunpack.c.l.b16 %v625
      %v2775 = vunpack.c.l.b16 %v626
      %v2776 = vpack.c.b16 %v2745, %v2744
      %v2777 = vpack.c.b16 %v2747, %v2746
      %v2778 = vpack.c.b16 %v2749, %v2748
      %v2779 = vpack.c.b16 %v2751, %v2750
      %v2780 = vpack.c.b16 %v2753, %v2752
      %v2781 = vpack.c.b16 %v2755, %v2754
      %v2782 = vpack.c.b16 %v2757, %v2756
      %v2783 = vpack.c.b16 %v2759, %v2758
      %v2784 = vpack.c.b16 %v2761, %v2760
      %v2785 = vpack.c.b16 %v2763, %v2762
      %v2786 = vpack.c.b16 %v2765, %v2764
      %v2787 = vpack.c.b16 %v2767, %v2766
      %v2788 = vpack.c.b16 %v2769, %v2768
      %v2789 = vpack.c.b16 %v2771, %v2770
      %v2790 = vpack.c.b16 %v2773, %v2772
      %v2791 = vpack.c.b16 %v2775, %v2774
      %2808 = vmatpush.bf16.msra.mxu0 %v2783
      %2809 = vmatpush.bf16.msra.mxu0 %v2782
      %2810 = vmatpush.bf16.msra.mxu0 %v2781
      %2811 = vmatpush.bf16.msra.mxu0 %v2780
      %2812 = vmatpush.bf16.msra.mxu0 %v2779
      %2813 = vmatpush.bf16.msra.mxu0 %v2778
      %2814 = vmatpush.bf16.msra.mxu0 %v2777
      %2815 = vmatpush.bf16.msra.mxu0 %v2776
      %2816 = vmatmul.bf16.gmra.mxu0 %v2648
      %v2817 = vpop.f32.mrf.mxu0
      %v2818 = vadd.f32 0.0, %v2817
      %v2819 = vpop.f32.mrf.mxu0
      %v2820 = vadd.f32 0.0, %v2819
      %2821 = vmatmul.bf16.gmra.mxu0 %v2650
      %v2822 = vpop.f32.mrf.mxu0
      %v2823 = vadd.f32 0.0, %v2822
      %v2824 = vpop.f32.mrf.mxu0
      %v2825 = vadd.f32 0.0, %v2824
      %2826 = vmatmul.bf16.gmra.mxu0 %v2652
      %v2827 = vpop.f32.mrf.mxu0
      %v2828 = vadd.f32 0.0, %v2827
      %v2829 = vpop.f32.mrf.mxu0
      %v2830 = vadd.f32 0.0, %v2829
      %2831 = vmatmul.bf16.gmra.mxu0 %v2654
      %v2832 = vpop.f32.mrf.mxu0
      %v2833 = vadd.f32 0.0, %v2832
      %v2834 = vpop.f32.mrf.mxu0
      %v2835 = vadd.f32 0.0, %v2834
      %2836 = vmatmul.bf16.gmra.mxu0 %v2656
      %v2837 = vpop.f32.mrf.mxu0
      %v2838 = vadd.f32 0.0, %v2837
      %v2839 = vpop.f32.mrf.mxu0
      %v2840 = vadd.f32 0.0, %v2839
      %2841 = vmatmul.bf16.gmra.mxu0 %v2658
      %v2842 = vpop.f32.mrf.mxu0
      %v2843 = vadd.f32 0.0, %v2842
      %v2844 = vpop.f32.mrf.mxu0
      %v2845 = vadd.f32 0.0, %v2844
      %2846 = vmatmul.bf16.gmra.mxu0 %v2660
      %v2847 = vpop.f32.mrf.mxu0
      %v2848 = vadd.f32 0.0, %v2847
      %v2849 = vpop.f32.mrf.mxu0
      %v2850 = vadd.f32 0.0, %v2849
      %2851 = vmatmul.bf16.gmra.mxu0 %v2662
      %v2852 = vpop.f32.mrf.mxu0
      %v2853 = vadd.f32 0.0, %v2852
      %v2854 = vpop.f32.mrf.mxu0
      %v2855 = vadd.f32 0.0, %v2854
      %2856 = vmatmul.bf16.gmra.mxu0 %v2664
      %v2857 = vpop.f32.mrf.mxu0
      %v2858 = vadd.f32 0.0, %v2857
      %v2859 = vpop.f32.mrf.mxu0
      %v2860 = vadd.f32 0.0, %v2859
      %2861 = vmatmul.bf16.gmra.mxu0 %v2666
      %v2862 = vpop.f32.mrf.mxu0
      %v2863 = vadd.f32 0.0, %v2862
      %v2864 = vpop.f32.mrf.mxu0
      %v2865 = vadd.f32 0.0, %v2864
      %2866 = vmatmul.bf16.gmra.mxu0 %v2668
      %v2867 = vpop.f32.mrf.mxu0
      %v2868 = vadd.f32 0.0, %v2867
      %v2869 = vpop.f32.mrf.mxu0
      %v2870 = vadd.f32 0.0, %v2869
      %2871 = vmatmul.bf16.gmra.mxu0 %v2670
      %v2872 = vpop.f32.mrf.mxu0
      %v2873 = vadd.f32 0.0, %v2872
      %v2874 = vpop.f32.mrf.mxu0
      %v2875 = vadd.f32 0.0, %v2874
      %2876 = vmatmul.bf16.gmra.mxu0 %v2672
      %v2877 = vpop.f32.mrf.mxu0
      %v2878 = vadd.f32 0.0, %v2877
      %v2879 = vpop.f32.mrf.mxu0
      %v2880 = vadd.f32 0.0, %v2879
      %2881 = vmatmul.bf16.gmra.mxu0 %v2674
      %v2882 = vpop.f32.mrf.mxu0
      %v2883 = vadd.f32 0.0, %v2882
      %v2884 = vpop.f32.mrf.mxu0
      %v2885 = vadd.f32 0.0, %v2884
      %2886 = vmatmul.bf16.gmra.mxu0 %v2676
      %v2887 = vpop.f32.mrf.mxu0
      %v2888 = vadd.f32 0.0, %v2887
      %v2889 = vpop.f32.mrf.mxu0
      %v2890 = vadd.f32 0.0, %v2889
      %2891 = vmatmul.bf16.gmra.mxu0 %v2678
      %v2892 = vpop.f32.mrf.mxu0
      %v2893 = vadd.f32 0.0, %v2892
      %v2894 = vpop.f32.mrf.mxu0
      %v2895 = vadd.f32 0.0, %v2894
      %2896 = vdwg.mxu0
      %2897 = vmatpush.bf16.msra.mxu0 %v2791
      %2898 = vmatpush.bf16.msra.mxu0 %v2790
      %2899 = vmatpush.bf16.msra.mxu0 %v2789
      %2900 = vmatpush.bf16.msra.mxu0 %v2788
      %2901 = vmatpush.bf16.msra.mxu0 %v2787
      %2902 = vmatpush.bf16.msra.mxu0 %v2786
      %2903 = vmatpush.bf16.msra.mxu0 %v2785
      %2904 = vmatpush.bf16.msra.mxu0 %v2784
      %2905 = vmatmul.bf16.gmra.mxu0 %v2649
      %v2906 = vpop.f32.mrf.mxu0
      %v2907 = vadd.f32 %v2818, %v2906
      %v2908 = vpop.f32.mrf.mxu0
      %v2909 = vadd.f32 %v2820, %v2908
      %2910 = vmatmul.bf16.gmra.mxu0 %v2651
      %v2911 = vpop.f32.mrf.mxu0
      %v2912 = vadd.f32 %v2823, %v2911
      %v2913 = vpop.f32.mrf.mxu0
      %v2914 = vadd.f32 %v2825, %v2913
      %2915 = vmatmul.bf16.gmra.mxu0 %v2653
      %v2916 = vpop.f32.mrf.mxu0
      %v2917 = vadd.f32 %v2828, %v2916
      %v2918 = vpop.f32.mrf.mxu0
      %v2919 = vadd.f32 %v2830, %v2918
      %2920 = vmatmul.bf16.gmra.mxu0 %v2655
      %v2921 = vpop.f32.mrf.mxu0
      %v2922 = vadd.f32 %v2833, %v2921
      %v2923 = vpop.f32.mrf.mxu0
      %v2924 = vadd.f32 %v2835, %v2923
      %2925 = vmatmul.bf16.gmra.mxu0 %v2657
      %v2926 = vpop.f32.mrf.mxu0
      %v2927 = vadd.f32 %v2838, %v2926
      %v2928 = vpop.f32.mrf.mxu0
      %v2929 = vadd.f32 %v2840, %v2928
      %2930 = vmatmul.bf16.gmra.mxu0 %v2659
      %v2931 = vpop.f32.mrf.mxu0
      %v2932 = vadd.f32 %v2843, %v2931
      %v2933 = vpop.f32.mrf.mxu0
      %v2934 = vadd.f32 %v2845, %v2933
      %2935 = vmatmul.bf16.gmra.mxu0 %v2661
      %v2936 = vpop.f32.mrf.mxu0
      %v2937 = vadd.f32 %v2848, %v2936
      %v2938 = vpop.f32.mrf.mxu0
      %v2939 = vadd.f32 %v2850, %v2938
      %2940 = vmatmul.bf16.gmra.mxu0 %v2663
      %v2941 = vpop.f32.mrf.mxu0
      %v2942 = vadd.f32 %v2853, %v2941
      %v2943 = vpop.f32.mrf.mxu0
      %v2944 = vadd.f32 %v2855, %v2943
      %2945 = vmatmul.bf16.gmra.mxu0 %v2665
      %v2946 = vpop.f32.mrf.mxu0
      %v2947 = vadd.f32 %v2858, %v2946
      %v2948 = vpop.f32.mrf.mxu0
      %v2949 = vadd.f32 %v2860, %v2948
      %2950 = vmatmul.bf16.gmra.mxu0 %v2667
      %v2951 = vpop.f32.mrf.mxu0
      %v2952 = vadd.f32 %v2863, %v2951
      %v2953 = vpop.f32.mrf.mxu0
      %v2954 = vadd.f32 %v2865, %v2953
      %2955 = vmatmul.bf16.gmra.mxu0 %v2669
      %v2956 = vpop.f32.mrf.mxu0
      %v2957 = vadd.f32 %v2868, %v2956
      %v2958 = vpop.f32.mrf.mxu0
      %v2959 = vadd.f32 %v2870, %v2958
      %2960 = vmatmul.bf16.gmra.mxu0 %v2671
      %v2961 = vpop.f32.mrf.mxu0
      %v2962 = vadd.f32 %v2873, %v2961
      %v2963 = vpop.f32.mrf.mxu0
      %v2964 = vadd.f32 %v2875, %v2963
      %2965 = vmatmul.bf16.gmra.mxu0 %v2673
      %v2966 = vpop.f32.mrf.mxu0
      %v2967 = vadd.f32 %v2878, %v2966
      %v2968 = vpop.f32.mrf.mxu0
      %v2969 = vadd.f32 %v2880, %v2968
      %2970 = vmatmul.bf16.gmra.mxu0 %v2675
      %v2971 = vpop.f32.mrf.mxu0
      %v2972 = vadd.f32 %v2883, %v2971
      %v2973 = vpop.f32.mrf.mxu0
      %v2974 = vadd.f32 %v2885, %v2973
      %2975 = vmatmul.bf16.gmra.mxu0 %v2677
      %v2976 = vpop.f32.mrf.mxu0
      %v2977 = vadd.f32 %v2888, %v2976
      %v2978 = vpop.f32.mrf.mxu0
      %v2979 = vadd.f32 %v2890, %v2978
      %2980 = vmatmul.bf16.gmra.mxu0 %v2679
      %v2981 = vpop.f32.mrf.mxu0
      %v2982 = vadd.f32 %v2893, %v2981
      %v2983 = vpop.f32.mrf.mxu0
      %v2984 = vadd.f32 %v2895, %v2983
      %2985 = vdwg.mxu0
      %v3018 = vunpack.c.l.b16 %v2520
      %v3019 = vunpack.c.h.b16 %v2520
      %v3020 = vunpack.c.l.b16 %v2521
      %v3021 = vunpack.c.h.b16 %v2521
      %v3022 = vunpack.c.l.b16 %v2522
      %v3023 = vunpack.c.h.b16 %v2522
      %v3024 = vunpack.c.l.b16 %v2523
      %v3025 = vunpack.c.h.b16 %v2523
      %v3026 = vunpack.c.l.b16 %v2524
      %v3027 = vunpack.c.h.b16 %v2524
      %v3028 = vunpack.c.l.b16 %v2525
      %v3029 = vunpack.c.h.b16 %v2525
      %v3030 = vunpack.c.l.b16 %v2526
      %v3031 = vunpack.c.h.b16 %v2526
      %v3032 = vunpack.c.l.b16 %v2527
      %v3033 = vunpack.c.h.b16 %v2527
      %v3034 = vunpack.c.l.b16 %v2528
      %v3035 = vunpack.c.h.b16 %v2528
      %v3036 = vunpack.c.l.b16 %v2529
      %v3037 = vunpack.c.h.b16 %v2529
      %v3038 = vunpack.c.l.b16 %v2530
      %v3039 = vunpack.c.h.b16 %v2530
      %v3040 = vunpack.c.l.b16 %v2531
      %v3041 = vunpack.c.h.b16 %v2531
      %v3042 = vunpack.c.l.b16 %v2532
      %v3043 = vunpack.c.h.b16 %v2532
      %v3044 = vunpack.c.l.b16 %v2533
      %v3045 = vunpack.c.h.b16 %v2533
      %v3046 = vunpack.c.l.b16 %v2534
      %v3047 = vunpack.c.h.b16 %v2534
      %v3048 = vunpack.c.l.b16 %v2535
      %v3049 = vunpack.c.h.b16 %v2535
      %v3050 = vunpack.c.l.b16 %v2536
      %v3051 = vunpack.c.h.b16 %v2536
      %v3052 = vunpack.c.l.b16 %v2537
      %v3053 = vunpack.c.h.b16 %v2537
      %v3054 = vunpack.c.l.b16 %v2538
      %v3055 = vunpack.c.h.b16 %v2538
      %v3056 = vunpack.c.l.b16 %v2539
      %v3057 = vunpack.c.h.b16 %v2539
      %v3058 = vunpack.c.l.b16 %v2540
      %v3059 = vunpack.c.h.b16 %v2540
      %v3060 = vunpack.c.l.b16 %v2541
      %v3061 = vunpack.c.h.b16 %v2541
      %v3062 = vunpack.c.l.b16 %v2542
      %v3063 = vunpack.c.h.b16 %v2542
      %v3064 = vunpack.c.l.b16 %v2543
      %v3065 = vunpack.c.h.b16 %v2543
      %v3066 = vunpack.c.l.b16 %v2544
      %v3067 = vunpack.c.h.b16 %v2544
      %v3068 = vunpack.c.l.b16 %v2545
      %v3069 = vunpack.c.h.b16 %v2545
      %v3070 = vunpack.c.l.b16 %v2546
      %v3071 = vunpack.c.h.b16 %v2546
      %v3072 = vunpack.c.l.b16 %v2547
      %v3073 = vunpack.c.h.b16 %v2547
      %v3074 = vunpack.c.l.b16 %v2548
      %v3075 = vunpack.c.h.b16 %v2548
      %v3076 = vunpack.c.l.b16 %v2549
      %v3077 = vunpack.c.h.b16 %v2549
      %v3078 = vunpack.c.l.b16 %v2550
      %v3079 = vunpack.c.h.b16 %v2550
      %v3080 = vunpack.c.l.b16 %v2551
      %v3081 = vunpack.c.h.b16 %v2551
      %v3082 = vpack.c.b16 %v3020, %v3018
      %v3083 = vpack.c.b16 %v3021, %v3019
      %v3084 = vpack.c.b16 %v3024, %v3022
      %v3085 = vpack.c.b16 %v3025, %v3023
      %v3086 = vpack.c.b16 %v3028, %v3026
      %v3087 = vpack.c.b16 %v3029, %v3027
      %v3088 = vpack.c.b16 %v3032, %v3030
      %v3089 = vpack.c.b16 %v3033, %v3031
      %v3090 = vpack.c.b16 %v3036, %v3034
      %v3091 = vpack.c.b16 %v3037, %v3035
      %v3092 = vpack.c.b16 %v3040, %v3038
      %v3093 = vpack.c.b16 %v3041, %v3039
      %v3094 = vpack.c.b16 %v3044, %v3042
      %v3095 = vpack.c.b16 %v3045, %v3043
      %v3096 = vpack.c.b16 %v3048, %v3046
      %v3097 = vpack.c.b16 %v3049, %v3047
      %v3098 = vpack.c.b16 %v3052, %v3050
      %v3099 = vpack.c.b16 %v3053, %v3051
      %v3100 = vpack.c.b16 %v3056, %v3054
      %v3101 = vpack.c.b16 %v3057, %v3055
      %v3102 = vpack.c.b16 %v3060, %v3058
      %v3103 = vpack.c.b16 %v3061, %v3059
      %v3104 = vpack.c.b16 %v3064, %v3062
      %v3105 = vpack.c.b16 %v3065, %v3063
      %v3106 = vpack.c.b16 %v3068, %v3066
      %v3107 = vpack.c.b16 %v3069, %v3067
      %v3108 = vpack.c.b16 %v3072, %v3070
      %v3109 = vpack.c.b16 %v3073, %v3071
      %v3110 = vpack.c.b16 %v3076, %v3074
      %v3111 = vpack.c.b16 %v3077, %v3075
      %v3112 = vpack.c.b16 %v3080, %v3078
      %v3113 = vpack.c.b16 %v3081, %v3079
      %v3178 = vunpack.c.l.b16 %v627
      %v3179 = vunpack.c.l.b16 %v628
      %v3180 = vunpack.c.l.b16 %v629
      %v3181 = vunpack.c.l.b16 %v630
      %v3182 = vunpack.c.l.b16 %v631
      %v3183 = vunpack.c.l.b16 %v632
      %v3184 = vunpack.c.l.b16 %v633
      %v3185 = vunpack.c.l.b16 %v634
      %v3186 = vunpack.c.l.b16 %v635
      %v3187 = vunpack.c.l.b16 %v636
      %v3188 = vunpack.c.l.b16 %v637
      %v3189 = vunpack.c.l.b16 %v638
      %v3190 = vunpack.c.l.b16 %v639
      %v3191 = vunpack.c.l.b16 %v640
      %v3192 = vunpack.c.l.b16 %v641
      %v3193 = vunpack.c.l.b16 %v642
      %v3194 = vunpack.c.l.b16 %v643
      %v3195 = vunpack.c.l.b16 %v644
      %v3196 = vunpack.c.l.b16 %v645
      %v3197 = vunpack.c.l.b16 %v646
      %v3198 = vunpack.c.l.b16 %v647
      %v3199 = vunpack.c.l.b16 %v648
      %v3200 = vunpack.c.l.b16 %v649
      %v3201 = vunpack.c.l.b16 %v650
      %v3202 = vunpack.c.l.b16 %v651
      %v3203 = vunpack.c.l.b16 %v652
      %v3204 = vunpack.c.l.b16 %v653
      %v3205 = vunpack.c.l.b16 %v654
      %v3206 = vunpack.c.l.b16 %v655
      %v3207 = vunpack.c.l.b16 %v656
      %v3208 = vunpack.c.l.b16 %v657
      %v3209 = vunpack.c.l.b16 %v658
      %v3210 = vpack.c.b16 %v3179, %v3178
      %v3211 = vpack.c.b16 %v3181, %v3180
      %v3212 = vpack.c.b16 %v3183, %v3182
      %v3213 = vpack.c.b16 %v3185, %v3184
      %v3214 = vpack.c.b16 %v3187, %v3186
      %v3215 = vpack.c.b16 %v3189, %v3188
      %v3216 = vpack.c.b16 %v3191, %v3190
      %v3217 = vpack.c.b16 %v3193, %v3192
      %v3218 = vpack.c.b16 %v3195, %v3194
      %v3219 = vpack.c.b16 %v3197, %v3196
      %v3220 = vpack.c.b16 %v3199, %v3198
      %v3221 = vpack.c.b16 %v3201, %v3200
      %v3222 = vpack.c.b16 %v3203, %v3202
      %v3223 = vpack.c.b16 %v3205, %v3204
      %v3224 = vpack.c.b16 %v3207, %v3206
      %v3225 = vpack.c.b16 %v3209, %v3208
      %3242 = vmatpush.bf16.msra.mxu0 %v3217
      %3243 = vmatpush.bf16.msra.mxu0 %v3216
      %3244 = vmatpush.bf16.msra.mxu0 %v3215
      %3245 = vmatpush.bf16.msra.mxu0 %v3214
      %3246 = vmatpush.bf16.msra.mxu0 %v3213
      %3247 = vmatpush.bf16.msra.mxu0 %v3212
      %3248 = vmatpush.bf16.msra.mxu0 %v3211
      %3249 = vmatpush.bf16.msra.mxu0 %v3210
      %3250 = vmatmul.bf16.gmra.mxu0 %v3082
      %v3251 = vpop.f32.mrf.mxu0
      %v3252 = vadd.f32 0.0, %v3251
      %v3253 = vpop.f32.mrf.mxu0
      %v3254 = vadd.f32 0.0, %v3253
      %3255 = vmatmul.bf16.gmra.mxu0 %v3084
      %v3256 = vpop.f32.mrf.mxu0
      %v3257 = vadd.f32 0.0, %v3256
      %v3258 = vpop.f32.mrf.mxu0
      %v3259 = vadd.f32 0.0, %v3258
      %3260 = vmatmul.bf16.gmra.mxu0 %v3086
      %v3261 = vpop.f32.mrf.mxu0
      %v3262 = vadd.f32 0.0, %v3261
      %v3263 = vpop.f32.mrf.mxu0
      %v3264 = vadd.f32 0.0, %v3263
      %3265 = vmatmul.bf16.gmra.mxu0 %v3088
      %v3266 = vpop.f32.mrf.mxu0
      %v3267 = vadd.f32 0.0, %v3266
      %v3268 = vpop.f32.mrf.mxu0
      %v3269 = vadd.f32 0.0, %v3268
      %3270 = vmatmul.bf16.gmra.mxu0 %v3090
      %v3271 = vpop.f32.mrf.mxu0
      %v3272 = vadd.f32 0.0, %v3271
      %v3273 = vpop.f32.mrf.mxu0
      %v3274 = vadd.f32 0.0, %v3273
      %3275 = vmatmul.bf16.gmra.mxu0 %v3092
      %v3276 = vpop.f32.mrf.mxu0
      %v3277 = vadd.f32 0.0, %v3276
      %v3278 = vpop.f32.mrf.mxu0
      %v3279 = vadd.f32 0.0, %v3278
      %3280 = vmatmul.bf16.gmra.mxu0 %v3094
      %v3281 = vpop.f32.mrf.mxu0
      %v3282 = vadd.f32 0.0, %v3281
      %v3283 = vpop.f32.mrf.mxu0
      %v3284 = vadd.f32 0.0, %v3283
      %3285 = vmatmul.bf16.gmra.mxu0 %v3096
      %v3286 = vpop.f32.mrf.mxu0
      %v3287 = vadd.f32 0.0, %v3286
      %v3288 = vpop.f32.mrf.mxu0
      %v3289 = vadd.f32 0.0, %v3288
      %3290 = vmatmul.bf16.gmra.mxu0 %v3098
      %v3291 = vpop.f32.mrf.mxu0
      %v3292 = vadd.f32 0.0, %v3291
      %v3293 = vpop.f32.mrf.mxu0
      %v3294 = vadd.f32 0.0, %v3293
      %3295 = vmatmul.bf16.gmra.mxu0 %v3100
      %v3296 = vpop.f32.mrf.mxu0
      %v3297 = vadd.f32 0.0, %v3296
      %v3298 = vpop.f32.mrf.mxu0
      %v3299 = vadd.f32 0.0, %v3298
      %3300 = vmatmul.bf16.gmra.mxu0 %v3102
      %v3301 = vpop.f32.mrf.mxu0
      %v3302 = vadd.f32 0.0, %v3301
      %v3303 = vpop.f32.mrf.mxu0
      %v3304 = vadd.f32 0.0, %v3303
      %3305 = vmatmul.bf16.gmra.mxu0 %v3104
      %v3306 = vpop.f32.mrf.mxu0
      %v3307 = vadd.f32 0.0, %v3306
      %v3308 = vpop.f32.mrf.mxu0
      %v3309 = vadd.f32 0.0, %v3308
      %3310 = vmatmul.bf16.gmra.mxu0 %v3106
      %v3311 = vpop.f32.mrf.mxu0
      %v3312 = vadd.f32 0.0, %v3311
      %v3313 = vpop.f32.mrf.mxu0
      %v3314 = vadd.f32 0.0, %v3313
      %3315 = vmatmul.bf16.gmra.mxu0 %v3108
      %v3316 = vpop.f32.mrf.mxu0
      %v3317 = vadd.f32 0.0, %v3316
      %v3318 = vpop.f32.mrf.mxu0
      %v3319 = vadd.f32 0.0, %v3318
      %3320 = vmatmul.bf16.gmra.mxu0 %v3110
      %v3321 = vpop.f32.mrf.mxu0
      %v3322 = vadd.f32 0.0, %v3321
      %v3323 = vpop.f32.mrf.mxu0
      %v3324 = vadd.f32 0.0, %v3323
      %3325 = vmatmul.bf16.gmra.mxu0 %v3112
      %v3326 = vpop.f32.mrf.mxu0
      %v3327 = vadd.f32 0.0, %v3326
      %v3328 = vpop.f32.mrf.mxu0
      %v3329 = vadd.f32 0.0, %v3328
      %3330 = vdwg.mxu0
      %3331 = vmatpush.bf16.msra.mxu0 %v3225
      %3332 = vmatpush.bf16.msra.mxu0 %v3224
      %3333 = vmatpush.bf16.msra.mxu0 %v3223
      %3334 = vmatpush.bf16.msra.mxu0 %v3222
      %3335 = vmatpush.bf16.msra.mxu0 %v3221
      %3336 = vmatpush.bf16.msra.mxu0 %v3220
      %3337 = vmatpush.bf16.msra.mxu0 %v3219
      %3338 = vmatpush.bf16.msra.mxu0 %v3218
      %3339 = vmatmul.bf16.gmra.mxu0 %v3083
      %v3340 = vpop.f32.mrf.mxu0
      %v3341 = vadd.f32 %v3252, %v3340
      %v3342 = vpop.f32.mrf.mxu0
      %v3343 = vadd.f32 %v3254, %v3342
      %3344 = vmatmul.bf16.gmra.mxu0 %v3085
      %v3345 = vpop.f32.mrf.mxu0
      %v3346 = vadd.f32 %v3257, %v3345
      %v3347 = vpop.f32.mrf.mxu0
      %v3348 = vadd.f32 %v3259, %v3347
      %3349 = vmatmul.bf16.gmra.mxu0 %v3087
      %v3350 = vpop.f32.mrf.mxu0
      %v3351 = vadd.f32 %v3262, %v3350
      %v3352 = vpop.f32.mrf.mxu0
      %v3353 = vadd.f32 %v3264, %v3352
      %3354 = vmatmul.bf16.gmra.mxu0 %v3089
      %v3355 = vpop.f32.mrf.mxu0
      %v3356 = vadd.f32 %v3267, %v3355
      %v3357 = vpop.f32.mrf.mxu0
      %v3358 = vadd.f32 %v3269, %v3357
      %3359 = vmatmul.bf16.gmra.mxu0 %v3091
      %v3360 = vpop.f32.mrf.mxu0
      %v3361 = vadd.f32 %v3272, %v3360
      %v3362 = vpop.f32.mrf.mxu0
      %v3363 = vadd.f32 %v3274, %v3362
      %3364 = vmatmul.bf16.gmra.mxu0 %v3093
      %v3365 = vpop.f32.mrf.mxu0
      %v3366 = vadd.f32 %v3277, %v3365
      %v3367 = vpop.f32.mrf.mxu0
      %v3368 = vadd.f32 %v3279, %v3367
      %3369 = vmatmul.bf16.gmra.mxu0 %v3095
      %v3370 = vpop.f32.mrf.mxu0
      %v3371 = vadd.f32 %v3282, %v3370
      %v3372 = vpop.f32.mrf.mxu0
      %v3373 = vadd.f32 %v3284, %v3372
      %3374 = vmatmul.bf16.gmra.mxu0 %v3097
      %v3375 = vpop.f32.mrf.mxu0
      %v3376 = vadd.f32 %v3287, %v3375
      %v3377 = vpop.f32.mrf.mxu0
      %v3378 = vadd.f32 %v3289, %v3377
      %3379 = vmatmul.bf16.gmra.mxu0 %v3099
      %v3380 = vpop.f32.mrf.mxu0
      %v3381 = vadd.f32 %v3292, %v3380
      %v3382 = vpop.f32.mrf.mxu0
      %v3383 = vadd.f32 %v3294, %v3382
      %3384 = vmatmul.bf16.gmra.mxu0 %v3101
      %v3385 = vpop.f32.mrf.mxu0
      %v3386 = vadd.f32 %v3297, %v3385
      %v3387 = vpop.f32.mrf.mxu0
      %v3388 = vadd.f32 %v3299, %v3387
      %3389 = vmatmul.bf16.gmra.mxu0 %v3103
      %v3390 = vpop.f32.mrf.mxu0
      %v3391 = vadd.f32 %v3302, %v3390
      %v3392 = vpop.f32.mrf.mxu0
      %v3393 = vadd.f32 %v3304, %v3392
      %3394 = vmatmul.bf16.gmra.mxu0 %v3105
      %v3395 = vpop.f32.mrf.mxu0
      %v3396 = vadd.f32 %v3307, %v3395
      %v3397 = vpop.f32.mrf.mxu0
      %v3398 = vadd.f32 %v3309, %v3397
      %3399 = vmatmul.bf16.gmra.mxu0 %v3107
      %v3400 = vpop.f32.mrf.mxu0
      %v3401 = vadd.f32 %v3312, %v3400
      %v3402 = vpop.f32.mrf.mxu0
      %v3403 = vadd.f32 %v3314, %v3402
      %3404 = vmatmul.bf16.gmra.mxu0 %v3109
      %v3405 = vpop.f32.mrf.mxu0
      %v3406 = vadd.f32 %v3317, %v3405
      %v3407 = vpop.f32.mrf.mxu0
      %v3408 = vadd.f32 %v3319, %v3407
      %3409 = vmatmul.bf16.gmra.mxu0 %v3111
      %v3410 = vpop.f32.mrf.mxu0
      %v3411 = vadd.f32 %v3322, %v3410
      %v3412 = vpop.f32.mrf.mxu0
      %v3413 = vadd.f32 %v3324, %v3412
      %3414 = vmatmul.bf16.gmra.mxu0 %v3113
      %v3415 = vpop.f32.mrf.mxu0
      %v3416 = vadd.f32 %v3327, %v3415
      %v3417 = vpop.f32.mrf.mxu0
      %v3418 = vadd.f32 %v3329, %v3417
      %3419 = vdwg.mxu0
      %3420 = vst.msk [vmem:[%s210] sm:$0xff] %vm819, %v2907
      %3421 = vst.msk [vmem:[%s210 + $0x8] sm:$0xff] %vm819, %v2909
      %3422 = vst.msk [vmem:[%s210 + $0x10] sm:$0xff] %vm819, %v2912
      %3423 = vst.msk [vmem:[%s210 + $0x18] sm:$0xff] %vm819, %v2914
      %3424 = vst.msk [vmem:[%s210 + $0x20] sm:$0xff] %vm819, %v2917
      %3425 = vst.msk [vmem:[%s210 + $0x28] sm:$0xff] %vm819, %v2919
      %3426 = vst.msk [vmem:[%s210 + $0x30] sm:$0xff] %vm819, %v2922
      %3427 = vst.msk [vmem:[%s210 + $0x38] sm:$0xff] %vm819, %v2924
      %3428 = vst.msk [vmem:[%s210 + $0x40] sm:$0xff] %vm819, %v2927
      %3429 = vst.msk [vmem:[%s210 + $0x48] sm:$0xff] %vm819, %v2929
      %3430 = vst.msk [vmem:[%s210 + $0x50] sm:$0xff] %vm819, %v2932
      %3431 = vst.msk [vmem:[%s210 + $0x58] sm:$0xff] %vm819, %v2934
      %3432 = vst.msk [vmem:[%s210 + $0x60] sm:$0xff] %vm819, %v2937
      %3433 = vst.msk [vmem:[%s210 + $0x68] sm:$0xff] %vm819, %v2939
      %3434 = vst.msk [vmem:[%s210 + $0x70] sm:$0xff] %vm819, %v2942
      %3435 = vst.msk [vmem:[%s210 + $0x78] sm:$0xff] %vm819, %v2944
      %3436 = vst.msk [vmem:[%s210 + $0x80] sm:$0xff] %vm819, %v2947
      %3437 = vst.msk [vmem:[%s210 + $0x88] sm:$0xff] %vm819, %v2949
      %3438 = vst.msk [vmem:[%s210 + $0x90] sm:$0xff] %vm819, %v2952
      %3439 = vst.msk [vmem:[%s210 + $0x98] sm:$0xff] %vm819, %v2954
      %3440 = vst.msk [vmem:[%s210 + $0xa0] sm:$0xff] %vm819, %v2957
      %3441 = vst.msk [vmem:[%s210 + $0xa8] sm:$0xff] %vm819, %v2959
      %3442 = vst.msk [vmem:[%s210 + $0xb0] sm:$0xff] %vm819, %v2962
      %3443 = vst.msk [vmem:[%s210 + $0xb8] sm:$0xff] %vm819, %v2964
      %3444 = vst.msk [vmem:[%s210 + $0xc0] sm:$0xff] %vm819, %v2967
      %3445 = vst.msk [vmem:[%s210 + $0xc8] sm:$0xff] %vm819, %v2969
      %3446 = vst.msk [vmem:[%s210 + $0xd0] sm:$0xff] %vm819, %v2972
      %3447 = vst.msk [vmem:[%s210 + $0xd8] sm:$0xff] %vm819, %v2974
      %3448 = vst.msk [vmem:[%s210 + $0xe0] sm:$0xff] %vm819, %v2977
      %3449 = vst.msk [vmem:[%s210 + $0xe8] sm:$0xff] %vm819, %v2979
      %3450 = vst.msk [vmem:[%s210 + $0xf0] sm:$0xff] %vm819, %v2982
      %3451 = vst.msk [vmem:[%s210 + $0xf8] sm:$0xff] %vm819, %v2984
      %3452 = vst.msk [vmem:[%s210 + $0x100] sm:$0xff] %vm819, %v3341
      %3453 = vst.msk [vmem:[%s210 + $0x108] sm:$0xff] %vm819, %v3343
      %3454 = vst.msk [vmem:[%s210 + $0x110] sm:$0xff] %vm819, %v3346
      %3455 = vst.msk [vmem:[%s210 + $0x118] sm:$0xff] %vm819, %v3348
      %3456 = vst.msk [vmem:[%s210 + $0x120] sm:$0xff] %vm819, %v3351
      %3457 = vst.msk [vmem:[%s210 + $0x128] sm:$0xff] %vm819, %v3353
      %3458 = vst.msk [vmem:[%s210 + $0x130] sm:$0xff] %vm819, %v3356
      %3459 = vst.msk [vmem:[%s210 + $0x138] sm:$0xff] %vm819, %v3358
      %3460 = vst.msk [vmem:[%s210 + $0x140] sm:$0xff] %vm819, %v3361
      %3461 = vst.msk [vmem:[%s210 + $0x148] sm:$0xff] %vm819, %v3363
      %3462 = vst.msk [vmem:[%s210 + $0x150] sm:$0xff] %vm819, %v3366
      %3463 = vst.msk [vmem:[%s210 + $0x158] sm:$0xff] %vm819, %v3368
      %3464 = vst.msk [vmem:[%s210 + $0x160] sm:$0xff] %vm819, %v3371
      %3465 = vst.msk [vmem:[%s210 + $0x168] sm:$0xff] %vm819, %v3373
      %3466 = vst.msk [vmem:[%s210 + $0x170] sm:$0xff] %vm819, %v3376
      %3467 = vst.msk [vmem:[%s210 + $0x178] sm:$0xff] %vm819, %v3378
      %3468 = vst.msk [vmem:[%s210 + $0x180] sm:$0xff] %vm819, %v3381
      %3469 = vst.msk [vmem:[%s210 + $0x188] sm:$0xff] %vm819, %v3383
      %3470 = vst.msk [vmem:[%s210 + $0x190] sm:$0xff] %vm819, %v3386
      %3471 = vst.msk [vmem:[%s210 + $0x198] sm:$0xff] %vm819, %v3388
      %3472 = vst.msk [vmem:[%s210 + $0x1a0] sm:$0xff] %vm819, %v3391
      %3473 = vst.msk [vmem:[%s210 + $0x1a8] sm:$0xff] %vm819, %v3393
      %3474 = vst.msk [vmem:[%s210 + $0x1b0] sm:$0xff] %vm819, %v3396
      %3475 = vst.msk [vmem:[%s210 + $0x1b8] sm:$0xff] %vm819, %v3398
      %3476 = vst.msk [vmem:[%s210 + $0x1c0] sm:$0xff] %vm819, %v3401
      %3477 = vst.msk [vmem:[%s210 + $0x1c8] sm:$0xff] %vm819, %v3403
      %3478 = vst.msk [vmem:[%s210 + $0x1d0] sm:$0xff] %vm819, %v3406
      %3479 = vst.msk [vmem:[%s210 + $0x1d8] sm:$0xff] %vm819, %v3408
      %3480 = vst.msk [vmem:[%s210 + $0x1e0] sm:$0xff] %vm819, %v3411
      %3481 = vst.msk [vmem:[%s210 + $0x1e8] sm:$0xff] %vm819, %v3413
      %3482 = vst.msk [vmem:[%s210 + $0x1f0] sm:$0xff] %vm819, %v3416
      %3483 = vst.msk [vmem:[%s210 + $0x1f8] sm:$0xff] %vm819, %v3418
      %p3484 = scmp.lt.s32.totalorder %s14, 1
      %s3485 = scalar_select %p3484, %s14, 1
      %s3486 = smul.addr %s3485, 64
      %s3487 = smul.addr %s3486, 8
      %s3488 = scalar_lea.vmem %s3, %s3487
      // Predicated region
      $region33: #{spatial_transformer_forward.11} parent=31 // pred_check
        %p3489 = pneg %p110
      $region34: #{spatial_transformer_forward.11} parent=31 // pred_check_branch
        %3491 = sbr.rel (%p3489) target = $region36
      $region35: #{spatial_transformer_forward.11} parent=31 // pred_region
        _
      $region36: #{spatial_transformer_forward.11} parent=31 // pred_fallthru
        _
    $region32: #{spatial_transformer_forward.11} parent=5 // pred_fallthru
      _
    %p3492 = scmp.le.s32.totalorder 2, %s9
    // Predicated region
    $region37: #{spatial_transformer_forward.11} parent=5 // pred_check
      %p3493 = pneg %p3492
    $region38: #{spatial_transformer_forward.11} parent=5 // pred_check_branch
      %3495 = sbr.rel (%p3493) target = $region40
    $region39: #{spatial_transformer_forward.11} parent=5 // pred_region
      %s3496 = ssub.s32 %s9, 2
      // Predicated region
      $region41: #{spatial_transformer_forward.11} parent=39 // pred_check
        %p3497 = pneg %p116
      $region42: #{spatial_transformer_forward.11} parent=39 // pred_check_branch
        %3499 = sbr.rel (%p3497) target = $region44
      $region43: #{spatial_transformer_forward.11} parent=39 // pred_region
        %p3500 = scmp.lt.s32.totalorder %s15, 1
        %s3501 = scalar_select %p3500, %s15, 1
        %s3502 = smul.addr %s3501, 64
        %s3503 = smul.addr %s3502, 8
        %s3504 = scalar_lea.vmem %s3, %s3503
      $region44: #{spatial_transformer_forward.11} parent=39 // pred_fallthru
        _
    $region40: #{spatial_transformer_forward.11} parent=5 // pred_fallthru
      _
  $region6: #{spatial_transformer_forward.11} parent=0 // loop_footer
    %s13 = sadd.s32 1, %s9
  $region7: #{spatial_transformer_forward.11} parent=0 // loop_footer_branch
    %8 = sbr.rel target = $region3
  $region8: #{spatial_transformer_forward.11} parent=0 // loop_exit
    _

// kernel: spatial_transformer_forward.17
$region0: #{spatial_transformer_forward.17}
  #allocation0 [shape = 'u32[]', space=smem, size = 0x4, offset = 0x4, fixed_abs, tag = 'smem constant byte address 0x4 - core index']
  #allocation1 [shape = 'u32[72,128]{1,0:T(1,128)}', space=vmem, size = 0x9000, scoped, tag = 'internal scratch']
  %s0 = inlined_call_operand.vmem [shape: f32[512,64], index: 0, kind: input, shape index: {}]
  %s1 = inlined_call_operand.vmem [shape: f32[64,8], index: 1, kind: input, shape index: {}]
  %s2 = inlined_call_operand.vmem [shape: f32[1,8], index: 2, kind: input, shape index: {}]
  %s3 = inlined_call_operand.vmem [shape: f32[512,8], index: 3, kind: input, shape index: {}]
  %s4 = inlined_call_operand.vmem [shape: f32[512,8], index: 4, kind: output, shape index: {}]
  %s5 = sld [smem:[#allocation0]]
  $region49: #{spatial_transformer_forward.17} parent=0
    _
  %s7 = ssub.s32 1, %s5
  %s8 = scalar_select 0, %s7, %s5
  loop: start=0, step=1, limit=4
  $region2: #{spatial_transformer_forward.17} parent=0 // loop_pre_header
    _
  $region3: #{spatial_transformer_forward.17} parent=0 // loop_header
    %s10 = sphi 0, %s14
    %p11 = scmp.ge.s32.totalorder %s10, 4
    %s20 = sphi 0, %s22
    %s23 = sphi 0, %s20
    %s24 = sphi 0, %s23
    %s40 = sphi 0, %s24
    %s44 = sphi 0, %s44
    %s46 = sphi 0, %s44
    %s47 = sphi 0, %s46
    %s61 = sphi 0, %s47
    %s65 = sphi 0, %s65
    %s67 = sphi 0, %s65
    %s68 = sphi 0, %s67
    %s82 = sphi 0, %s68
    %s88 = sphi 0, %s90
    %s91 = sphi 0, %s88
    %s92 = sphi 0, %s91
    %s108 = sphi 0, %s92
    %s114 = sphi 0, %s116
    %s117 = sphi 0, %s114
    %s118 = sphi 0, %s117
    %s134 = sphi 0, %s118
  $region4: #{spatial_transformer_forward.17} parent=0 // loop_header_branch
    %13 = sbr.rel (%p11) target = $region8
  $region5: #{spatial_transformer_forward.17} parent=0 // loop_body
    %s15 = ssub.s32 %s10, 1
    %s16 = ssub.s32 %s10, 2
    %s17 = sadd.s32 %s10, 1
    %s18 = ssub.s32 %s10, %s17
    %p19 = scmp.eq.s32.totalorder %s18, 0
    %s21 = sadd.s32 %s20, 1
    %s22 = scalar_select %p19, %s20, %s21
    %p25 = pneg %p19
    %p26 = scmp.eq.s32.totalorder %s10, 1
    %p27 = por %p25, %p26
    %p28 = scmp.ne.s32.totalorder %s20, %s23
    %p29 = scmp.eq.s32.totalorder %s10, 0
    %p30 = por %p28, %p29
    %p31 = scmp.ne.s32.totalorder %s20, %s23
    %p32 = scmp.eq.s32.totalorder %s15, 1
    %p33 = por %p31, %p32
    %p34 = scmp.ne.s32.totalorder %s23, %s24
    %p35 = scmp.eq.s32.totalorder %s15, 0
    %p36 = por %p34, %p35
    %p37 = scmp.ne.s32.totalorder %s23, %s24
    %p38 = scmp.eq.s32.totalorder %s16, 1
    %p39 = por %p37, %p38
    %p41 = scmp.ne.s32.totalorder %s24, %s40
    %p42 = scmp.eq.s32.totalorder %s16, 0
    %p43 = por %p41, %p42
    %s45 = sadd.s32 %s44, 1
    %p48 = scmp.eq.s32.totalorder %s10, 1
    %p49 = scmp.ne.s32.totalorder %s44, %s46
    %p50 = scmp.eq.s32.totalorder %s10, 0
    %p51 = por %p49, %p50
    %p52 = scmp.ne.s32.totalorder %s44, %s46
    %p53 = scmp.eq.s32.totalorder %s15, 1
    %p54 = por %p52, %p53
    %p55 = scmp.ne.s32.totalorder %s46, %s47
    %p56 = scmp.eq.s32.totalorder %s15, 0
    %p57 = por %p55, %p56
    %p58 = scmp.ne.s32.totalorder %s46, %s47
    %p59 = scmp.eq.s32.totalorder %s16, 1
    %p60 = por %p58, %p59
    %p62 = scmp.ne.s32.totalorder %s47, %s61
    %p63 = scmp.eq.s32.totalorder %s16, 0
    %p64 = por %p62, %p63
    %s66 = sadd.s32 %s65, 1
    %p69 = scmp.eq.s32.totalorder %s10, 1
    %p70 = scmp.ne.s32.totalorder %s65, %s67
    %p71 = scmp.eq.s32.totalorder %s10, 0
    %p72 = por %p70, %p71
    %p73 = scmp.ne.s32.totalorder %s65, %s67
    %p74 = scmp.eq.s32.totalorder %s15, 1
    %p75 = por %p73, %p74
    %p76 = scmp.ne.s32.totalorder %s67, %s68
    %p77 = scmp.eq.s32.totalorder %s15, 0
    %p78 = por %p76, %p77
    %p79 = scmp.ne.s32.totalorder %s67, %s68
    %p80 = scmp.eq.s32.totalorder %s16, 1
    %p81 = por %p79, %p80
    %p83 = scmp.ne.s32.totalorder %s68, %s82
    %p84 = scmp.eq.s32.totalorder %s16, 0
    %p85 = por %p83, %p84
    %s86 = ssub.s32 %s10, %s17
    %p87 = scmp.eq.s32.totalorder %s86, 0
    %s89 = sadd.s32 %s88, 1
    %s90 = scalar_select %p87, %s88, %s89
    %p93 = pneg %p87
    %p94 = scmp.eq.s32.totalorder %s10, 1
    %p95 = por %p93, %p94
    %p96 = scmp.ne.s32.totalorder %s88, %s91
    %p97 = scmp.eq.s32.totalorder %s10, 0
    %p98 = por %p96, %p97
    %p99 = scmp.ne.s32.totalorder %s88, %s91
    %p100 = scmp.eq.s32.totalorder %s15, 1
    %p101 = por %p99, %p100
    %p102 = scmp.ne.s32.totalorder %s91, %s92
    %p103 = scmp.eq.s32.totalorder %s15, 0
    %p104 = por %p102, %p103
    %p105 = scmp.ne.s32.totalorder %s91, %s92
    %p106 = scmp.eq.s32.totalorder %s16, 1
    %p107 = por %p105, %p106
    %p109 = scmp.ne.s32.totalorder %s92, %s108
    %p110 = scmp.eq.s32.totalorder %s16, 0
    %p111 = por %p109, %p110
    %s112 = ssub.s32 %s10, %s17
    %p113 = scmp.eq.s32.totalorder %s112, 0
    %s115 = sadd.s32 %s114, 1
    %s116 = scalar_select %p113, %s114, %s115
    %p119 = pneg %p113
    %p120 = scmp.eq.s32.totalorder %s10, 1
    %p121 = por %p119, %p120
    %p122 = scmp.ne.s32.totalorder %s114, %s117
    %p123 = scmp.eq.s32.totalorder %s10, 0
    %p124 = por %p122, %p123
    %p125 = scmp.ne.s32.totalorder %s114, %s117
    %p126 = scmp.eq.s32.totalorder %s15, 1
    %p127 = por %p125, %p126
    %p128 = scmp.ne.s32.totalorder %s117, %s118
    %p129 = scmp.eq.s32.totalorder %s15, 0
    %p130 = por %p128, %p129
    %p131 = scmp.ne.s32.totalorder %s117, %s118
    %p132 = scmp.eq.s32.totalorder %s16, 1
    %p133 = por %p131, %p132
    %p135 = scmp.ne.s32.totalorder %s118, %s134
    %p136 = scmp.eq.s32.totalorder %s16, 0
    %p137 = por %p135, %p136
    %p138 = scmp.le.s32.totalorder 1, %s10
    %p139 = scmp.lt.s32.totalorder %s10, 3
    %p140 = pnand %p138, %p139
    %p141 = pneg %p140
    // Predicated region
    $region9: #{spatial_transformer_forward.17} parent=5 // pred_check
      _
    $region10: #{spatial_transformer_forward.17} parent=5 // pred_check_branch
      %143 = sbr.rel (%p140) target = $region12
    $region11: #{spatial_transformer_forward.17} parent=5 // pred_region
      %s144 = ssub.s32 %s10, 1
      // Predicated region
      $region13: #{spatial_transformer_forward.17} parent=11 // pred_check
        %p145 = pneg %p57
      $region14: #{spatial_transformer_forward.17} parent=11 // pred_check_branch
        %147 = sbr.rel (%p145) target = $region16
      $region15: #{spatial_transformer_forward.17} parent=11 // pred_region
        _
      $region16: #{spatial_transformer_forward.17} parent=11 // pred_fallthru
        _
      // Predicated region
      $region17: #{spatial_transformer_forward.17} parent=11 // pred_check
        %p148 = pneg %p78
      $region18: #{spatial_transformer_forward.17} parent=11 // pred_check_branch
        %150 = sbr.rel (%p148) target = $region20
      $region19: #{spatial_transformer_forward.17} parent=11 // pred_region
        _
      $region20: #{spatial_transformer_forward.17} parent=11 // pred_fallthru
        _
    $region12: #{spatial_transformer_forward.17} parent=5 // pred_fallthru
      _
    %p151 = scmp.lt.s32.totalorder %s10, 2
    // Predicated region
    $region21: #{spatial_transformer_forward.17} parent=5 // pred_check
      %p152 = pneg %p151
    $region22: #{spatial_transformer_forward.17} parent=5 // pred_check_branch
      %154 = sbr.rel (%p152) target = $region24
    $region23: #{spatial_transformer_forward.17} parent=5 // pred_region
      // Predicated region
      $region25: #{spatial_transformer_forward.17} parent=23 // pred_check
        %p155 = pneg %p30
      $region26: #{spatial_transformer_forward.17} parent=23 // pred_check_branch
        %157 = sbr.rel (%p155) target = $region28
      $region27: #{spatial_transformer_forward.17} parent=23 // pred_region
        %s158 = smul.u32 32, %s10
        %p159 = scmp.lt.s32.totalorder %s158, 63
        %s160 = scalar_select %p159, %s158, 63
        %s161 = smul.addr %s160, 8
        %s162 = scalar_lea.vmem %s0, %s161
        %s163 = smul.u32 32, %s10
      $region28: #{spatial_transformer_forward.17} parent=23 // pred_fallthru
        _
      // Predicated region
      $region29: #{spatial_transformer_forward.17} parent=23 // pred_check
        %p164 = pneg %p98
      $region30: #{spatial_transformer_forward.17} parent=23 // pred_check_branch
        %166 = sbr.rel (%p164) target = $region32
      $region31: #{spatial_transformer_forward.17} parent=23 // pred_region
        %s167 = smul.u32 32, %s10
        %p168 = scmp.lt.s32.totalorder %s167, 63
        %s169 = scalar_select %p168, %s167, 63
        %s170 = smul.addr %s169, 8
        %s171 = scalar_lea.vmem %s3, %s170
        %s172 = smul.u32 32, %s10
      $region32: #{spatial_transformer_forward.17} parent=23 // pred_fallthru
        _
    $region24: #{spatial_transformer_forward.17} parent=5 // pred_fallthru
      _
    %p173 = scmp.le.s32.totalorder 1, %s10
    %p174 = scmp.lt.s32.totalorder %s10, 3
    %p175 = pnand %p173, %p174
    %p176 = pneg %p175
    // Predicated region
    $region33: #{spatial_transformer_forward.17} parent=5 // pred_check
      _
    $region34: #{spatial_transformer_forward.17} parent=5 // pred_check_branch
      %178 = sbr.rel (%p175) target = $region36
    $region35: #{spatial_transformer_forward.17} parent=5 // pred_region
      %s179 = ssub.s32 %s10, 1
      %s180 = smul.u32 32, %s15
      %p181 = scmp.lt.s32.totalorder %s180, 63
      %s182 = scalar_select %p181, %s180, 63
      %s183 = smul.addr %s182, 8
      %s184 = scalar_lea.vmem %s0, %s183
      %p185 = pneg %p36
      %p186 = pneg %p33
      %p187 = pneg %p57
      %p188 = pneg %p54
      %p189 = pneg %p78
      %p190 = pneg %p75
      %s191 = smul.u32 32, %s15
      %p192 = scmp.lt.s32.totalorder %s191, 63
      %s193 = scalar_select %p192, %s191, 63
      %s194 = smul.addr %s193, 8
      %s195 = scalar_lea.vmem %s3, %s194
      %p196 = pneg %p104
      %p197 = pneg %p101
      %p198 = pneg %p130
      %p199 = pneg %p127
      %s200 = smul.u32 32, %s15
      %p201 = scmp.lt.s32.totalorder %s200, 63
      %s202 = scalar_select %p201, %s200, 63
      %s203 = smul.addr %s202, 8
      %s204 = scalar_lea.vmem %s4, %s203
      %s205 = smul.u32 32, %s15
      %p206 = scmp.lt.s32.totalorder %s205, 63
      %s207 = scalar_select %p206, %s205, 63
      %s208 = smul.addr %s207, 8
      %s209 = scalar_lea.vmem %s0, %s208
      %s210 = smul.u32 32, %s15
      %s211 = smul.u32 32, %s15
      %p212 = scmp.lt.s32.totalorder %s211, 63
      %s213 = scalar_select %p212, %s211, 63
      %s214 = smul.addr %s213, 8
      %s215 = scalar_lea.vmem %s3, %s214
      %s216 = smul.u32 32, %s15
      %s217 = smul.u32 32, %s15
      %p218 = scmp.lt.s32.totalorder %s217, 63
      %s219 = scalar_select %p218, %s217, 63
      %s220 = smul.addr %s219, 8
      %s221 = scalar_lea.vmem %s4, %s220
      %s222 = smul.u32 32, %s15
      %v224 = vld [vmem:[%s209] sm:$0xff]
      %v225 = vld [vmem:[%s209 + $0x8] sm:$0xff]
      %v226 = vld [vmem:[%s209 + $0x10] sm:$0xff]
      %v227 = vld [vmem:[%s209 + $0x18] sm:$0xff]
      %v228 = vld [vmem:[%s209 + $0x20] sm:$0xff]
      %v229 = vld [vmem:[%s209 + $0x28] sm:$0xff]
      %v230 = vld [vmem:[%s209 + $0x30] sm:$0xff]
      %v231 = vld [vmem:[%s209 + $0x38] sm:$0xff]
      %v232 = vld [vmem:[%s209 + $0x40] sm:$0xff]
      %v233 = vld [vmem:[%s209 + $0x48] sm:$0xff]
      %v234 = vld [vmem:[%s209 + $0x50] sm:$0xff]
      %v235 = vld [vmem:[%s209 + $0x58] sm:$0xff]
      %v236 = vld [vmem:[%s209 + $0x60] sm:$0xff]
      %v237 = vld [vmem:[%s209 + $0x68] sm:$0xff]
      %v238 = vld [vmem:[%s209 + $0x70] sm:$0xff]
      %v239 = vld [vmem:[%s209 + $0x78] sm:$0xff]
      %v240 = vld [vmem:[%s209 + $0x80] sm:$0xff]
      %v241 = vld [vmem:[%s209 + $0x88] sm:$0xff]
      %v242 = vld [vmem:[%s209 + $0x90] sm:$0xff]
      %v243 = vld [vmem:[%s209 + $0x98] sm:$0xff]
      %v244 = vld [vmem:[%s209 + $0xa0] sm:$0xff]
      %v245 = vld [vmem:[%s209 + $0xa8] sm:$0xff]
      %v246 = vld [vmem:[%s209 + $0xb0] sm:$0xff]
      %v247 = vld [vmem:[%s209 + $0xb8] sm:$0xff]
      %v248 = vld [vmem:[%s209 + $0xc0] sm:$0xff]
      %v249 = vld [vmem:[%s209 + $0xc8] sm:$0xff]
      %v250 = vld [vmem:[%s209 + $0xd0] sm:$0xff]
      %v251 = vld [vmem:[%s209 + $0xd8] sm:$0xff]
      %v252 = vld [vmem:[%s209 + $0xe0] sm:$0xff]
      %v253 = vld [vmem:[%s209 + $0xe8] sm:$0xff]
      %v254 = vld [vmem:[%s209 + $0xf0] sm:$0xff]
      %v255 = vld [vmem:[%s209 + $0xf8] sm:$0xff]
      %v256 = vpack.c.bf16 %v225, %v224
      %v257 = vpack.c.bf16 %v227, %v226
      %v258 = vpack.c.bf16 %v229, %v228
      %v259 = vpack.c.bf16 %v231, %v230
      %v260 = vpack.c.bf16 %v233, %v232
      %v261 = vpack.c.bf16 %v235, %v234
      %v262 = vpack.c.bf16 %v237, %v236
      %v263 = vpack.c.bf16 %v239, %v238
      %v264 = vpack.c.bf16 %v241, %v240
      %v265 = vpack.c.bf16 %v243, %v242
      %v266 = vpack.c.bf16 %v245, %v244
      %v267 = vpack.c.bf16 %v247, %v246
      %v268 = vpack.c.bf16 %v249, %v248
      %v269 = vpack.c.bf16 %v251, %v250
      %v270 = vpack.c.bf16 %v253, %v252
      %v271 = vpack.c.bf16 %v255, %v254
      %v272 = vld [vmem:[%s1] sm:$0xff]
      %v273 = vld [vmem:[%s1 + $0x8] sm:$0xff]
      %v274 = vld [vmem:[%s1 + $0x10] sm:$0xff]
      %v275 = vld [vmem:[%s1 + $0x18] sm:$0xff]
      %v276 = vld [vmem:[%s1 + $0x20] sm:$0xff]
      %v277 = vld [vmem:[%s1 + $0x28] sm:$0xff]
      %v278 = vld [vmem:[%s1 + $0x30] sm:$0xff]
      %v279 = vld [vmem:[%s1 + $0x38] sm:$0xff]
      %v280 = vpack.c.bf16 %v273, %v272
      %v281 = vpack.c.bf16 %v275, %v274
      %v282 = vpack.c.bf16 %v277, %v276
      %v283 = vpack.c.bf16 %v279, %v278
      %v284 = vld [vmem:[%s2] sm:$0x1]
      %v286 = vperm.slane %v284, 0
      %vm288 = vcmask 523264
      %v290 = vsel %vm288, %v256, 0
      %v293 = vsel %vm288, %v257, 0
      %v296 = vsel %vm288, %v258, 0
      %v299 = vsel %vm288, %v259, 0
      %v302 = vsel %vm288, %v260, 0
      %v305 = vsel %vm288, %v261, 0
      %v308 = vsel %vm288, %v262, 0
      %v311 = vsel %vm288, %v263, 0
      %v314 = vsel %vm288, %v264, 0
      %v317 = vsel %vm288, %v265, 0
      %v320 = vsel %vm288, %v266, 0
      %v323 = vsel %vm288, %v267, 0
      %v326 = vsel %vm288, %v268, 0
      %v329 = vsel %vm288, %v269, 0
      %v332 = vsel %vm288, %v270, 0
      %v335 = vsel %vm288, %v271, 0
      %337 = vmatpush.bf16.msra.mxu0 0
      %338 = vmatpush.bf16.msra.mxu0 0
      %339 = vmatpush.bf16.msra.mxu0 0
      %340 = vmatpush.bf16.msra.mxu0 0
      %341 = vmatpush.bf16.msra.mxu0 %v283
      %342 = vmatpush.bf16.msra.mxu0 %v282
      %343 = vmatpush.bf16.msra.mxu0 %v281
      %344 = vmatpush.bf16.msra.mxu0 %v280
      %345 = vmatmul.bf16.gmra.mxu0 %v290
      %v346 = vpop.f32.mrf.mxu0
      %v347 = vadd.f32 %v286, %v346
      %v348 = vpop.f32.mrf.mxu0
      %v349 = vadd.f32 %v286, %v348
      %350 = vmatmul.bf16.gmra.mxu0 %v293
      %v351 = vpop.f32.mrf.mxu0
      %v352 = vadd.f32 %v286, %v351
      %v353 = vpop.f32.mrf.mxu0
      %v354 = vadd.f32 %v286, %v353
      %355 = vmatmul.bf16.gmra.mxu0 %v296
      %v356 = vpop.f32.mrf.mxu0
      %v357 = vadd.f32 %v286, %v356
      %v358 = vpop.f32.mrf.mxu0
      %v359 = vadd.f32 %v286, %v358
      %360 = vmatmul.bf16.gmra.mxu0 %v299
      %v361 = vpop.f32.mrf.mxu0
      %v362 = vadd.f32 %v286, %v361
      %v363 = vpop.f32.mrf.mxu0
      %v364 = vadd.f32 %v286, %v363
      %365 = vmatmul.bf16.gmra.mxu0 %v302
      %v366 = vpop.f32.mrf.mxu0
      %v367 = vadd.f32 %v286, %v366
      %v368 = vpop.f32.mrf.mxu0
      %v369 = vadd.f32 %v286, %v368
      %370 = vmatmul.bf16.gmra.mxu0 %v305
      %v371 = vpop.f32.mrf.mxu0
      %v372 = vadd.f32 %v286, %v371
      %v373 = vpop.f32.mrf.mxu0
      %v374 = vadd.f32 %v286, %v373
      %375 = vmatmul.bf16.gmra.mxu0 %v308
      %v376 = vpop.f32.mrf.mxu0
      %v377 = vadd.f32 %v286, %v376
      %v378 = vpop.f32.mrf.mxu0
      %v379 = vadd.f32 %v286, %v378
      %380 = vmatmul.bf16.gmra.mxu0 %v311
      %v381 = vpop.f32.mrf.mxu0
      %v382 = vadd.f32 %v286, %v381
      %v383 = vpop.f32.mrf.mxu0
      %v384 = vadd.f32 %v286, %v383
      %385 = vmatmul.bf16.gmra.mxu0 %v314
      %v386 = vpop.f32.mrf.mxu0
      %v387 = vadd.f32 %v286, %v386
      %v388 = vpop.f32.mrf.mxu0
      %v389 = vadd.f32 %v286, %v388
      %390 = vmatmul.bf16.gmra.mxu0 %v317
      %v391 = vpop.f32.mrf.mxu0
      %v392 = vadd.f32 %v286, %v391
      %v393 = vpop.f32.mrf.mxu0
      %v394 = vadd.f32 %v286, %v393
      %395 = vmatmul.bf16.gmra.mxu0 %v320
      %v396 = vpop.f32.mrf.mxu0
      %v397 = vadd.f32 %v286, %v396
      %v398 = vpop.f32.mrf.mxu0
      %v399 = vadd.f32 %v286, %v398
      %400 = vmatmul.bf16.gmra.mxu0 %v323
      %v401 = vpop.f32.mrf.mxu0
      %v402 = vadd.f32 %v286, %v401
      %v403 = vpop.f32.mrf.mxu0
      %v404 = vadd.f32 %v286, %v403
      %405 = vmatmul.bf16.gmra.mxu0 %v326
      %v406 = vpop.f32.mrf.mxu0
      %v407 = vadd.f32 %v286, %v406
      %v408 = vpop.f32.mrf.mxu0
      %v409 = vadd.f32 %v286, %v408
      %410 = vmatmul.bf16.gmra.mxu0 %v329
      %v411 = vpop.f32.mrf.mxu0
      %v412 = vadd.f32 %v286, %v411
      %v413 = vpop.f32.mrf.mxu0
      %v414 = vadd.f32 %v286, %v413
      %415 = vmatmul.bf16.gmra.mxu0 %v332
      %v416 = vpop.f32.mrf.mxu0
      %v417 = vadd.f32 %v286, %v416
      %v418 = vpop.f32.mrf.mxu0
      %v419 = vadd.f32 %v286, %v418
      %420 = vmatmul.bf16.gmra.mxu0 %v335
      %v421 = vpop.f32.mrf.mxu0
      %v422 = vadd.f32 %v286, %v421
      %v423 = vpop.f32.mrf.mxu0
      %v424 = vadd.f32 %v286, %v423
      %425 = vdwg.mxu0
      %v426 = vld [vmem:[%s215] sm:$0xff]
      %v427 = vld [vmem:[%s215 + $0x8] sm:$0xff]
      %v428 = vld [vmem:[%s215 + $0x10] sm:$0xff]
      %v429 = vld [vmem:[%s215 + $0x18] sm:$0xff]
      %v430 = vld [vmem:[%s215 + $0x20] sm:$0xff]
      %v431 = vld [vmem:[%s215 + $0x28] sm:$0xff]
      %v432 = vld [vmem:[%s215 + $0x30] sm:$0xff]
      %v433 = vld [vmem:[%s215 + $0x38] sm:$0xff]
      %v434 = vld [vmem:[%s215 + $0x40] sm:$0xff]
      %v435 = vld [vmem:[%s215 + $0x48] sm:$0xff]
      %v436 = vld [vmem:[%s215 + $0x50] sm:$0xff]
      %v437 = vld [vmem:[%s215 + $0x58] sm:$0xff]
      %v438 = vld [vmem:[%s215 + $0x60] sm:$0xff]
      %v439 = vld [vmem:[%s215 + $0x68] sm:$0xff]
      %v440 = vld [vmem:[%s215 + $0x70] sm:$0xff]
      %v441 = vld [vmem:[%s215 + $0x78] sm:$0xff]
      %v442 = vld [vmem:[%s215 + $0x80] sm:$0xff]
      %v443 = vld [vmem:[%s215 + $0x88] sm:$0xff]
      %v444 = vld [vmem:[%s215 + $0x90] sm:$0xff]
      %v445 = vld [vmem:[%s215 + $0x98] sm:$0xff]
      %v446 = vld [vmem:[%s215 + $0xa0] sm:$0xff]
      %v447 = vld [vmem:[%s215 + $0xa8] sm:$0xff]
      %v448 = vld [vmem:[%s215 + $0xb0] sm:$0xff]
      %v449 = vld [vmem:[%s215 + $0xb8] sm:$0xff]
      %v450 = vld [vmem:[%s215 + $0xc0] sm:$0xff]
      %v451 = vld [vmem:[%s215 + $0xc8] sm:$0xff]
      %v452 = vld [vmem:[%s215 + $0xd0] sm:$0xff]
      %v453 = vld [vmem:[%s215 + $0xd8] sm:$0xff]
      %v454 = vld [vmem:[%s215 + $0xe0] sm:$0xff]
      %v455 = vld [vmem:[%s215 + $0xe8] sm:$0xff]
      %v456 = vld [vmem:[%s215 + $0xf0] sm:$0xff]
      %v457 = vld [vmem:[%s215 + $0xf8] sm:$0xff]
      %v458 = vadd.f32 %v347, %v426
      %v459 = vadd.f32 %v349, %v427
      %v460 = vadd.f32 %v352, %v428
      %v461 = vadd.f32 %v354, %v429
      %v462 = vadd.f32 %v357, %v430
      %v463 = vadd.f32 %v359, %v431
      %v464 = vadd.f32 %v362, %v432
      %v465 = vadd.f32 %v364, %v433
      %v466 = vadd.f32 %v367, %v434
      %v467 = vadd.f32 %v369, %v435
      %v468 = vadd.f32 %v372, %v436
      %v469 = vadd.f32 %v374, %v437
      %v470 = vadd.f32 %v377, %v438
      %v471 = vadd.f32 %v379, %v439
      %v472 = vadd.f32 %v382, %v440
      %v473 = vadd.f32 %v384, %v441
      %v474 = vadd.f32 %v387, %v442
      %v475 = vadd.f32 %v389, %v443
      %v476 = vadd.f32 %v392, %v444
      %v477 = vadd.f32 %v394, %v445
      %v478 = vadd.f32 %v397, %v446
      %v479 = vadd.f32 %v399, %v447
      %v480 = vadd.f32 %v402, %v448
      %v481 = vadd.f32 %v404, %v449
      %v482 = vadd.f32 %v407, %v450
      %v483 = vadd.f32 %v409, %v451
      %v484 = vadd.f32 %v412, %v452
      %v485 = vadd.f32 %v414, %v453
      %v486 = vadd.f32 %v417, %v454
      %v487 = vadd.f32 %v419, %v455
      %v488 = vadd.f32 %v422, %v456
      %v489 = vadd.f32 %v424, %v457
      %vm490 = vcmask 64512
      %491 = vst.msk [vmem:[%s221] sm:$0xff] %vm490, %v458
      %492 = vst.msk [vmem:[%s221 + $0x8] sm:$0xff] %vm490, %v459
      %493 = vst.msk [vmem:[%s221 + $0x10] sm:$0xff] %vm490, %v460
      %494 = vst.msk [vmem:[%s221 + $0x18] sm:$0xff] %vm490, %v461
      %495 = vst.msk [vmem:[%s221 + $0x20] sm:$0xff] %vm490, %v462
      %496 = vst.msk [vmem:[%s221 + $0x28] sm:$0xff] %vm490, %v463
      %497 = vst.msk [vmem:[%s221 + $0x30] sm:$0xff] %vm490, %v464
      %498 = vst.msk [vmem:[%s221 + $0x38] sm:$0xff] %vm490, %v465
      %499 = vst.msk [vmem:[%s221 + $0x40] sm:$0xff] %vm490, %v466
      %500 = vst.msk [vmem:[%s221 + $0x48] sm:$0xff] %vm490, %v467
      %501 = vst.msk [vmem:[%s221 + $0x50] sm:$0xff] %vm490, %v468
      %502 = vst.msk [vmem:[%s221 + $0x58] sm:$0xff] %vm490, %v469
      %503 = vst.msk [vmem:[%s221 + $0x60] sm:$0xff] %vm490, %v470
      %504 = vst.msk [vmem:[%s221 + $0x68] sm:$0xff] %vm490, %v471
      %505 = vst.msk [vmem:[%s221 + $0x70] sm:$0xff] %vm490, %v472
      %506 = vst.msk [vmem:[%s221 + $0x78] sm:$0xff] %vm490, %v473
      %507 = vst.msk [vmem:[%s221 + $0x80] sm:$0xff] %vm490, %v474
      %508 = vst.msk [vmem:[%s221 + $0x88] sm:$0xff] %vm490, %v475
      %509 = vst.msk [vmem:[%s221 + $0x90] sm:$0xff] %vm490, %v476
      %510 = vst.msk [vmem:[%s221 + $0x98] sm:$0xff] %vm490, %v477
      %511 = vst.msk [vmem:[%s221 + $0xa0] sm:$0xff] %vm490, %v478
      %512 = vst.msk [vmem:[%s221 + $0xa8] sm:$0xff] %vm490, %v479
      %513 = vst.msk [vmem:[%s221 + $0xb0] sm:$0xff] %vm490, %v480
      %514 = vst.msk [vmem:[%s221 + $0xb8] sm:$0xff] %vm490, %v481
      %515 = vst.msk [vmem:[%s221 + $0xc0] sm:$0xff] %vm490, %v482
      %516 = vst.msk [vmem:[%s221 + $0xc8] sm:$0xff] %vm490, %v483
      %517 = vst.msk [vmem:[%s221 + $0xd0] sm:$0xff] %vm490, %v484
      %518 = vst.msk [vmem:[%s221 + $0xd8] sm:$0xff] %vm490, %v485
      %519 = vst.msk [vmem:[%s221 + $0xe0] sm:$0xff] %vm490, %v486
      %520 = vst.msk [vmem:[%s221 + $0xe8] sm:$0xff] %vm490, %v487
      %521 = vst.msk [vmem:[%s221 + $0xf0] sm:$0xff] %vm490, %v488
      %522 = vst.msk [vmem:[%s221 + $0xf8] sm:$0xff] %vm490, %v489
      %s523 = smul.u32 32, %s15
      %p524 = scmp.lt.s32.totalorder %s523, 63
      %s525 = scalar_select %p524, %s523, 63
      %s526 = smul.addr %s525, 8
      %s527 = scalar_lea.vmem %s4, %s526
      // Predicated region
      $region37: #{spatial_transformer_forward.17} parent=35 // pred_check
        %p528 = pneg %p127
      $region38: #{spatial_transformer_forward.17} parent=35 // pred_check_branch
        %530 = sbr.rel (%p528) target = $region40
      $region39: #{spatial_transformer_forward.17} parent=35 // pred_region
        %s531 = smul.u32 32, %s15
      $region40: #{spatial_transformer_forward.17} parent=35 // pred_fallthru
        _
    $region36: #{spatial_transformer_forward.17} parent=5 // pred_fallthru
      _
    %p532 = scmp.le.s32.totalorder 2, %s10
    // Predicated region
    $region41: #{spatial_transformer_forward.17} parent=5 // pred_check
      %p533 = pneg %p532
    $region42: #{spatial_transformer_forward.17} parent=5 // pred_check_branch
      %535 = sbr.rel (%p533) target = $region44
    $region43: #{spatial_transformer_forward.17} parent=5 // pred_region
      %s536 = ssub.s32 %s10, 2
      // Predicated region
      $region45: #{spatial_transformer_forward.17} parent=43 // pred_check
        %p537 = pneg %p133
      $region46: #{spatial_transformer_forward.17} parent=43 // pred_check_branch
        %539 = sbr.rel (%p537) target = $region48
      $region47: #{spatial_transformer_forward.17} parent=43 // pred_region
        %s540 = smul.u32 32, %s16
        %p541 = scmp.lt.s32.totalorder %s540, 63
        %s542 = scalar_select %p541, %s540, 63
        %s543 = smul.addr %s542, 8
        %s544 = scalar_lea.vmem %s4, %s543
      $region48: #{spatial_transformer_forward.17} parent=43 // pred_fallthru
        _
    $region44: #{spatial_transformer_forward.17} parent=5 // pred_fallthru
      _
  $region6: #{spatial_transformer_forward.17} parent=0 // loop_footer
    %s14 = sadd.s32 1, %s10
  $region7: #{spatial_transformer_forward.17} parent=0 // loop_footer_branch
    %9 = sbr.rel target = $region3
  $region8: #{spatial_transformer_forward.17} parent=0 // loop_exit
    _

// kernel: spatial_transformer_forward.16
$region0: #{spatial_transformer_forward.16}
  #allocation0 [shape = 'u32[]', space=smem, size = 0x4, offset = 0x4, fixed_abs, tag = 'smem constant byte address 0x4 - core index']
  #allocation1 [shape = 'u32[72,128]{1,0:T(1,128)}', space=vmem, size = 0x9000, scoped, tag = 'internal scratch']
  %s0 = inlined_call_operand.vmem [shape: f32[512,64], index: 0, kind: input, shape index: {}]
  %s1 = inlined_call_operand.vmem [shape: f32[1,64], index: 1, kind: input, shape index: {}]
  %s2 = inlined_call_operand.vmem [shape: f32[1,64], index: 2, kind: input, shape index: {}]
  %s3 = inlined_call_operand.vmem [shape: f32[64,256], index: 3, kind: input, shape index: {}]
  %s4 = inlined_call_operand.vmem [shape: f32[1,256], index: 4, kind: input, shape index: {}]
  %s5 = inlined_call_operand.vmem [shape: f32[64,256], index: 5, kind: input, shape index: {}]
  %s6 = inlined_call_operand.vmem [shape: f32[1,256], index: 6, kind: input, shape index: {}]
  %s7 = inlined_call_operand.vmem [shape: f32[256,64], index: 7, kind: input, shape index: {}]
  %s8 = inlined_call_operand.vmem [shape: f32[1,64], index: 8, kind: input, shape index: {}]
  %s9 = inlined_call_operand.vmem [shape: f32[512,64], index: 9, kind: output, shape index: {}]
  %s10 = sld [smem:[#allocation0]]
  $region69: #{spatial_transformer_forward.16} parent=0
    _
  %s12 = ssub.s32 1, %s10
  %s13 = scalar_select 0, %s12, %s10
  loop: start=0, step=1, limit=4
  $region2: #{spatial_transformer_forward.16} parent=0 // loop_pre_header
    _
  $region3: #{spatial_transformer_forward.16} parent=0 // loop_header
    %s15 = sphi 0, %s19
    %p16 = scmp.ge.s32.totalorder %s15, 4
    %s25 = sphi 0, %s27
    %s28 = sphi 0, %s25
    %s29 = sphi 0, %s28
    %s45 = sphi 0, %s29
    %s49 = sphi 0, %s49
    %s51 = sphi 0, %s49
    %s52 = sphi 0, %s51
    %s66 = sphi 0, %s52
    %s70 = sphi 0, %s70
    %s72 = sphi 0, %s70
    %s73 = sphi 0, %s72
    %s87 = sphi 0, %s73
    %s91 = sphi 0, %s91
    %s93 = sphi 0, %s91
    %s94 = sphi 0, %s93
    %s108 = sphi 0, %s94
    %s112 = sphi 0, %s112
    %s114 = sphi 0, %s112
    %s115 = sphi 0, %s114
    %s129 = sphi 0, %s115
    %s133 = sphi 0, %s133
    %s135 = sphi 0, %s133
    %s136 = sphi 0, %s135
    %s150 = sphi 0, %s136
    %s154 = sphi 0, %s154
    %s156 = sphi 0, %s154
    %s157 = sphi 0, %s156
    %s171 = sphi 0, %s157
    %s175 = sphi 0, %s175
    %s177 = sphi 0, %s175
    %s178 = sphi 0, %s177
    %s192 = sphi 0, %s178
    %s196 = sphi 0, %s196
    %s198 = sphi 0, %s196
    %s199 = sphi 0, %s198
    %s213 = sphi 0, %s199
    %s219 = sphi 0, %s221
    %s222 = sphi 0, %s219
    %s223 = sphi 0, %s222
    %s239 = sphi 0, %s223
  $region4: #{spatial_transformer_forward.16} parent=0 // loop_header_branch
    %18 = sbr.rel (%p16) target = $region8
  $region5: #{spatial_transformer_forward.16} parent=0 // loop_body
    %s20 = ssub.s32 %s15, 1
    %s21 = ssub.s32 %s15, 2
    %s22 = sadd.s32 %s15, 1
    %s23 = ssub.s32 %s15, %s22
    %p24 = scmp.eq.s32.totalorder %s23, 0
    %s26 = sadd.s32 %s25, 1
    %s27 = scalar_select %p24, %s25, %s26
    %p30 = pneg %p24
    %p31 = scmp.eq.s32.totalorder %s15, 1
    %p32 = por %p30, %p31
    %p33 = scmp.ne.s32.totalorder %s25, %s28
    %p34 = scmp.eq.s32.totalorder %s15, 0
    %p35 = por %p33, %p34
    %p36 = scmp.ne.s32.totalorder %s25, %s28
    %p37 = scmp.eq.s32.totalorder %s20, 1
    %p38 = por %p36, %p37
    %p39 = scmp.ne.s32.totalorder %s28, %s29
    %p40 = scmp.eq.s32.totalorder %s20, 0
    %p41 = por %p39, %p40
    %p42 = scmp.ne.s32.totalorder %s28, %s29
    %p43 = scmp.eq.s32.totalorder %s21, 1
    %p44 = por %p42, %p43
    %p46 = scmp.ne.s32.totalorder %s29, %s45
    %p47 = scmp.eq.s32.totalorder %s21, 0
    %p48 = por %p46, %p47
    %s50 = sadd.s32 %s49, 1
    %p53 = scmp.eq.s32.totalorder %s15, 1
    %p54 = scmp.ne.s32.totalorder %s49, %s51
    %p55 = scmp.eq.s32.totalorder %s15, 0
    %p56 = por %p54, %p55
    %p57 = scmp.ne.s32.totalorder %s49, %s51
    %p58 = scmp.eq.s32.totalorder %s20, 1
    %p59 = por %p57, %p58
    %p60 = scmp.ne.s32.totalorder %s51, %s52
    %p61 = scmp.eq.s32.totalorder %s20, 0
    %p62 = por %p60, %p61
    %p63 = scmp.ne.s32.totalorder %s51, %s52
    %p64 = scmp.eq.s32.totalorder %s21, 1
    %p65 = por %p63, %p64
    %p67 = scmp.ne.s32.totalorder %s52, %s66
    %p68 = scmp.eq.s32.totalorder %s21, 0
    %p69 = por %p67, %p68
    %s71 = sadd.s32 %s70, 1
    %p74 = scmp.eq.s32.totalorder %s15, 1
    %p75 = scmp.ne.s32.totalorder %s70, %s72
    %p76 = scmp.eq.s32.totalorder %s15, 0
    %p77 = por %p75, %p76
    %p78 = scmp.ne.s32.totalorder %s70, %s72
    %p79 = scmp.eq.s32.totalorder %s20, 1
    %p80 = por %p78, %p79
    %p81 = scmp.ne.s32.totalorder %s72, %s73
    %p82 = scmp.eq.s32.totalorder %s20, 0
    %p83 = por %p81, %p82
    %p84 = scmp.ne.s32.totalorder %s72, %s73
    %p85 = scmp.eq.s32.totalorder %s21, 1
    %p86 = por %p84, %p85
    %p88 = scmp.ne.s32.totalorder %s73, %s87
    %p89 = scmp.eq.s32.totalorder %s21, 0
    %p90 = por %p88, %p89
    %s92 = sadd.s32 %s91, 1
    %p95 = scmp.eq.s32.totalorder %s15, 1
    %p96 = scmp.ne.s32.totalorder %s91, %s93
    %p97 = scmp.eq.s32.totalorder %s15, 0
    %p98 = por %p96, %p97
    %p99 = scmp.ne.s32.totalorder %s91, %s93
    %p100 = scmp.eq.s32.totalorder %s20, 1
    %p101 = por %p99, %p100
    %p102 = scmp.ne.s32.totalorder %s93, %s94
    %p103 = scmp.eq.s32.totalorder %s20, 0
    %p104 = por %p102, %p103
    %p105 = scmp.ne.s32.totalorder %s93, %s94
    %p106 = scmp.eq.s32.totalorder %s21, 1
    %p107 = por %p105, %p106
    %p109 = scmp.ne.s32.totalorder %s94, %s108
    %p110 = scmp.eq.s32.totalorder %s21, 0
    %p111 = por %p109, %p110
    %s113 = sadd.s32 %s112, 1
    %p116 = scmp.eq.s32.totalorder %s15, 1
    %p117 = scmp.ne.s32.totalorder %s112, %s114
    %p118 = scmp.eq.s32.totalorder %s15, 0
    %p119 = por %p117, %p118
    %p120 = scmp.ne.s32.totalorder %s112, %s114
    %p121 = scmp.eq.s32.totalorder %s20, 1
    %p122 = por %p120, %p121
    %p123 = scmp.ne.s32.totalorder %s114, %s115
    %p124 = scmp.eq.s32.totalorder %s20, 0
    %p125 = por %p123, %p124
    %p126 = scmp.ne.s32.totalorder %s114, %s115
    %p127 = scmp.eq.s32.totalorder %s21, 1
    %p128 = por %p126, %p127
    %p130 = scmp.ne.s32.totalorder %s115, %s129
    %p131 = scmp.eq.s32.totalorder %s21, 0
    %p132 = por %p130, %p131
    %s134 = sadd.s32 %s133, 1
    %p137 = scmp.eq.s32.totalorder %s15, 1
    %p138 = scmp.ne.s32.totalorder %s133, %s135
    %p139 = scmp.eq.s32.totalorder %s15, 0
    %p140 = por %p138, %p139
    %p141 = scmp.ne.s32.totalorder %s133, %s135
    %p142 = scmp.eq.s32.totalorder %s20, 1
    %p143 = por %p141, %p142
    %p144 = scmp.ne.s32.totalorder %s135, %s136
    %p145 = scmp.eq.s32.totalorder %s20, 0
    %p146 = por %p144, %p145
    %p147 = scmp.ne.s32.totalorder %s135, %s136
    %p148 = scmp.eq.s32.totalorder %s21, 1
    %p149 = por %p147, %p148
    %p151 = scmp.ne.s32.totalorder %s136, %s150
    %p152 = scmp.eq.s32.totalorder %s21, 0
    %p153 = por %p151, %p152
    %s155 = sadd.s32 %s154, 1
    %p158 = scmp.eq.s32.totalorder %s15, 1
    %p159 = scmp.ne.s32.totalorder %s154, %s156
    %p160 = scmp.eq.s32.totalorder %s15, 0
    %p161 = por %p159, %p160
    %p162 = scmp.ne.s32.totalorder %s154, %s156
    %p163 = scmp.eq.s32.totalorder %s20, 1
    %p164 = por %p162, %p163
    %p165 = scmp.ne.s32.totalorder %s156, %s157
    %p166 = scmp.eq.s32.totalorder %s20, 0
    %p167 = por %p165, %p166
    %p168 = scmp.ne.s32.totalorder %s156, %s157
    %p169 = scmp.eq.s32.totalorder %s21, 1
    %p170 = por %p168, %p169
    %p172 = scmp.ne.s32.totalorder %s157, %s171
    %p173 = scmp.eq.s32.totalorder %s21, 0
    %p174 = por %p172, %p173
    %s176 = sadd.s32 %s175, 1
    %p179 = scmp.eq.s32.totalorder %s15, 1
    %p180 = scmp.ne.s32.totalorder %s175, %s177
    %p181 = scmp.eq.s32.totalorder %s15, 0
    %p182 = por %p180, %p181
    %p183 = scmp.ne.s32.totalorder %s175, %s177
    %p184 = scmp.eq.s32.totalorder %s20, 1
    %p185 = por %p183, %p184
    %p186 = scmp.ne.s32.totalorder %s177, %s178
    %p187 = scmp.eq.s32.totalorder %s20, 0
    %p188 = por %p186, %p187
    %p189 = scmp.ne.s32.totalorder %s177, %s178
    %p190 = scmp.eq.s32.totalorder %s21, 1
    %p191 = por %p189, %p190
    %p193 = scmp.ne.s32.totalorder %s178, %s192
    %p194 = scmp.eq.s32.totalorder %s21, 0
    %p195 = por %p193, %p194
    %s197 = sadd.s32 %s196, 1
    %p200 = scmp.eq.s32.totalorder %s15, 1
    %p201 = scmp.ne.s32.totalorder %s196, %s198
    %p202 = scmp.eq.s32.totalorder %s15, 0
    %p203 = por %p201, %p202
    %p204 = scmp.ne.s32.totalorder %s196, %s198
    %p205 = scmp.eq.s32.totalorder %s20, 1
    %p206 = por %p204, %p205
    %p207 = scmp.ne.s32.totalorder %s198, %s199
    %p208 = scmp.eq.s32.totalorder %s20, 0
    %p209 = por %p207, %p208
    %p210 = scmp.ne.s32.totalorder %s198, %s199
    %p211 = scmp.eq.s32.totalorder %s21, 1
    %p212 = por %p210, %p211
    %p214 = scmp.ne.s32.totalorder %s199, %s213
    %p215 = scmp.eq.s32.totalorder %s21, 0
    %p216 = por %p214, %p215
    %s217 = ssub.s32 %s15, %s22
    %p218 = scmp.eq.s32.totalorder %s217, 0
    %s220 = sadd.s32 %s219, 1
    %s221 = scalar_select %p218, %s219, %s220
    %p224 = pneg %p218
    %p225 = scmp.eq.s32.totalorder %s15, 1
    %p226 = por %p224, %p225
    %p227 = scmp.ne.s32.totalorder %s219, %s222
    %p228 = scmp.eq.s32.totalorder %s15, 0
    %p229 = por %p227, %p228
    %p230 = scmp.ne.s32.totalorder %s219, %s222
    %p231 = scmp.eq.s32.totalorder %s20, 1
    %p232 = por %p230, %p231
    %p233 = scmp.ne.s32.totalorder %s222, %s223
    %p234 = scmp.eq.s32.totalorder %s20, 0
    %p235 = por %p233, %p234
    %p236 = scmp.ne.s32.totalorder %s222, %s223
    %p237 = scmp.eq.s32.totalorder %s21, 1
    %p238 = por %p236, %p237
    %p240 = scmp.ne.s32.totalorder %s223, %s239
    %p241 = scmp.eq.s32.totalorder %s21, 0
    %p242 = por %p240, %p241
    %p243 = scmp.le.s32.totalorder 1, %s15
    %p244 = scmp.lt.s32.totalorder %s15, 3
    %p245 = pnand %p243, %p244
    %p246 = pneg %p245
    // Predicated region
    $region9: #{spatial_transformer_forward.16} parent=5 // pred_check
      _
    $region10: #{spatial_transformer_forward.16} parent=5 // pred_check_branch
      %248 = sbr.rel (%p245) target = $region12
    $region11: #{spatial_transformer_forward.16} parent=5 // pred_region
      %s249 = ssub.s32 %s15, 1
      // Predicated region
      $region13: #{spatial_transformer_forward.16} parent=11 // pred_check
        %p250 = pneg %p62
      $region14: #{spatial_transformer_forward.16} parent=11 // pred_check_branch
        %252 = sbr.rel (%p250) target = $region16
      $region15: #{spatial_transformer_forward.16} parent=11 // pred_region
        _
      $region16: #{spatial_transformer_forward.16} parent=11 // pred_fallthru
        _
      // Predicated region
      $region17: #{spatial_transformer_forward.16} parent=11 // pred_check
        %p253 = pneg %p83
      $region18: #{spatial_transformer_forward.16} parent=11 // pred_check_branch
        %255 = sbr.rel (%p253) target = $region20
      $region19: #{spatial_transformer_forward.16} parent=11 // pred_region
        _
      $region20: #{spatial_transformer_forward.16} parent=11 // pred_fallthru
        _
      // Predicated region
      $region21: #{spatial_transformer_forward.16} parent=11 // pred_check
        %p256 = pneg %p104
      $region22: #{spatial_transformer_forward.16} parent=11 // pred_check_branch
        %258 = sbr.rel (%p256) target = $region24
      $region23: #{spatial_transformer_forward.16} parent=11 // pred_region
        _
      $region24: #{spatial_transformer_forward.16} parent=11 // pred_fallthru
        _
      // Predicated region
      $region25: #{spatial_transformer_forward.16} parent=11 // pred_check
        %p259 = pneg %p125
      $region26: #{spatial_transformer_forward.16} parent=11 // pred_check_branch
        %261 = sbr.rel (%p259) target = $region28
      $region27: #{spatial_transformer_forward.16} parent=11 // pred_region
        _
      $region28: #{spatial_transformer_forward.16} parent=11 // pred_fallthru
        _
      // Predicated region
      $region29: #{spatial_transformer_forward.16} parent=11 // pred_check
        %p262 = pneg %p146
      $region30: #{spatial_transformer_forward.16} parent=11 // pred_check_branch
        %264 = sbr.rel (%p262) target = $region32
      $region31: #{spatial_transformer_forward.16} parent=11 // pred_region
        _
      $region32: #{spatial_transformer_forward.16} parent=11 // pred_fallthru
        _
      // Predicated region
      $region33: #{spatial_transformer_forward.16} parent=11 // pred_check
        %p265 = pneg %p167
      $region34: #{spatial_transformer_forward.16} parent=11 // pred_check_branch
        %267 = sbr.rel (%p265) target = $region36
      $region35: #{spatial_transformer_forward.16} parent=11 // pred_region
        _
      $region36: #{spatial_transformer_forward.16} parent=11 // pred_fallthru
        _
      // Predicated region
      $region37: #{spatial_transformer_forward.16} parent=11 // pred_check
        %p268 = pneg %p188
      $region38: #{spatial_transformer_forward.16} parent=11 // pred_check_branch
        %270 = sbr.rel (%p268) target = $region40
      $region39: #{spatial_transformer_forward.16} parent=11 // pred_region
        _
      $region40: #{spatial_transformer_forward.16} parent=11 // pred_fallthru
        _
      // Predicated region
      $region41: #{spatial_transformer_forward.16} parent=11 // pred_check
        %p271 = pneg %p209
      $region42: #{spatial_transformer_forward.16} parent=11 // pred_check_branch
        %273 = sbr.rel (%p271) target = $region44
      $region43: #{spatial_transformer_forward.16} parent=11 // pred_region
        _
      $region44: #{spatial_transformer_forward.16} parent=11 // pred_fallthru
        _
    $region12: #{spatial_transformer_forward.16} parent=5 // pred_fallthru
      _
    %p274 = scmp.lt.s32.totalorder %s15, 2
    // Predicated region
    $region45: #{spatial_transformer_forward.16} parent=5 // pred_check
      %p275 = pneg %p274
    $region46: #{spatial_transformer_forward.16} parent=5 // pred_check_branch
      %277 = sbr.rel (%p275) target = $region48
    $region47: #{spatial_transformer_forward.16} parent=5 // pred_region
      // Predicated region
      $region49: #{spatial_transformer_forward.16} parent=47 // pred_check
        %p278 = pneg %p35
      $region50: #{spatial_transformer_forward.16} parent=47 // pred_check_branch
        %280 = sbr.rel (%p278) target = $region52
      $region51: #{spatial_transformer_forward.16} parent=47 // pred_region
        %s281 = smul.u32 32, %s15
        %p282 = scmp.lt.s32.totalorder %s281, 63
        %s283 = scalar_select %p282, %s281, 63
        %s284 = smul.addr %s283, 8
        %s285 = scalar_lea.vmem %s0, %s284
        %s286 = smul.u32 32, %s15
      $region52: #{spatial_transformer_forward.16} parent=47 // pred_fallthru
        _
    $region48: #{spatial_transformer_forward.16} parent=5 // pred_fallthru
      _
    %p287 = scmp.le.s32.totalorder 1, %s15
    %p288 = scmp.lt.s32.totalorder %s15, 3
    %p289 = pnand %p287, %p288
    %p290 = pneg %p289
    // Predicated region
    $region53: #{spatial_transformer_forward.16} parent=5 // pred_check
      _
    $region54: #{spatial_transformer_forward.16} parent=5 // pred_check_branch
      %292 = sbr.rel (%p289) target = $region56
    $region55: #{spatial_transformer_forward.16} parent=5 // pred_region
      %s293 = ssub.s32 %s15, 1
      %s294 = smul.u32 32, %s20
      %p295 = scmp.lt.s32.totalorder %s294, 63
      %s296 = scalar_select %p295, %s294, 63
      %s297 = smul.addr %s296, 8
      %s298 = scalar_lea.vmem %s0, %s297
      %p299 = pneg %p41
      %p300 = pneg %p38
      %p301 = pneg %p62
      %p302 = pneg %p59
      %p303 = pneg %p83
      %p304 = pneg %p80
      %p305 = pneg %p104
      %p306 = pneg %p101
      %p307 = pneg %p125
      %p308 = pneg %p122
      %p309 = pneg %p146
      %p310 = pneg %p143
      %p311 = pneg %p167
      %p312 = pneg %p164
      %p313 = pneg %p188
      %p314 = pneg %p185
      %p315 = pneg %p209
      %p316 = pneg %p206
      %p317 = pneg %p235
      %p318 = pneg %p232
      %s319 = smul.u32 32, %s20
      %p320 = scmp.lt.s32.totalorder %s319, 63
      %s321 = scalar_select %p320, %s319, 63
      %s322 = smul.addr %s321, 8
      %s323 = scalar_lea.vmem %s9, %s322
      %s324 = smul.u32 32, %s20
      %p325 = scmp.lt.s32.totalorder %s324, 63
      %s326 = scalar_select %p325, %s324, 63
      %s327 = smul.addr %s326, 8
      %s328 = scalar_lea.vmem %s0, %s327
      %s329 = smul.u32 32, %s20
      %s330 = smul.u32 32, %s20
      %p331 = scmp.lt.s32.totalorder %s330, 63
      %s332 = scalar_select %p331, %s330, 63
      %s333 = smul.addr %s332, 8
      %s334 = scalar_lea.vmem %s9, %s333
      %s335 = smul.u32 32, %s20
      %v337 = vld [vmem:[%s328] sm:$0xff]
      %v338 = vld [vmem:[%s328 + $0x8] sm:$0xff]
      %v339 = vld [vmem:[%s328 + $0x10] sm:$0xff]
      %v340 = vld [vmem:[%s328 + $0x18] sm:$0xff]
      %v341 = vld [vmem:[%s328 + $0x20] sm:$0xff]
      %v342 = vld [vmem:[%s328 + $0x28] sm:$0xff]
      %v343 = vld [vmem:[%s328 + $0x30] sm:$0xff]
      %v344 = vld [vmem:[%s328 + $0x38] sm:$0xff]
      %v345 = vld [vmem:[%s328 + $0x40] sm:$0xff]
      %v346 = vld [vmem:[%s328 + $0x48] sm:$0xff]
      %v347 = vld [vmem:[%s328 + $0x50] sm:$0xff]
      %v348 = vld [vmem:[%s328 + $0x58] sm:$0xff]
      %v349 = vld [vmem:[%s328 + $0x60] sm:$0xff]
      %v350 = vld [vmem:[%s328 + $0x68] sm:$0xff]
      %v351 = vld [vmem:[%s328 + $0x70] sm:$0xff]
      %v352 = vld [vmem:[%s328 + $0x78] sm:$0xff]
      %v353 = vld [vmem:[%s328 + $0x80] sm:$0xff]
      %v354 = vld [vmem:[%s328 + $0x88] sm:$0xff]
      %v355 = vld [vmem:[%s328 + $0x90] sm:$0xff]
      %v356 = vld [vmem:[%s328 + $0x98] sm:$0xff]
      %v357 = vld [vmem:[%s328 + $0xa0] sm:$0xff]
      %v358 = vld [vmem:[%s328 + $0xa8] sm:$0xff]
      %v359 = vld [vmem:[%s328 + $0xb0] sm:$0xff]
      %v360 = vld [vmem:[%s328 + $0xb8] sm:$0xff]
      %v361 = vld [vmem:[%s328 + $0xc0] sm:$0xff]
      %v362 = vld [vmem:[%s328 + $0xc8] sm:$0xff]
      %v363 = vld [vmem:[%s328 + $0xd0] sm:$0xff]
      %v364 = vld [vmem:[%s328 + $0xd8] sm:$0xff]
      %v365 = vld [vmem:[%s328 + $0xe0] sm:$0xff]
      %v366 = vld [vmem:[%s328 + $0xe8] sm:$0xff]
      %v367 = vld [vmem:[%s328 + $0xf0] sm:$0xff]
      %v368 = vld [vmem:[%s328 + $0xf8] sm:$0xff]
      %vm369 = vcmask 523264
      %v370 = vsel %vm369, %v337, 0.0
      %371 = vadd.xlane.f32.xlu0 %v370
      %v372 = vpop.xlane.xlu0 %371
      %v373 = vsel %vm369, %v338, 0.0
      %374 = vadd.xlane.f32.xlu0 %v373
      %v375 = vpop.xlane.xlu0 %374
      %v376 = vsel %vm369, %v339, 0.0
      %377 = vadd.xlane.f32.xlu0 %v376
      %v378 = vpop.xlane.xlu0 %377
      %v379 = vsel %vm369, %v340, 0.0
      %380 = vadd.xlane.f32.xlu0 %v379
      %v381 = vpop.xlane.xlu0 %380
      %v382 = vsel %vm369, %v341, 0.0
      %383 = vadd.xlane.f32.xlu0 %v382
      %v384 = vpop.xlane.xlu0 %383
      %v385 = vsel %vm369, %v342, 0.0
      %386 = vadd.xlane.f32.xlu0 %v385
      %v387 = vpop.xlane.xlu0 %386
      %v388 = vsel %vm369, %v343, 0.0
      %389 = vadd.xlane.f32.xlu0 %v388
      %v390 = vpop.xlane.xlu0 %389
      %v391 = vsel %vm369, %v344, 0.0
      %392 = vadd.xlane.f32.xlu0 %v391
      %v393 = vpop.xlane.xlu0 %392
      %v394 = vsel %vm369, %v345, 0.0
      %395 = vadd.xlane.f32.xlu0 %v394
      %v396 = vpop.xlane.xlu0 %395
      %v397 = vsel %vm369, %v346, 0.0
      %398 = vadd.xlane.f32.xlu0 %v397
      %v399 = vpop.xlane.xlu0 %398
      %v400 = vsel %vm369, %v347, 0.0
      %401 = vadd.xlane.f32.xlu0 %v400
      %v402 = vpop.xlane.xlu0 %401
      %v403 = vsel %vm369, %v348, 0.0
      %404 = vadd.xlane.f32.xlu0 %v403
      %v405 = vpop.xlane.xlu0 %404
      %v406 = vsel %vm369, %v349, 0.0
      %407 = vadd.xlane.f32.xlu0 %v406
      %v408 = vpop.xlane.xlu0 %407
      %v409 = vsel %vm369, %v350, 0.0
      %410 = vadd.xlane.f32.xlu0 %v409
      %v411 = vpop.xlane.xlu0 %410
      %v412 = vsel %vm369, %v351, 0.0
      %413 = vadd.xlane.f32.xlu0 %v412
      %v414 = vpop.xlane.xlu0 %413
      %v415 = vsel %vm369, %v352, 0.0
      %416 = vadd.xlane.f32.xlu0 %v415
      %v417 = vpop.xlane.xlu0 %416
      %v418 = vsel %vm369, %v353, 0.0
      %419 = vadd.xlane.f32.xlu0 %v418
      %v420 = vpop.xlane.xlu0 %419
      %v421 = vsel %vm369, %v354, 0.0
      %422 = vadd.xlane.f32.xlu0 %v421
      %v423 = vpop.xlane.xlu0 %422
      %v424 = vsel %vm369, %v355, 0.0
      %425 = vadd.xlane.f32.xlu0 %v424
      %v426 = vpop.xlane.xlu0 %425
      %v427 = vsel %vm369, %v356, 0.0
      %428 = vadd.xlane.f32.xlu0 %v427
      %v429 = vpop.xlane.xlu0 %428
      %v430 = vsel %vm369, %v357, 0.0
      %431 = vadd.xlane.f32.xlu0 %v430
      %v432 = vpop.xlane.xlu0 %431
      %v433 = vsel %vm369, %v358, 0.0
      %434 = vadd.xlane.f32.xlu0 %v433
      %v435 = vpop.xlane.xlu0 %434
      %v436 = vsel %vm369, %v359, 0.0
      %437 = vadd.xlane.f32.xlu0 %v436
      %v438 = vpop.xlane.xlu0 %437
      %v439 = vsel %vm369, %v360, 0.0
      %440 = vadd.xlane.f32.xlu0 %v439
      %v441 = vpop.xlane.xlu0 %440
      %v442 = vsel %vm369, %v361, 0.0
      %443 = vadd.xlane.f32.xlu0 %v442
      %v444 = vpop.xlane.xlu0 %443
      %v445 = vsel %vm369, %v362, 0.0
      %446 = vadd.xlane.f32.xlu0 %v445
      %v447 = vpop.xlane.xlu0 %446
      %v448 = vsel %vm369, %v363, 0.0
      %449 = vadd.xlane.f32.xlu0 %v448
      %v450 = vpop.xlane.xlu0 %449
      %v451 = vsel %vm369, %v364, 0.0
      %452 = vadd.xlane.f32.xlu0 %v451
      %v453 = vpop.xlane.xlu0 %452
      %v454 = vsel %vm369, %v365, 0.0
      %455 = vadd.xlane.f32.xlu0 %v454
      %v456 = vpop.xlane.xlu0 %455
      %v457 = vsel %vm369, %v366, 0.0
      %458 = vadd.xlane.f32.xlu0 %v457
      %v459 = vpop.xlane.xlu0 %458
      %v460 = vsel %vm369, %v367, 0.0
      %461 = vadd.xlane.f32.xlu0 %v460
      %v462 = vpop.xlane.xlu0 %461
      %v463 = vsel %vm369, %v368, 0.0
      %464 = vadd.xlane.f32.xlu0 %v463
      %v465 = vpop.xlane.xlu0 %464
      %v466 = vrcp.pop 64.0
      %v467 = vmul.f32 64.0, %v466
      %v468 = vsub.f32 1.0, %v467
      %v469 = vmul.f32 %v466, %v468
      %v470 = vadd.f32 %v466, %v469
      %vm471 = vweird.f32 %v466
      %v472 = vsel %vm471, %v466, %v470
      %v473 = vmul.f32 %v372, %v472
      %v474 = vmul.f32 %v375, %v472
      %v475 = vmul.f32 %v378, %v472
      %v476 = vmul.f32 %v381, %v472
      %v477 = vmul.f32 %v384, %v472
      %v478 = vmul.f32 %v387, %v472
      %v479 = vmul.f32 %v390, %v472
      %v480 = vmul.f32 %v393, %v472
      %v481 = vmul.f32 %v396, %v472
      %v482 = vmul.f32 %v399, %v472
      %v483 = vmul.f32 %v402, %v472
      %v484 = vmul.f32 %v405, %v472
      %v485 = vmul.f32 %v408, %v472
      %v486 = vmul.f32 %v411, %v472
      %v487 = vmul.f32 %v414, %v472
      %v488 = vmul.f32 %v417, %v472
      %v489 = vmul.f32 %v420, %v472
      %v490 = vmul.f32 %v423, %v472
      %v491 = vmul.f32 %v426, %v472
      %v492 = vmul.f32 %v429, %v472
      %v493 = vmul.f32 %v432, %v472
      %v494 = vmul.f32 %v435, %v472
      %v495 = vmul.f32 %v438, %v472
      %v496 = vmul.f32 %v441, %v472
      %v497 = vmul.f32 %v444, %v472
      %v498 = vmul.f32 %v447, %v472
      %v499 = vmul.f32 %v450, %v472
      %v500 = vmul.f32 %v453, %v472
      %v501 = vmul.f32 %v456, %v472
      %v502 = vmul.f32 %v459, %v472
      %v503 = vmul.f32 %v462, %v472
      %v504 = vmul.f32 %v465, %v472
      %v505 = vsub.f32 %v337, %v473
      %v506 = vsub.f32 %v338, %v474
      %v507 = vsub.f32 %v339, %v475
      %v508 = vsub.f32 %v340, %v476
      %v509 = vsub.f32 %v341, %v477
      %v510 = vsub.f32 %v342, %v478
      %v511 = vsub.f32 %v343, %v479
      %v512 = vsub.f32 %v344, %v480
      %v513 = vsub.f32 %v345, %v481
      %v514 = vsub.f32 %v346, %v482
      %v515 = vsub.f32 %v347, %v483
      %v516 = vsub.f32 %v348, %v484
      %v517 = vsub.f32 %v349, %v485
      %v518 = vsub.f32 %v350, %v486
      %v519 = vsub.f32 %v351, %v487
      %v520 = vsub.f32 %v352, %v488
      %v521 = vsub.f32 %v353, %v489
      %v522 = vsub.f32 %v354, %v490
      %v523 = vsub.f32 %v355, %v491
      %v524 = vsub.f32 %v356, %v492
      %v525 = vsub.f32 %v357, %v493
      %v526 = vsub.f32 %v358, %v494
      %v527 = vsub.f32 %v359, %v495
      %v528 = vsub.f32 %v360, %v496
      %v529 = vsub.f32 %v361, %v497
      %v530 = vsub.f32 %v362, %v498
      %v531 = vsub.f32 %v363, %v499
      %v532 = vsub.f32 %v364, %v500
      %v533 = vsub.f32 %v365, %v501
      %v534 = vsub.f32 %v366, %v502
      %v535 = vsub.f32 %v367, %v503
      %v536 = vsub.f32 %v368, %v504
      %v537 = vmul.f32 %v505, %v505
      %v538 = vmul.f32 %v506, %v506
      %v539 = vmul.f32 %v507, %v507
      %v540 = vmul.f32 %v508, %v508
      %v541 = vmul.f32 %v509, %v509
      %v542 = vmul.f32 %v510, %v510
      %v543 = vmul.f32 %v511, %v511
      %v544 = vmul.f32 %v512, %v512
      %v545 = vmul.f32 %v513, %v513
      %v546 = vmul.f32 %v514, %v514
      %v547 = vmul.f32 %v515, %v515
      %v548 = vmul.f32 %v516, %v516
      %v549 = vmul.f32 %v517, %v517
      %v550 = vmul.f32 %v518, %v518
      %v551 = vmul.f32 %v519, %v519
      %v552 = vmul.f32 %v520, %v520
      %v553 = vmul.f32 %v521, %v521
      %v554 = vmul.f32 %v522, %v522
      %v555 = vmul.f32 %v523, %v523
      %v556 = vmul.f32 %v524, %v524
      %v557 = vmul.f32 %v525, %v525
      %v558 = vmul.f32 %v526, %v526
      %v559 = vmul.f32 %v527, %v527
      %v560 = vmul.f32 %v528, %v528
      %v561 = vmul.f32 %v529, %v529
      %v562 = vmul.f32 %v530, %v530
      %v563 = vmul.f32 %v531, %v531
      %v564 = vmul.f32 %v532, %v532
      %v565 = vmul.f32 %v533, %v533
      %v566 = vmul.f32 %v534, %v534
      %v567 = vmul.f32 %v535, %v535
      %v568 = vmul.f32 %v536, %v536
      %v569 = vsel %vm369, %v537, 0.0
      %570 = vadd.xlane.f32.xlu0 %v569
      %v571 = vpop.xlane.xlu0 %570
      %v572 = vsel %vm369, %v538, 0.0
      %573 = vadd.xlane.f32.xlu0 %v572
      %v574 = vpop.xlane.xlu0 %573
      %v575 = vsel %vm369, %v539, 0.0
      %576 = vadd.xlane.f32.xlu0 %v575
      %v577 = vpop.xlane.xlu0 %576
      %v578 = vsel %vm369, %v540, 0.0
      %579 = vadd.xlane.f32.xlu0 %v578
      %v580 = vpop.xlane.xlu0 %579
      %v581 = vsel %vm369, %v541, 0.0
      %582 = vadd.xlane.f32.xlu0 %v581
      %v583 = vpop.xlane.xlu0 %582
      %v584 = vsel %vm369, %v542, 0.0
      %585 = vadd.xlane.f32.xlu0 %v584
      %v586 = vpop.xlane.xlu0 %585
      %v587 = vsel %vm369, %v543, 0.0
      %588 = vadd.xlane.f32.xlu0 %v587
      %v589 = vpop.xlane.xlu0 %588
      %v590 = vsel %vm369, %v544, 0.0
      %591 = vadd.xlane.f32.xlu0 %v590
      %v592 = vpop.xlane.xlu0 %591
      %v593 = vsel %vm369, %v545, 0.0
      %594 = vadd.xlane.f32.xlu0 %v593
      %v595 = vpop.xlane.xlu0 %594
      %v596 = vsel %vm369, %v546, 0.0
      %597 = vadd.xlane.f32.xlu0 %v596
      %v598 = vpop.xlane.xlu0 %597
      %v599 = vsel %vm369, %v547, 0.0
      %600 = vadd.xlane.f32.xlu0 %v599
      %v601 = vpop.xlane.xlu0 %600
      %v602 = vsel %vm369, %v548, 0.0
      %603 = vadd.xlane.f32.xlu0 %v602
      %v604 = vpop.xlane.xlu0 %603
      %v605 = vsel %vm369, %v549, 0.0
      %606 = vadd.xlane.f32.xlu0 %v605
      %v607 = vpop.xlane.xlu0 %606
      %v608 = vsel %vm369, %v550, 0.0
      %609 = vadd.xlane.f32.xlu0 %v608
      %v610 = vpop.xlane.xlu0 %609
      %v611 = vsel %vm369, %v551, 0.0
      %612 = vadd.xlane.f32.xlu0 %v611
      %v613 = vpop.xlane.xlu0 %612
      %v614 = vsel %vm369, %v552, 0.0
      %615 = vadd.xlane.f32.xlu0 %v614
      %v616 = vpop.xlane.xlu0 %615
      %v617 = vsel %vm369, %v553, 0.0
      %618 = vadd.xlane.f32.xlu0 %v617
      %v619 = vpop.xlane.xlu0 %618
      %v620 = vsel %vm369, %v554, 0.0
      %621 = vadd.xlane.f32.xlu0 %v620
      %v622 = vpop.xlane.xlu0 %621
      %v623 = vsel %vm369, %v555, 0.0
      %624 = vadd.xlane.f32.xlu0 %v623
      %v625 = vpop.xlane.xlu0 %624
      %v626 = vsel %vm369, %v556, 0.0
      %627 = vadd.xlane.f32.xlu0 %v626
      %v628 = vpop.xlane.xlu0 %627
      %v629 = vsel %vm369, %v557, 0.0
      %630 = vadd.xlane.f32.xlu0 %v629
      %v631 = vpop.xlane.xlu0 %630
      %v632 = vsel %vm369, %v558, 0.0
      %633 = vadd.xlane.f32.xlu0 %v632
      %v634 = vpop.xlane.xlu0 %633
      %v635 = vsel %vm369, %v559, 0.0
      %636 = vadd.xlane.f32.xlu0 %v635
      %v637 = vpop.xlane.xlu0 %636
      %v638 = vsel %vm369, %v560, 0.0
      %639 = vadd.xlane.f32.xlu0 %v638
      %v640 = vpop.xlane.xlu0 %639
      %v641 = vsel %vm369, %v561, 0.0
      %642 = vadd.xlane.f32.xlu0 %v641
      %v643 = vpop.xlane.xlu0 %642
      %v644 = vsel %vm369, %v562, 0.0
      %645 = vadd.xlane.f32.xlu0 %v644
      %v646 = vpop.xlane.xlu0 %645
      %v647 = vsel %vm369, %v563, 0.0
      %648 = vadd.xlane.f32.xlu0 %v647
      %v649 = vpop.xlane.xlu0 %648
      %v650 = vsel %vm369, %v564, 0.0
      %651 = vadd.xlane.f32.xlu0 %v650
      %v652 = vpop.xlane.xlu0 %651
      %v653 = vsel %vm369, %v565, 0.0
      %654 = vadd.xlane.f32.xlu0 %v653
      %v655 = vpop.xlane.xlu0 %654
      %v656 = vsel %vm369, %v566, 0.0
      %657 = vadd.xlane.f32.xlu0 %v656
      %v658 = vpop.xlane.xlu0 %657
      %v659 = vsel %vm369, %v567, 0.0
      %660 = vadd.xlane.f32.xlu0 %v659
      %v661 = vpop.xlane.xlu0 %660
      %v662 = vsel %vm369, %v568, 0.0
      %663 = vadd.xlane.f32.xlu0 %v662
      %v664 = vpop.xlane.xlu0 %663
      %v665 = vmul.f32 %v571, %v472
      %v666 = vmul.f32 %v574, %v472
      %v667 = vmul.f32 %v577, %v472
      %v668 = vmul.f32 %v580, %v472
      %v669 = vmul.f32 %v583, %v472
      %v670 = vmul.f32 %v586, %v472
      %v671 = vmul.f32 %v589, %v472
      %v672 = vmul.f32 %v592, %v472
      %v673 = vmul.f32 %v595, %v472
      %v674 = vmul.f32 %v598, %v472
      %v675 = vmul.f32 %v601, %v472
      %v676 = vmul.f32 %v604, %v472
      %v677 = vmul.f32 %v607, %v472
      %v678 = vmul.f32 %v610, %v472
      %v679 = vmul.f32 %v613, %v472
      %v680 = vmul.f32 %v616, %v472
      %v681 = vmul.f32 %v619, %v472
      %v682 = vmul.f32 %v622, %v472
      %v683 = vmul.f32 %v625, %v472
      %v684 = vmul.f32 %v628, %v472
      %v685 = vmul.f32 %v631, %v472
      %v686 = vmul.f32 %v634, %v472
      %v687 = vmul.f32 %v637, %v472
      %v688 = vmul.f32 %v640, %v472
      %v689 = vmul.f32 %v643, %v472
      %v690 = vmul.f32 %v646, %v472
      %v691 = vmul.f32 %v649, %v472
      %v692 = vmul.f32 %v652, %v472
      %v693 = vmul.f32 %v655, %v472
      %v694 = vmul.f32 %v658, %v472
      %v695 = vmul.f32 %v661, %v472
      %v696 = vmul.f32 %v664, %v472
      %v697 = vadd.f32 %v665, 1e-05
      %v698 = vadd.f32 %v666, 1e-05
      %v699 = vadd.f32 %v667, 1e-05
      %v700 = vadd.f32 %v668, 1e-05
      %v701 = vadd.f32 %v669, 1e-05
      %v702 = vadd.f32 %v670, 1e-05
      %v703 = vadd.f32 %v671, 1e-05
      %v704 = vadd.f32 %v672, 1e-05
      %v705 = vadd.f32 %v673, 1e-05
      %v706 = vadd.f32 %v674, 1e-05
      %v707 = vadd.f32 %v675, 1e-05
      %v708 = vadd.f32 %v676, 1e-05
      %v709 = vadd.f32 %v677, 1e-05
      %v710 = vadd.f32 %v678, 1e-05
      %v711 = vadd.f32 %v679, 1e-05
      %v712 = vadd.f32 %v680, 1e-05
      %v713 = vadd.f32 %v681, 1e-05
      %v714 = vadd.f32 %v682, 1e-05
      %v715 = vadd.f32 %v683, 1e-05
      %v716 = vadd.f32 %v684, 1e-05
      %v717 = vadd.f32 %v685, 1e-05
      %v718 = vadd.f32 %v686, 1e-05
      %v719 = vadd.f32 %v687, 1e-05
      %v720 = vadd.f32 %v688, 1e-05
      %v721 = vadd.f32 %v689, 1e-05
      %v722 = vadd.f32 %v690, 1e-05
      %v723 = vadd.f32 %v691, 1e-05
      %v724 = vadd.f32 %v692, 1e-05
      %v725 = vadd.f32 %v693, 1e-05
      %v726 = vadd.f32 %v694, 1e-05
      %v727 = vadd.f32 %v695, 1e-05
      %v728 = vadd.f32 %v696, 1e-05
      %v729 = vrsqrt.pop %v697
      %v730 = vmul.f32 %v729, %v697
      %v731 = vmul.f32 %v730, %v729
      %v732 = vmul.f32 0.5, %v731
      %v733 = vsub.f32 1.5, %v732
      %v734 = vmul.f32 %v729, %v733
      %vm735 = vweird.f32 %v697
      %vm736 = vweird.f32 %v729
      %vm737 = vmor %vm735, %vm736
      %v738 = vsel %vm737, %v729, %v734
      %v739 = vrsqrt.pop %v698
      %v740 = vmul.f32 %v739, %v698
      %v741 = vmul.f32 %v740, %v739
      %v742 = vmul.f32 0.5, %v741
      %v743 = vsub.f32 1.5, %v742
      %v744 = vmul.f32 %v739, %v743
      %vm745 = vweird.f32 %v698
      %vm746 = vweird.f32 %v739
      %vm747 = vmor %vm745, %vm746
      %v748 = vsel %vm747, %v739, %v744
      %v749 = vrsqrt.pop %v699
      %v750 = vmul.f32 %v749, %v699
      %v751 = vmul.f32 %v750, %v749
      %v752 = vmul.f32 0.5, %v751
      %v753 = vsub.f32 1.5, %v752
      %v754 = vmul.f32 %v749, %v753
      %vm755 = vweird.f32 %v699
      %vm756 = vweird.f32 %v749
      %vm757 = vmor %vm755, %vm756
      %v758 = vsel %vm757, %v749, %v754
      %v759 = vrsqrt.pop %v700
      %v760 = vmul.f32 %v759, %v700
      %v761 = vmul.f32 %v760, %v759
      %v762 = vmul.f32 0.5, %v761
      %v763 = vsub.f32 1.5, %v762
      %v764 = vmul.f32 %v759, %v763
      %vm765 = vweird.f32 %v700
      %vm766 = vweird.f32 %v759
      %vm767 = vmor %vm765, %vm766
      %v768 = vsel %vm767, %v759, %v764
      %v769 = vrsqrt.pop %v701
      %v770 = vmul.f32 %v769, %v701
      %v771 = vmul.f32 %v770, %v769
      %v772 = vmul.f32 0.5, %v771
      %v773 = vsub.f32 1.5, %v772
      %v774 = vmul.f32 %v769, %v773
      %vm775 = vweird.f32 %v701
      %vm776 = vweird.f32 %v769
      %vm777 = vmor %vm775, %vm776
      %v778 = vsel %vm777, %v769, %v774
      %v779 = vrsqrt.pop %v702
      %v780 = vmul.f32 %v779, %v702
      %v781 = vmul.f32 %v780, %v779
      %v782 = vmul.f32 0.5, %v781
      %v783 = vsub.f32 1.5, %v782
      %v784 = vmul.f32 %v779, %v783
      %vm785 = vweird.f32 %v702
      %vm786 = vweird.f32 %v779
      %vm787 = vmor %vm785, %vm786
      %v788 = vsel %vm787, %v779, %v784
      %v789 = vrsqrt.pop %v703
      %v790 = vmul.f32 %v789, %v703
      %v791 = vmul.f32 %v790, %v789
      %v792 = vmul.f32 0.5, %v791
      %v793 = vsub.f32 1.5, %v792
      %v794 = vmul.f32 %v789, %v793
      %vm795 = vweird.f32 %v703
      %vm796 = vweird.f32 %v789
      %vm797 = vmor %vm795, %vm796
      %v798 = vsel %vm797, %v789, %v794
      %v799 = vrsqrt.pop %v704
      %v800 = vmul.f32 %v799, %v704
      %v801 = vmul.f32 %v800, %v799
      %v802 = vmul.f32 0.5, %v801
      %v803 = vsub.f32 1.5, %v802
      %v804 = vmul.f32 %v799, %v803
      %vm805 = vweird.f32 %v704
      %vm806 = vweird.f32 %v799
      %vm807 = vmor %vm805, %vm806
      %v808 = vsel %vm807, %v799, %v804
      %v809 = vrsqrt.pop %v705
      %v810 = vmul.f32 %v809, %v705
      %v811 = vmul.f32 %v810, %v809
      %v812 = vmul.f32 0.5, %v811
      %v813 = vsub.f32 1.5, %v812
      %v814 = vmul.f32 %v809, %v813
      %vm815 = vweird.f32 %v705
      %vm816 = vweird.f32 %v809
      %vm817 = vmor %vm815, %vm816
      %v818 = vsel %vm817, %v809, %v814
      %v819 = vrsqrt.pop %v706
      %v820 = vmul.f32 %v819, %v706
      %v821 = vmul.f32 %v820, %v819
      %v822 = vmul.f32 0.5, %v821
      %v823 = vsub.f32 1.5, %v822
      %v824 = vmul.f32 %v819, %v823
      %vm825 = vweird.f32 %v706
      %vm826 = vweird.f32 %v819
      %vm827 = vmor %vm825, %vm826
      %v828 = vsel %vm827, %v819, %v824
      %v829 = vrsqrt.pop %v707
      %v830 = vmul.f32 %v829, %v707
      %v831 = vmul.f32 %v830, %v829
      %v832 = vmul.f32 0.5, %v831
      %v833 = vsub.f32 1.5, %v832
      %v834 = vmul.f32 %v829, %v833
      %vm835 = vweird.f32 %v707
      %vm836 = vweird.f32 %v829
      %vm837 = vmor %vm835, %vm836
      %v838 = vsel %vm837, %v829, %v834
      %v839 = vrsqrt.pop %v708
      %v840 = vmul.f32 %v839, %v708
      %v841 = vmul.f32 %v840, %v839
      %v842 = vmul.f32 0.5, %v841
      %v843 = vsub.f32 1.5, %v842
      %v844 = vmul.f32 %v839, %v843
      %vm845 = vweird.f32 %v708
      %vm846 = vweird.f32 %v839
      %vm847 = vmor %vm845, %vm846
      %v848 = vsel %vm847, %v839, %v844
      %v849 = vrsqrt.pop %v709
      %v850 = vmul.f32 %v849, %v709
      %v851 = vmul.f32 %v850, %v849
      %v852 = vmul.f32 0.5, %v851
      %v853 = vsub.f32 1.5, %v852
      %v854 = vmul.f32 %v849, %v853
      %vm855 = vweird.f32 %v709
      %vm856 = vweird.f32 %v849
      %vm857 = vmor %vm855, %vm856
      %v858 = vsel %vm857, %v849, %v854
      %v859 = vrsqrt.pop %v710
      %v860 = vmul.f32 %v859, %v710
      %v861 = vmul.f32 %v860, %v859
      %v862 = vmul.f32 0.5, %v861
      %v863 = vsub.f32 1.5, %v862
      %v864 = vmul.f32 %v859, %v863
      %vm865 = vweird.f32 %v710
      %vm866 = vweird.f32 %v859
      %vm867 = vmor %vm865, %vm866
      %v868 = vsel %vm867, %v859, %v864
      %v869 = vrsqrt.pop %v711
      %v870 = vmul.f32 %v869, %v711
      %v871 = vmul.f32 %v870, %v869
      %v872 = vmul.f32 0.5, %v871
      %v873 = vsub.f32 1.5, %v872
      %v874 = vmul.f32 %v869, %v873
      %vm875 = vweird.f32 %v711
      %vm876 = vweird.f32 %v869
      %vm877 = vmor %vm875, %vm876
      %v878 = vsel %vm877, %v869, %v874
      %v879 = vrsqrt.pop %v712
      %v880 = vmul.f32 %v879, %v712
      %v881 = vmul.f32 %v880, %v879
      %v882 = vmul.f32 0.5, %v881
      %v883 = vsub.f32 1.5, %v882
      %v884 = vmul.f32 %v879, %v883
      %vm885 = vweird.f32 %v712
      %vm886 = vweird.f32 %v879
      %vm887 = vmor %vm885, %vm886
      %v888 = vsel %vm887, %v879, %v884
      %v889 = vrsqrt.pop %v713
      %v890 = vmul.f32 %v889, %v713
      %v891 = vmul.f32 %v890, %v889
      %v892 = vmul.f32 0.5, %v891
      %v893 = vsub.f32 1.5, %v892
      %v894 = vmul.f32 %v889, %v893
      %vm895 = vweird.f32 %v713
      %vm896 = vweird.f32 %v889
      %vm897 = vmor %vm895, %vm896
      %v898 = vsel %vm897, %v889, %v894
      %v899 = vrsqrt.pop %v714
      %v900 = vmul.f32 %v899, %v714
      %v901 = vmul.f32 %v900, %v899
      %v902 = vmul.f32 0.5, %v901
      %v903 = vsub.f32 1.5, %v902
      %v904 = vmul.f32 %v899, %v903
      %vm905 = vweird.f32 %v714
      %vm906 = vweird.f32 %v899
      %vm907 = vmor %vm905, %vm906
      %v908 = vsel %vm907, %v899, %v904
      %v909 = vrsqrt.pop %v715
      %v910 = vmul.f32 %v909, %v715
      %v911 = vmul.f32 %v910, %v909
      %v912 = vmul.f32 0.5, %v911
      %v913 = vsub.f32 1.5, %v912
      %v914 = vmul.f32 %v909, %v913
      %vm915 = vweird.f32 %v715
      %vm916 = vweird.f32 %v909
      %vm917 = vmor %vm915, %vm916
      %v918 = vsel %vm917, %v909, %v914
      %v919 = vrsqrt.pop %v716
      %v920 = vmul.f32 %v919, %v716
      %v921 = vmul.f32 %v920, %v919
      %v922 = vmul.f32 0.5, %v921
      %v923 = vsub.f32 1.5, %v922
      %v924 = vmul.f32 %v919, %v923
      %vm925 = vweird.f32 %v716
      %vm926 = vweird.f32 %v919
      %vm927 = vmor %vm925, %vm926
      %v928 = vsel %vm927, %v919, %v924
      %v929 = vrsqrt.pop %v717
      %v930 = vmul.f32 %v929, %v717
      %v931 = vmul.f32 %v930, %v929
      %v932 = vmul.f32 0.5, %v931
      %v933 = vsub.f32 1.5, %v932
      %v934 = vmul.f32 %v929, %v933
      %vm935 = vweird.f32 %v717
      %vm936 = vweird.f32 %v929
      %vm937 = vmor %vm935, %vm936
      %v938 = vsel %vm937, %v929, %v934
      %v939 = vrsqrt.pop %v718
      %v940 = vmul.f32 %v939, %v718
      %v941 = vmul.f32 %v940, %v939
      %v942 = vmul.f32 0.5, %v941
      %v943 = vsub.f32 1.5, %v942
      %v944 = vmul.f32 %v939, %v943
      %vm945 = vweird.f32 %v718
      %vm946 = vweird.f32 %v939
      %vm947 = vmor %vm945, %vm946
      %v948 = vsel %vm947, %v939, %v944
      %v949 = vrsqrt.pop %v719
      %v950 = vmul.f32 %v949, %v719
      %v951 = vmul.f32 %v950, %v949
      %v952 = vmul.f32 0.5, %v951
      %v953 = vsub.f32 1.5, %v952
      %v954 = vmul.f32 %v949, %v953
      %vm955 = vweird.f32 %v719
      %vm956 = vweird.f32 %v949
      %vm957 = vmor %vm955, %vm956
      %v958 = vsel %vm957, %v949, %v954
      %v959 = vrsqrt.pop %v720
      %v960 = vmul.f32 %v959, %v720
      %v961 = vmul.f32 %v960, %v959
      %v962 = vmul.f32 0.5, %v961
      %v963 = vsub.f32 1.5, %v962
      %v964 = vmul.f32 %v959, %v963
      %vm965 = vweird.f32 %v720
      %vm966 = vweird.f32 %v959
      %vm967 = vmor %vm965, %vm966
      %v968 = vsel %vm967, %v959, %v964
      %v969 = vrsqrt.pop %v721
      %v970 = vmul.f32 %v969, %v721
      %v971 = vmul.f32 %v970, %v969
      %v972 = vmul.f32 0.5, %v971
      %v973 = vsub.f32 1.5, %v972
      %v974 = vmul.f32 %v969, %v973
      %vm975 = vweird.f32 %v721
      %vm976 = vweird.f32 %v969
      %vm977 = vmor %vm975, %vm976
      %v978 = vsel %vm977, %v969, %v974
      %v979 = vrsqrt.pop %v722
      %v980 = vmul.f32 %v979, %v722
      %v981 = vmul.f32 %v980, %v979
      %v982 = vmul.f32 0.5, %v981
      %v983 = vsub.f32 1.5, %v982
      %v984 = vmul.f32 %v979, %v983
      %vm985 = vweird.f32 %v722
      %vm986 = vweird.f32 %v979
      %vm987 = vmor %vm985, %vm986
      %v988 = vsel %vm987, %v979, %v984
      %v989 = vrsqrt.pop %v723
      %v990 = vmul.f32 %v989, %v723
      %v991 = vmul.f32 %v990, %v989
      %v992 = vmul.f32 0.5, %v991
      %v993 = vsub.f32 1.5, %v992
      %v994 = vmul.f32 %v989, %v993
      %vm995 = vweird.f32 %v723
      %vm996 = vweird.f32 %v989
      %vm997 = vmor %vm995, %vm996
      %v998 = vsel %vm997, %v989, %v994
      %v999 = vrsqrt.pop %v724
      %v1000 = vmul.f32 %v999, %v724
      %v1001 = vmul.f32 %v1000, %v999
      %v1002 = vmul.f32 0.5, %v1001
      %v1003 = vsub.f32 1.5, %v1002
      %v1004 = vmul.f32 %v999, %v1003
      %vm1005 = vweird.f32 %v724
      %vm1006 = vweird.f32 %v999
      %vm1007 = vmor %vm1005, %vm1006
      %v1008 = vsel %vm1007, %v999, %v1004
      %v1009 = vrsqrt.pop %v725
      %v1010 = vmul.f32 %v1009, %v725
      %v1011 = vmul.f32 %v1010, %v1009
      %v1012 = vmul.f32 0.5, %v1011
      %v1013 = vsub.f32 1.5, %v1012
      %v1014 = vmul.f32 %v1009, %v1013
      %vm1015 = vweird.f32 %v725
      %vm1016 = vweird.f32 %v1009
      %vm1017 = vmor %vm1015, %vm1016
      %v1018 = vsel %vm1017, %v1009, %v1014
      %v1019 = vrsqrt.pop %v726
      %v1020 = vmul.f32 %v1019, %v726
      %v1021 = vmul.f32 %v1020, %v1019
      %v1022 = vmul.f32 0.5, %v1021
      %v1023 = vsub.f32 1.5, %v1022
      %v1024 = vmul.f32 %v1019, %v1023
      %vm1025 = vweird.f32 %v726
      %vm1026 = vweird.f32 %v1019
      %vm1027 = vmor %vm1025, %vm1026
      %v1028 = vsel %vm1027, %v1019, %v1024
      %v1029 = vrsqrt.pop %v727
      %v1030 = vmul.f32 %v1029, %v727
      %v1031 = vmul.f32 %v1030, %v1029
      %v1032 = vmul.f32 0.5, %v1031
      %v1033 = vsub.f32 1.5, %v1032
      %v1034 = vmul.f32 %v1029, %v1033
      %vm1035 = vweird.f32 %v727
      %vm1036 = vweird.f32 %v1029
      %vm1037 = vmor %vm1035, %vm1036
      %v1038 = vsel %vm1037, %v1029, %v1034
      %v1039 = vrsqrt.pop %v728
      %v1040 = vmul.f32 %v1039, %v728
      %v1041 = vmul.f32 %v1040, %v1039
      %v1042 = vmul.f32 0.5, %v1041
      %v1043 = vsub.f32 1.5, %v1042
      %v1044 = vmul.f32 %v1039, %v1043
      %vm1045 = vweird.f32 %v728
      %vm1046 = vweird.f32 %v1039
      %vm1047 = vmor %vm1045, %vm1046
      %v1048 = vsel %vm1047, %v1039, %v1044
      %v1049 = vmul.f32 %v505, %v738
      %v1050 = vmul.f32 %v506, %v748
      %v1051 = vmul.f32 %v507, %v758
      %v1052 = vmul.f32 %v508, %v768
      %v1053 = vmul.f32 %v509, %v778
      %v1054 = vmul.f32 %v510, %v788
      %v1055 = vmul.f32 %v511, %v798
      %v1056 = vmul.f32 %v512, %v808
      %v1057 = vmul.f32 %v513, %v818
      %v1058 = vmul.f32 %v514, %v828
      %v1059 = vmul.f32 %v515, %v838
      %v1060 = vmul.f32 %v516, %v848
      %v1061 = vmul.f32 %v517, %v858
      %v1062 = vmul.f32 %v518, %v868
      %v1063 = vmul.f32 %v519, %v878
      %v1064 = vmul.f32 %v520, %v888
      %v1065 = vmul.f32 %v521, %v898
      %v1066 = vmul.f32 %v522, %v908
      %v1067 = vmul.f32 %v523, %v918
      %v1068 = vmul.f32 %v524, %v928
      %v1069 = vmul.f32 %v525, %v938
      %v1070 = vmul.f32 %v526, %v948
      %v1071 = vmul.f32 %v527, %v958
      %v1072 = vmul.f32 %v528, %v968
      %v1073 = vmul.f32 %v529, %v978
      %v1074 = vmul.f32 %v530, %v988
      %v1075 = vmul.f32 %v531, %v998
      %v1076 = vmul.f32 %v532, %v1008
      %v1077 = vmul.f32 %v533, %v1018
      %v1078 = vmul.f32 %v534, %v1028
      %v1079 = vmul.f32 %v535, %v1038
      %v1080 = vmul.f32 %v536, %v1048
      %v1081 = vld [vmem:[%s1] sm:$0x1]
      %v1083 = vperm.slane %v1081, 0
      %v1085 = vmul.f32 %v1049, %v1083
      %v1086 = vmul.f32 %v1050, %v1083
      %v1087 = vmul.f32 %v1051, %v1083
      %v1088 = vmul.f32 %v1052, %v1083
      %v1089 = vmul.f32 %v1053, %v1083
      %v1090 = vmul.f32 %v1054, %v1083
      %v1091 = vmul.f32 %v1055, %v1083
      %v1092 = vmul.f32 %v1056, %v1083
      %v1093 = vmul.f32 %v1057, %v1083
      %v1094 = vmul.f32 %v1058, %v1083
      %v1095 = vmul.f32 %v1059, %v1083
      %v1096 = vmul.f32 %v1060, %v1083
      %v1097 = vmul.f32 %v1061, %v1083
      %v1098 = vmul.f32 %v1062, %v1083
      %v1099 = vmul.f32 %v1063, %v1083
      %v1100 = vmul.f32 %v1064, %v1083
      %v1101 = vmul.f32 %v1065, %v1083
      %v1102 = vmul.f32 %v1066, %v1083
      %v1103 = vmul.f32 %v1067, %v1083
      %v1104 = vmul.f32 %v1068, %v1083
      %v1105 = vmul.f32 %v1069, %v1083
      %v1106 = vmul.f32 %v1070, %v1083
      %v1107 = vmul.f32 %v1071, %v1083
      %v1108 = vmul.f32 %v1072, %v1083
      %v1109 = vmul.f32 %v1073, %v1083
      %v1110 = vmul.f32 %v1074, %v1083
      %v1111 = vmul.f32 %v1075, %v1083
      %v1112 = vmul.f32 %v1076, %v1083
      %v1113 = vmul.f32 %v1077, %v1083
      %v1114 = vmul.f32 %v1078, %v1083
      %v1115 = vmul.f32 %v1079, %v1083
      %v1116 = vmul.f32 %v1080, %v1083
      %v1117 = vld [vmem:[%s2] sm:$0x1]
      %v1119 = vperm.slane %v1117, 0
      %v1121 = vadd.f32 %v1085, %v1119
      %v1122 = vadd.f32 %v1086, %v1119
      %v1123 = vadd.f32 %v1087, %v1119
      %v1124 = vadd.f32 %v1088, %v1119
      %v1125 = vadd.f32 %v1089, %v1119
      %v1126 = vadd.f32 %v1090, %v1119
      %v1127 = vadd.f32 %v1091, %v1119
      %v1128 = vadd.f32 %v1092, %v1119
      %v1129 = vadd.f32 %v1093, %v1119
      %v1130 = vadd.f32 %v1094, %v1119
      %v1131 = vadd.f32 %v1095, %v1119
      %v1132 = vadd.f32 %v1096, %v1119
      %v1133 = vadd.f32 %v1097, %v1119
      %v1134 = vadd.f32 %v1098, %v1119
      %v1135 = vadd.f32 %v1099, %v1119
      %v1136 = vadd.f32 %v1100, %v1119
      %v1137 = vadd.f32 %v1101, %v1119
      %v1138 = vadd.f32 %v1102, %v1119
      %v1139 = vadd.f32 %v1103, %v1119
      %v1140 = vadd.f32 %v1104, %v1119
      %v1141 = vadd.f32 %v1105, %v1119
      %v1142 = vadd.f32 %v1106, %v1119
      %v1143 = vadd.f32 %v1107, %v1119
      %v1144 = vadd.f32 %v1108, %v1119
      %v1145 = vadd.f32 %v1109, %v1119
      %v1146 = vadd.f32 %v1110, %v1119
      %v1147 = vadd.f32 %v1111, %v1119
      %v1148 = vadd.f32 %v1112, %v1119
      %v1149 = vadd.f32 %v1113, %v1119
      %v1150 = vadd.f32 %v1114, %v1119
      %v1151 = vadd.f32 %v1115, %v1119
      %v1152 = vadd.f32 %v1116, %v1119
      %v1153 = vpack.c.bf16 %v1122, %v1121
      %v1154 = vpack.c.bf16 %v1124, %v1123
      %v1155 = vpack.c.bf16 %v1126, %v1125
      %v1156 = vpack.c.bf16 %v1128, %v1127
      %v1157 = vpack.c.bf16 %v1130, %v1129
      %v1158 = vpack.c.bf16 %v1132, %v1131
      %v1159 = vpack.c.bf16 %v1134, %v1133
      %v1160 = vpack.c.bf16 %v1136, %v1135
      %v1161 = vpack.c.bf16 %v1138, %v1137
      %v1162 = vpack.c.bf16 %v1140, %v1139
      %v1163 = vpack.c.bf16 %v1142, %v1141
      %v1164 = vpack.c.bf16 %v1144, %v1143
      %v1165 = vpack.c.bf16 %v1146, %v1145
      %v1166 = vpack.c.bf16 %v1148, %v1147
      %v1167 = vpack.c.bf16 %v1150, %v1149
      %v1168 = vpack.c.bf16 %v1152, %v1151
      %v1169 = vld [vmem:[%s3] sm:$0xff]
      %v1170 = vld [vmem:[%s3 + $0x8] sm:$0xff]
      %v1171 = vld [vmem:[%s3 + $0x10] sm:$0xff]
      %v1172 = vld [vmem:[%s3 + $0x18] sm:$0xff]
      %v1173 = vld [vmem:[%s3 + $0x20] sm:$0xff]
      %v1174 = vld [vmem:[%s3 + $0x28] sm:$0xff]
      %v1175 = vld [vmem:[%s3 + $0x30] sm:$0xff]
      %v1176 = vld [vmem:[%s3 + $0x38] sm:$0xff]
      %v1177 = vld [vmem:[%s3 + $0x40] sm:$0xff]
      %v1178 = vld [vmem:[%s3 + $0x48] sm:$0xff]
      %v1179 = vld [vmem:[%s3 + $0x50] sm:$0xff]
      %v1180 = vld [vmem:[%s3 + $0x58] sm:$0xff]
      %v1181 = vld [vmem:[%s3 + $0x60] sm:$0xff]
      %v1182 = vld [vmem:[%s3 + $0x68] sm:$0xff]
      %v1183 = vld [vmem:[%s3 + $0x70] sm:$0xff]
      %v1184 = vld [vmem:[%s3 + $0x78] sm:$0xff]
      %v1185 = vpack.c.bf16 %v1171, %v1169
      %v1186 = vpack.c.bf16 %v1172, %v1170
      %v1187 = vpack.c.bf16 %v1175, %v1173
      %v1188 = vpack.c.bf16 %v1176, %v1174
      %v1189 = vpack.c.bf16 %v1179, %v1177
      %v1190 = vpack.c.bf16 %v1180, %v1178
      %v1191 = vpack.c.bf16 %v1183, %v1181
      %v1192 = vpack.c.bf16 %v1184, %v1182
      %v1193 = vld [vmem:[%s4] sm:$0x3]
      %v1195 = vperm.slane %v1193, 0
      %v1196 = vperm.slane %v1193, 1
      %v1200 = vsel %vm369, %v1153, 0
      %v1203 = vsel %vm369, %v1154, 0
      %v1206 = vsel %vm369, %v1155, 0
      %v1209 = vsel %vm369, %v1156, 0
      %v1212 = vsel %vm369, %v1157, 0
      %v1215 = vsel %vm369, %v1158, 0
      %v1218 = vsel %vm369, %v1159, 0
      %v1221 = vsel %vm369, %v1160, 0
      %v1224 = vsel %vm369, %v1161, 0
      %v1227 = vsel %vm369, %v1162, 0
      %v1230 = vsel %vm369, %v1163, 0
      %v1233 = vsel %vm369, %v1164, 0
      %v1236 = vsel %vm369, %v1165, 0
      %v1239 = vsel %vm369, %v1166, 0
      %v1242 = vsel %vm369, %v1167, 0
      %v1245 = vsel %vm369, %v1168, 0
      %1247 = vmatpush.bf16.msra.mxu0 0
      %1248 = vmatpush.bf16.msra.mxu0 0
      %1249 = vmatpush.bf16.msra.mxu0 0
      %1250 = vmatpush.bf16.msra.mxu0 0
      %1251 = vmatpush.bf16.msra.mxu0 %v1191
      %1252 = vmatpush.bf16.msra.mxu0 %v1189
      %1253 = vmatpush.bf16.msra.mxu0 %v1187
      %1254 = vmatpush.bf16.msra.mxu0 %v1185
      %1255 = vmatmul.bf16.gmra.mxu0 %v1200
      %v1256 = vpop.f32.mrf.mxu0
      %v1257 = vadd.f32 %v1195, %v1256
      %v1258 = vpop.f32.mrf.mxu0
      %v1259 = vadd.f32 %v1195, %v1258
      %1260 = vmatmul.bf16.gmra.mxu0 %v1203
      %v1261 = vpop.f32.mrf.mxu0
      %v1262 = vadd.f32 %v1195, %v1261
      %v1263 = vpop.f32.mrf.mxu0
      %v1264 = vadd.f32 %v1195, %v1263
      %1265 = vmatmul.bf16.gmra.mxu0 %v1206
      %v1266 = vpop.f32.mrf.mxu0
      %v1267 = vadd.f32 %v1195, %v1266
      %v1268 = vpop.f32.mrf.mxu0
      %v1269 = vadd.f32 %v1195, %v1268
      %1270 = vmatmul.bf16.gmra.mxu0 %v1209
      %v1271 = vpop.f32.mrf.mxu0
      %v1272 = vadd.f32 %v1195, %v1271
      %v1273 = vpop.f32.mrf.mxu0
      %v1274 = vadd.f32 %v1195, %v1273
      %1275 = vmatmul.bf16.gmra.mxu0 %v1212
      %v1276 = vpop.f32.mrf.mxu0
      %v1277 = vadd.f32 %v1195, %v1276
      %v1278 = vpop.f32.mrf.mxu0
      %v1279 = vadd.f32 %v1195, %v1278
      %1280 = vmatmul.bf16.gmra.mxu0 %v1215
      %v1281 = vpop.f32.mrf.mxu0
      %v1282 = vadd.f32 %v1195, %v1281
      %v1283 = vpop.f32.mrf.mxu0
      %v1284 = vadd.f32 %v1195, %v1283
      %1285 = vmatmul.bf16.gmra.mxu0 %v1218
      %v1286 = vpop.f32.mrf.mxu0
      %v1287 = vadd.f32 %v1195, %v1286
      %v1288 = vpop.f32.mrf.mxu0
      %v1289 = vadd.f32 %v1195, %v1288
      %1290 = vmatmul.bf16.gmra.mxu0 %v1221
      %v1291 = vpop.f32.mrf.mxu0
      %v1292 = vadd.f32 %v1195, %v1291
      %v1293 = vpop.f32.mrf.mxu0
      %v1294 = vadd.f32 %v1195, %v1293
      %1295 = vmatmul.bf16.gmra.mxu0 %v1224
      %v1296 = vpop.f32.mrf.mxu0
      %v1297 = vadd.f32 %v1195, %v1296
      %v1298 = vpop.f32.mrf.mxu0
      %v1299 = vadd.f32 %v1195, %v1298
      %1300 = vmatmul.bf16.gmra.mxu0 %v1227
      %v1301 = vpop.f32.mrf.mxu0
      %v1302 = vadd.f32 %v1195, %v1301
      %v1303 = vpop.f32.mrf.mxu0
      %v1304 = vadd.f32 %v1195, %v1303
      %1305 = vmatmul.bf16.gmra.mxu0 %v1230
      %v1306 = vpop.f32.mrf.mxu0
      %v1307 = vadd.f32 %v1195, %v1306
      %v1308 = vpop.f32.mrf.mxu0
      %v1309 = vadd.f32 %v1195, %v1308
      %1310 = vmatmul.bf16.gmra.mxu0 %v1233
      %v1311 = vpop.f32.mrf.mxu0
      %v1312 = vadd.f32 %v1195, %v1311
      %v1313 = vpop.f32.mrf.mxu0
      %v1314 = vadd.f32 %v1195, %v1313
      %1315 = vmatmul.bf16.gmra.mxu0 %v1236
      %v1316 = vpop.f32.mrf.mxu0
      %v1317 = vadd.f32 %v1195, %v1316
      %v1318 = vpop.f32.mrf.mxu0
      %v1319 = vadd.f32 %v1195, %v1318
      %1320 = vmatmul.bf16.gmra.mxu0 %v1239
      %v1321 = vpop.f32.mrf.mxu0
      %v1322 = vadd.f32 %v1195, %v1321
      %v1323 = vpop.f32.mrf.mxu0
      %v1324 = vadd.f32 %v1195, %v1323
      %1325 = vmatmul.bf16.gmra.mxu0 %v1242
      %v1326 = vpop.f32.mrf.mxu0
      %v1327 = vadd.f32 %v1195, %v1326
      %v1328 = vpop.f32.mrf.mxu0
      %v1329 = vadd.f32 %v1195, %v1328
      %1330 = vmatmul.bf16.gmra.mxu0 %v1245
      %v1331 = vpop.f32.mrf.mxu0
      %v1332 = vadd.f32 %v1195, %v1331
      %v1333 = vpop.f32.mrf.mxu0
      %v1334 = vadd.f32 %v1195, %v1333
      %1335 = vdwg.mxu0
      %1336 = vmatpush.bf16.msra.mxu0 0
      %1337 = vmatpush.bf16.msra.mxu0 0
      %1338 = vmatpush.bf16.msra.mxu0 0
      %1339 = vmatpush.bf16.msra.mxu0 0
      %1340 = vmatpush.bf16.msra.mxu0 %v1192
      %1341 = vmatpush.bf16.msra.mxu0 %v1190
      %1342 = vmatpush.bf16.msra.mxu0 %v1188
      %1343 = vmatpush.bf16.msra.mxu0 %v1186
      %1344 = vmatmul.bf16.gmra.mxu0 %v1200
      %v1345 = vpop.f32.mrf.mxu0
      %v1346 = vadd.f32 %v1196, %v1345
      %v1347 = vpop.f32.mrf.mxu0
      %v1348 = vadd.f32 %v1196, %v1347
      %1349 = vmatmul.bf16.gmra.mxu0 %v1203
      %v1350 = vpop.f32.mrf.mxu0
      %v1351 = vadd.f32 %v1196, %v1350
      %v1352 = vpop.f32.mrf.mxu0
      %v1353 = vadd.f32 %v1196, %v1352
      %1354 = vmatmul.bf16.gmra.mxu0 %v1206
      %v1355 = vpop.f32.mrf.mxu0
      %v1356 = vadd.f32 %v1196, %v1355
      %v1357 = vpop.f32.mrf.mxu0
      %v1358 = vadd.f32 %v1196, %v1357
      %1359 = vmatmul.bf16.gmra.mxu0 %v1209
      %v1360 = vpop.f32.mrf.mxu0
      %v1361 = vadd.f32 %v1196, %v1360
      %v1362 = vpop.f32.mrf.mxu0
      %v1363 = vadd.f32 %v1196, %v1362
      %1364 = vmatmul.bf16.gmra.mxu0 %v1212
      %v1365 = vpop.f32.mrf.mxu0
      %v1366 = vadd.f32 %v1196, %v1365
      %v1367 = vpop.f32.mrf.mxu0
      %v1368 = vadd.f32 %v1196, %v1367
      %1369 = vmatmul.bf16.gmra.mxu0 %v1215
      %v1370 = vpop.f32.mrf.mxu0
      %v1371 = vadd.f32 %v1196, %v1370
      %v1372 = vpop.f32.mrf.mxu0
      %v1373 = vadd.f32 %v1196, %v1372
      %1374 = vmatmul.bf16.gmra.mxu0 %v1218
      %v1375 = vpop.f32.mrf.mxu0
      %v1376 = vadd.f32 %v1196, %v1375
      %v1377 = vpop.f32.mrf.mxu0
      %v1378 = vadd.f32 %v1196, %v1377
      %1379 = vmatmul.bf16.gmra.mxu0 %v1221
      %v1380 = vpop.f32.mrf.mxu0
      %v1381 = vadd.f32 %v1196, %v1380
      %v1382 = vpop.f32.mrf.mxu0
      %v1383 = vadd.f32 %v1196, %v1382
      %1384 = vmatmul.bf16.gmra.mxu0 %v1224
      %v1385 = vpop.f32.mrf.mxu0
      %v1386 = vadd.f32 %v1196, %v1385
      %v1387 = vpop.f32.mrf.mxu0
      %v1388 = vadd.f32 %v1196, %v1387
      %1389 = vmatmul.bf16.gmra.mxu0 %v1227
      %v1390 = vpop.f32.mrf.mxu0
      %v1391 = vadd.f32 %v1196, %v1390
      %v1392 = vpop.f32.mrf.mxu0
      %v1393 = vadd.f32 %v1196, %v1392
      %1394 = vmatmul.bf16.gmra.mxu0 %v1230
      %v1395 = vpop.f32.mrf.mxu0
      %v1396 = vadd.f32 %v1196, %v1395
      %v1397 = vpop.f32.mrf.mxu0
      %v1398 = vadd.f32 %v1196, %v1397
      %1399 = vmatmul.bf16.gmra.mxu0 %v1233
      %v1400 = vpop.f32.mrf.mxu0
      %v1401 = vadd.f32 %v1196, %v1400
      %v1402 = vpop.f32.mrf.mxu0
      %v1403 = vadd.f32 %v1196, %v1402
      %1404 = vmatmul.bf16.gmra.mxu0 %v1236
      %v1405 = vpop.f32.mrf.mxu0
      %v1406 = vadd.f32 %v1196, %v1405
      %v1407 = vpop.f32.mrf.mxu0
      %v1408 = vadd.f32 %v1196, %v1407
      %1409 = vmatmul.bf16.gmra.mxu0 %v1239
      %v1410 = vpop.f32.mrf.mxu0
      %v1411 = vadd.f32 %v1196, %v1410
      %v1412 = vpop.f32.mrf.mxu0
      %v1413 = vadd.f32 %v1196, %v1412
      %1414 = vmatmul.bf16.gmra.mxu0 %v1242
      %v1415 = vpop.f32.mrf.mxu0
      %v1416 = vadd.f32 %v1196, %v1415
      %v1417 = vpop.f32.mrf.mxu0
      %v1418 = vadd.f32 %v1196, %v1417
      %1419 = vmatmul.bf16.gmra.mxu0 %v1245
      %v1420 = vpop.f32.mrf.mxu0
      %v1421 = vadd.f32 %v1196, %v1420
      %v1422 = vpop.f32.mrf.mxu0
      %v1423 = vadd.f32 %v1196, %v1422
      %1424 = vdwg.mxu0
      %v1425 = vld [vmem:[%s5] sm:$0xff]
      %v1426 = vld [vmem:[%s5 + $0x8] sm:$0xff]
      %v1427 = vld [vmem:[%s5 + $0x10] sm:$0xff]
      %v1428 = vld [vmem:[%s5 + $0x18] sm:$0xff]
      %v1429 = vld [vmem:[%s5 + $0x20] sm:$0xff]
      %v1430 = vld [vmem:[%s5 + $0x28] sm:$0xff]
      %v1431 = vld [vmem:[%s5 + $0x30] sm:$0xff]
      %v1432 = vld [vmem:[%s5 + $0x38] sm:$0xff]
      %v1433 = vld [vmem:[%s5 + $0x40] sm:$0xff]
      %v1434 = vld [vmem:[%s5 + $0x48] sm:$0xff]
      %v1435 = vld [vmem:[%s5 + $0x50] sm:$0xff]
      %v1436 = vld [vmem:[%s5 + $0x58] sm:$0xff]
      %v1437 = vld [vmem:[%s5 + $0x60] sm:$0xff]
      %v1438 = vld [vmem:[%s5 + $0x68] sm:$0xff]
      %v1439 = vld [vmem:[%s5 + $0x70] sm:$0xff]
      %v1440 = vld [vmem:[%s5 + $0x78] sm:$0xff]
      %v1441 = vpack.c.bf16 %v1427, %v1425
      %v1442 = vpack.c.bf16 %v1428, %v1426
      %v1443 = vpack.c.bf16 %v1431, %v1429
      %v1444 = vpack.c.bf16 %v1432, %v1430
      %v1445 = vpack.c.bf16 %v1435, %v1433
      %v1446 = vpack.c.bf16 %v1436, %v1434
      %v1447 = vpack.c.bf16 %v1439, %v1437
      %v1448 = vpack.c.bf16 %v1440, %v1438
      %v1449 = vld [vmem:[%s6] sm:$0x3]
      %v1451 = vperm.slane %v1449, 0
      %v1452 = vperm.slane %v1449, 1
      %1455 = vmatpush.bf16.msra.mxu0 0
      %1456 = vmatpush.bf16.msra.mxu0 0
      %1457 = vmatpush.bf16.msra.mxu0 0
      %1458 = vmatpush.bf16.msra.mxu0 0
      %1459 = vmatpush.bf16.msra.mxu0 %v1447
      %1460 = vmatpush.bf16.msra.mxu0 %v1445
      %1461 = vmatpush.bf16.msra.mxu0 %v1443
      %1462 = vmatpush.bf16.msra.mxu0 %v1441
      %1463 = vmatmul.bf16.gmra.mxu0 %v1200
      %v1464 = vpop.f32.mrf.mxu0
      %v1465 = vadd.f32 %v1451, %v1464
      %v1466 = vpop.f32.mrf.mxu0
      %v1467 = vadd.f32 %v1451, %v1466
      %1468 = vmatmul.bf16.gmra.mxu0 %v1203
      %v1469 = vpop.f32.mrf.mxu0
      %v1470 = vadd.f32 %v1451, %v1469
      %v1471 = vpop.f32.mrf.mxu0
      %v1472 = vadd.f32 %v1451, %v1471
      %1473 = vmatmul.bf16.gmra.mxu0 %v1206
      %v1474 = vpop.f32.mrf.mxu0
      %v1475 = vadd.f32 %v1451, %v1474
      %v1476 = vpop.f32.mrf.mxu0
      %v1477 = vadd.f32 %v1451, %v1476
      %1478 = vmatmul.bf16.gmra.mxu0 %v1209
      %v1479 = vpop.f32.mrf.mxu0
      %v1480 = vadd.f32 %v1451, %v1479
      %v1481 = vpop.f32.mrf.mxu0
      %v1482 = vadd.f32 %v1451, %v1481
      %1483 = vmatmul.bf16.gmra.mxu0 %v1212
      %v1484 = vpop.f32.mrf.mxu0
      %v1485 = vadd.f32 %v1451, %v1484
      %v1486 = vpop.f32.mrf.mxu0
      %v1487 = vadd.f32 %v1451, %v1486
      %1488 = vmatmul.bf16.gmra.mxu0 %v1215
      %v1489 = vpop.f32.mrf.mxu0
      %v1490 = vadd.f32 %v1451, %v1489
      %v1491 = vpop.f32.mrf.mxu0
      %v1492 = vadd.f32 %v1451, %v1491
      %1493 = vmatmul.bf16.gmra.mxu0 %v1218
      %v1494 = vpop.f32.mrf.mxu0
      %v1495 = vadd.f32 %v1451, %v1494
      %v1496 = vpop.f32.mrf.mxu0
      %v1497 = vadd.f32 %v1451, %v1496
      %1498 = vmatmul.bf16.gmra.mxu0 %v1221
      %v1499 = vpop.f32.mrf.mxu0
      %v1500 = vadd.f32 %v1451, %v1499
      %v1501 = vpop.f32.mrf.mxu0
      %v1502 = vadd.f32 %v1451, %v1501
      %1503 = vmatmul.bf16.gmra.mxu0 %v1224
      %v1504 = vpop.f32.mrf.mxu0
      %v1505 = vadd.f32 %v1451, %v1504
      %v1506 = vpop.f32.mrf.mxu0
      %v1507 = vadd.f32 %v1451, %v1506
      %1508 = vmatmul.bf16.gmra.mxu0 %v1227
      %v1509 = vpop.f32.mrf.mxu0
      %v1510 = vadd.f32 %v1451, %v1509
      %v1511 = vpop.f32.mrf.mxu0
      %v1512 = vadd.f32 %v1451, %v1511
      %1513 = vmatmul.bf16.gmra.mxu0 %v1230
      %v1514 = vpop.f32.mrf.mxu0
      %v1515 = vadd.f32 %v1451, %v1514
      %v1516 = vpop.f32.mrf.mxu0
      %v1517 = vadd.f32 %v1451, %v1516
      %1518 = vmatmul.bf16.gmra.mxu0 %v1233
      %v1519 = vpop.f32.mrf.mxu0
      %v1520 = vadd.f32 %v1451, %v1519
      %v1521 = vpop.f32.mrf.mxu0
      %v1522 = vadd.f32 %v1451, %v1521
      %1523 = vmatmul.bf16.gmra.mxu0 %v1236
      %v1524 = vpop.f32.mrf.mxu0
      %v1525 = vadd.f32 %v1451, %v1524
      %v1526 = vpop.f32.mrf.mxu0
      %v1527 = vadd.f32 %v1451, %v1526
      %1528 = vmatmul.bf16.gmra.mxu0 %v1239
      %v1529 = vpop.f32.mrf.mxu0
      %v1530 = vadd.f32 %v1451, %v1529
      %v1531 = vpop.f32.mrf.mxu0
      %v1532 = vadd.f32 %v1451, %v1531
      %1533 = vmatmul.bf16.gmra.mxu0 %v1242
      %v1534 = vpop.f32.mrf.mxu0
      %v1535 = vadd.f32 %v1451, %v1534
      %v1536 = vpop.f32.mrf.mxu0
      %v1537 = vadd.f32 %v1451, %v1536
      %1538 = vmatmul.bf16.gmra.mxu0 %v1245
      %v1539 = vpop.f32.mrf.mxu0
      %v1540 = vadd.f32 %v1451, %v1539
      %v1541 = vpop.f32.mrf.mxu0
      %v1542 = vadd.f32 %v1451, %v1541
      %1543 = vdwg.mxu0
      %1544 = vmatpush.bf16.msra.mxu0 0
      %1545 = vmatpush.bf16.msra.mxu0 0
      %1546 = vmatpush.bf16.msra.mxu0 0
      %1547 = vmatpush.bf16.msra.mxu0 0
      %1548 = vmatpush.bf16.msra.mxu0 %v1448
      %1549 = vmatpush.bf16.msra.mxu0 %v1446
      %1550 = vmatpush.bf16.msra.mxu0 %v1444
      %1551 = vmatpush.bf16.msra.mxu0 %v1442
      %1552 = vmatmul.bf16.gmra.mxu0 %v1200
      %v1553 = vpop.f32.mrf.mxu0
      %v1554 = vadd.f32 %v1452, %v1553
      %v1555 = vpop.f32.mrf.mxu0
      %v1556 = vadd.f32 %v1452, %v1555
      %1557 = vmatmul.bf16.gmra.mxu0 %v1203
      %v1558 = vpop.f32.mrf.mxu0
      %v1559 = vadd.f32 %v1452, %v1558
      %v1560 = vpop.f32.mrf.mxu0
      %v1561 = vadd.f32 %v1452, %v1560
      %1562 = vmatmul.bf16.gmra.mxu0 %v1206
      %v1563 = vpop.f32.mrf.mxu0
      %v1564 = vadd.f32 %v1452, %v1563
      %v1565 = vpop.f32.mrf.mxu0
      %v1566 = vadd.f32 %v1452, %v1565
      %1567 = vmatmul.bf16.gmra.mxu0 %v1209
      %v1568 = vpop.f32.mrf.mxu0
      %v1569 = vadd.f32 %v1452, %v1568
      %v1570 = vpop.f32.mrf.mxu0
      %v1571 = vadd.f32 %v1452, %v1570
      %1572 = vmatmul.bf16.gmra.mxu0 %v1212
      %v1573 = vpop.f32.mrf.mxu0
      %v1574 = vadd.f32 %v1452, %v1573
      %v1575 = vpop.f32.mrf.mxu0
      %v1576 = vadd.f32 %v1452, %v1575
      %1577 = vmatmul.bf16.gmra.mxu0 %v1215
      %v1578 = vpop.f32.mrf.mxu0
      %v1579 = vadd.f32 %v1452, %v1578
      %v1580 = vpop.f32.mrf.mxu0
      %v1581 = vadd.f32 %v1452, %v1580
      %1582 = vmatmul.bf16.gmra.mxu0 %v1218
      %v1583 = vpop.f32.mrf.mxu0
      %v1584 = vadd.f32 %v1452, %v1583
      %v1585 = vpop.f32.mrf.mxu0
      %v1586 = vadd.f32 %v1452, %v1585
      %1587 = vmatmul.bf16.gmra.mxu0 %v1221
      %v1588 = vpop.f32.mrf.mxu0
      %v1589 = vadd.f32 %v1452, %v1588
      %v1590 = vpop.f32.mrf.mxu0
      %v1591 = vadd.f32 %v1452, %v1590
      %1592 = vmatmul.bf16.gmra.mxu0 %v1224
      %v1593 = vpop.f32.mrf.mxu0
      %v1594 = vadd.f32 %v1452, %v1593
      %v1595 = vpop.f32.mrf.mxu0
      %v1596 = vadd.f32 %v1452, %v1595
      %1597 = vmatmul.bf16.gmra.mxu0 %v1227
      %v1598 = vpop.f32.mrf.mxu0
      %v1599 = vadd.f32 %v1452, %v1598
      %v1600 = vpop.f32.mrf.mxu0
      %v1601 = vadd.f32 %v1452, %v1600
      %1602 = vmatmul.bf16.gmra.mxu0 %v1230
      %v1603 = vpop.f32.mrf.mxu0
      %v1604 = vadd.f32 %v1452, %v1603
      %v1605 = vpop.f32.mrf.mxu0
      %v1606 = vadd.f32 %v1452, %v1605
      %1607 = vmatmul.bf16.gmra.mxu0 %v1233
      %v1608 = vpop.f32.mrf.mxu0
      %v1609 = vadd.f32 %v1452, %v1608
      %v1610 = vpop.f32.mrf.mxu0
      %v1611 = vadd.f32 %v1452, %v1610
      %1612 = vmatmul.bf16.gmra.mxu0 %v1236
      %v1613 = vpop.f32.mrf.mxu0
      %v1614 = vadd.f32 %v1452, %v1613
      %v1615 = vpop.f32.mrf.mxu0
      %v1616 = vadd.f32 %v1452, %v1615
      %1617 = vmatmul.bf16.gmra.mxu0 %v1239
      %v1618 = vpop.f32.mrf.mxu0
      %v1619 = vadd.f32 %v1452, %v1618
      %v1620 = vpop.f32.mrf.mxu0
      %v1621 = vadd.f32 %v1452, %v1620
      %1622 = vmatmul.bf16.gmra.mxu0 %v1242
      %v1623 = vpop.f32.mrf.mxu0
      %v1624 = vadd.f32 %v1452, %v1623
      %v1625 = vpop.f32.mrf.mxu0
      %v1626 = vadd.f32 %v1452, %v1625
      %1627 = vmatmul.bf16.gmra.mxu0 %v1245
      %v1628 = vpop.f32.mrf.mxu0
      %v1629 = vadd.f32 %v1452, %v1628
      %v1630 = vpop.f32.mrf.mxu0
      %v1631 = vadd.f32 %v1452, %v1630
      %1632 = vdwg.mxu0
      %v1633 = vmul.f32 %v1465, %v1465
      %v1634 = vmul.f32 %v1554, %v1554
      %v1635 = vmul.f32 %v1467, %v1467
      %v1636 = vmul.f32 %v1556, %v1556
      %v1637 = vmul.f32 %v1470, %v1470
      %v1638 = vmul.f32 %v1559, %v1559
      %v1639 = vmul.f32 %v1472, %v1472
      %v1640 = vmul.f32 %v1561, %v1561
      %v1641 = vmul.f32 %v1475, %v1475
      %v1642 = vmul.f32 %v1564, %v1564
      %v1643 = vmul.f32 %v1477, %v1477
      %v1644 = vmul.f32 %v1566, %v1566
      %v1645 = vmul.f32 %v1480, %v1480
      %v1646 = vmul.f32 %v1569, %v1569
      %v1647 = vmul.f32 %v1482, %v1482
      %v1648 = vmul.f32 %v1571, %v1571
      %v1649 = vmul.f32 %v1485, %v1485
      %v1650 = vmul.f32 %v1574, %v1574
      %v1651 = vmul.f32 %v1487, %v1487
      %v1652 = vmul.f32 %v1576, %v1576
      %v1653 = vmul.f32 %v1490, %v1490
      %v1654 = vmul.f32 %v1579, %v1579
      %v1655 = vmul.f32 %v1492, %v1492
      %v1656 = vmul.f32 %v1581, %v1581
      %v1657 = vmul.f32 %v1495, %v1495
      %v1658 = vmul.f32 %v1584, %v1584
      %v1659 = vmul.f32 %v1497, %v1497
      %v1660 = vmul.f32 %v1586, %v1586
      %v1661 = vmul.f32 %v1500, %v1500
      %v1662 = vmul.f32 %v1589, %v1589
      %v1663 = vmul.f32 %v1502, %v1502
      %v1664 = vmul.f32 %v1591, %v1591
      %v1665 = vmul.f32 %v1505, %v1505
      %v1666 = vmul.f32 %v1594, %v1594
      %v1667 = vmul.f32 %v1507, %v1507
      %v1668 = vmul.f32 %v1596, %v1596
      %v1669 = vmul.f32 %v1510, %v1510
      %v1670 = vmul.f32 %v1599, %v1599
      %v1671 = vmul.f32 %v1512, %v1512
      %v1672 = vmul.f32 %v1601, %v1601
      %v1673 = vmul.f32 %v1515, %v1515
      %v1674 = vmul.f32 %v1604, %v1604
      %v1675 = vmul.f32 %v1517, %v1517
      %v1676 = vmul.f32 %v1606, %v1606
      %v1677 = vmul.f32 %v1520, %v1520
      %v1678 = vmul.f32 %v1609, %v1609
      %v1679 = vmul.f32 %v1522, %v1522
      %v1680 = vmul.f32 %v1611, %v1611
      %v1681 = vmul.f32 %v1525, %v1525
      %v1682 = vmul.f32 %v1614, %v1614
      %v1683 = vmul.f32 %v1527, %v1527
      %v1684 = vmul.f32 %v1616, %v1616
      %v1685 = vmul.f32 %v1530, %v1530
      %v1686 = vmul.f32 %v1619, %v1619
      %v1687 = vmul.f32 %v1532, %v1532
      %v1688 = vmul.f32 %v1621, %v1621
      %v1689 = vmul.f32 %v1535, %v1535
      %v1690 = vmul.f32 %v1624, %v1624
      %v1691 = vmul.f32 %v1537, %v1537
      %v1692 = vmul.f32 %v1626, %v1626
      %v1693 = vmul.f32 %v1540, %v1540
      %v1694 = vmul.f32 %v1629, %v1629
      %v1695 = vmul.f32 %v1542, %v1542
      %v1696 = vmul.f32 %v1631, %v1631
      %v1697 = vmul.f32 %v1465, %v1633
      %v1698 = vmul.f32 %v1554, %v1634
      %v1699 = vmul.f32 %v1467, %v1635
      %v1700 = vmul.f32 %v1556, %v1636
      %v1701 = vmul.f32 %v1470, %v1637
      %v1702 = vmul.f32 %v1559, %v1638
      %v1703 = vmul.f32 %v1472, %v1639
      %v1704 = vmul.f32 %v1561, %v1640
      %v1705 = vmul.f32 %v1475, %v1641
      %v1706 = vmul.f32 %v1564, %v1642
      %v1707 = vmul.f32 %v1477, %v1643
      %v1708 = vmul.f32 %v1566, %v1644
      %v1709 = vmul.f32 %v1480, %v1645
      %v1710 = vmul.f32 %v1569, %v1646
      %v1711 = vmul.f32 %v1482, %v1647
      %v1712 = vmul.f32 %v1571, %v1648
      %v1713 = vmul.f32 %v1485, %v1649
      %v1714 = vmul.f32 %v1574, %v1650
      %v1715 = vmul.f32 %v1487, %v1651
      %v1716 = vmul.f32 %v1576, %v1652
      %v1717 = vmul.f32 %v1490, %v1653
      %v1718 = vmul.f32 %v1579, %v1654
      %v1719 = vmul.f32 %v1492, %v1655
      %v1720 = vmul.f32 %v1581, %v1656
      %v1721 = vmul.f32 %v1495, %v1657
      %v1722 = vmul.f32 %v1584, %v1658
      %v1723 = vmul.f32 %v1497, %v1659
      %v1724 = vmul.f32 %v1586, %v1660
      %v1725 = vmul.f32 %v1500, %v1661
      %v1726 = vmul.f32 %v1589, %v1662
      %v1727 = vmul.f32 %v1502, %v1663
      %v1728 = vmul.f32 %v1591, %v1664
      %v1729 = vmul.f32 %v1505, %v1665
      %v1730 = vmul.f32 %v1594, %v1666
      %v1731 = vmul.f32 %v1507, %v1667
      %v1732 = vmul.f32 %v1596, %v1668
      %v1733 = vmul.f32 %v1510, %v1669
      %v1734 = vmul.f32 %v1599, %v1670
      %v1735 = vmul.f32 %v1512, %v1671
      %v1736 = vmul.f32 %v1601, %v1672
      %v1737 = vmul.f32 %v1515, %v1673
      %v1738 = vmul.f32 %v1604, %v1674
      %v1739 = vmul.f32 %v1517, %v1675
      %v1740 = vmul.f32 %v1606, %v1676
      %v1741 = vmul.f32 %v1520, %v1677
      %v1742 = vmul.f32 %v1609, %v1678
      %v1743 = vmul.f32 %v1522, %v1679
      %v1744 = vmul.f32 %v1611, %v1680
      %v1745 = vmul.f32 %v1525, %v1681
      %v1746 = vmul.f32 %v1614, %v1682
      %v1747 = vmul.f32 %v1527, %v1683
      %v1748 = vmul.f32 %v1616, %v1684
      %v1749 = vmul.f32 %v1530, %v1685
      %v1750 = vmul.f32 %v1619, %v1686
      %v1751 = vmul.f32 %v1532, %v1687
      %v1752 = vmul.f32 %v1621, %v1688
      %v1753 = vmul.f32 %v1535, %v1689
      %v1754 = vmul.f32 %v1624, %v1690
      %v1755 = vmul.f32 %v1537, %v1691
      %v1756 = vmul.f32 %v1626, %v1692
      %v1757 = vmul.f32 %v1540, %v1693
      %v1758 = vmul.f32 %v1629, %v1694
      %v1759 = vmul.f32 %v1542, %v1695
      %v1760 = vmul.f32 %v1631, %v1696
      %v1761 = vmul.f32 %v1697, 0.044715
      %v1762 = vmul.f32 %v1698, 0.044715
      %v1763 = vmul.f32 %v1699, 0.044715
      %v1764 = vmul.f32 %v1700, 0.044715
      %v1765 = vmul.f32 %v1701, 0.044715
      %v1766 = vmul.f32 %v1702, 0.044715
      %v1767 = vmul.f32 %v1703, 0.044715
      %v1768 = vmul.f32 %v1704, 0.044715
      %v1769 = vmul.f32 %v1705, 0.044715
      %v1770 = vmul.f32 %v1706, 0.044715
      %v1771 = vmul.f32 %v1707, 0.044715
      %v1772 = vmul.f32 %v1708, 0.044715
      %v1773 = vmul.f32 %v1709, 0.044715
      %v1774 = vmul.f32 %v1710, 0.044715
      %v1775 = vmul.f32 %v1711, 0.044715
      %v1776 = vmul.f32 %v1712, 0.044715
      %v1777 = vmul.f32 %v1713, 0.044715
      %v1778 = vmul.f32 %v1714, 0.044715
      %v1779 = vmul.f32 %v1715, 0.044715
      %v1780 = vmul.f32 %v1716, 0.044715
      %v1781 = vmul.f32 %v1717, 0.044715
      %v1782 = vmul.f32 %v1718, 0.044715
      %v1783 = vmul.f32 %v1719, 0.044715
      %v1784 = vmul.f32 %v1720, 0.044715
      %v1785 = vmul.f32 %v1721, 0.044715
      %v1786 = vmul.f32 %v1722, 0.044715
      %v1787 = vmul.f32 %v1723, 0.044715
      %v1788 = vmul.f32 %v1724, 0.044715
      %v1789 = vmul.f32 %v1725, 0.044715
      %v1790 = vmul.f32 %v1726, 0.044715
      %v1791 = vmul.f32 %v1727, 0.044715
      %v1792 = vmul.f32 %v1728, 0.044715
      %v1793 = vmul.f32 %v1729, 0.044715
      %v1794 = vmul.f32 %v1730, 0.044715
      %v1795 = vmul.f32 %v1731, 0.044715
      %v1796 = vmul.f32 %v1732, 0.044715
      %v1797 = vmul.f32 %v1733, 0.044715
      %v1798 = vmul.f32 %v1734, 0.044715
      %v1799 = vmul.f32 %v1735, 0.044715
      %v1800 = vmul.f32 %v1736, 0.044715
      %v1801 = vmul.f32 %v1737, 0.044715
      %v1802 = vmul.f32 %v1738, 0.044715
      %v1803 = vmul.f32 %v1739, 0.044715
      %v1804 = vmul.f32 %v1740, 0.044715
      %v1805 = vmul.f32 %v1741, 0.044715
      %v1806 = vmul.f32 %v1742, 0.044715
      %v1807 = vmul.f32 %v1743, 0.044715
      %v1808 = vmul.f32 %v1744, 0.044715
      %v1809 = vmul.f32 %v1745, 0.044715
      %v1810 = vmul.f32 %v1746, 0.044715
      %v1811 = vmul.f32 %v1747, 0.044715
      %v1812 = vmul.f32 %v1748, 0.044715
      %v1813 = vmul.f32 %v1749, 0.044715
      %v1814 = vmul.f32 %v1750, 0.044715
      %v1815 = vmul.f32 %v1751, 0.044715
      %v1816 = vmul.f32 %v1752, 0.044715
      %v1817 = vmul.f32 %v1753, 0.044715
      %v1818 = vmul.f32 %v1754, 0.044715
      %v1819 = vmul.f32 %v1755, 0.044715
      %v1820 = vmul.f32 %v1756, 0.044715
      %v1821 = vmul.f32 %v1757, 0.044715
      %v1822 = vmul.f32 %v1758, 0.044715
      %v1823 = vmul.f32 %v1759, 0.044715
      %v1824 = vmul.f32 %v1760, 0.044715
      %v1825 = vadd.f32 %v1465, %v1761
      %v1826 = vadd.f32 %v1554, %v1762
      %v1827 = vadd.f32 %v1467, %v1763
      %v1828 = vadd.f32 %v1556, %v1764
      %v1829 = vadd.f32 %v1470, %v1765
      %v1830 = vadd.f32 %v1559, %v1766
      %v1831 = vadd.f32 %v1472, %v1767
      %v1832 = vadd.f32 %v1561, %v1768
      %v1833 = vadd.f32 %v1475, %v1769
      %v1834 = vadd.f32 %v1564, %v1770
      %v1835 = vadd.f32 %v1477, %v1771
      %v1836 = vadd.f32 %v1566, %v1772
      %v1837 = vadd.f32 %v1480, %v1773
      %v1838 = vadd.f32 %v1569, %v1774
      %v1839 = vadd.f32 %v1482, %v1775
      %v1840 = vadd.f32 %v1571, %v1776
      %v1841 = vadd.f32 %v1485, %v1777
      %v1842 = vadd.f32 %v1574, %v1778
      %v1843 = vadd.f32 %v1487, %v1779
      %v1844 = vadd.f32 %v1576, %v1780
      %v1845 = vadd.f32 %v1490, %v1781
      %v1846 = vadd.f32 %v1579, %v1782
      %v1847 = vadd.f32 %v1492, %v1783
      %v1848 = vadd.f32 %v1581, %v1784
      %v1849 = vadd.f32 %v1495, %v1785
      %v1850 = vadd.f32 %v1584, %v1786
      %v1851 = vadd.f32 %v1497, %v1787
      %v1852 = vadd.f32 %v1586, %v1788
      %v1853 = vadd.f32 %v1500, %v1789
      %v1854 = vadd.f32 %v1589, %v1790
      %v1855 = vadd.f32 %v1502, %v1791
      %v1856 = vadd.f32 %v1591, %v1792
      %v1857 = vadd.f32 %v1505, %v1793
      %v1858 = vadd.f32 %v1594, %v1794
      %v1859 = vadd.f32 %v1507, %v1795
      %v1860 = vadd.f32 %v1596, %v1796
      %v1861 = vadd.f32 %v1510, %v1797
      %v1862 = vadd.f32 %v1599, %v1798
      %v1863 = vadd.f32 %v1512, %v1799
      %v1864 = vadd.f32 %v1601, %v1800
      %v1865 = vadd.f32 %v1515, %v1801
      %v1866 = vadd.f32 %v1604, %v1802
      %v1867 = vadd.f32 %v1517, %v1803
      %v1868 = vadd.f32 %v1606, %v1804
      %v1869 = vadd.f32 %v1520, %v1805
      %v1870 = vadd.f32 %v1609, %v1806
      %v1871 = vadd.f32 %v1522, %v1807
      %v1872 = vadd.f32 %v1611, %v1808
      %v1873 = vadd.f32 %v1525, %v1809
      %v1874 = vadd.f32 %v1614, %v1810
      %v1875 = vadd.f32 %v1527, %v1811
      %v1876 = vadd.f32 %v1616, %v1812
      %v1877 = vadd.f32 %v1530, %v1813
      %v1878 = vadd.f32 %v1619, %v1814
      %v1879 = vadd.f32 %v1532, %v1815
      %v1880 = vadd.f32 %v1621, %v1816
      %v1881 = vadd.f32 %v1535, %v1817
      %v1882 = vadd.f32 %v1624, %v1818
      %v1883 = vadd.f32 %v1537, %v1819
      %v1884 = vadd.f32 %v1626, %v1820
      %v1885 = vadd.f32 %v1540, %v1821
      %v1886 = vadd.f32 %v1629, %v1822
      %v1887 = vadd.f32 %v1542, %v1823
      %v1888 = vadd.f32 %v1631, %v1824
      %v1889 = vmul.f32 %v1825, 0.7978846
      %v1890 = vmul.f32 %v1826, 0.7978846
      %v1891 = vmul.f32 %v1827, 0.7978846
      %v1892 = vmul.f32 %v1828, 0.7978846
      %v1893 = vmul.f32 %v1829, 0.7978846
      %v1894 = vmul.f32 %v1830, 0.7978846
      %v1895 = vmul.f32 %v1831, 0.7978846
      %v1896 = vmul.f32 %v1832, 0.7978846
      %v1897 = vmul.f32 %v1833, 0.7978846
      %v1898 = vmul.f32 %v1834, 0.7978846
      %v1899 = vmul.f32 %v1835, 0.7978846
      %v1900 = vmul.f32 %v1836, 0.7978846
      %v1901 = vmul.f32 %v1837, 0.7978846
      %v1902 = vmul.f32 %v1838, 0.7978846
      %v1903 = vmul.f32 %v1839, 0.7978846
      %v1904 = vmul.f32 %v1840, 0.7978846
      %v1905 = vmul.f32 %v1841, 0.7978846
      %v1906 = vmul.f32 %v1842, 0.7978846
      %v1907 = vmul.f32 %v1843, 0.7978846
      %v1908 = vmul.f32 %v1844, 0.7978846
      %v1909 = vmul.f32 %v1845, 0.7978846
      %v1910 = vmul.f32 %v1846, 0.7978846
      %v1911 = vmul.f32 %v1847, 0.7978846
      %v1912 = vmul.f32 %v1848, 0.7978846
      %v1913 = vmul.f32 %v1849, 0.7978846
      %v1914 = vmul.f32 %v1850, 0.7978846
      %v1915 = vmul.f32 %v1851, 0.7978846
      %v1916 = vmul.f32 %v1852, 0.7978846
      %v1917 = vmul.f32 %v1853, 0.7978846
      %v1918 = vmul.f32 %v1854, 0.7978846
      %v1919 = vmul.f32 %v1855, 0.7978846
      %v1920 = vmul.f32 %v1856, 0.7978846
      %v1921 = vmul.f32 %v1857, 0.7978846
      %v1922 = vmul.f32 %v1858, 0.7978846
      %v1923 = vmul.f32 %v1859, 0.7978846
      %v1924 = vmul.f32 %v1860, 0.7978846
      %v1925 = vmul.f32 %v1861, 0.7978846
      %v1926 = vmul.f32 %v1862, 0.7978846
      %v1927 = vmul.f32 %v1863, 0.7978846
      %v1928 = vmul.f32 %v1864, 0.7978846
      %v1929 = vmul.f32 %v1865, 0.7978846
      %v1930 = vmul.f32 %v1866, 0.7978846
      %v1931 = vmul.f32 %v1867, 0.7978846
      %v1932 = vmul.f32 %v1868, 0.7978846
      %v1933 = vmul.f32 %v1869, 0.7978846
      %v1934 = vmul.f32 %v1870, 0.7978846
      %v1935 = vmul.f32 %v1871, 0.7978846
      %v1936 = vmul.f32 %v1872, 0.7978846
      %v1937 = vmul.f32 %v1873, 0.7978846
      %v1938 = vmul.f32 %v1874, 0.7978846
      %v1939 = vmul.f32 %v1875, 0.7978846
      %v1940 = vmul.f32 %v1876, 0.7978846
      %v1941 = vmul.f32 %v1877, 0.7978846
      %v1942 = vmul.f32 %v1878, 0.7978846
      %v1943 = vmul.f32 %v1879, 0.7978846
      %v1944 = vmul.f32 %v1880, 0.7978846
      %v1945 = vmul.f32 %v1881, 0.7978846
      %v1946 = vmul.f32 %v1882, 0.7978846
      %v1947 = vmul.f32 %v1883, 0.7978846
      %v1948 = vmul.f32 %v1884, 0.7978846
      %v1949 = vmul.f32 %v1885, 0.7978846
      %v1950 = vmul.f32 %v1886, 0.7978846
      %v1951 = vmul.f32 %v1887, 0.7978846
      %v1952 = vmul.f32 %v1888, 0.7978846
      %v1953 = vtanh.pop %v1889
      %v1954 = vtanh.pop %v1890
      %v1955 = vtanh.pop %v1891
      %v1956 = vtanh.pop %v1892
      %v1957 = vtanh.pop %v1893
      %v1958 = vtanh.pop %v1894
      %v1959 = vtanh.pop %v1895
      %v1960 = vtanh.pop %v1896
      %v1961 = vtanh.pop %v1897
      %v1962 = vtanh.pop %v1898
      %v1963 = vtanh.pop %v1899
      %v1964 = vtanh.pop %v1900
      %v1965 = vtanh.pop %v1901
      %v1966 = vtanh.pop %v1902
      %v1967 = vtanh.pop %v1903
      %v1968 = vtanh.pop %v1904
      %v1969 = vtanh.pop %v1905
      %v1970 = vtanh.pop %v1906
      %v1971 = vtanh.pop %v1907
      %v1972 = vtanh.pop %v1908
      %v1973 = vtanh.pop %v1909
      %v1974 = vtanh.pop %v1910
      %v1975 = vtanh.pop %v1911
      %v1976 = vtanh.pop %v1912
      %v1977 = vtanh.pop %v1913
      %v1978 = vtanh.pop %v1914
      %v1979 = vtanh.pop %v1915
      %v1980 = vtanh.pop %v1916
      %v1981 = vtanh.pop %v1917
      %v1982 = vtanh.pop %v1918
      %v1983 = vtanh.pop %v1919
      %v1984 = vtanh.pop %v1920
      %v1985 = vtanh.pop %v1921
      %v1986 = vtanh.pop %v1922
      %v1987 = vtanh.pop %v1923
      %v1988 = vtanh.pop %v1924
      %v1989 = vtanh.pop %v1925
      %v1990 = vtanh.pop %v1926
      %v1991 = vtanh.pop %v1927
      %v1992 = vtanh.pop %v1928
      %v1993 = vtanh.pop %v1929
      %v1994 = vtanh.pop %v1930
      %v1995 = vtanh.pop %v1931
      %v1996 = vtanh.pop %v1932
      %v1997 = vtanh.pop %v1933
      %v1998 = vtanh.pop %v1934
      %v1999 = vtanh.pop %v1935
      %v2000 = vtanh.pop %v1936
      %v2001 = vtanh.pop %v1937
      %v2002 = vtanh.pop %v1938
      %v2003 = vtanh.pop %v1939
      %v2004 = vtanh.pop %v1940
      %v2005 = vtanh.pop %v1941
      %v2006 = vtanh.pop %v1942
      %v2007 = vtanh.pop %v1943
      %v2008 = vtanh.pop %v1944
      %v2009 = vtanh.pop %v1945
      %v2010 = vtanh.pop %v1946
      %v2011 = vtanh.pop %v1947
      %v2012 = vtanh.pop %v1948
      %v2013 = vtanh.pop %v1949
      %v2014 = vtanh.pop %v1950
      %v2015 = vtanh.pop %v1951
      %v2016 = vtanh.pop %v1952
      %v2017 = vadd.f32 %v1953, 1.0
      %v2018 = vadd.f32 %v1954, 1.0
      %v2019 = vadd.f32 %v1955, 1.0
      %v2020 = vadd.f32 %v1956, 1.0
      %v2021 = vadd.f32 %v1957, 1.0
      %v2022 = vadd.f32 %v1958, 1.0
      %v2023 = vadd.f32 %v1959, 1.0
      %v2024 = vadd.f32 %v1960, 1.0
      %v2025 = vadd.f32 %v1961, 1.0
      %v2026 = vadd.f32 %v1962, 1.0
      %v2027 = vadd.f32 %v1963, 1.0
      %v2028 = vadd.f32 %v1964, 1.0
      %v2029 = vadd.f32 %v1965, 1.0
      %v2030 = vadd.f32 %v1966, 1.0
      %v2031 = vadd.f32 %v1967, 1.0
      %v2032 = vadd.f32 %v1968, 1.0
      %v2033 = vadd.f32 %v1969, 1.0
      %v2034 = vadd.f32 %v1970, 1.0
      %v2035 = vadd.f32 %v1971, 1.0
      %v2036 = vadd.f32 %v1972, 1.0
      %v2037 = vadd.f32 %v1973, 1.0
      %v2038 = vadd.f32 %v1974, 1.0
      %v2039 = vadd.f32 %v1975, 1.0
      %v2040 = vadd.f32 %v1976, 1.0
      %v2041 = vadd.f32 %v1977, 1.0
      %v2042 = vadd.f32 %v1978, 1.0
      %v2043 = vadd.f32 %v1979, 1.0
      %v2044 = vadd.f32 %v1980, 1.0
      %v2045 = vadd.f32 %v1981, 1.0
      %v2046 = vadd.f32 %v1982, 1.0
      %v2047 = vadd.f32 %v1983, 1.0
      %v2048 = vadd.f32 %v1984, 1.0
      %v2049 = vadd.f32 %v1985, 1.0
      %v2050 = vadd.f32 %v1986, 1.0
      %v2051 = vadd.f32 %v1987, 1.0
      %v2052 = vadd.f32 %v1988, 1.0
      %v2053 = vadd.f32 %v1989, 1.0
      %v2054 = vadd.f32 %v1990, 1.0
      %v2055 = vadd.f32 %v1991, 1.0
      %v2056 = vadd.f32 %v1992, 1.0
      %v2057 = vadd.f32 %v1993, 1.0
      %v2058 = vadd.f32 %v1994, 1.0
      %v2059 = vadd.f32 %v1995, 1.0
      %v2060 = vadd.f32 %v1996, 1.0
      %v2061 = vadd.f32 %v1997, 1.0
      %v2062 = vadd.f32 %v1998, 1.0
      %v2063 = vadd.f32 %v1999, 1.0
      %v2064 = vadd.f32 %v2000, 1.0
      %v2065 = vadd.f32 %v2001, 1.0
      %v2066 = vadd.f32 %v2002, 1.0
      %v2067 = vadd.f32 %v2003, 1.0
      %v2068 = vadd.f32 %v2004, 1.0
      %v2069 = vadd.f32 %v2005, 1.0
      %v2070 = vadd.f32 %v2006, 1.0
      %v2071 = vadd.f32 %v2007, 1.0
      %v2072 = vadd.f32 %v2008, 1.0
      %v2073 = vadd.f32 %v2009, 1.0
      %v2074 = vadd.f32 %v2010, 1.0
      %v2075 = vadd.f32 %v2011, 1.0
      %v2076 = vadd.f32 %v2012, 1.0
      %v2077 = vadd.f32 %v2013, 1.0
      %v2078 = vadd.f32 %v2014, 1.0
      %v2079 = vadd.f32 %v2015, 1.0
      %v2080 = vadd.f32 %v2016, 1.0
      %v2081 = vmul.f32 %v2017, 0.5
      %v2082 = vmul.f32 %v2018, 0.5
      %v2083 = vmul.f32 %v2019, 0.5
      %v2084 = vmul.f32 %v2020, 0.5
      %v2085 = vmul.f32 %v2021, 0.5
      %v2086 = vmul.f32 %v2022, 0.5
      %v2087 = vmul.f32 %v2023, 0.5
      %v2088 = vmul.f32 %v2024, 0.5
      %v2089 = vmul.f32 %v2025, 0.5
      %v2090 = vmul.f32 %v2026, 0.5
      %v2091 = vmul.f32 %v2027, 0.5
      %v2092 = vmul.f32 %v2028, 0.5
      %v2093 = vmul.f32 %v2029, 0.5
      %v2094 = vmul.f32 %v2030, 0.5
      %v2095 = vmul.f32 %v2031, 0.5
      %v2096 = vmul.f32 %v2032, 0.5
      %v2097 = vmul.f32 %v2033, 0.5
      %v2098 = vmul.f32 %v2034, 0.5
      %v2099 = vmul.f32 %v2035, 0.5
      %v2100 = vmul.f32 %v2036, 0.5
      %v2101 = vmul.f32 %v2037, 0.5
      %v2102 = vmul.f32 %v2038, 0.5
      %v2103 = vmul.f32 %v2039, 0.5
      %v2104 = vmul.f32 %v2040, 0.5
      %v2105 = vmul.f32 %v2041, 0.5
      %v2106 = vmul.f32 %v2042, 0.5
      %v2107 = vmul.f32 %v2043, 0.5
      %v2108 = vmul.f32 %v2044, 0.5
      %v2109 = vmul.f32 %v2045, 0.5
      %v2110 = vmul.f32 %v2046, 0.5
      %v2111 = vmul.f32 %v2047, 0.5
      %v2112 = vmul.f32 %v2048, 0.5
      %v2113 = vmul.f32 %v2049, 0.5
      %v2114 = vmul.f32 %v2050, 0.5
      %v2115 = vmul.f32 %v2051, 0.5
      %v2116 = vmul.f32 %v2052, 0.5
      %v2117 = vmul.f32 %v2053, 0.5
      %v2118 = vmul.f32 %v2054, 0.5
      %v2119 = vmul.f32 %v2055, 0.5
      %v2120 = vmul.f32 %v2056, 0.5
      %v2121 = vmul.f32 %v2057, 0.5
      %v2122 = vmul.f32 %v2058, 0.5
      %v2123 = vmul.f32 %v2059, 0.5
      %v2124 = vmul.f32 %v2060, 0.5
      %v2125 = vmul.f32 %v2061, 0.5
      %v2126 = vmul.f32 %v2062, 0.5
      %v2127 = vmul.f32 %v2063, 0.5
      %v2128 = vmul.f32 %v2064, 0.5
      %v2129 = vmul.f32 %v2065, 0.5
      %v2130 = vmul.f32 %v2066, 0.5
      %v2131 = vmul.f32 %v2067, 0.5
      %v2132 = vmul.f32 %v2068, 0.5
      %v2133 = vmul.f32 %v2069, 0.5
      %v2134 = vmul.f32 %v2070, 0.5
      %v2135 = vmul.f32 %v2071, 0.5
      %v2136 = vmul.f32 %v2072, 0.5
      %v2137 = vmul.f32 %v2073, 0.5
      %v2138 = vmul.f32 %v2074, 0.5
      %v2139 = vmul.f32 %v2075, 0.5
      %v2140 = vmul.f32 %v2076, 0.5
      %v2141 = vmul.f32 %v2077, 0.5
      %v2142 = vmul.f32 %v2078, 0.5
      %v2143 = vmul.f32 %v2079, 0.5
      %v2144 = vmul.f32 %v2080, 0.5
      %v2145 = vmul.f32 %v1465, %v2081
      %v2146 = vmul.f32 %v1554, %v2082
      %v2147 = vmul.f32 %v1467, %v2083
      %v2148 = vmul.f32 %v1556, %v2084
      %v2149 = vmul.f32 %v1470, %v2085
      %v2150 = vmul.f32 %v1559, %v2086
      %v2151 = vmul.f32 %v1472, %v2087
      %v2152 = vmul.f32 %v1561, %v2088
      %v2153 = vmul.f32 %v1475, %v2089
      %v2154 = vmul.f32 %v1564, %v2090
      %v2155 = vmul.f32 %v1477, %v2091
      %v2156 = vmul.f32 %v1566, %v2092
      %v2157 = vmul.f32 %v1480, %v2093
      %v2158 = vmul.f32 %v1569, %v2094
      %v2159 = vmul.f32 %v1482, %v2095
      %v2160 = vmul.f32 %v1571, %v2096
      %v2161 = vmul.f32 %v1485, %v2097
      %v2162 = vmul.f32 %v1574, %v2098
      %v2163 = vmul.f32 %v1487, %v2099
      %v2164 = vmul.f32 %v1576, %v2100
      %v2165 = vmul.f32 %v1490, %v2101
      %v2166 = vmul.f32 %v1579, %v2102
      %v2167 = vmul.f32 %v1492, %v2103
      %v2168 = vmul.f32 %v1581, %v2104
      %v2169 = vmul.f32 %v1495, %v2105
      %v2170 = vmul.f32 %v1584, %v2106
      %v2171 = vmul.f32 %v1497, %v2107
      %v2172 = vmul.f32 %v1586, %v2108
      %v2173 = vmul.f32 %v1500, %v2109
      %v2174 = vmul.f32 %v1589, %v2110
      %v2175 = vmul.f32 %v1502, %v2111
      %v2176 = vmul.f32 %v1591, %v2112
      %v2177 = vmul.f32 %v1505, %v2113
      %v2178 = vmul.f32 %v1594, %v2114
      %v2179 = vmul.f32 %v1507, %v2115
      %v2180 = vmul.f32 %v1596, %v2116
      %v2181 = vmul.f32 %v1510, %v2117
      %v2182 = vmul.f32 %v1599, %v2118
      %v2183 = vmul.f32 %v1512, %v2119
      %v2184 = vmul.f32 %v1601, %v2120
      %v2185 = vmul.f32 %v1515, %v2121
      %v2186 = vmul.f32 %v1604, %v2122
      %v2187 = vmul.f32 %v1517, %v2123
      %v2188 = vmul.f32 %v1606, %v2124
      %v2189 = vmul.f32 %v1520, %v2125
      %v2190 = vmul.f32 %v1609, %v2126
      %v2191 = vmul.f32 %v1522, %v2127
      %v2192 = vmul.f32 %v1611, %v2128
      %v2193 = vmul.f32 %v1525, %v2129
      %v2194 = vmul.f32 %v1614, %v2130
      %v2195 = vmul.f32 %v1527, %v2131
      %v2196 = vmul.f32 %v1616, %v2132
      %v2197 = vmul.f32 %v1530, %v2133
      %v2198 = vmul.f32 %v1619, %v2134
      %v2199 = vmul.f32 %v1532, %v2135
      %v2200 = vmul.f32 %v1621, %v2136
      %v2201 = vmul.f32 %v1535, %v2137
      %v2202 = vmul.f32 %v1624, %v2138
      %v2203 = vmul.f32 %v1537, %v2139
      %v2204 = vmul.f32 %v1626, %v2140
      %v2205 = vmul.f32 %v1540, %v2141
      %v2206 = vmul.f32 %v1629, %v2142
      %v2207 = vmul.f32 %v1542, %v2143
      %v2208 = vmul.f32 %v1631, %v2144
      %v2209 = vmul.f32 %v1257, %v2145
      %v2210 = vmul.f32 %v1346, %v2146
      %v2211 = vmul.f32 %v1259, %v2147
      %v2212 = vmul.f32 %v1348, %v2148
      %v2213 = vmul.f32 %v1262, %v2149
      %v2214 = vmul.f32 %v1351, %v2150
      %v2215 = vmul.f32 %v1264, %v2151
      %v2216 = vmul.f32 %v1353, %v2152
      %v2217 = vmul.f32 %v1267, %v2153
      %v2218 = vmul.f32 %v1356, %v2154
      %v2219 = vmul.f32 %v1269, %v2155
      %v2220 = vmul.f32 %v1358, %v2156
      %v2221 = vmul.f32 %v1272, %v2157
      %v2222 = vmul.f32 %v1361, %v2158
      %v2223 = vmul.f32 %v1274, %v2159
      %v2224 = vmul.f32 %v1363, %v2160
      %v2225 = vmul.f32 %v1277, %v2161
      %v2226 = vmul.f32 %v1366, %v2162
      %v2227 = vmul.f32 %v1279, %v2163
      %v2228 = vmul.f32 %v1368, %v2164
      %v2229 = vmul.f32 %v1282, %v2165
      %v2230 = vmul.f32 %v1371, %v2166
      %v2231 = vmul.f32 %v1284, %v2167
      %v2232 = vmul.f32 %v1373, %v2168
      %v2233 = vmul.f32 %v1287, %v2169
      %v2234 = vmul.f32 %v1376, %v2170
      %v2235 = vmul.f32 %v1289, %v2171
      %v2236 = vmul.f32 %v1378, %v2172
      %v2237 = vmul.f32 %v1292, %v2173
      %v2238 = vmul.f32 %v1381, %v2174
      %v2239 = vmul.f32 %v1294, %v2175
      %v2240 = vmul.f32 %v1383, %v2176
      %v2241 = vmul.f32 %v1297, %v2177
      %v2242 = vmul.f32 %v1386, %v2178
      %v2243 = vmul.f32 %v1299, %v2179
      %v2244 = vmul.f32 %v1388, %v2180
      %v2245 = vmul.f32 %v1302, %v2181
      %v2246 = vmul.f32 %v1391, %v2182
      %v2247 = vmul.f32 %v1304, %v2183
      %v2248 = vmul.f32 %v1393, %v2184
      %v2249 = vmul.f32 %v1307, %v2185
      %v2250 = vmul.f32 %v1396, %v2186
      %v2251 = vmul.f32 %v1309, %v2187
      %v2252 = vmul.f32 %v1398, %v2188
      %v2253 = vmul.f32 %v1312, %v2189
      %v2254 = vmul.f32 %v1401, %v2190
      %v2255 = vmul.f32 %v1314, %v2191
      %v2256 = vmul.f32 %v1403, %v2192
      %v2257 = vmul.f32 %v1317, %v2193
      %v2258 = vmul.f32 %v1406, %v2194
      %v2259 = vmul.f32 %v1319, %v2195
      %v2260 = vmul.f32 %v1408, %v2196
      %v2261 = vmul.f32 %v1322, %v2197
      %v2262 = vmul.f32 %v1411, %v2198
      %v2263 = vmul.f32 %v1324, %v2199
      %v2264 = vmul.f32 %v1413, %v2200
      %v2265 = vmul.f32 %v1327, %v2201
      %v2266 = vmul.f32 %v1416, %v2202
      %v2267 = vmul.f32 %v1329, %v2203
      %v2268 = vmul.f32 %v1418, %v2204
      %v2269 = vmul.f32 %v1332, %v2205
      %v2270 = vmul.f32 %v1421, %v2206
      %v2271 = vmul.f32 %v1334, %v2207
      %v2272 = vmul.f32 %v1423, %v2208
      %v2273 = vpack.c.bf16 %v2211, %v2209
      %v2274 = vpack.c.bf16 %v2212, %v2210
      %v2275 = vpack.c.bf16 %v2215, %v2213
      %v2276 = vpack.c.bf16 %v2216, %v2214
      %v2277 = vpack.c.bf16 %v2219, %v2217
      %v2278 = vpack.c.bf16 %v2220, %v2218
      %v2279 = vpack.c.bf16 %v2223, %v2221
      %v2280 = vpack.c.bf16 %v2224, %v2222
      %v2281 = vpack.c.bf16 %v2227, %v2225
      %v2282 = vpack.c.bf16 %v2228, %v2226
      %v2283 = vpack.c.bf16 %v2231, %v2229
      %v2284 = vpack.c.bf16 %v2232, %v2230
      %v2285 = vpack.c.bf16 %v2235, %v2233
      %v2286 = vpack.c.bf16 %v2236, %v2234
      %v2287 = vpack.c.bf16 %v2239, %v2237
      %v2288 = vpack.c.bf16 %v2240, %v2238
      %v2289 = vpack.c.bf16 %v2243, %v2241
      %v2290 = vpack.c.bf16 %v2244, %v2242
      %v2291 = vpack.c.bf16 %v2247, %v2245
      %v2292 = vpack.c.bf16 %v2248, %v2246
      %v2293 = vpack.c.bf16 %v2251, %v2249
      %v2294 = vpack.c.bf16 %v2252, %v2250
      %v2295 = vpack.c.bf16 %v2255, %v2253
      %v2296 = vpack.c.bf16 %v2256, %v2254
      %v2297 = vpack.c.bf16 %v2259, %v2257
      %v2298 = vpack.c.bf16 %v2260, %v2258
      %v2299 = vpack.c.bf16 %v2263, %v2261
      %v2300 = vpack.c.bf16 %v2264, %v2262
      %v2301 = vpack.c.bf16 %v2267, %v2265
      %v2302 = vpack.c.bf16 %v2268, %v2266
      %v2303 = vpack.c.bf16 %v2271, %v2269
      %v2304 = vpack.c.bf16 %v2272, %v2270
      %v2305 = vld [vmem:[%s7] sm:$0xff]
      %v2306 = vld [vmem:[%s7 + $0x8] sm:$0xff]
      %v2307 = vld [vmem:[%s7 + $0x10] sm:$0xff]
      %v2308 = vld [vmem:[%s7 + $0x18] sm:$0xff]
      %v2309 = vld [vmem:[%s7 + $0x20] sm:$0xff]
      %v2310 = vld [vmem:[%s7 + $0x28] sm:$0xff]
      %v2311 = vld [vmem:[%s7 + $0x30] sm:$0xff]
      %v2312 = vld [vmem:[%s7 + $0x38] sm:$0xff]
      %v2313 = vld [vmem:[%s7 + $0x40] sm:$0xff]
      %v2314 = vld [vmem:[%s7 + $0x48] sm:$0xff]
      %v2315 = vld [vmem:[%s7 + $0x50] sm:$0xff]
      %v2316 = vld [vmem:[%s7 + $0x58] sm:$0xff]
      %v2317 = vld [vmem:[%s7 + $0x60] sm:$0xff]
      %v2318 = vld [vmem:[%s7 + $0x68] sm:$0xff]
      %v2319 = vld [vmem:[%s7 + $0x70] sm:$0xff]
      %v2320 = vld [vmem:[%s7 + $0x78] sm:$0xff]
      %v2321 = vld [vmem:[%s7 + $0x80] sm:$0xff]
      %v2322 = vld [vmem:[%s7 + $0x88] sm:$0xff]
      %v2323 = vld [vmem:[%s7 + $0x90] sm:$0xff]
      %v2324 = vld [vmem:[%s7 + $0x98] sm:$0xff]
      %v2325 = vld [vmem:[%s7 + $0xa0] sm:$0xff]
      %v2326 = vld [vmem:[%s7 + $0xa8] sm:$0xff]
      %v2327 = vld [vmem:[%s7 + $0xb0] sm:$0xff]
      %v2328 = vld [vmem:[%s7 + $0xb8] sm:$0xff]
      %v2329 = vld [vmem:[%s7 + $0xc0] sm:$0xff]
      %v2330 = vld [vmem:[%s7 + $0xc8] sm:$0xff]
      %v2331 = vld [vmem:[%s7 + $0xd0] sm:$0xff]
      %v2332 = vld [vmem:[%s7 + $0xd8] sm:$0xff]
      %v2333 = vld [vmem:[%s7 + $0xe0] sm:$0xff]
      %v2334 = vld [vmem:[%s7 + $0xe8] sm:$0xff]
      %v2335 = vld [vmem:[%s7 + $0xf0] sm:$0xff]
      %v2336 = vld [vmem:[%s7 + $0xf8] sm:$0xff]
      %v2337 = vpack.c.bf16 %v2306, %v2305
      %v2338 = vpack.c.bf16 %v2308, %v2307
      %v2339 = vpack.c.bf16 %v2310, %v2309
      %v2340 = vpack.c.bf16 %v2312, %v2311
      %v2341 = vpack.c.bf16 %v2314, %v2313
      %v2342 = vpack.c.bf16 %v2316, %v2315
      %v2343 = vpack.c.bf16 %v2318, %v2317
      %v2344 = vpack.c.bf16 %v2320, %v2319
      %v2345 = vpack.c.bf16 %v2322, %v2321
      %v2346 = vpack.c.bf16 %v2324, %v2323
      %v2347 = vpack.c.bf16 %v2326, %v2325
      %v2348 = vpack.c.bf16 %v2328, %v2327
      %v2349 = vpack.c.bf16 %v2330, %v2329
      %v2350 = vpack.c.bf16 %v2332, %v2331
      %v2351 = vpack.c.bf16 %v2334, %v2333
      %v2352 = vpack.c.bf16 %v2336, %v2335
      %v2353 = vld [vmem:[%s8] sm:$0x1]
      %v2355 = vperm.slane %v2353, 0
      %2357 = vmatpush.bf16.msra.mxu0 %v2344
      %2358 = vmatpush.bf16.msra.mxu0 %v2343
      %2359 = vmatpush.bf16.msra.mxu0 %v2342
      %2360 = vmatpush.bf16.msra.mxu0 %v2341
      %2361 = vmatpush.bf16.msra.mxu0 %v2340
      %2362 = vmatpush.bf16.msra.mxu0 %v2339
      %2363 = vmatpush.bf16.msra.mxu0 %v2338
      %2364 = vmatpush.bf16.msra.mxu0 %v2337
      %2365 = vmatmul.bf16.gmra.mxu0 %v2273
      %v2366 = vpop.f32.mrf.mxu0
      %v2367 = vadd.f32 %v2355, %v2366
      %v2368 = vpop.f32.mrf.mxu0
      %v2369 = vadd.f32 %v2355, %v2368
      %2370 = vmatmul.bf16.gmra.mxu0 %v2275
      %v2371 = vpop.f32.mrf.mxu0
      %v2372 = vadd.f32 %v2355, %v2371
      %v2373 = vpop.f32.mrf.mxu0
      %v2374 = vadd.f32 %v2355, %v2373
      %2375 = vmatmul.bf16.gmra.mxu0 %v2277
      %v2376 = vpop.f32.mrf.mxu0
      %v2377 = vadd.f32 %v2355, %v2376
      %v2378 = vpop.f32.mrf.mxu0
      %v2379 = vadd.f32 %v2355, %v2378
      %2380 = vmatmul.bf16.gmra.mxu0 %v2279
      %v2381 = vpop.f32.mrf.mxu0
      %v2382 = vadd.f32 %v2355, %v2381
      %v2383 = vpop.f32.mrf.mxu0
      %v2384 = vadd.f32 %v2355, %v2383
      %2385 = vmatmul.bf16.gmra.mxu0 %v2281
      %v2386 = vpop.f32.mrf.mxu0
      %v2387 = vadd.f32 %v2355, %v2386
      %v2388 = vpop.f32.mrf.mxu0
      %v2389 = vadd.f32 %v2355, %v2388
      %2390 = vmatmul.bf16.gmra.mxu0 %v2283
      %v2391 = vpop.f32.mrf.mxu0
      %v2392 = vadd.f32 %v2355, %v2391
      %v2393 = vpop.f32.mrf.mxu0
      %v2394 = vadd.f32 %v2355, %v2393
      %2395 = vmatmul.bf16.gmra.mxu0 %v2285
      %v2396 = vpop.f32.mrf.mxu0
      %v2397 = vadd.f32 %v2355, %v2396
      %v2398 = vpop.f32.mrf.mxu0
      %v2399 = vadd.f32 %v2355, %v2398
      %2400 = vmatmul.bf16.gmra.mxu0 %v2287
      %v2401 = vpop.f32.mrf.mxu0
      %v2402 = vadd.f32 %v2355, %v2401
      %v2403 = vpop.f32.mrf.mxu0
      %v2404 = vadd.f32 %v2355, %v2403
      %2405 = vmatmul.bf16.gmra.mxu0 %v2289
      %v2406 = vpop.f32.mrf.mxu0
      %v2407 = vadd.f32 %v2355, %v2406
      %v2408 = vpop.f32.mrf.mxu0
      %v2409 = vadd.f32 %v2355, %v2408
      %2410 = vmatmul.bf16.gmra.mxu0 %v2291
      %v2411 = vpop.f32.mrf.mxu0
      %v2412 = vadd.f32 %v2355, %v2411
      %v2413 = vpop.f32.mrf.mxu0
      %v2414 = vadd.f32 %v2355, %v2413
      %2415 = vmatmul.bf16.gmra.mxu0 %v2293
      %v2416 = vpop.f32.mrf.mxu0
      %v2417 = vadd.f32 %v2355, %v2416
      %v2418 = vpop.f32.mrf.mxu0
      %v2419 = vadd.f32 %v2355, %v2418
      %2420 = vmatmul.bf16.gmra.mxu0 %v2295
      %v2421 = vpop.f32.mrf.mxu0
      %v2422 = vadd.f32 %v2355, %v2421
      %v2423 = vpop.f32.mrf.mxu0
      %v2424 = vadd.f32 %v2355, %v2423
      %2425 = vmatmul.bf16.gmra.mxu0 %v2297
      %v2426 = vpop.f32.mrf.mxu0
      %v2427 = vadd.f32 %v2355, %v2426
      %v2428 = vpop.f32.mrf.mxu0
      %v2429 = vadd.f32 %v2355, %v2428
      %2430 = vmatmul.bf16.gmra.mxu0 %v2299
      %v2431 = vpop.f32.mrf.mxu0
      %v2432 = vadd.f32 %v2355, %v2431
      %v2433 = vpop.f32.mrf.mxu0
      %v2434 = vadd.f32 %v2355, %v2433
      %2435 = vmatmul.bf16.gmra.mxu0 %v2301
      %v2436 = vpop.f32.mrf.mxu0
      %v2437 = vadd.f32 %v2355, %v2436
      %v2438 = vpop.f32.mrf.mxu0
      %v2439 = vadd.f32 %v2355, %v2438
      %2440 = vmatmul.bf16.gmra.mxu0 %v2303
      %v2441 = vpop.f32.mrf.mxu0
      %v2442 = vadd.f32 %v2355, %v2441
      %v2443 = vpop.f32.mrf.mxu0
      %v2444 = vadd.f32 %v2355, %v2443
      %2445 = vdwg.mxu0
      %2446 = vmatpush.bf16.msra.mxu0 %v2352
      %2447 = vmatpush.bf16.msra.mxu0 %v2351
      %2448 = vmatpush.bf16.msra.mxu0 %v2350
      %2449 = vmatpush.bf16.msra.mxu0 %v2349
      %2450 = vmatpush.bf16.msra.mxu0 %v2348
      %2451 = vmatpush.bf16.msra.mxu0 %v2347
      %2452 = vmatpush.bf16.msra.mxu0 %v2346
      %2453 = vmatpush.bf16.msra.mxu0 %v2345
      %2454 = vmatmul.bf16.gmra.mxu0 %v2274
      %v2455 = vpop.f32.mrf.mxu0
      %v2456 = vadd.f32 %v2367, %v2455
      %v2457 = vpop.f32.mrf.mxu0
      %v2458 = vadd.f32 %v2369, %v2457
      %2459 = vmatmul.bf16.gmra.mxu0 %v2276
      %v2460 = vpop.f32.mrf.mxu0
      %v2461 = vadd.f32 %v2372, %v2460
      %v2462 = vpop.f32.mrf.mxu0
      %v2463 = vadd.f32 %v2374, %v2462
      %2464 = vmatmul.bf16.gmra.mxu0 %v2278
      %v2465 = vpop.f32.mrf.mxu0
      %v2466 = vadd.f32 %v2377, %v2465
      %v2467 = vpop.f32.mrf.mxu0
      %v2468 = vadd.f32 %v2379, %v2467
      %2469 = vmatmul.bf16.gmra.mxu0 %v2280
      %v2470 = vpop.f32.mrf.mxu0
      %v2471 = vadd.f32 %v2382, %v2470
      %v2472 = vpop.f32.mrf.mxu0
      %v2473 = vadd.f32 %v2384, %v2472
      %2474 = vmatmul.bf16.gmra.mxu0 %v2282
      %v2475 = vpop.f32.mrf.mxu0
      %v2476 = vadd.f32 %v2387, %v2475
      %v2477 = vpop.f32.mrf.mxu0
      %v2478 = vadd.f32 %v2389, %v2477
      %2479 = vmatmul.bf16.gmra.mxu0 %v2284
      %v2480 = vpop.f32.mrf.mxu0
      %v2481 = vadd.f32 %v2392, %v2480
      %v2482 = vpop.f32.mrf.mxu0
      %v2483 = vadd.f32 %v2394, %v2482
      %2484 = vmatmul.bf16.gmra.mxu0 %v2286
      %v2485 = vpop.f32.mrf.mxu0
      %v2486 = vadd.f32 %v2397, %v2485
      %v2487 = vpop.f32.mrf.mxu0
      %v2488 = vadd.f32 %v2399, %v2487
      %2489 = vmatmul.bf16.gmra.mxu0 %v2288
      %v2490 = vpop.f32.mrf.mxu0
      %v2491 = vadd.f32 %v2402, %v2490
      %v2492 = vpop.f32.mrf.mxu0
      %v2493 = vadd.f32 %v2404, %v2492
      %2494 = vmatmul.bf16.gmra.mxu0 %v2290
      %v2495 = vpop.f32.mrf.mxu0
      %v2496 = vadd.f32 %v2407, %v2495
      %v2497 = vpop.f32.mrf.mxu0
      %v2498 = vadd.f32 %v2409, %v2497
      %2499 = vmatmul.bf16.gmra.mxu0 %v2292
      %v2500 = vpop.f32.mrf.mxu0
      %v2501 = vadd.f32 %v2412, %v2500
      %v2502 = vpop.f32.mrf.mxu0
      %v2503 = vadd.f32 %v2414, %v2502
      %2504 = vmatmul.bf16.gmra.mxu0 %v2294
      %v2505 = vpop.f32.mrf.mxu0
      %v2506 = vadd.f32 %v2417, %v2505
      %v2507 = vpop.f32.mrf.mxu0
      %v2508 = vadd.f32 %v2419, %v2507
      %2509 = vmatmul.bf16.gmra.mxu0 %v2296
      %v2510 = vpop.f32.mrf.mxu0
      %v2511 = vadd.f32 %v2422, %v2510
      %v2512 = vpop.f32.mrf.mxu0
      %v2513 = vadd.f32 %v2424, %v2512
      %2514 = vmatmul.bf16.gmra.mxu0 %v2298
      %v2515 = vpop.f32.mrf.mxu0
      %v2516 = vadd.f32 %v2427, %v2515
      %v2517 = vpop.f32.mrf.mxu0
      %v2518 = vadd.f32 %v2429, %v2517
      %2519 = vmatmul.bf16.gmra.mxu0 %v2300
      %v2520 = vpop.f32.mrf.mxu0
      %v2521 = vadd.f32 %v2432, %v2520
      %v2522 = vpop.f32.mrf.mxu0
      %v2523 = vadd.f32 %v2434, %v2522
      %2524 = vmatmul.bf16.gmra.mxu0 %v2302
      %v2525 = vpop.f32.mrf.mxu0
      %v2526 = vadd.f32 %v2437, %v2525
      %v2527 = vpop.f32.mrf.mxu0
      %v2528 = vadd.f32 %v2439, %v2527
      %2529 = vmatmul.bf16.gmra.mxu0 %v2304
      %v2530 = vpop.f32.mrf.mxu0
      %v2531 = vadd.f32 %v2442, %v2530
      %v2532 = vpop.f32.mrf.mxu0
      %v2533 = vadd.f32 %v2444, %v2532
      %2534 = vdwg.mxu0
      %v2535 = vadd.f32 %v2456, %v337
      %v2536 = vadd.f32 %v2458, %v338
      %v2537 = vadd.f32 %v2461, %v339
      %v2538 = vadd.f32 %v2463, %v340
      %v2539 = vadd.f32 %v2466, %v341
      %v2540 = vadd.f32 %v2468, %v342
      %v2541 = vadd.f32 %v2471, %v343
      %v2542 = vadd.f32 %v2473, %v344
      %v2543 = vadd.f32 %v2476, %v345
      %v2544 = vadd.f32 %v2478, %v346
      %v2545 = vadd.f32 %v2481, %v347
      %v2546 = vadd.f32 %v2483, %v348
      %v2547 = vadd.f32 %v2486, %v349
      %v2548 = vadd.f32 %v2488, %v350
      %v2549 = vadd.f32 %v2491, %v351
      %v2550 = vadd.f32 %v2493, %v352
      %v2551 = vadd.f32 %v2496, %v353
      %v2552 = vadd.f32 %v2498, %v354
      %v2553 = vadd.f32 %v2501, %v355
      %v2554 = vadd.f32 %v2503, %v356
      %v2555 = vadd.f32 %v2506, %v357
      %v2556 = vadd.f32 %v2508, %v358
      %v2557 = vadd.f32 %v2511, %v359
      %v2558 = vadd.f32 %v2513, %v360
      %v2559 = vadd.f32 %v2516, %v361
      %v2560 = vadd.f32 %v2518, %v362
      %v2561 = vadd.f32 %v2521, %v363
      %v2562 = vadd.f32 %v2523, %v364
      %v2563 = vadd.f32 %v2526, %v365
      %v2564 = vadd.f32 %v2528, %v366
      %v2565 = vadd.f32 %v2531, %v367
      %v2566 = vadd.f32 %v2533, %v368
      %2567 = vst.msk [vmem:[%s334] sm:$0xff] %vm369, %v2535
      %2568 = vst.msk [vmem:[%s334 + $0x8] sm:$0xff] %vm369, %v2536
      %2569 = vst.msk [vmem:[%s334 + $0x10] sm:$0xff] %vm369, %v2537
      %2570 = vst.msk [vmem:[%s334 + $0x18] sm:$0xff] %vm369, %v2538
      %2571 = vst.msk [vmem:[%s334 + $0x20] sm:$0xff] %vm369, %v2539
      %2572 = vst.msk [vmem:[%s334 + $0x28] sm:$0xff] %vm369, %v2540
      %2573 = vst.msk [vmem:[%s334 + $0x30] sm:$0xff] %vm369, %v2541
      %2574 = vst.msk [vmem:[%s334 + $0x38] sm:$0xff] %vm369, %v2542
      %2575 = vst.msk [vmem:[%s334 + $0x40] sm:$0xff] %vm369, %v2543
      %2576 = vst.msk [vmem:[%s334 + $0x48] sm:$0xff] %vm369, %v2544
      %2577 = vst.msk [vmem:[%s334 + $0x50] sm:$0xff] %vm369, %v2545
      %2578 = vst.msk [vmem:[%s334 + $0x58] sm:$0xff] %vm369, %v2546
      %2579 = vst.msk [vmem:[%s334 + $0x60] sm:$0xff] %vm369, %v2547
      %2580 = vst.msk [vmem:[%s334 + $0x68] sm:$0xff] %vm369, %v2548
      %2581 = vst.msk [vmem:[%s334 + $0x70] sm:$0xff] %vm369, %v2549
      %2582 = vst.msk [vmem:[%s334 + $0x78] sm:$0xff] %vm369, %v2550
      %2583 = vst.msk [vmem:[%s334 + $0x80] sm:$0xff] %vm369, %v2551
      %2584 = vst.msk [vmem:[%s334 + $0x88] sm:$0xff] %vm369, %v2552
      %2585 = vst.msk [vmem:[%s334 + $0x90] sm:$0xff] %vm369, %v2553
      %2586 = vst.msk [vmem:[%s334 + $0x98] sm:$0xff] %vm369, %v2554
      %2587 = vst.msk [vmem:[%s334 + $0xa0] sm:$0xff] %vm369, %v2555
      %2588 = vst.msk [vmem:[%s334 + $0xa8] sm:$0xff] %vm369, %v2556
      %2589 = vst.msk [vmem:[%s334 + $0xb0] sm:$0xff] %vm369, %v2557
      %2590 = vst.msk [vmem:[%s334 + $0xb8] sm:$0xff] %vm369, %v2558
      %2591 = vst.msk [vmem:[%s334 + $0xc0] sm:$0xff] %vm369, %v2559
      %2592 = vst.msk [vmem:[%s334 + $0xc8] sm:$0xff] %vm369, %v2560
      %2593 = vst.msk [vmem:[%s334 + $0xd0] sm:$0xff] %vm369, %v2561
      %2594 = vst.msk [vmem:[%s334 + $0xd8] sm:$0xff] %vm369, %v2562
      %2595 = vst.msk [vmem:[%s334 + $0xe0] sm:$0xff] %vm369, %v2563
      %2596 = vst.msk [vmem:[%s334 + $0xe8] sm:$0xff] %vm369, %v2564
      %2597 = vst.msk [vmem:[%s334 + $0xf0] sm:$0xff] %vm369, %v2565
      %2598 = vst.msk [vmem:[%s334 + $0xf8] sm:$0xff] %vm369, %v2566
      %s2599 = smul.u32 32, %s20
      %p2600 = scmp.lt.s32.totalorder %s2599, 63
      %s2601 = scalar_select %p2600, %s2599, 63
      %s2602 = smul.addr %s2601, 8
      %s2603 = scalar_lea.vmem %s9, %s2602
      // Predicated region
      $region57: #{spatial_transformer_forward.16} parent=55 // pred_check
        %p2604 = pneg %p232
      $region58: #{spatial_transformer_forward.16} parent=55 // pred_check_branch
        %2606 = sbr.rel (%p2604) target = $region60
      $region59: #{spatial_transformer_forward.16} parent=55 // pred_region
        %s2607 = smul.u32 32, %s20
      $region60: #{spatial_transformer_forward.16} parent=55 // pred_fallthru
        _
    $region56: #{spatial_transformer_forward.16} parent=5 // pred_fallthru
      _
    %p2608 = scmp.le.s32.totalorder 2, %s15
    // Predicated region
    $region61: #{spatial_transformer_forward.16} parent=5 // pred_check
      %p2609 = pneg %p2608
    $region62: #{spatial_transformer_forward.16} parent=5 // pred_check_branch
      %2611 = sbr.rel (%p2609) target = $region64
    $region63: #{spatial_transformer_forward.16} parent=5 // pred_region
      %s2612 = ssub.s32 %s15, 2
      // Predicated region
      $region65: #{spatial_transformer_forward.16} parent=63 // pred_check
        %p2613 = pneg %p238
      $region66: #{spatial_transformer_forward.16} parent=63 // pred_check_branch
        %2615 = sbr.rel (%p2613) target = $region68
      $region67: #{spatial_transformer_forward.16} parent=63 // pred_region
        %s2616 = smul.u32 32, %s21
        %p2617 = scmp.lt.s32.totalorder %s2616, 63
        %s2618 = scalar_select %p2617, %s2616, 63
        %s2619 = smul.addr %s2618, 8
        %s2620 = scalar_lea.vmem %s9, %s2619
      $region68: #{spatial_transformer_forward.16} parent=63 // pred_fallthru
        _
    $region64: #{spatial_transformer_forward.16} parent=5 // pred_fallthru
      _
  $region6: #{spatial_transformer_forward.16} parent=0 // loop_footer
    %s19 = sadd.s32 1, %s15
  $region7: #{spatial_transformer_forward.16} parent=0 // loop_footer_branch
    %14 = sbr.rel target = $region3
  $region8: #{spatial_transformer_forward.16} parent=0 // loop_exit
    _

</llo_original>
